<compile_context>
chip_gen: v6e
topology: v6e:2x2x1
jax: 0.10.0
libtpu: 0.0.40
codegen_flags: <defaults>
</compile_context>

<pallas_src>
import functools
import math

import jax
import jax.numpy as jnp
from jax.experimental import pallas as pl
from jax.experimental.pallas import tpu as pltpu

LN_EPS = 1e-5


# ----------------------------- in-kernel helpers (traced inside kernel bodies) -----------------------------

def _layer_norm(h, gamma, beta):
    """LayerNorm over the last dim. gamma/beta: (1, D)."""
    mu = jnp.mean(h, axis=-1, keepdims=True)
    var = jnp.mean(jnp.square(h - mu), axis=-1, keepdims=True)
    return (h - mu) * jax.lax.rsqrt(var + LN_EPS) * gamma + beta


def _sdpa_heads_on_lanes(q, k, v, num_heads):
    """softmax(q k^T / sqrt(dh)) v for head_dim == 1 (d_model == num_heads).

    Heads stay on the lane axis the whole way: per-head scores are an outer product
    (Sq, Sk, H) built with broadcasts, softmax reduces over the key (sublane) axis, and
    the PV contraction is the matching sublane reduction.  No per-head grid, no
    transposes, no narrow masked stores.
    """
    _, d = q.shape
    head_dim = d // num_heads
    assert head_dim == 1, "OptimatedTransformer requires d_model == num_heads"
    scale = 1.0 / math.sqrt(head_dim)
    if scale != 1.0:                       # statically folds away for head_dim == 1
        q = q * scale
    s = q[:, None, :] * k[None, :, :]                       # (Sq, Sk, H)
    m = jnp.max(s, axis=1, keepdims=True)                   # (Sq, 1, H)
    e = jnp.exp(s - m)
    denom = jnp.sum(e, axis=1, keepdims=True)               # (Sq, 1, H)
    p = e * pl.reciprocal(denom, approx=True)               # EUP vrcp; VALU stays free
    return jnp.sum(p * v[None, :, :], axis=1)               # (Sq, H) == (Sq, D)


def _erf_f32(z):
    # TODO(synk): switch to lax.erf once its Mosaic lowering is confirmed; this A&S 7.1.26
    # rational approximation is float32-accurate (max abs err ~1.5e-7) and uses only
    # guaranteed-lowering ops (abs / div / exp / where).
    az = jnp.abs(z)
    t = 1.0 / (1.0 + 0.3275911 * az)
    poly = ((((1.061405429 * t - 1.453152027) * t + 1.421413741) * t
             - 0.284496736) * t + 0.254829592) * t
    e = 1.0 - poly * jnp.exp(-az * az)
    return jnp.where(z < 0.0, -e, e)


def _gelu_exact(x):
    """Exact (erf) GELU — matches torch.nn.functional.gelu default."""
    return 0.5 * x * (1.0 + _erf_f32(x * 0.7071067811865476))


# ----------------------------- fused Pallas kernels -----------------------------

def _encoder_layer_kernel(x_ref, wqkv_ref, bqkv_ref, wo_ref, bo_ref, g1_ref, b1_ref,
                          wf1_ref, bf1_ref, wf2_ref, bf2_ref, g2_ref, b2_ref,
                          o_ref, *, num_heads):
    """One full post-norm TransformerEncoderLayer for one batch element."""
    x = x_ref[0]                                             # (S, D)
    d = x.shape[-1]

    # --- self-attention: single fused QKV matmul on the MXU ---
    qkv = jnp.dot(x, wqkv_ref[...], preferred_element_type=jnp.float32) + bqkv_ref[...]
    a = _sdpa_heads_on_lanes(qkv[:, :d], qkv[:, d:2 * d], qkv[:, 2 * d:], num_heads)
    # --- out-proj + residual + LayerNorm fused ---
    a = jnp.dot(a, wo_ref[...], preferred_element_type=jnp.float32) + bo_ref[...]
    h1 = _layer_norm(x + a, g1_ref[...], b1_ref[...])

    # --- FFN (ReLU) + residual + LayerNorm fused ---
    f = jnp.maximum(
        jnp.dot(h1, wf1_ref[...], preferred_element_type=jnp.float32) + bf1_ref[...], 0.0)
    f = jnp.dot(f, wf2_ref[...], preferred_element_type=jnp.float32) + bf2_ref[...]
    o_ref[0] = _layer_norm(h1 + f, g2_ref[...], b2_ref[...])


def _decoder_layer_kernel(x_ref, mem_ref,
                          sa_wqkv_ref, sa_bqkv_ref, sa_wo_ref, sa_bo_ref, g1_ref, b1_ref,
                          ca_wq_ref, ca_bq_ref, ca_wkv_ref, ca_bkv_ref, ca_wo_ref, ca_bo_ref,
                          g2_ref, b2_ref,
                          ff_w1_ref, ff_b1_ref, ff_w2_ref, ff_b2_ref, g3_ref, b3_ref,
                          o_ref, *, num_heads):
    """One full post-norm TransformerDecoderLayer for one batch element."""
    x = x_ref[0]                                             # (S, D)
    mem = mem_ref[0]                                         # (Sm, D)
    d = x.shape[-1]

    # --- self-attention block ---
    qkv = jnp.dot(x, sa_wqkv_ref[...], preferred_element_type=jnp.float32) + sa_bqkv_ref[...]
    a = _sdpa_heads_on_lanes(qkv[:, :d], qkv[:, d:2 * d], qkv[:, 2 * d:], num_heads)
    a = jnp.dot(a, sa_wo_ref[...], preferred_element_type=jnp.float32) + sa_bo_ref[...]
    h1 = _layer_norm(x + a, g1_ref[...], b1_ref[...])

    # --- cross-attention block: Q from decoder stream, fused KV matmul from memory ---
    qc = jnp.dot(h1, ca_wq_ref[...], preferred_element_type=jnp.float32) + ca_bq_ref[...]
    kv = jnp.dot(mem, ca_wkv_ref[...], preferred_element_type=jnp.float32) + ca_bkv_ref[...]
    a2 = _sdpa_heads_on_lanes(qc, kv[:, :d], kv[:, d:], num_heads)
    a2 = jnp.dot(a2, ca_wo_ref[...], preferred_element_type=jnp.float32) + ca_bo_ref[...]
    h2 = _layer_norm(h1 + a2, g2_ref[...], b2_ref[...])

    # --- FFN block ---
    f = jnp.maximum(
        jnp.dot(h2, ff_w1_ref[...], preferred_element_type=jnp.float32) + ff_b1_ref[...], 0.0)
    f = jnp.dot(f, ff_w2_ref[...], preferred_element_type=jnp.float32) + ff_b2_ref[...]
    o_ref[0] = _layer_norm(h2 + f, g3_ref[...], b3_ref[...])


def _opt_mha_kernel(q_ref, kv_ref, wq_ref, bq_ref, wkv_ref, bkv_ref,
                    wo_ref, bo_ref, optw_ref, o_ref, *, num_heads):
    """OptimatedMultiheadAttention(query=tgt, key=value=src) fully fused."""
    qx = q_ref[0]                                            # (Sq, D)
    kvx = kv_ref[0]                                          # (Sk, D)
    d = qx.shape[-1]
    q = jnp.dot(qx, wq_ref[...], preferred_element_type=jnp.float32) + bq_ref[...]
    kv = jnp.dot(kvx, wkv_ref[...], preferred_element_type=jnp.float32) + bkv_ref[...]
    a = _sdpa_heads_on_lanes(q, kv[:, :d], kv[:, d:], num_heads)
    y = jnp.dot(a, wo_ref[...], preferred_element_type=jnp.float32) + bo_ref[...]
    # (1,1,num_heads) broadcast over (B,S,d_model) — valid because d_model == num_heads.
    o_ref[0] = y * optw_ref[...]


def _adaptive_kernel(x_ref, w1_ref, b1_ref, w2_ref, b2_ref, mix_ref, o_ref):
    """OptimatedAdaptiveLayer: linear -> exact GELU -> linear -> convex mix, all fused."""
    x = x_ref[...]                                           # (N, D)
    h = jnp.dot(x, w1_ref[...], preferred_element_type=jnp.float32) + b1_ref[...]
    h = _gelu_exact(h)
    y = jnp.dot(h, w2_ref[...], preferred_element_type=jnp.float32) + b2_ref[...]
    w = mix_ref[...]                                         # (1, 1)
    o_ref[...] = x * w + y * (1.0 - w)


def _output_kernel(x_ref, w_ref, b_ref, conf_ref, o_ref):
    """OptimatedOutputLayer: logits = (x @ W + b) * confidence (vocab-tiled)."""
    y = jnp.dot(x_ref[...], w_ref[...], preferred_element_type=jnp.float32) + b_ref[...]
    o_ref[...] = y * conf_ref[...]


# ----------------------------- pallas_call wrappers -----------------------------

def _replicated_spec(arr):
    """Whole-array block whose block index never changes across the grid, so the (tiny)
    weight stays resident in VMEM instead of being re-DMAed per grid step."""
    ndim = arr.ndim
    return pl.BlockSpec(arr.shape, lambda *_: (0,) * ndim)


def encoder_layer(x, p, num_heads):
    bsz, s, d = x.shape
    a = p["attn"]
    weights = (a["w_qkv"], a["b_qkv"], a["w_out"], a["b_out"],
               p["ln1_g"], p["ln1_b"],
               p["ff_w1"], p["ff_b1"], p["ff_w2"], p["ff_b2"],
               p["ln2_g"], p["ln2_b"])
    return pl.pallas_call(
        functools.partial(_encoder_layer_kernel, num_heads=num_heads),
        grid=(bsz,),
        in_specs=[pl.BlockSpec((1, s, d), lambda b: (b, 0, 0))]
                 + [_replicated_spec(w) for w in weights],
        out_specs=pl.BlockSpec((1, s, d), lambda b: (b, 0, 0)),
        out_shape=jax.ShapeDtypeStruct((bsz, s, d), jnp.float32),
        compiler_params=pltpu.CompilerParams(dimension_semantics=("parallel",)),
    )(x, *weights)


def decoder_layer(x, memory, p, num_heads):
    bsz, s, d = x.shape
    sm = memory.shape[1]
    sa, ca = p["self_attn"], p["cross_attn"]
    weights = (sa["w_qkv"], sa["b_qkv"], sa["w_out"], sa["b_out"], p["ln1_g"], p["ln1_b"],
               ca["w_q"], ca["b_q"], ca["w_kv"], ca["b_kv"], ca["w_out"], ca["b_out"],
               p["ln2_g"], p["ln2_b"],
               p["ff_w1"], p["ff_b1"], p["ff_w2"], p["ff_b2"], p["ln3_g"], p["ln3_b"])
    return pl.pallas_call(
        functools.partial(_decoder_layer_kernel, num_heads=num_heads),
        grid=(bsz,),
        in_specs=[pl.BlockSpec((1, s, d), lambda b: (b, 0, 0)),
                  pl.BlockSpec((1, sm, d), lambda b: (b, 0, 0))]
                 + [_replicated_spec(w) for w in weights],
        out_specs=pl.BlockSpec((1, s, d), lambda b: (b, 0, 0)),
        out_shape=jax.ShapeDtypeStruct((bsz, s, d), jnp.float32),
        compiler_params=pltpu.CompilerParams(dimension_semantics=("parallel",)),
    )(x, memory, *weights)


def optimated_multihead_attention(query, key_value, p, num_heads):
    bsz, sq, d = query.shape
    sk = key_value.shape[1]
    weights = (p["w_q"], p["b_q"], p["w_kv"], p["b_kv"], p["w_out"], p["b_out"],
               p["opt_weights"])
    return pl.pallas_call(
        functools.partial(_opt_mha_kernel, num_heads=num_heads),
        grid=(bsz,),
        in_specs=[pl.BlockSpec((1, sq, d), lambda b: (b, 0, 0)),
                  pl.BlockSpec((1, sk, d), lambda b: (b, 0, 0))]
                 + [_replicated_spec(w) for w in weights],
        out_specs=pl.BlockSpec((1, sq, d), lambda b: (b, 0, 0)),
        out_shape=jax.ShapeDtypeStruct((bsz, sq, d), jnp.float32),
        compiler_params=pltpu.CompilerParams(dimension_semantics=("parallel",)),
    )(query, key_value, *weights)


def adaptive_layer(x, p):
    bsz, s, d = x.shape
    x2d = x.reshape(bsz * s, d)
    y = pl.pallas_call(
        _adaptive_kernel,
        out_shape=jax.ShapeDtypeStruct((bsz * s, d), jnp.float32),
    )(x2d, p["w1"], p["b1"], p["w2"], p["b2"], p["opt_w"])
    return y.reshape(bsz, s, d)


def output_layer(x, p):
    bsz, s, d = x.shape
    x2d = x.reshape(bsz * s, d)
    n = x2d.shape[0]
    v = p["w"].shape[1]
    # Lane-dense vocab tiles (multiple of 128) once the vocab grows; full vocab otherwise.
    tile_v = 512 if (v > 512 and v % 512 == 0) else v
    logits = pl.pallas_call(
        _output_kernel,
        grid=(v // tile_v,),
        in_specs=[pl.BlockSpec((n, d), lambda j: (0, 0)),
                  pl.BlockSpec((d, tile_v), lambda j: (0, j)),
                  pl.BlockSpec((1, tile_v), lambda j: (0, j)),
                  pl.BlockSpec((1, 1), lambda j: (0, 0))],
        out_specs=pl.BlockSpec((n, tile_v), lambda j: (0, j)),
        out_shape=jax.ShapeDtypeStruct((n, v), jnp.float32),
        compiler_params=pltpu.CompilerParams(dimension_semantics=("parallel",)),
    )(x2d, p["w"], p["b"], p["confidence"])
    return logits.reshape(bsz, s, v)


# ----------------------------- positional encoding (host-side buffer, XLA add) -----------------------------

def make_positional_encoding(d_model, max_len, opt_w):
    position = jnp.arange(max_len, dtype=jnp.float32)[:, None]                    # (L, 1)
    div_term = jnp.exp(jnp.arange(0, d_model, 2, dtype=jnp.float32)
                       * (-math.log(10000.0) / d_model))
    decay = jnp.exp(-position / 10000.0)
    pe = jnp.zeros((max_len, d_model), jnp.float32)
    # The reference bakes opt_w / (1 - opt_w) into the buffer at init time ...
    pe = pe.at[:, 0::2].set(jnp.sin(position * div_term) * decay * opt_w)
    pe = pe.at[:, 1::2].set(jnp.cos(position * div_term) * decay * (1.0 - opt_w))
    return pe[None]                                                               # (1, L, D)


def positional_encoding(x, pe, opt_w):
    # ... and multiplies the slice by opt_w again in forward — faithful to the module.
    return x + pe[:, : x.shape[1], :] * opt_w


# ----------------------------- full forward -----------------------------

def optimated_transformer_forward(params, src_ids, tgt_ids, *, num_heads):
    emb = params["embedding"]
    pe, pe_w = params["pe"], params["pe_opt_w"]

    src = jnp.take(emb, src_ids, axis=0)                    # embedding gather (XLA glue)
    src = positional_encoding(src, pe, pe_w)
    for lp in params["encoder_layers"]:
        src = encoder_layer(src, lp, num_heads)

    tgt = jnp.take(emb, tgt_ids, axis=0)
    tgt = positional_encoding(tgt, pe, pe_w)
    tgt = adaptive_layer(tgt, params["adaptive"])
    tgt = optimated_multihead_attention(tgt, src, params["opt_mha"], num_heads)

    out = tgt
    for lp in params["decoder_layers"]:
        out = decoder_layer(out, src, lp, num_heads)

    return output_layer(out, params["output"])


# ----------------------------- deterministic synthetic parameters -----------------------------

def init_params(key, vocab_size, d_model, num_heads, num_layers, d_ff, max_len):
    assert d_model % num_heads == 0
    # OptimatedMultiheadAttention's (1,1,num_heads) broadcast over (B,S,d_model) only
    # type-checks when d_model == num_heads (head_dim == 1), as in the PyTorch module.
    assert d_model == num_heads
    it = iter(jax.random.split(key, 256))

    def dense_t(din, dout, scale=0.05):
        # PyTorch stores nn.Linear weight as (dout, din); pre-transpose ONCE here so the
        # kernels stream weights in the MXU-friendly (K=din, N=dout) layout.
        return (scale * jax.random.normal(next(it), (dout, din), jnp.float32)).T

    def bias_row(d):
        return 0.01 * jax.random.normal(next(it), (1, d), jnp.float32)

    def self_attn():
        return dict(w_qkv=dense_t(d_model, 3 * d_model), b_qkv=bias_row(3 * d_model),
                    w_out=dense_t(d_model, d_model), b_out=bias_row(d_model))

    def cross_attn():
        w_in_t = dense_t(d_model, 3 * d_model)               # (D, 3D) == in_proj_weight.T
        b_in = bias_row(3 * d_model)
        return dict(w_q=w_in_t[:, :d_model], b_q=b_in[:, :d_model],
                    w_kv=w_in_t[:, d_model:], b_kv=b_in[:, d_model:],
                    w_out=dense_t(d_model, d_model), b_out=bias_row(d_model))

    def ln():
        return jnp.ones((1, d_model), jnp.float32), jnp.zeros((1, d_model), jnp.float32)

    def enc_layer():
        g1, b1 = ln()
        g2, b2 = ln()
        return dict(attn=self_attn(), ln1_g=g1, ln1_b=b1, ln2_g=g2, ln2_b=b2,
                    ff_w1=dense_t(d_model, d_ff), ff_b1=bias_row(d_ff),
                    ff_w2=dense_t(d_ff, d_model), ff_b2=bias_row(d_model))

    def dec_layer():
        g1, b1 = ln()
        g2, b2 = ln()
        g3, b3 = ln()
        return dict(self_attn=self_attn(), cross_attn=cross_attn(),
                    ln1_g=g1, ln1_b=b1, ln2_g=g2, ln2_b=b2, ln3_g=g3, ln3_b=b3,
                    ff_w1=dense_t(d_model, d_ff), ff_b1=bias_row(d_ff),
                    ff_w2=dense_t(d_ff, d_model), ff_b2=bias_row(d_model))

    return dict(
        embedding=0.1 * jax.random.normal(next(it), (vocab_size, d_model), jnp.float32),
        pe=make_positional_encoding(d_model, max_len, 0.5),
        pe_opt_w=jnp.asarray(0.5, jnp.float32),
        adaptive=dict(w1=dense_t(d_model, 2 * d_model), b1=bias_row(2 * d_model),
                      w2=dense_t(2 * d_model, d_model), b2=bias_row(d_model),
                      opt_w=jnp.full((1, 1), 0.5, jnp.float32)),
        encoder_layers=[enc_layer() for _ in range(num_layers)],
        decoder_layers=[dec_layer() for _ in range(num_layers)],
        opt_mha=dict(**cross_attn(),
                     opt_weights=jnp.full((1, num_heads), 1.0 / num_heads, jnp.float32)),
        output=dict(w=dense_t(d_model, vocab_size), b=bias_row(vocab_size),
                    confidence=jnp.full((1, 1), 0.75, jnp.float32)),
    )


# ----------------------------- main -----------------------------

if __name__ == "__main__":
    VOCAB, D_MODEL, NUM_HEADS, NUM_LAYERS, D_FF, MAX_LEN = 64, 8, 8, 2, 32, 100
    B, S = 2, 8

    key = jax.random.PRNGKey(0)
    pkey, skey, tkey = jax.random.split(key, 3)
    params = init_params(pkey, VOCAB, D_MODEL, NUM_HEADS, NUM_LAYERS, D_FF, MAX_LEN)

    src = jax.random.randint(skey, (B, S), 0, VOCAB, dtype=jnp.int32)
    tgt = jax.random.randint(tkey, (B, S), 0, VOCAB, dtype=jnp.int32)

    fwd = jax.jit(functools.partial(optimated_transformer_forward, num_heads=NUM_HEADS))
    logits = fwd(params, src, tgt)
    jax.block_until_ready(logits)

    assert logits.shape == (B, S, VOCAB), logits.shape
    assert logits.dtype == jnp.float32
    assert bool(jnp.all(jnp.isfinite(logits)))
    print("KERNEL_OK")
</pallas_src>

<mosaic_0001>
module attributes {stable_mosaic.version = 11 : i64} {
  func.func @_opt_mha_kernel(%arg0: i32, %arg1: memref<1x8x8xf32, #tpu.memory_space<vmem>>, %arg2: memref<1x8x8xf32, #tpu.memory_space<vmem>>, %arg3: memref<8x8xf32, #tpu.memory_space<vmem>>, %arg4: memref<1x8xf32, #tpu.memory_space<vmem>>, %arg5: memref<8x16xf32, #tpu.memory_space<vmem>>, %arg6: memref<1x16xf32, #tpu.memory_space<vmem>>, %arg7: memref<8x8xf32, #tpu.memory_space<vmem>>, %arg8: memref<1x8xf32, #tpu.memory_space<vmem>>, %arg9: memref<1x8xf32, #tpu.memory_space<vmem>>, %arg10: memref<1x8x8xf32, #tpu.memory_space<vmem>>) attributes {dimension_semantics = [#tpu.dimension_semantics<parallel>], iteration_bounds = array<i64: 2>, scalar_prefetch = 0 : i64, scratch_operands = 0 : i64, tpu.core_type = #tpu.core_type<tc>, window_params = [{transform_indices = @transform_0, window_bounds = array<i64: 1, 8, 8>}, {transform_indices = @transform_1, window_bounds = array<i64: 1, 8, 8>}, {pipeline_mode = #tpu.pipeline_mode<synchronous>, transform_indices = @transform_2, window_bounds = array<i64: 8, 8>}, {pipeline_mode = #tpu.pipeline_mode<synchronous>, transform_indices = @transform_3, window_bounds = array<i64: 1, 8>}, {pipeline_mode = #tpu.pipeline_mode<synchronous>, transform_indices = @transform_4, window_bounds = array<i64: 8, 16>}, {pipeline_mode = #tpu.pipeline_mode<synchronous>, transform_indices = @transform_5, window_bounds = array<i64: 1, 16>}, {pipeline_mode = #tpu.pipeline_mode<synchronous>, transform_indices = @transform_6, window_bounds = array<i64: 8, 8>}, {pipeline_mode = #tpu.pipeline_mode<synchronous>, transform_indices = @transform_7, window_bounds = array<i64: 1, 8>}, {pipeline_mode = #tpu.pipeline_mode<synchronous>, transform_indices = @transform_8, window_bounds = array<i64: 1, 8>}, {transform_indices = @transform_9, window_bounds = array<i64: 1, 8, 8>}]} {
    %c0 = arith.constant 0 : index
    %c0_0 = arith.constant 0 : index
    %c0_1 = arith.constant 0 : index
    %0 = vector.load %arg1[%c0, %c0_0, %c0_1] : memref<1x8x8xf32, #tpu.memory_space<vmem>>, vector<1x8x8xf32>
    %1 = vector.shape_cast %0 : vector<1x8x8xf32> to vector<8x8xf32>
    %c0_2 = arith.constant 0 : index
    %c0_3 = arith.constant 0 : index
    %c0_4 = arith.constant 0 : index
    %2 = vector.load %arg2[%c0_2, %c0_3, %c0_4] : memref<1x8x8xf32, #tpu.memory_space<vmem>>, vector<1x8x8xf32>
    %3 = vector.shape_cast %2 : vector<1x8x8xf32> to vector<8x8xf32>
    %c0_5 = arith.constant 0 : index
    %c0_6 = arith.constant 0 : index
    %4 = vector.load %arg3[%c0_5, %c0_6] : memref<8x8xf32, #tpu.memory_space<vmem>>, vector<8x8xf32>
    %cst = arith.constant dense<0.000000e+00> : vector<8x8xf32>
    %5 = tpu.matmul %1, %4, %cst {dimension_numbers = #tpu.dot_dimension_numbers<[1], [0], [0], [1], [0, 0, 1, 1], [], []>} : vector<8x8xf32>, vector<8x8xf32>, vector<8x8xf32> -> vector<8x8xf32>
    %c0_7 = arith.constant 0 : index
    %c0_8 = arith.constant 0 : index
    %6 = vector.load %arg4[%c0_7, %c0_8] : memref<1x8xf32, #tpu.memory_space<vmem>>, vector<1x8xf32>
    %7 = vector.broadcast %6 : vector<1x8xf32> to vector<8x8xf32>
    %8 = arith.addf %5, %7 : vector<8x8xf32>
    %c0_9 = arith.constant 0 : index
    %c0_10 = arith.constant 0 : index
    %9 = vector.load %arg5[%c0_9, %c0_10] : memref<8x16xf32, #tpu.memory_space<vmem>>, vector<8x16xf32>
    %cst_11 = arith.constant dense<0.000000e+00> : vector<8x16xf32>
    %10 = tpu.matmul %3, %9, %cst_11 {dimension_numbers = #tpu.dot_dimension_numbers<[1], [0], [0], [1], [0, 0, 1, 1], [], []>} : vector<8x8xf32>, vector<8x16xf32>, vector<8x16xf32> -> vector<8x16xf32>
    %c0_12 = arith.constant 0 : index
    %c0_13 = arith.constant 0 : index
    %11 = vector.load %arg6[%c0_12, %c0_13] : memref<1x16xf32, #tpu.memory_space<vmem>>, vector<1x16xf32>
    %12 = vector.broadcast %11 : vector<1x16xf32> to vector<8x16xf32>
    %13 = arith.addf %10, %12 : vector<8x16xf32>
    %14 = vector.extract_strided_slice %13 {offsets = [0, 0], sizes = [8, 8], strides = [1, 1]} : vector<8x16xf32> to vector<8x8xf32>
    %15 = vector.extract_strided_slice %13 {offsets = [0, 8], sizes = [8, 8], strides = [1, 1]} : vector<8x16xf32> to vector<8x8xf32>
    %16 = vector.shape_cast %8 : vector<8x8xf32> to vector<8x1x8xf32>
    %17 = vector.shape_cast %14 : vector<8x8xf32> to vector<1x8x8xf32>
    %18 = vector.broadcast %16 : vector<8x1x8xf32> to vector<8x8x8xf32>
    %19 = vector.broadcast %17 : vector<1x8x8xf32> to vector<8x8x8xf32>
    %20 = arith.mulf %18, %19 : vector<8x8x8xf32>
    %cst_14 = arith.constant dense<0xFF800000> : vector<8x8xf32>
    %21 = vector.multi_reduction <maximumf>, %20, %cst_14 [1] : vector<8x8x8xf32> to vector<8x8xf32>
    %22 = vector.shape_cast %21 : vector<8x8xf32> to vector<8x1x8xf32>
    %23 = vector.broadcast %22 : vector<8x1x8xf32> to vector<8x8x8xf32>
    %24 = arith.subf %20, %23 : vector<8x8x8xf32>
    %25 = math.exp %24 : vector<8x8x8xf32>
    %cst_15 = arith.constant dense<0.000000e+00> : vector<8x8xf32>
    %26 = vector.multi_reduction <add>, %25, %cst_15 [1] : vector<8x8x8xf32> to vector<8x8xf32>
    %27 = vector.shape_cast %26 : vector<8x8xf32> to vector<8x1x8xf32>
    %28 = tpu.reciprocal %27 {approx = true} : vector<8x1x8xf32> -> vector<8x1x8xf32>
    %29 = vector.broadcast %28 : vector<8x1x8xf32> to vector<8x8x8xf32>
    %30 = arith.mulf %25, %29 : vector<8x8x8xf32>
    %31 = vector.shape_cast %15 : vector<8x8xf32> to vector<1x8x8xf32>
    %32 = vector.broadcast %31 : vector<1x8x8xf32> to vector<8x8x8xf32>
    %33 = arith.mulf %30, %32 : vector<8x8x8xf32>
    %cst_16 = arith.constant dense<0.000000e+00> : vector<8x8xf32>
    %34 = vector.multi_reduction <add>, %33, %cst_16 [1] : vector<8x8x8xf32> to vector<8x8xf32>
    %c0_17 = arith.constant 0 : index
    %c0_18 = arith.constant 0 : index
    %35 = vector.load %arg7[%c0_17, %c0_18] : memref<8x8xf32, #tpu.memory_space<vmem>>, vector<8x8xf32>
    %cst_19 = arith.constant dense<0.000000e+00> : vector<8x8xf32>
    %36 = tpu.matmul %34, %35, %cst_19 {dimension_numbers = #tpu.dot_dimension_numbers<[1], [0], [0], [1], [0, 0, 1, 1], [], []>} : vector<8x8xf32>, vector<8x8xf32>, vector<8x8xf32> -> vector<8x8xf32>
    %c0_20 = arith.constant 0 : index
    %c0_21 = arith.constant 0 : index
    %37 = vector.load %arg8[%c0_20, %c0_21] : memref<1x8xf32, #tpu.memory_space<vmem>>, vector<1x8xf32>
    %38 = vector.broadcast %37 : vector<1x8xf32> to vector<8x8xf32>
    %39 = arith.addf %36, %38 : vector<8x8xf32>
    %c0_22 = arith.constant 0 : index
    %c0_23 = arith.constant 0 : index
    %40 = vector.load %arg9[%c0_22, %c0_23] : memref<1x8xf32, #tpu.memory_space<vmem>>, vector<1x8xf32>
    %41 = vector.broadcast %40 : vector<1x8xf32> to vector<8x8xf32>
    %42 = arith.mulf %39, %41 : vector<8x8xf32>
    %c0_24 = arith.constant 0 : index
    %c0_25 = arith.constant 0 : index
    %c0_26 = arith.constant 0 : index
    %43 = vector.load %arg10[%c0_24, %c0_25, %c0_26] : memref<1x8x8xf32, #tpu.memory_space<vmem>>, vector<1x8x8xf32>
    %44 = vector.shape_cast %43 : vector<1x8x8xf32> to vector<8x8xf32>
    %45 = vector.shape_cast %42 : vector<8x8xf32> to vector<1x8x8xf32>
    tpu.vector_store %arg10[%c0_24, %c0_25, %c0_26], %45 {strides = array<i32>} : memref<1x8x8xf32, #tpu.memory_space<vmem>>, vector<1x8x8xf32>,
    return
  }
  func.func @transform_0(%arg0: i32) -> (i32, i32, i32) {
    %c0_i32 = arith.constant 0 : i32
    %c0_i32_0 = arith.constant 0 : i32
    %c0_i32_1 = arith.constant 0 : i32
    return %arg0, %c0_i32, %c0_i32_0 : i32, i32, i32
  }
  func.func @transform_1(%arg0: i32) -> (i32, i32, i32) {
    %c0_i32 = arith.constant 0 : i32
    %c0_i32_0 = arith.constant 0 : i32
    %c0_i32_1 = arith.constant 0 : i32
    return %arg0, %c0_i32, %c0_i32_0 : i32, i32, i32
  }
  func.func @transform_2(%arg0: i32) -> (i32, i32) {
    %c0_i32 = arith.constant 0 : i32
    %c0_i32_0 = arith.constant 0 : i32
    %c0_i32_1 = arith.constant 0 : i32
    return %c0_i32, %c0_i32_0 : i32, i32
  }
  func.func @transform_3(%arg0: i32) -> (i32, i32) {
    %c0_i32 = arith.constant 0 : i32
    %c0_i32_0 = arith.constant 0 : i32
    %c0_i32_1 = arith.constant 0 : i32
    return %c0_i32, %c0_i32_0 : i32, i32
  }
  func.func @transform_4(%arg0: i32) -> (i32, i32) {
    %c0_i32 = arith.constant 0 : i32
    %c0_i32_0 = arith.constant 0 : i32
    %c0_i32_1 = arith.constant 0 : i32
    return %c0_i32, %c0_i32_0 : i32, i32
  }
  func.func @transform_5(%arg0: i32) -> (i32, i32) {
    %c0_i32 = arith.constant 0 : i32
    %c0_i32_0 = arith.constant 0 : i32
    %c0_i32_1 = arith.constant 0 : i32
    return %c0_i32, %c0_i32_0 : i32, i32
  }
  func.func @transform_6(%arg0: i32) -> (i32, i32) {
    %c0_i32 = arith.constant 0 : i32
    %c0_i32_0 = arith.constant 0 : i32
    %c0_i32_1 = arith.constant 0 : i32
    return %c0_i32, %c0_i32_0 : i32, i32
  }
  func.func @transform_7(%arg0: i32) -> (i32, i32) {
    %c0_i32 = arith.constant 0 : i32
    %c0_i32_0 = arith.constant 0 : i32
    %c0_i32_1 = arith.constant 0 : i32
    return %c0_i32, %c0_i32_0 : i32, i32
  }
  func.func @transform_8(%arg0: i32) -> (i32, i32) {
    %c0_i32 = arith.constant 0 : i32
    %c0_i32_0 = arith.constant 0 : i32
    %c0_i32_1 = arith.constant 0 : i32
    return %c0_i32, %c0_i32_0 : i32, i32
  }
  func.func @transform_9(%arg0: i32) -> (i32, i32, i32) {
    %c0_i32 = arith.constant 0 : i32
    %c0_i32_0 = arith.constant 0 : i32
    %c0_i32_1 = arith.constant 0 : i32
    return %arg0, %c0_i32, %c0_i32_0 : i32, i32, i32
  }
}

module attributes {stable_mosaic.version = 11 : i64} {
  func.func @_encoder_layer_kernel(%arg0: i32, %arg1: memref<1x8x8xf32, #tpu.memory_space<vmem>>, %arg2: memref<8x24xf32, #tpu.memory_space<vmem>>, %arg3: memref<1x24xf32, #tpu.memory_space<vmem>>, %arg4: memref<8x8xf32, #tpu.memory_space<vmem>>, %arg5: memref<1x8xf32, #tpu.memory_space<vmem>>, %arg6: memref<1x8xf32, #tpu.memory_space<vmem>>, %arg7: memref<1x8xf32, #tpu.memory_space<vmem>>, %arg8: memref<8x32xf32, #tpu.memory_space<vmem>>, %arg9: memref<1x32xf32, #tpu.memory_space<vmem>>, %arg10: memref<32x8xf32, #tpu.memory_space<vmem>>, %arg11: memref<1x8xf32, #tpu.memory_space<vmem>>, %arg12: memref<1x8xf32, #tpu.memory_space<vmem>>, %arg13: memref<1x8xf32, #tpu.memory_space<vmem>>, %arg14: memref<1x8x8xf32, #tpu.memory_space<vmem>>) attributes {dimension_semantics = [#tpu.dimension_semantics<parallel>], iteration_bounds = array<i64: 2>, scalar_prefetch = 0 : i64, scratch_operands = 0 : i64, tpu.core_type = #tpu.core_type<tc>, window_params = [{transform_indices = @transform_0, window_bounds = array<i64: 1, 8, 8>}, {pipeline_mode = #tpu.pipeline_mode<synchronous>, transform_indices = @transform_1, window_bounds = array<i64: 8, 24>}, {pipeline_mode = #tpu.pipeline_mode<synchronous>, transform_indices = @transform_2, window_bounds = array<i64: 1, 24>}, {pipeline_mode = #tpu.pipeline_mode<synchronous>, transform_indices = @transform_3, window_bounds = array<i64: 8, 8>}, {pipeline_mode = #tpu.pipeline_mode<synchronous>, transform_indices = @transform_4, window_bounds = array<i64: 1, 8>}, {pipeline_mode = #tpu.pipeline_mode<synchronous>, transform_indices = @transform_5, window_bounds = array<i64: 1, 8>}, {pipeline_mode = #tpu.pipeline_mode<synchronous>, transform_indices = @transform_6, window_bounds = array<i64: 1, 8>}, {pipeline_mode = #tpu.pipeline_mode<synchronous>, transform_indices = @transform_7, window_bounds = array<i64: 8, 32>}, {pipeline_mode = #tpu.pipeline_mode<synchronous>, transform_indices = @transform_8, window_bounds = array<i64: 1, 32>}, {pipeline_mode = #tpu.pipeline_mode<synchronous>, transform_indices = @transform_9, window_bounds = array<i64: 32, 8>}, {pipeline_mode = #tpu.pipeline_mode<synchronous>, transform_indices = @transform_10, window_bounds = array<i64: 1, 8>}, {pipeline_mode = #tpu.pipeline_mode<synchronous>, transform_indices = @transform_11, window_bounds = array<i64: 1, 8>}, {pipeline_mode = #tpu.pipeline_mode<synchronous>, transform_indices = @transform_12, window_bounds = array<i64: 1, 8>}, {transform_indices = @transform_13, window_bounds = array<i64: 1, 8, 8>}]} {
    %c0 = arith.constant 0 : index
    %c0_0 = arith.constant 0 : index
    %c0_1 = arith.constant 0 : index
    %0 = vector.load %arg1[%c0, %c0_0, %c0_1] : memref<1x8x8xf32, #tpu.memory_space<vmem>>, vector<1x8x8xf32>
    %1 = vector.shape_cast %0 : vector<1x8x8xf32> to vector<8x8xf32>
    %c0_2 = arith.constant 0 : index
    %c0_3 = arith.constant 0 : index
    %2 = vector.load %arg2[%c0_2, %c0_3] : memref<8x24xf32, #tpu.memory_space<vmem>>, vector<8x24xf32>
    %cst = arith.constant dense<0.000000e+00> : vector<8x24xf32>
    %3 = tpu.matmul %1, %2, %cst {dimension_numbers = #tpu.dot_dimension_numbers<[1], [0], [0], [1], [0, 0, 1, 1], [], []>} : vector<8x8xf32>, vector<8x24xf32>, vector<8x24xf32> -> vector<8x24xf32>
    %c0_4 = arith.constant 0 : index
    %c0_5 = arith.constant 0 : index
    %4 = vector.load %arg3[%c0_4, %c0_5] : memref<1x24xf32, #tpu.memory_space<vmem>>, vector<1x24xf32>
    %5 = vector.broadcast %4 : vector<1x24xf32> to vector<8x24xf32>
    %6 = arith.addf %3, %5 : vector<8x24xf32>
    %7 = vector.extract_strided_slice %6 {offsets = [0, 0], sizes = [8, 8], strides = [1, 1]} : vector<8x24xf32> to vector<8x8xf32>
    %8 = vector.extract_strided_slice %6 {offsets = [0, 8], sizes = [8, 8], strides = [1, 1]} : vector<8x24xf32> to vector<8x8xf32>
    %9 = vector.extract_strided_slice %6 {offsets = [0, 16], sizes = [8, 8], strides = [1, 1]} : vector<8x24xf32> to vector<8x8xf32>
    %10 = vector.shape_cast %7 : vector<8x8xf32> to vector<8x1x8xf32>
    %11 = vector.shape_cast %8 : vector<8x8xf32> to vector<1x8x8xf32>
    %12 = vector.broadcast %10 : vector<8x1x8xf32> to vector<8x8x8xf32>
    %13 = vector.broadcast %11 : vector<1x8x8xf32> to vector<8x8x8xf32>
    %14 = arith.mulf %12, %13 : vector<8x8x8xf32>
    %cst_6 = arith.constant dense<0xFF800000> : vector<8x8xf32>
    %15 = vector.multi_reduction <maximumf>, %14, %cst_6 [1] : vector<8x8x8xf32> to vector<8x8xf32>
    %16 = vector.shape_cast %15 : vector<8x8xf32> to vector<8x1x8xf32>
    %17 = vector.broadcast %16 : vector<8x1x8xf32> to vector<8x8x8xf32>
    %18 = arith.subf %14, %17 : vector<8x8x8xf32>
    %19 = math.exp %18 : vector<8x8x8xf32>
    %cst_7 = arith.constant dense<0.000000e+00> : vector<8x8xf32>
    %20 = vector.multi_reduction <add>, %19, %cst_7 [1] : vector<8x8x8xf32> to vector<8x8xf32>
    %21 = vector.shape_cast %20 : vector<8x8xf32> to vector<8x1x8xf32>
    %22 = tpu.reciprocal %21 {approx = true} : vector<8x1x8xf32> -> vector<8x1x8xf32>
    %23 = vector.broadcast %22 : vector<8x1x8xf32> to vector<8x8x8xf32>
    %24 = arith.mulf %19, %23 : vector<8x8x8xf32>
    %25 = vector.shape_cast %9 : vector<8x8xf32> to vector<1x8x8xf32>
    %26 = vector.broadcast %25 : vector<1x8x8xf32> to vector<8x8x8xf32>
    %27 = arith.mulf %24, %26 : vector<8x8x8xf32>
    %cst_8 = arith.constant dense<0.000000e+00> : vector<8x8xf32>
    %28 = vector.multi_reduction <add>, %27, %cst_8 [1] : vector<8x8x8xf32> to vector<8x8xf32>
    %c0_9 = arith.constant 0 : index
    %c0_10 = arith.constant 0 : index
    %29 = vector.load %arg4[%c0_9, %c0_10] : memref<8x8xf32, #tpu.memory_space<vmem>>, vector<8x8xf32>
    %cst_11 = arith.constant dense<0.000000e+00> : vector<8x8xf32>
    %30 = tpu.matmul %28, %29, %cst_11 {dimension_numbers = #tpu.dot_dimension_numbers<[1], [0], [0], [1], [0, 0, 1, 1], [], []>} : vector<8x8xf32>, vector<8x8xf32>, vector<8x8xf32> -> vector<8x8xf32>
    %c0_12 = arith.constant 0 : index
    %c0_13 = arith.constant 0 : index
    %31 = vector.load %arg5[%c0_12, %c0_13] : memref<1x8xf32, #tpu.memory_space<vmem>>, vector<1x8xf32>
    %32 = vector.broadcast %31 : vector<1x8xf32> to vector<8x8xf32>
    %33 = arith.addf %30, %32 : vector<8x8xf32>
    %34 = arith.addf %1, %33 : vector<8x8xf32>
    %c0_14 = arith.constant 0 : index
    %c0_15 = arith.constant 0 : index
    %35 = vector.load %arg6[%c0_14, %c0_15] : memref<1x8xf32, #tpu.memory_space<vmem>>, vector<1x8xf32>
    %c0_16 = arith.constant 0 : index
    %c0_17 = arith.constant 0 : index
    %36 = vector.load %arg7[%c0_16, %c0_17] : memref<1x8xf32, #tpu.memory_space<vmem>>, vector<1x8xf32>
    %cst_18 = arith.constant dense<0.000000e+00> : vector<8xf32>
    %37 = vector.multi_reduction <add>, %34, %cst_18 [1] : vector<8x8xf32> to vector<8xf32>
    %38 = vector.shape_cast %37 : vector<8xf32> to vector<8x1xf32>
    %cst_19 = arith.constant 8.000000e+00 : f32
    %39 = vector.broadcast %cst_19 : f32 to vector<8x1xf32>
    %40 = arith.divf %38, %39 : vector<8x1xf32>
    %41 = vector.broadcast %40 : vector<8x1xf32> to vector<8x8xf32>
    %42 = arith.subf %34, %41 : vector<8x8xf32>
    %43 = arith.mulf %42, %42 : vector<8x8xf32>
    %cst_20 = arith.constant dense<0.000000e+00> : vector<8xf32>
    %44 = vector.multi_reduction <add>, %43, %cst_20 [1] : vector<8x8xf32> to vector<8xf32>
    %45 = vector.shape_cast %44 : vector<8xf32> to vector<8x1xf32>
    %cst_21 = arith.constant 8.000000e+00 : f32
    %46 = vector.broadcast %cst_21 : f32 to vector<8x1xf32>
    %47 = arith.divf %45, %46 : vector<8x1xf32>
    %48 = vector.broadcast %40 : vector<8x1xf32> to vector<8x8xf32>
    %49 = arith.subf %34, %48 : vector<8x8xf32>
    %cst_22 = arith.constant 9.99999974E-6 : f32
    %50 = vector.broadcast %cst_22 : f32 to vector<8x1xf32>
    %51 = arith.addf %47, %50 : vector<8x1xf32>
    %52 = math.rsqrt %51 : vector<8x1xf32>
    %53 = vector.broadcast %52 : vector<8x1xf32> to vector<8x8xf32>
    %54 = arith.mulf %49, %53 : vector<8x8xf32>
    %55 = vector.broadcast %35 : vector<1x8xf32> to vector<8x8xf32>
    %56 = arith.mulf %54, %55 : vector<8x8xf32>
    %57 = vector.broadcast %36 : vector<1x8xf32> to vector<8x8xf32>
    %58 = arith.addf %56, %57 : vector<8x8xf32>
    %c0_23 = arith.constant 0 : index
    %c0_24 = arith.constant 0 : index
    %59 = vector.load %arg8[%c0_23, %c0_24] : memref<8x32xf32, #tpu.memory_space<vmem>>, vector<8x32xf32>
    %cst_25 = arith.constant dense<0.000000e+00> : vector<8x32xf32>
    %60 = tpu.matmul %58, %59, %cst_25 {dimension_numbers = #tpu.dot_dimension_numbers<[1], [0], [0], [1], [0, 0, 1, 1], [], []>} : vector<8x8xf32>, vector<8x32xf32>, vector<8x32xf32> -> vector<8x32xf32>
    %c0_26 = arith.constant 0 : index
    %c0_27 = arith.constant 0 : index
    %61 = vector.load %arg9[%c0_26, %c0_27] : memref<1x32xf32, #tpu.memory_space<vmem>>, vector<1x32xf32>
    %62 = vector.broadcast %61 : vector<1x32xf32> to vector<8x32xf32>
    %63 = arith.addf %60, %62 : vector<8x32xf32>
    %cst_28 = arith.constant 0.000000e+00 : f32
    %64 = vector.broadcast %cst_28 : f32 to vector<8x32xf32>
    %65 = arith.maximumf %63, %64 : vector<8x32xf32>
    %c0_29 = arith.constant 0 : index
    %c0_30 = arith.constant 0 : index
    %66 = vector.load %arg10[%c0_29, %c0_30] : memref<32x8xf32, #tpu.memory_space<vmem>>, vector<32x8xf32>
    %cst_31 = arith.constant dense<0.000000e+00> : vector<8x8xf32>
    %67 = tpu.matmul %65, %66, %cst_31 {dimension_numbers = #tpu.dot_dimension_numbers<[1], [0], [0], [1], [0, 0, 1, 1], [], []>} : vector<8x32xf32>, vector<32x8xf32>, vector<8x8xf32> -> vector<8x8xf32>
    %c0_32 = arith.constant 0 : index
    %c0_33 = arith.constant 0 : index
    %68 = vector.load %arg11[%c0_32, %c0_33] : memref<1x8xf32, #tpu.memory_space<vmem>>, vector<1x8xf32>
    %69 = vector.broadcast %68 : vector<1x8xf32> to vector<8x8xf32>
    %70 = arith.addf %67, %69 : vector<8x8xf32>
    %71 = arith.addf %58, %70 : vector<8x8xf32>
    %c0_34 = arith.constant 0 : index
    %c0_35 = arith.constant 0 : index
    %72 = vector.load %arg12[%c0_34, %c0_35] : memref<1x8xf32, #tpu.memory_space<vmem>>, vector<1x8xf32>
    %c0_36 = arith.constant 0 : index
    %c0_37 = arith.constant 0 : index
    %73 = vector.load %arg13[%c0_36, %c0_37] : memref<1x8xf32, #tpu.memory_space<vmem>>, vector<1x8xf32>
    %cst_38 = arith.constant dense<0.000000e+00> : vector<8xf32>
    %74 = vector.multi_reduction <add>, %71, %cst_38 [1] : vector<8x8xf32> to vector<8xf32>
    %75 = vector.shape_cast %74 : vector<8xf32> to vector<8x1xf32>
    %cst_39 = arith.constant 8.000000e+00 : f32
    %76 = vector.broadcast %cst_39 : f32 to vector<8x1xf32>
    %77 = arith.divf %75, %76 : vector<8x1xf32>
    %78 = vector.broadcast %77 : vector<8x1xf32> to vector<8x8xf32>
    %79 = arith.subf %71, %78 : vector<8x8xf32>
    %80 = arith.mulf %79, %79 : vector<8x8xf32>
    %cst_40 = arith.constant dense<0.000000e+00> : vector<8xf32>
    %81 = vector.multi_reduction <add>, %80, %cst_40 [1] : vector<8x8xf32> to vector<8xf32>
    %82 = vector.shape_cast %81 : vector<8xf32> to vector<8x1xf32>
    %cst_41 = arith.constant 8.000000e+00 : f32
    %83 = vector.broadcast %cst_41 : f32 to vector<8x1xf32>
    %84 = arith.divf %82, %83 : vector<8x1xf32>
    %85 = vector.broadcast %77 : vector<8x1xf32> to vector<8x8xf32>
    %86 = arith.subf %71, %85 : vector<8x8xf32>
    %cst_42 = arith.constant 9.99999974E-6 : f32
    %87 = vector.broadcast %cst_42 : f32 to vector<8x1xf32>
    %88 = arith.addf %84, %87 : vector<8x1xf32>
    %89 = math.rsqrt %88 : vector<8x1xf32>
    %90 = vector.broadcast %89 : vector<8x1xf32> to vector<8x8xf32>
    %91 = arith.mulf %86, %90 : vector<8x8xf32>
    %92 = vector.broadcast %72 : vector<1x8xf32> to vector<8x8xf32>
    %93 = arith.mulf %91, %92 : vector<8x8xf32>
    %94 = vector.broadcast %73 : vector<1x8xf32> to vector<8x8xf32>
    %95 = arith.addf %93, %94 : vector<8x8xf32>
    %c0_43 = arith.constant 0 : index
    %c0_44 = arith.constant 0 : index
    %c0_45 = arith.constant 0 : index
    %96 = vector.load %arg14[%c0_43, %c0_44, %c0_45] : memref<1x8x8xf32, #tpu.memory_space<vmem>>, vector<1x8x8xf32>
    %97 = vector.shape_cast %96 : vector<1x8x8xf32> to vector<8x8xf32>
    %98 = vector.shape_cast %95 : vector<8x8xf32> to vector<1x8x8xf32>
    tpu.vector_store %arg14[%c0_43, %c0_44, %c0_45], %98 {strides = array<i32>} : memref<1x8x8xf32, #tpu.memory_space<vmem>>, vector<1x8x8xf32>,
    return
  }
  func.func @transform_0(%arg0: i32) -> (i32, i32, i32) {
    %c0_i32 = arith.constant 0 : i32
    %c0_i32_0 = arith.constant 0 : i32
    %c0_i32_1 = arith.constant 0 : i32
    return %arg0, %c0_i32, %c0_i32_0 : i32, i32, i32
  }
  func.func @transform_1(%arg0: i32) -> (i32, i32) {
    %c0_i32 = arith.constant 0 : i32
    %c0_i32_0 = arith.constant 0 : i32
    %c0_i32_1 = arith.constant 0 : i32
    return %c0_i32, %c0_i32_0 : i32, i32
  }
  func.func @transform_2(%arg0: i32) -> (i32, i32) {
    %c0_i32 = arith.constant 0 : i32
    %c0_i32_0 = arith.constant 0 : i32
    %c0_i32_1 = arith.constant 0 : i32
    return %c0_i32, %c0_i32_0 : i32, i32
  }
  func.func @transform_3(%arg0: i32) -> (i32, i32) {
    %c0_i32 = arith.constant 0 : i32
    %c0_i32_0 = arith.constant 0 : i32
    %c0_i32_1 = arith.constant 0 : i32
    return %c0_i32, %c0_i32_0 : i32, i32
  }
  func.func @transform_4(%arg0: i32) -> (i32, i32) {
    %c0_i32 = arith.constant 0 : i32
    %c0_i32_0 = arith.constant 0 : i32
    %c0_i32_1 = arith.constant 0 : i32
    return %c0_i32, %c0_i32_0 : i32, i32
  }
  func.func @transform_5(%arg0: i32) -> (i32, i32) {
    %c0_i32 = arith.constant 0 : i32
    %c0_i32_0 = arith.constant 0 : i32
    %c0_i32_1 = arith.constant 0 : i32
    return %c0_i32, %c0_i32_0 : i32, i32
  }
  func.func @transform_6(%arg0: i32) -> (i32, i32) {
    %c0_i32 = arith.constant 0 : i32
    %c0_i32_0 = arith.constant 0 : i32
    %c0_i32_1 = arith.constant 0 : i32
    return %c0_i32, %c0_i32_0 : i32, i32
  }
  func.func @transform_7(%arg0: i32) -> (i32, i32) {
    %c0_i32 = arith.constant 0 : i32
    %c0_i32_0 = arith.constant 0 : i32
    %c0_i32_1 = arith.constant 0 : i32
    return %c0_i32, %c0_i32_0 : i32, i32
  }
  func.func @transform_8(%arg0: i32) -> (i32, i32) {
    %c0_i32 = arith.constant 0 : i32
    %c0_i32_0 = arith.constant 0 : i32
    %c0_i32_1 = arith.constant 0 : i32
    return %c0_i32, %c0_i32_0 : i32, i32
  }
  func.func @transform_9(%arg0: i32) -> (i32, i32) {
    %c0_i32 = arith.constant 0 : i32
    %c0_i32_0 = arith.constant 0 : i32
    %c0_i32_1 = arith.constant 0 : i32
    return %c0_i32, %c0_i32_0 : i32, i32
  }
  func.func @transform_10(%arg0: i32) -> (i32, i32) {
    %c0_i32 = arith.constant 0 : i32
    %c0_i32_0 = arith.constant 0 : i32
    %c0_i32_1 = arith.constant 0 : i32
    return %c0_i32, %c0_i32_0 : i32, i32
  }
  func.func @transform_11(%arg0: i32) -> (i32, i32) {
    %c0_i32 = arith.constant 0 : i32
    %c0_i32_0 = arith.constant 0 : i32
    %c0_i32_1 = arith.constant 0 : i32
    return %c0_i32, %c0_i32_0 : i32, i32
  }
  func.func @transform_12(%arg0: i32) -> (i32, i32) {
    %c0_i32 = arith.constant 0 : i32
    %c0_i32_0 = arith.constant 0 : i32
    %c0_i32_1 = arith.constant 0 : i32
    return %c0_i32, %c0_i32_0 : i32, i32
  }
  func.func @transform_13(%arg0: i32) -> (i32, i32, i32) {
    %c0_i32 = arith.constant 0 : i32
    %c0_i32_0 = arith.constant 0 : i32
    %c0_i32_1 = arith.constant 0 : i32
    return %arg0, %c0_i32, %c0_i32_0 : i32, i32, i32
  }
}

module attributes {stable_mosaic.version = 11 : i64} {
  func.func @_adaptive_kernel(%arg0: memref<16x8xf32, #tpu.memory_space<vmem>>, %arg1: memref<8x16xf32, #tpu.memory_space<vmem>>, %arg2: memref<1x16xf32, #tpu.memory_space<vmem>>, %arg3: memref<16x8xf32, #tpu.memory_space<vmem>>, %arg4: memref<1x8xf32, #tpu.memory_space<vmem>>, %arg5: memref<1x1xf32, #tpu.memory_space<vmem>>, %arg6: memref<16x8xf32, #tpu.memory_space<vmem>>) attributes {dimension_semantics = [], scalar_prefetch = 0 : i64, scratch_operands = 0 : i64, tpu.core_type = #tpu.core_type<tc>} {
    %c0 = arith.constant 0 : index
    %c0_0 = arith.constant 0 : index
    %0 = vector.load %arg0[%c0, %c0_0] : memref<16x8xf32, #tpu.memory_space<vmem>>, vector<16x8xf32>
    %c0_1 = arith.constant 0 : index
    %c0_2 = arith.constant 0 : index
    %1 = vector.load %arg1[%c0_1, %c0_2] : memref<8x16xf32, #tpu.memory_space<vmem>>, vector<8x16xf32>
    %cst = arith.constant dense<0.000000e+00> : vector<16x16xf32>
    %2 = tpu.matmul %0, %1, %cst {dimension_numbers = #tpu.dot_dimension_numbers<[1], [0], [0], [1], [0, 0, 1, 1], [], []>} : vector<16x8xf32>, vector<8x16xf32>, vector<16x16xf32> -> vector<16x16xf32>
    %c0_3 = arith.constant 0 : index
    %c0_4 = arith.constant 0 : index
    %3 = vector.load %arg2[%c0_3, %c0_4] : memref<1x16xf32, #tpu.memory_space<vmem>>, vector<1x16xf32>
    %4 = vector.broadcast %3 : vector<1x16xf32> to vector<16x16xf32>
    %5 = arith.addf %2, %4 : vector<16x16xf32>
    %cst_5 = arith.constant 5.000000e-01 : f32
    %6 = vector.broadcast %cst_5 : f32 to vector<16x16xf32>
    %7 = arith.mulf %6, %5 : vector<16x16xf32>
    %cst_6 = arith.constant 0.707106769 : f32
    %8 = vector.broadcast %cst_6 : f32 to vector<16x16xf32>
    %9 = arith.mulf %5, %8 : vector<16x16xf32>
    %10 = math.absf %9 : vector<16x16xf32>
    %cst_7 = arith.constant 0.327591091 : f32
    %11 = vector.broadcast %cst_7 : f32 to vector<16x16xf32>
    %12 = arith.mulf %11, %10 : vector<16x16xf32>
    %cst_8 = arith.constant 1.000000e+00 : f32
    %13 = vector.broadcast %cst_8 : f32 to vector<16x16xf32>
    %14 = arith.addf %13, %12 : vector<16x16xf32>
    %cst_9 = arith.constant 1.000000e+00 : f32
    %15 = vector.broadcast %cst_9 : f32 to vector<16x16xf32>
    %16 = arith.divf %15, %14 : vector<16x16xf32>
    %cst_10 = arith.constant 1.06140542 : f32
    %17 = vector.broadcast %cst_10 : f32 to vector<16x16xf32>
    %18 = arith.mulf %17, %16 : vector<16x16xf32>
    %cst_11 = arith.constant 1.45315206 : f32
    %19 = vector.broadcast %cst_11 : f32 to vector<16x16xf32>
    %20 = arith.subf %18, %19 : vector<16x16xf32>
    %21 = arith.mulf %20, %16 : vector<16x16xf32>
    %cst_12 = arith.constant 1.42141378 : f32
    %22 = vector.broadcast %cst_12 : f32 to vector<16x16xf32>
    %23 = arith.addf %21, %22 : vector<16x16xf32>
    %24 = arith.mulf %23, %16 : vector<16x16xf32>
    %cst_13 = arith.constant 0.284496725 : f32
    %25 = vector.broadcast %cst_13 : f32 to vector<16x16xf32>
    %26 = arith.subf %24, %25 : vector<16x16xf32>
    %27 = arith.mulf %26, %16 : vector<16x16xf32>
    %cst_14 = arith.constant 0.254829586 : f32
    %28 = vector.broadcast %cst_14 : f32 to vector<16x16xf32>
    %29 = arith.addf %27, %28 : vector<16x16xf32>
    %30 = arith.mulf %29, %16 : vector<16x16xf32>
    %cst_15 = arith.constant 0.000000e+00 : f32
    %31 = vector.broadcast %cst_15 : f32 to vector<16x16xf32>
    %32 = arith.subf %31, %10 : vector<16x16xf32>
    %33 = arith.mulf %32, %10 : vector<16x16xf32>
    %34 = math.exp %33 : vector<16x16xf32>
    %35 = arith.mulf %30, %34 : vector<16x16xf32>
    %cst_16 = arith.constant 1.000000e+00 : f32
    %36 = vector.broadcast %cst_16 : f32 to vector<16x16xf32>
    %37 = arith.subf %36, %35 : vector<16x16xf32>
    %cst_17 = arith.constant 0.000000e+00 : f32
    %38 = vector.broadcast %cst_17 : f32 to vector<16x16xf32>
    %39 = arith.cmpf olt, %9, %38 : vector<16x16xf32>
    %cst_18 = arith.constant 0.000000e+00 : f32
    %40 = vector.broadcast %cst_18 : f32 to vector<16x16xf32>
    %41 = arith.subf %40, %37 : vector<16x16xf32>
    %42 = arith.select %39, %41, %37 : vector<16x16xi1>, vector<16x16xf32>
    %cst_19 = arith.constant 1.000000e+00 : f32
    %43 = vector.broadcast %cst_19 : f32 to vector<16x16xf32>
    %44 = arith.addf %43, %42 : vector<16x16xf32>
    %45 = arith.mulf %7, %44 : vector<16x16xf32>
    %c0_20 = arith.constant 0 : index
    %c0_21 = arith.constant 0 : index
    %46 = vector.load %arg3[%c0_20, %c0_21] : memref<16x8xf32, #tpu.memory_space<vmem>>, vector<16x8xf32>
    %cst_22 = arith.constant dense<0.000000e+00> : vector<16x8xf32>
    %47 = tpu.matmul %45, %46, %cst_22 {dimension_numbers = #tpu.dot_dimension_numbers<[1], [0], [0], [1], [0, 0, 1, 1], [], []>} : vector<16x16xf32>, vector<16x8xf32>, vector<16x8xf32> -> vector<16x8xf32>
    %c0_23 = arith.constant 0 : index
    %c0_24 = arith.constant 0 : index
    %48 = vector.load %arg4[%c0_23, %c0_24] : memref<1x8xf32, #tpu.memory_space<vmem>>, vector<1x8xf32>
    %49 = vector.broadcast %48 : vector<1x8xf32> to vector<16x8xf32>
    %50 = arith.addf %47, %49 : vector<16x8xf32>
    %c0_25 = arith.constant 0 : index
    %c0_26 = arith.constant 0 : index
    %51 = vector.load %arg5[%c0_25, %c0_26] : memref<1x1xf32, #tpu.memory_space<vmem>>, vector<1x1xf32>
    %52 = vector.broadcast %51 : vector<1x1xf32> to vector<16x8xf32>
    %53 = arith.mulf %0, %52 : vector<16x8xf32>
    %cst_27 = arith.constant 1.000000e+00 : f32
    %54 = vector.broadcast %cst_27 : f32 to vector<1x1xf32>
    %55 = arith.subf %54, %51 : vector<1x1xf32>
    %56 = vector.broadcast %55 : vector<1x1xf32> to vector<16x8xf32>
    %57 = arith.mulf %50, %56 : vector<16x8xf32>
    %58 = arith.addf %53, %57 : vector<16x8xf32>
    %c0_28 = arith.constant 0 : index
    %c0_29 = arith.constant 0 : index
    %59 = vector.load %arg6[%c0_28, %c0_29] : memref<16x8xf32, #tpu.memory_space<vmem>>, vector<16x8xf32>
    tpu.vector_store %arg6[%c0_28, %c0_29], %58 {strides = array<i32>} : memref<16x8xf32, #tpu.memory_space<vmem>>, vector<16x8xf32>,
    return
  }
}

module attributes {stable_mosaic.version = 11 : i64} {
  func.func @_decoder_layer_kernel(%arg0: i32, %arg1: memref<1x8x8xf32, #tpu.memory_space<vmem>>, %arg2: memref<1x8x8xf32, #tpu.memory_space<vmem>>, %arg3: memref<8x24xf32, #tpu.memory_space<vmem>>, %arg4: memref<1x24xf32, #tpu.memory_space<vmem>>, %arg5: memref<8x8xf32, #tpu.memory_space<vmem>>, %arg6: memref<1x8xf32, #tpu.memory_space<vmem>>, %arg7: memref<1x8xf32, #tpu.memory_space<vmem>>, %arg8: memref<1x8xf32, #tpu.memory_space<vmem>>, %arg9: memref<8x8xf32, #tpu.memory_space<vmem>>, %arg10: memref<1x8xf32, #tpu.memory_space<vmem>>, %arg11: memref<8x16xf32, #tpu.memory_space<vmem>>, %arg12: memref<1x16xf32, #tpu.memory_space<vmem>>, %arg13: memref<8x8xf32, #tpu.memory_space<vmem>>, %arg14: memref<1x8xf32, #tpu.memory_space<vmem>>, %arg15: memref<1x8xf32, #tpu.memory_space<vmem>>, %arg16: memref<1x8xf32, #tpu.memory_space<vmem>>, %arg17: memref<8x32xf32, #tpu.memory_space<vmem>>, %arg18: memref<1x32xf32, #tpu.memory_space<vmem>>, %arg19: memref<32x8xf32, #tpu.memory_space<vmem>>, %arg20: memref<1x8xf32, #tpu.memory_space<vmem>>, %arg21: memref<1x8xf32, #tpu.memory_space<vmem>>, %arg22: memref<1x8xf32, #tpu.memory_space<vmem>>, %arg23: memref<1x8x8xf32, #tpu.memory_space<vmem>>) attributes {dimension_semantics = [#tpu.dimension_semantics<parallel>], iteration_bounds = array<i64: 2>, scalar_prefetch = 0 : i64, scratch_operands = 0 : i64, tpu.core_type = #tpu.core_type<tc>, window_params = [{transform_indices = @transform_0, window_bounds = array<i64: 1, 8, 8>}, {transform_indices = @transform_1, window_bounds = array<i64: 1, 8, 8>}, {pipeline_mode = #tpu.pipeline_mode<synchronous>, transform_indices = @transform_2, window_bounds = array<i64: 8, 24>}, {pipeline_mode = #tpu.pipeline_mode<synchronous>, transform_indices = @transform_3, window_bounds = array<i64: 1, 24>}, {pipeline_mode = #tpu.pipeline_mode<synchronous>, transform_indices = @transform_4, window_bounds = array<i64: 8, 8>}, {pipeline_mode = #tpu.pipeline_mode<synchronous>, transform_indices = @transform_5, window_bounds = array<i64: 1, 8>}, {pipeline_mode = #tpu.pipeline_mode<synchronous>, transform_indices = @transform_6, window_bounds = array<i64: 1, 8>}, {pipeline_mode = #tpu.pipeline_mode<synchronous>, transform_indices = @transform_7, window_bounds = array<i64: 1, 8>}, {pipeline_mode = #tpu.pipeline_mode<synchronous>, transform_indices = @transform_8, window_bounds = array<i64: 8, 8>}, {pipeline_mode = #tpu.pipeline_mode<synchronous>, transform_indices = @transform_9, window_bounds = array<i64: 1, 8>}, {pipeline_mode = #tpu.pipeline_mode<synchronous>, transform_indices = @transform_10, window_bounds = array<i64: 8, 16>}, {pipeline_mode = #tpu.pipeline_mode<synchronous>, transform_indices = @transform_11, window_bounds = array<i64: 1, 16>}, {pipeline_mode = #tpu.pipeline_mode<synchronous>, transform_indices = @transform_12, window_bounds = array<i64: 8, 8>}, {pipeline_mode = #tpu.pipeline_mode<synchronous>, transform_indices = @transform_13, window_bounds = array<i64: 1, 8>}, {pipeline_mode = #tpu.pipeline_mode<synchronous>, transform_indices = @transform_14, window_bounds = array<i64: 1, 8>}, {pipeline_mode = #tpu.pipeline_mode<synchronous>, transform_indices = @transform_15, window_bounds = array<i64: 1, 8>}, {pipeline_mode = #tpu.pipeline_mode<synchronous>, transform_indices = @transform_16, window_bounds = array<i64: 8, 32>}, {pipeline_mode = #tpu.pipeline_mode<synchronous>, transform_indices = @transform_17, window_bounds = array<i64: 1, 32>}, {pipeline_mode = #tpu.pipeline_mode<synchronous>, transform_indices = @transform_18, window_bounds = array<i64: 32, 8>}, {pipeline_mode = #tpu.pipeline_mode<synchronous>, transform_indices = @transform_19, window_bounds = array<i64: 1, 8>}, {pipeline_mode = #tpu.pipeline_mode<synchronous>, transform_indices = @transform_20, window_bounds = array<i64: 1, 8>}, {pipeline_mode = #tpu.pipeline_mode<synchronous>, transform_indices = @transform_21, window_bounds = array<i64: 1, 8>}, {transform_indices = @transform_22, window_bounds = array<i64: 1, 8, 8>}]} {
    %c0 = arith.constant 0 : index
    %c0_0 = arith.constant 0 : index
    %c0_1 = arith.constant 0 : index
    %0 = vector.load %arg1[%c0, %c0_0, %c0_1] : memref<1x8x8xf32, #tpu.memory_space<vmem>>, vector<1x8x8xf32>
    %1 = vector.shape_cast %0 : vector<1x8x8xf32> to vector<8x8xf32>
    %c0_2 = arith.constant 0 : index
    %c0_3 = arith.constant 0 : index
    %c0_4 = arith.constant 0 : index
    %2 = vector.load %arg2[%c0_2, %c0_3, %c0_4] : memref<1x8x8xf32, #tpu.memory_space<vmem>>, vector<1x8x8xf32>
    %3 = vector.shape_cast %2 : vector<1x8x8xf32> to vector<8x8xf32>
    %c0_5 = arith.constant 0 : index
    %c0_6 = arith.constant 0 : index
    %4 = vector.load %arg3[%c0_5, %c0_6] : memref<8x24xf32, #tpu.memory_space<vmem>>, vector<8x24xf32>
    %cst = arith.constant dense<0.000000e+00> : vector<8x24xf32>
    %5 = tpu.matmul %1, %4, %cst {dimension_numbers = #tpu.dot_dimension_numbers<[1], [0], [0], [1], [0, 0, 1, 1], [], []>} : vector<8x8xf32>, vector<8x24xf32>, vector<8x24xf32> -> vector<8x24xf32>
    %c0_7 = arith.constant 0 : index
    %c0_8 = arith.constant 0 : index
    %6 = vector.load %arg4[%c0_7, %c0_8] : memref<1x24xf32, #tpu.memory_space<vmem>>, vector<1x24xf32>
    %7 = vector.broadcast %6 : vector<1x24xf32> to vector<8x24xf32>
    %8 = arith.addf %5, %7 : vector<8x24xf32>
    %9 = vector.extract_strided_slice %8 {offsets = [0, 0], sizes = [8, 8], strides = [1, 1]} : vector<8x24xf32> to vector<8x8xf32>
    %10 = vector.extract_strided_slice %8 {offsets = [0, 8], sizes = [8, 8], strides = [1, 1]} : vector<8x24xf32> to vector<8x8xf32>
    %11 = vector.extract_strided_slice %8 {offsets = [0, 16], sizes = [8, 8], strides = [1, 1]} : vector<8x24xf32> to vector<8x8xf32>
    %12 = vector.shape_cast %9 : vector<8x8xf32> to vector<8x1x8xf32>
    %13 = vector.shape_cast %10 : vector<8x8xf32> to vector<1x8x8xf32>
    %14 = vector.broadcast %12 : vector<8x1x8xf32> to vector<8x8x8xf32>
    %15 = vector.broadcast %13 : vector<1x8x8xf32> to vector<8x8x8xf32>
    %16 = arith.mulf %14, %15 : vector<8x8x8xf32>
    %cst_9 = arith.constant dense<0xFF800000> : vector<8x8xf32>
    %17 = vector.multi_reduction <maximumf>, %16, %cst_9 [1] : vector<8x8x8xf32> to vector<8x8xf32>
    %18 = vector.shape_cast %17 : vector<8x8xf32> to vector<8x1x8xf32>
    %19 = vector.broadcast %18 : vector<8x1x8xf32> to vector<8x8x8xf32>
    %20 = arith.subf %16, %19 : vector<8x8x8xf32>
    %21 = math.exp %20 : vector<8x8x8xf32>
    %cst_10 = arith.constant dense<0.000000e+00> : vector<8x8xf32>
    %22 = vector.multi_reduction <add>, %21, %cst_10 [1] : vector<8x8x8xf32> to vector<8x8xf32>
    %23 = vector.shape_cast %22 : vector<8x8xf32> to vector<8x1x8xf32>
    %24 = tpu.reciprocal %23 {approx = true} : vector<8x1x8xf32> -> vector<8x1x8xf32>
    %25 = vector.broadcast %24 : vector<8x1x8xf32> to vector<8x8x8xf32>
    %26 = arith.mulf %21, %25 : vector<8x8x8xf32>
    %27 = vector.shape_cast %11 : vector<8x8xf32> to vector<1x8x8xf32>
    %28 = vector.broadcast %27 : vector<1x8x8xf32> to vector<8x8x8xf32>
    %29 = arith.mulf %26, %28 : vector<8x8x8xf32>
    %cst_11 = arith.constant dense<0.000000e+00> : vector<8x8xf32>
    %30 = vector.multi_reduction <add>, %29, %cst_11 [1] : vector<8x8x8xf32> to vector<8x8xf32>
    %c0_12 = arith.constant 0 : index
    %c0_13 = arith.constant 0 : index
    %31 = vector.load %arg5[%c0_12, %c0_13] : memref<8x8xf32, #tpu.memory_space<vmem>>, vector<8x8xf32>
    %cst_14 = arith.constant dense<0.000000e+00> : vector<8x8xf32>
    %32 = tpu.matmul %30, %31, %cst_14 {dimension_numbers = #tpu.dot_dimension_numbers<[1], [0], [0], [1], [0, 0, 1, 1], [], []>} : vector<8x8xf32>, vector<8x8xf32>, vector<8x8xf32> -> vector<8x8xf32>
    %c0_15 = arith.constant 0 : index
    %c0_16 = arith.constant 0 : index
    %33 = vector.load %arg6[%c0_15, %c0_16] : memref<1x8xf32, #tpu.memory_space<vmem>>, vector<1x8xf32>
    %34 = vector.broadcast %33 : vector<1x8xf32> to vector<8x8xf32>
    %35 = arith.addf %32, %34 : vector<8x8xf32>
    %36 = arith.addf %1, %35 : vector<8x8xf32>
    %c0_17 = arith.constant 0 : index
    %c0_18 = arith.constant 0 : index
    %37 = vector.load %arg7[%c0_17, %c0_18] : memref<1x8xf32, #tpu.memory_space<vmem>>, vector<1x8xf32>
    %c0_19 = arith.constant 0 : index
    %c0_20 = arith.constant 0 : index
    %38 = vector.load %arg8[%c0_19, %c0_20] : memref<1x8xf32, #tpu.memory_space<vmem>>, vector<1x8xf32>
    %cst_21 = arith.constant dense<0.000000e+00> : vector<8xf32>
    %39 = vector.multi_reduction <add>, %36, %cst_21 [1] : vector<8x8xf32> to vector<8xf32>
    %40 = vector.shape_cast %39 : vector<8xf32> to vector<8x1xf32>
    %cst_22 = arith.constant 8.000000e+00 : f32
    %41 = vector.broadcast %cst_22 : f32 to vector<8x1xf32>
    %42 = arith.divf %40, %41 : vector<8x1xf32>
    %43 = vector.broadcast %42 : vector<8x1xf32> to vector<8x8xf32>
    %44 = arith.subf %36, %43 : vector<8x8xf32>
    %45 = arith.mulf %44, %44 : vector<8x8xf32>
    %cst_23 = arith.constant dense<0.000000e+00> : vector<8xf32>
    %46 = vector.multi_reduction <add>, %45, %cst_23 [1] : vector<8x8xf32> to vector<8xf32>
    %47 = vector.shape_cast %46 : vector<8xf32> to vector<8x1xf32>
    %cst_24 = arith.constant 8.000000e+00 : f32
    %48 = vector.broadcast %cst_24 : f32 to vector<8x1xf32>
    %49 = arith.divf %47, %48 : vector<8x1xf32>
    %50 = vector.broadcast %42 : vector<8x1xf32> to vector<8x8xf32>
    %51 = arith.subf %36, %50 : vector<8x8xf32>
    %cst_25 = arith.constant 9.99999974E-6 : f32
    %52 = vector.broadcast %cst_25 : f32 to vector<8x1xf32>
    %53 = arith.addf %49, %52 : vector<8x1xf32>
    %54 = math.rsqrt %53 : vector<8x1xf32>
    %55 = vector.broadcast %54 : vector<8x1xf32> to vector<8x8xf32>
    %56 = arith.mulf %51, %55 : vector<8x8xf32>
    %57 = vector.broadcast %37 : vector<1x8xf32> to vector<8x8xf32>
    %58 = arith.mulf %56, %57 : vector<8x8xf32>
    %59 = vector.broadcast %38 : vector<1x8xf32> to vector<8x8xf32>
    %60 = arith.addf %58, %59 : vector<8x8xf32>
    %c0_26 = arith.constant 0 : index
    %c0_27 = arith.constant 0 : index
    %61 = vector.load %arg9[%c0_26, %c0_27] : memref<8x8xf32, #tpu.memory_space<vmem>>, vector<8x8xf32>
    %cst_28 = arith.constant dense<0.000000e+00> : vector<8x8xf32>
    %62 = tpu.matmul %60, %61, %cst_28 {dimension_numbers = #tpu.dot_dimension_numbers<[1], [0], [0], [1], [0, 0, 1, 1], [], []>} : vector<8x8xf32>, vector<8x8xf32>, vector<8x8xf32> -> vector<8x8xf32>
    %c0_29 = arith.constant 0 : index
    %c0_30 = arith.constant 0 : index
    %63 = vector.load %arg10[%c0_29, %c0_30] : memref<1x8xf32, #tpu.memory_space<vmem>>, vector<1x8xf32>
    %64 = vector.broadcast %63 : vector<1x8xf32> to vector<8x8xf32>
    %65 = arith.addf %62, %64 : vector<8x8xf32>
    %c0_31 = arith.constant 0 : index
    %c0_32 = arith.constant 0 : index
    %66 = vector.load %arg11[%c0_31, %c0_32] : memref<8x16xf32, #tpu.memory_space<vmem>>, vector<8x16xf32>
    %cst_33 = arith.constant dense<0.000000e+00> : vector<8x16xf32>
    %67 = tpu.matmul %3, %66, %cst_33 {dimension_numbers = #tpu.dot_dimension_numbers<[1], [0], [0], [1], [0, 0, 1, 1], [], []>} : vector<8x8xf32>, vector<8x16xf32>, vector<8x16xf32> -> vector<8x16xf32>
    %c0_34 = arith.constant 0 : index
    %c0_35 = arith.constant 0 : index
    %68 = vector.load %arg12[%c0_34, %c0_35] : memref<1x16xf32, #tpu.memory_space<vmem>>, vector<1x16xf32>
    %69 = vector.broadcast %68 : vector<1x16xf32> to vector<8x16xf32>
    %70 = arith.addf %67, %69 : vector<8x16xf32>
    %71 = vector.extract_strided_slice %70 {offsets = [0, 0], sizes = [8, 8], strides = [1, 1]} : vector<8x16xf32> to vector<8x8xf32>
    %72 = vector.extract_strided_slice %70 {offsets = [0, 8], sizes = [8, 8], strides = [1, 1]} : vector<8x16xf32> to vector<8x8xf32>
    %73 = vector.shape_cast %65 : vector<8x8xf32> to vector<8x1x8xf32>
    %74 = vector.shape_cast %71 : vector<8x8xf32> to vector<1x8x8xf32>
    %75 = vector.broadcast %73 : vector<8x1x8xf32> to vector<8x8x8xf32>
    %76 = vector.broadcast %74 : vector<1x8x8xf32> to vector<8x8x8xf32>
    %77 = arith.mulf %75, %76 : vector<8x8x8xf32>
    %cst_36 = arith.constant dense<0xFF800000> : vector<8x8xf32>
    %78 = vector.multi_reduction <maximumf>, %77, %cst_36 [1] : vector<8x8x8xf32> to vector<8x8xf32>
    %79 = vector.shape_cast %78 : vector<8x8xf32> to vector<8x1x8xf32>
    %80 = vector.broadcast %79 : vector<8x1x8xf32> to vector<8x8x8xf32>
    %81 = arith.subf %77, %80 : vector<8x8x8xf32>
    %82 = math.exp %81 : vector<8x8x8xf32>
    %cst_37 = arith.constant dense<0.000000e+00> : vector<8x8xf32>
    %83 = vector.multi_reduction <add>, %82, %cst_37 [1] : vector<8x8x8xf32> to vector<8x8xf32>
    %84 = vector.shape_cast %83 : vector<8x8xf32> to vector<8x1x8xf32>
    %85 = tpu.reciprocal %84 {approx = true} : vector<8x1x8xf32> -> vector<8x1x8xf32>
    %86 = vector.broadcast %85 : vector<8x1x8xf32> to vector<8x8x8xf32>
    %87 = arith.mulf %82, %86 : vector<8x8x8xf32>
    %88 = vector.shape_cast %72 : vector<8x8xf32> to vector<1x8x8xf32>
    %89 = vector.broadcast %88 : vector<1x8x8xf32> to vector<8x8x8xf32>
    %90 = arith.mulf %87, %89 : vector<8x8x8xf32>
    %cst_38 = arith.constant dense<0.000000e+00> : vector<8x8xf32>
    %91 = vector.multi_reduction <add>, %90, %cst_38 [1] : vector<8x8x8xf32> to vector<8x8xf32>
    %c0_39 = arith.constant 0 : index
    %c0_40 = arith.constant 0 : index
    %92 = vector.load %arg13[%c0_39, %c0_40] : memref<8x8xf32, #tpu.memory_space<vmem>>, vector<8x8xf32>
    %cst_41 = arith.constant dense<0.000000e+00> : vector<8x8xf32>
    %93 = tpu.matmul %91, %92, %cst_41 {dimension_numbers = #tpu.dot_dimension_numbers<[1], [0], [0], [1], [0, 0, 1, 1], [], []>} : vector<8x8xf32>, vector<8x8xf32>, vector<8x8xf32> -> vector<8x8xf32>
    %c0_42 = arith.constant 0 : index
    %c0_43 = arith.constant 0 : index
    %94 = vector.load %arg14[%c0_42, %c0_43] : memref<1x8xf32, #tpu.memory_space<vmem>>, vector<1x8xf32>
    %95 = vector.broadcast %94 : vector<1x8xf32> to vector<8x8xf32>
    %96 = arith.addf %93, %95 : vector<8x8xf32>
    %97 = arith.addf %60, %96 : vector<8x8xf32>
    %c0_44 = arith.constant 0 : index
    %c0_45 = arith.constant 0 : index
    %98 = vector.load %arg15[%c0_44, %c0_45] : memref<1x8xf32, #tpu.memory_space<vmem>>, vector<1x8xf32>
    %c0_46 = arith.constant 0 : index
    %c0_47 = arith.constant 0 : index
    %99 = vector.load %arg16[%c0_46, %c0_47] : memref<1x8xf32, #tpu.memory_space<vmem>>, vector<1x8xf32>
    %cst_48 = arith.constant dense<0.000000e+00> : vector<8xf32>
    %100 = vector.multi_reduction <add>, %97, %cst_48 [1] : vector<8x8xf32> to vector<8xf32>
    %101 = vector.shape_cast %100 : vector<8xf32> to vector<8x1xf32>
    %cst_49 = arith.constant 8.000000e+00 : f32
    %102 = vector.broadcast %cst_49 : f32 to vector<8x1xf32>
    %103 = arith.divf %101, %102 : vector<8x1xf32>
    %104 = vector.broadcast %103 : vector<8x1xf32> to vector<8x8xf32>
    %105 = arith.subf %97, %104 : vector<8x8xf32>
    %106 = arith.mulf %105, %105 : vector<8x8xf32>
    %cst_50 = arith.constant dense<0.000000e+00> : vector<8xf32>
    %107 = vector.multi_reduction <add>, %106, %cst_50 [1] : vector<8x8xf32> to vector<8xf32>
    %108 = vector.shape_cast %107 : vector<8xf32> to vector<8x1xf32>
    %cst_51 = arith.constant 8.000000e+00 : f32
    %109 = vector.broadcast %cst_51 : f32 to vector<8x1xf32>
    %110 = arith.divf %108, %109 : vector<8x1xf32>
    %111 = vector.broadcast %103 : vector<8x1xf32> to vector<8x8xf32>
    %112 = arith.subf %97, %111 : vector<8x8xf32>
    %cst_52 = arith.constant 9.99999974E-6 : f32
    %113 = vector.broadcast %cst_52 : f32 to vector<8x1xf32>
    %114 = arith.addf %110, %113 : vector<8x1xf32>
    %115 = math.rsqrt %114 : vector<8x1xf32>
    %116 = vector.broadcast %115 : vector<8x1xf32> to vector<8x8xf32>
    %117 = arith.mulf %112, %116 : vector<8x8xf32>
    %118 = vector.broadcast %98 : vector<1x8xf32> to vector<8x8xf32>
    %119 = arith.mulf %117, %118 : vector<8x8xf32>
    %120 = vector.broadcast %99 : vector<1x8xf32> to vector<8x8xf32>
    %121 = arith.addf %119, %120 : vector<8x8xf32>
    %c0_53 = arith.constant 0 : index
    %c0_54 = arith.constant 0 : index
    %122 = vector.load %arg17[%c0_53, %c0_54] : memref<8x32xf32, #tpu.memory_space<vmem>>, vector<8x32xf32>
    %cst_55 = arith.constant dense<0.000000e+00> : vector<8x32xf32>
    %123 = tpu.matmul %121, %122, %cst_55 {dimension_numbers = #tpu.dot_dimension_numbers<[1], [0], [0], [1], [0, 0, 1, 1], [], []>} : vector<8x8xf32>, vector<8x32xf32>, vector<8x32xf32> -> vector<8x32xf32>
    %c0_56 = arith.constant 0 : index
    %c0_57 = arith.constant 0 : index
    %124 = vector.load %arg18[%c0_56, %c0_57] : memref<1x32xf32, #tpu.memory_space<vmem>>, vector<1x32xf32>
    %125 = vector.broadcast %124 : vector<1x32xf32> to vector<8x32xf32>
    %126 = arith.addf %123, %125 : vector<8x32xf32>
    %cst_58 = arith.constant 0.000000e+00 : f32
    %127 = vector.broadcast %cst_58 : f32 to vector<8x32xf32>
    %128 = arith.maximumf %126, %127 : vector<8x32xf32>
    %c0_59 = arith.constant 0 : index
    %c0_60 = arith.constant 0 : index
    %129 = vector.load %arg19[%c0_59, %c0_60] : memref<32x8xf32, #tpu.memory_space<vmem>>, vector<32x8xf32>
    %cst_61 = arith.constant dense<0.000000e+00> : vector<8x8xf32>
    %130 = tpu.matmul %128, %129, %cst_61 {dimension_numbers = #tpu.dot_dimension_numbers<[1], [0], [0], [1], [0, 0, 1, 1], [], []>} : vector<8x32xf32>, vector<32x8xf32>, vector<8x8xf32> -> vector<8x8xf32>
    %c0_62 = arith.constant 0 : index
    %c0_63 = arith.constant 0 : index
    %131 = vector.load %arg20[%c0_62, %c0_63] : memref<1x8xf32, #tpu.memory_space<vmem>>, vector<1x8xf32>
    %132 = vector.broadcast %131 : vector<1x8xf32> to vector<8x8xf32>
    %133 = arith.addf %130, %132 : vector<8x8xf32>
    %134 = arith.addf %121, %133 : vector<8x8xf32>
    %c0_64 = arith.constant 0 : index
    %c0_65 = arith.constant 0 : index
    %135 = vector.load %arg21[%c0_64, %c0_65] : memref<1x8xf32, #tpu.memory_space<vmem>>, vector<1x8xf32>
    %c0_66 = arith.constant 0 : index
    %c0_67 = arith.constant 0 : index
    %136 = vector.load %arg22[%c0_66, %c0_67] : memref<1x8xf32, #tpu.memory_space<vmem>>, vector<1x8xf32>
    %cst_68 = arith.constant dense<0.000000e+00> : vector<8xf32>
    %137 = vector.multi_reduction <add>, %134, %cst_68 [1] : vector<8x8xf32> to vector<8xf32>
    %138 = vector.shape_cast %137 : vector<8xf32> to vector<8x1xf32>
    %cst_69 = arith.constant 8.000000e+00 : f32
    %139 = vector.broadcast %cst_69 : f32 to vector<8x1xf32>
    %140 = arith.divf %138, %139 : vector<8x1xf32>
    %141 = vector.broadcast %140 : vector<8x1xf32> to vector<8x8xf32>
    %142 = arith.subf %134, %141 : vector<8x8xf32>
    %143 = arith.mulf %142, %142 : vector<8x8xf32>
    %cst_70 = arith.constant dense<0.000000e+00> : vector<8xf32>
    %144 = vector.multi_reduction <add>, %143, %cst_70 [1] : vector<8x8xf32> to vector<8xf32>
    %145 = vector.shape_cast %144 : vector<8xf32> to vector<8x1xf32>
    %cst_71 = arith.constant 8.000000e+00 : f32
    %146 = vector.broadcast %cst_71 : f32 to vector<8x1xf32>
    %147 = arith.divf %145, %146 : vector<8x1xf32>
    %148 = vector.broadcast %140 : vector<8x1xf32> to vector<8x8xf32>
    %149 = arith.subf %134, %148 : vector<8x8xf32>
    %cst_72 = arith.constant 9.99999974E-6 : f32
    %150 = vector.broadcast %cst_72 : f32 to vector<8x1xf32>
    %151 = arith.addf %147, %150 : vector<8x1xf32>
    %152 = math.rsqrt %151 : vector<8x1xf32>
    %153 = vector.broadcast %152 : vector<8x1xf32> to vector<8x8xf32>
    %154 = arith.mulf %149, %153 : vector<8x8xf32>
    %155 = vector.broadcast %135 : vector<1x8xf32> to vector<8x8xf32>
    %156 = arith.mulf %154, %155 : vector<8x8xf32>
    %157 = vector.broadcast %136 : vector<1x8xf32> to vector<8x8xf32>
    %158 = arith.addf %156, %157 : vector<8x8xf32>
    %c0_73 = arith.constant 0 : index
    %c0_74 = arith.constant 0 : index
    %c0_75 = arith.constant 0 : index
    %159 = vector.load %arg23[%c0_73, %c0_74, %c0_75] : memref<1x8x8xf32, #tpu.memory_space<vmem>>, vector<1x8x8xf32>
    %160 = vector.shape_cast %159 : vector<1x8x8xf32> to vector<8x8xf32>
    %161 = vector.shape_cast %158 : vector<8x8xf32> to vector<1x8x8xf32>
    tpu.vector_store %arg23[%c0_73, %c0_74, %c0_75], %161 {strides = array<i32>} : memref<1x8x8xf32, #tpu.memory_space<vmem>>, vector<1x8x8xf32>,
    return
  }
  func.func @transform_0(%arg0: i32) -> (i32, i32, i32) {
    %c0_i32 = arith.constant 0 : i32
    %c0_i32_0 = arith.constant 0 : i32
    %c0_i32_1 = arith.constant 0 : i32
    return %arg0, %c0_i32, %c0_i32_0 : i32, i32, i32
  }
  func.func @transform_1(%arg0: i32) -> (i32, i32, i32) {
    %c0_i32 = arith.constant 0 : i32
    %c0_i32_0 = arith.constant 0 : i32
    %c0_i32_1 = arith.constant 0 : i32
    return %arg0, %c0_i32, %c0_i32_0 : i32, i32, i32
  }
  func.func @transform_2(%arg0: i32) -> (i32, i32) {
    %c0_i32 = arith.constant 0 : i32
    %c0_i32_0 = arith.constant 0 : i32
    %c0_i32_1 = arith.constant 0 : i32
    return %c0_i32, %c0_i32_0 : i32, i32
  }
  func.func @transform_3(%arg0: i32) -> (i32, i32) {
    %c0_i32 = arith.constant 0 : i32
    %c0_i32_0 = arith.constant 0 : i32
    %c0_i32_1 = arith.constant 0 : i32
    return %c0_i32, %c0_i32_0 : i32, i32
  }
  func.func @transform_4(%arg0: i32) -> (i32, i32) {
    %c0_i32 = arith.constant 0 : i32
    %c0_i32_0 = arith.constant 0 : i32
    %c0_i32_1 = arith.constant 0 : i32
    return %c0_i32, %c0_i32_0 : i32, i32
  }
  func.func @transform_5(%arg0: i32) -> (i32, i32) {
    %c0_i32 = arith.constant 0 : i32
    %c0_i32_0 = arith.constant 0 : i32
    %c0_i32_1 = arith.constant 0 : i32
    return %c0_i32, %c0_i32_0 : i32, i32
  }
  func.func @transform_6(%arg0: i32) -> (i32, i32) {
    %c0_i32 = arith.constant 0 : i32
    %c0_i32_0 = arith.constant 0 : i32
    %c0_i32_1 = arith.constant 0 : i32
    return %c0_i32, %c0_i32_0 : i32, i32
  }
  func.func @transform_7(%arg0: i32) -> (i32, i32) {
    %c0_i32 = arith.constant 0 : i32
    %c0_i32_0 = arith.constant 0 : i32
    %c0_i32_1 = arith.constant 0 : i32
    return %c0_i32, %c0_i32_0 : i32, i32
  }
  func.func @transform_8(%arg0: i32) -> (i32, i32) {
    %c0_i32 = arith.constant 0 : i32
    %c0_i32_0 = arith.constant 0 : i32
    %c0_i32_1 = arith.constant 0 : i32
    return %c0_i32, %c0_i32_0 : i32, i32
  }
  func.func @transform_9(%arg0: i32) -> (i32, i32) {
    %c0_i32 = arith.constant 0 : i32
    %c0_i32_0 = arith.constant 0 : i32
    %c0_i32_1 = arith.constant 0 : i32
    return %c0_i32, %c0_i32_0 : i32, i32
  }
  func.func @transform_10(%arg0: i32) -> (i32, i32) {
    %c0_i32 = arith.constant 0 : i32
    %c0_i32_0 = arith.constant 0 : i32
    %c0_i32_1 = arith.constant 0 : i32
    return %c0_i32, %c0_i32_0 : i32, i32
  }
  func.func @transform_11(%arg0: i32) -> (i32, i32) {
    %c0_i32 = arith.constant 0 : i32
    %c0_i32_0 = arith.constant 0 : i32
    %c0_i32_1 = arith.constant 0 : i32
    return %c0_i32, %c0_i32_0 : i32, i32
  }
  func.func @transform_12(%arg0: i32) -> (i32, i32) {
    %c0_i32 = arith.constant 0 : i32
    %c0_i32_0 = arith.constant 0 : i32
    %c0_i32_1 = arith.constant 0 : i32
    return %c0_i32, %c0_i32_0 : i32, i32
  }
  func.func @transform_13(%arg0: i32) -> (i32, i32) {
    %c0_i32 = arith.constant 0 : i32
    %c0_i32_0 = arith.constant 0 : i32
    %c0_i32_1 = arith.constant 0 : i32
    return %c0_i32, %c0_i32_0 : i32, i32
  }
  func.func @transform_14(%arg0: i32) -> (i32, i32) {
    %c0_i32 = arith.constant 0 : i32
    %c0_i32_0 = arith.constant 0 : i32
    %c0_i32_1 = arith.constant 0 : i32
    return %c0_i32, %c0_i32_0 : i32, i32
  }
  func.func @transform_15(%arg0: i32) -> (i32, i32) {
    %c0_i32 = arith.constant 0 : i32
    %c0_i32_0 = arith.constant 0 : i32
    %c0_i32_1 = arith.constant 0 : i32
    return %c0_i32, %c0_i32_0 : i32, i32
  }
  func.func @transform_16(%arg0: i32) -> (i32, i32) {
    %c0_i32 = arith.constant 0 : i32
    %c0_i32_0 = arith.constant 0 : i32
    %c0_i32_1 = arith.constant 0 : i32
    return %c0_i32, %c0_i32_0 : i32, i32
  }
  func.func @transform_17(%arg0: i32) -> (i32, i32) {
    %c0_i32 = arith.constant 0 : i32
    %c0_i32_0 = arith.constant 0 : i32
    %c0_i32_1 = arith.constant 0 : i32
    return %c0_i32, %c0_i32_0 : i32, i32
  }
  func.func @transform_18(%arg0: i32) -> (i32, i32) {
    %c0_i32 = arith.constant 0 : i32
    %c0_i32_0 = arith.constant 0 : i32
    %c0_i32_1 = arith.constant 0 : i32
    return %c0_i32, %c0_i32_0 : i32, i32
  }
  func.func @transform_19(%arg0: i32) -> (i32, i32) {
    %c0_i32 = arith.constant 0 : i32
    %c0_i32_0 = arith.constant 0 : i32
    %c0_i32_1 = arith.constant 0 : i32
    return %c0_i32, %c0_i32_0 : i32, i32
  }
  func.func @transform_20(%arg0: i32) -> (i32, i32) {
    %c0_i32 = arith.constant 0 : i32
    %c0_i32_0 = arith.constant 0 : i32
    %c0_i32_1 = arith.constant 0 : i32
    return %c0_i32, %c0_i32_0 : i32, i32
  }
  func.func @transform_21(%arg0: i32) -> (i32, i32) {
    %c0_i32 = arith.constant 0 : i32
    %c0_i32_0 = arith.constant 0 : i32
    %c0_i32_1 = arith.constant 0 : i32
    return %c0_i32, %c0_i32_0 : i32, i32
  }
  func.func @transform_22(%arg0: i32) -> (i32, i32, i32) {
    %c0_i32 = arith.constant 0 : i32
    %c0_i32_0 = arith.constant 0 : i32
    %c0_i32_1 = arith.constant 0 : i32
    return %arg0, %c0_i32, %c0_i32_0 : i32, i32, i32
  }
}

module attributes {stable_mosaic.version = 11 : i64} {
  func.func @_output_kernel(%arg0: i32, %arg1: memref<16x8xf32, #tpu.memory_space<vmem>>, %arg2: memref<8x64xf32, #tpu.memory_space<vmem>>, %arg3: memref<1x64xf32, #tpu.memory_space<vmem>>, %arg4: memref<1x1xf32, #tpu.memory_space<vmem>>, %arg5: memref<16x64xf32, #tpu.memory_space<vmem>>) attributes {dimension_semantics = [#tpu.dimension_semantics<parallel>], iteration_bounds = array<i64: 1>, scalar_prefetch = 0 : i64, scratch_operands = 0 : i64, tpu.core_type = #tpu.core_type<tc>, window_params = [{pipeline_mode = #tpu.pipeline_mode<synchronous>, transform_indices = @transform_0, window_bounds = array<i64: 16, 8>}, {transform_indices = @transform_1, window_bounds = array<i64: 8, 64>}, {transform_indices = @transform_2, window_bounds = array<i64: 1, 64>}, {pipeline_mode = #tpu.pipeline_mode<synchronous>, transform_indices = @transform_3, window_bounds = array<i64: 1, 1>}, {transform_indices = @transform_4, window_bounds = array<i64: 16, 64>}]} {
    %c0 = arith.constant 0 : index
    %c0_0 = arith.constant 0 : index
    %0 = vector.load %arg1[%c0, %c0_0] : memref<16x8xf32, #tpu.memory_space<vmem>>, vector<16x8xf32>
    %c0_1 = arith.constant 0 : index
    %c0_2 = arith.constant 0 : index
    %1 = vector.load %arg2[%c0_1, %c0_2] : memref<8x64xf32, #tpu.memory_space<vmem>>, vector<8x64xf32>
    %cst = arith.constant dense<0.000000e+00> : vector<16x64xf32>
    %2 = tpu.matmul %0, %1, %cst {dimension_numbers = #tpu.dot_dimension_numbers<[1], [0], [0], [1], [0, 0, 1, 1], [], []>} : vector<16x8xf32>, vector<8x64xf32>, vector<16x64xf32> -> vector<16x64xf32>
    %c0_3 = arith.constant 0 : index
    %c0_4 = arith.constant 0 : index
    %3 = vector.load %arg3[%c0_3, %c0_4] : memref<1x64xf32, #tpu.memory_space<vmem>>, vector<1x64xf32>
    %4 = vector.broadcast %3 : vector<1x64xf32> to vector<16x64xf32>
    %5 = arith.addf %2, %4 : vector<16x64xf32>
    %c0_5 = arith.constant 0 : index
    %c0_6 = arith.constant 0 : index
    %6 = vector.load %arg4[%c0_5, %c0_6] : memref<1x1xf32, #tpu.memory_space<vmem>>, vector<1x1xf32>
    %7 = vector.broadcast %6 : vector<1x1xf32> to vector<16x64xf32>
    %8 = arith.mulf %5, %7 : vector<16x64xf32>
    %c0_7 = arith.constant 0 : index
    %c0_8 = arith.constant 0 : index
    %9 = vector.load %arg5[%c0_7, %c0_8] : memref<16x64xf32, #tpu.memory_space<vmem>>, vector<16x64xf32>
    tpu.vector_store %arg5[%c0_7, %c0_8], %8 {strides = array<i32>} : memref<16x64xf32, #tpu.memory_space<vmem>>, vector<16x64xf32>,
    return
  }
  func.func @transform_0(%arg0: i32) -> (i32, i32) {
    %c0_i32 = arith.constant 0 : i32
    %c0_i32_0 = arith.constant 0 : i32
    %c0_i32_1 = arith.constant 0 : i32
    return %c0_i32, %c0_i32_0 : i32, i32
  }
  func.func @transform_1(%arg0: i32) -> (i32, i32) {
    %c0_i32 = arith.constant 0 : i32
    %c0_i32_0 = arith.constant 0 : i32
    return %c0_i32, %arg0 : i32, i32
  }
  func.func @transform_2(%arg0: i32) -> (i32, i32) {
    %c0_i32 = arith.constant 0 : i32
    %c0_i32_0 = arith.constant 0 : i32
    return %c0_i32, %arg0 : i32, i32
  }
  func.func @transform_3(%arg0: i32) -> (i32, i32) {
    %c0_i32 = arith.constant 0 : i32
    %c0_i32_0 = arith.constant 0 : i32
    %c0_i32_1 = arith.constant 0 : i32
    return %c0_i32, %c0_i32_0 : i32, i32
  }
  func.func @transform_4(%arg0: i32) -> (i32, i32) {
    %c0_i32 = arith.constant 0 : i32
    %c0_i32_0 = arith.constant 0 : i32
    return %c0_i32, %arg0 : i32, i32
  }
}

module attributes {stable_mosaic.version = 11 : i64} {
  func.func @_decoder_layer_kernel(%arg0: i32, %arg1: memref<1x8x8xf32, #tpu.memory_space<vmem>>, %arg2: memref<1x8x8xf32, #tpu.memory_space<vmem>>, %arg3: memref<8x24xf32, #tpu.memory_space<vmem>>, %arg4: memref<1x24xf32, #tpu.memory_space<vmem>>, %arg5: memref<8x8xf32, #tpu.memory_space<vmem>>, %arg6: memref<1x8xf32, #tpu.memory_space<vmem>>, %arg7: memref<1x8xf32, #tpu.memory_space<vmem>>, %arg8: memref<1x8xf32, #tpu.memory_space<vmem>>, %arg9: memref<8x8xf32, #tpu.memory_space<vmem>>, %arg10: memref<1x8xf32, #tpu.memory_space<vmem>>, %arg11: memref<8x16xf32, #tpu.memory_space<vmem>>, %arg12: memref<1x16xf32, #tpu.memory_space<vmem>>, %arg13: memref<8x8xf32, #tpu.memory_space<vmem>>, %arg14: memref<1x8xf32, #tpu.memory_space<vmem>>, %arg15: memref<1x8xf32, #tpu.memory_space<vmem>>, %arg16: memref<1x8xf32, #tpu.memory_space<vmem>>, %arg17: memref<8x32xf32, #tpu.memory_space<vmem>>, %arg18: memref<1x32xf32, #tpu.memory_space<vmem>>, %arg19: memref<32x8xf32, #tpu.memory_space<vmem>>, %arg20: memref<1x8xf32, #tpu.memory_space<vmem>>, %arg21: memref<1x8xf32, #tpu.memory_space<vmem>>, %arg22: memref<1x8xf32, #tpu.memory_space<vmem>>, %arg23: memref<1x8x8xf32, #tpu.memory_space<vmem>>) attributes {dimension_semantics = [#tpu.dimension_semantics<parallel>], iteration_bounds = array<i64: 2>, scalar_prefetch = 0 : i64, scratch_operands = 0 : i64, tpu.core_type = #tpu.core_type<tc>, window_params = [{transform_indices = @transform_0, window_bounds = array<i64: 1, 8, 8>}, {transform_indices = @transform_1, window_bounds = array<i64: 1, 8, 8>}, {pipeline_mode = #tpu.pipeline_mode<synchronous>, transform_indices = @transform_2, window_bounds = array<i64: 8, 24>}, {pipeline_mode = #tpu.pipeline_mode<synchronous>, transform_indices = @transform_3, window_bounds = array<i64: 1, 24>}, {pipeline_mode = #tpu.pipeline_mode<synchronous>, transform_indices = @transform_4, window_bounds = array<i64: 8, 8>}, {pipeline_mode = #tpu.pipeline_mode<synchronous>, transform_indices = @transform_5, window_bounds = array<i64: 1, 8>}, {pipeline_mode = #tpu.pipeline_mode<synchronous>, transform_indices = @transform_6, window_bounds = array<i64: 1, 8>}, {pipeline_mode = #tpu.pipeline_mode<synchronous>, transform_indices = @transform_7, window_bounds = array<i64: 1, 8>}, {pipeline_mode = #tpu.pipeline_mode<synchronous>, transform_indices = @transform_8, window_bounds = array<i64: 8, 8>}, {pipeline_mode = #tpu.pipeline_mode<synchronous>, transform_indices = @transform_9, window_bounds = array<i64: 1, 8>}, {pipeline_mode = #tpu.pipeline_mode<synchronous>, transform_indices = @transform_10, window_bounds = array<i64: 8, 16>}, {pipeline_mode = #tpu.pipeline_mode<synchronous>, transform_indices = @transform_11, window_bounds = array<i64: 1, 16>}, {pipeline_mode = #tpu.pipeline_mode<synchronous>, transform_indices = @transform_12, window_bounds = array<i64: 8, 8>}, {pipeline_mode = #tpu.pipeline_mode<synchronous>, transform_indices = @transform_13, window_bounds = array<i64: 1, 8>}, {pipeline_mode = #tpu.pipeline_mode<synchronous>, transform_indices = @transform_14, window_bounds = array<i64: 1, 8>}, {pipeline_mode = #tpu.pipeline_mode<synchronous>, transform_indices = @transform_15, window_bounds = array<i64: 1, 8>}, {pipeline_mode = #tpu.pipeline_mode<synchronous>, transform_indices = @transform_16, window_bounds = array<i64: 8, 32>}, {pipeline_mode = #tpu.pipeline_mode<synchronous>, transform_indices = @transform_17, window_bounds = array<i64: 1, 32>}, {pipeline_mode = #tpu.pipeline_mode<synchronous>, transform_indices = @transform_18, window_bounds = array<i64: 32, 8>}, {pipeline_mode = #tpu.pipeline_mode<synchronous>, transform_indices = @transform_19, window_bounds = array<i64: 1, 8>}, {pipeline_mode = #tpu.pipeline_mode<synchronous>, transform_indices = @transform_20, window_bounds = array<i64: 1, 8>}, {pipeline_mode = #tpu.pipeline_mode<synchronous>, transform_indices = @transform_21, window_bounds = array<i64: 1, 8>}, {transform_indices = @transform_22, window_bounds = array<i64: 1, 8, 8>}]} {
    %c0 = arith.constant 0 : index
    %c0_0 = arith.constant 0 : index
    %c0_1 = arith.constant 0 : index
    %0 = vector.load %arg1[%c0, %c0_0, %c0_1] : memref<1x8x8xf32, #tpu.memory_space<vmem>>, vector<1x8x8xf32>
    %1 = vector.shape_cast %0 : vector<1x8x8xf32> to vector<8x8xf32>
    %c0_2 = arith.constant 0 : index
    %c0_3 = arith.constant 0 : index
    %c0_4 = arith.constant 0 : index
    %2 = vector.load %arg2[%c0_2, %c0_3, %c0_4] : memref<1x8x8xf32, #tpu.memory_space<vmem>>, vector<1x8x8xf32>
    %3 = vector.shape_cast %2 : vector<1x8x8xf32> to vector<8x8xf32>
    %c0_5 = arith.constant 0 : index
    %c0_6 = arith.constant 0 : index
    %4 = vector.load %arg3[%c0_5, %c0_6] : memref<8x24xf32, #tpu.memory_space<vmem>>, vector<8x24xf32>
    %cst = arith.constant dense<0.000000e+00> : vector<8x24xf32>
    %5 = tpu.matmul %1, %4, %cst {dimension_numbers = #tpu.dot_dimension_numbers<[1], [0], [0], [1], [0, 0, 1, 1], [], []>} : vector<8x8xf32>, vector<8x24xf32>, vector<8x24xf32> -> vector<8x24xf32>
    %c0_7 = arith.constant 0 : index
    %c0_8 = arith.constant 0 : index
    %6 = vector.load %arg4[%c0_7, %c0_8] : memref<1x24xf32, #tpu.memory_space<vmem>>, vector<1x24xf32>
    %7 = vector.broadcast %6 : vector<1x24xf32> to vector<8x24xf32>
    %8 = arith.addf %5, %7 : vector<8x24xf32>
    %9 = vector.extract_strided_slice %8 {offsets = [0, 0], sizes = [8, 8], strides = [1, 1]} : vector<8x24xf32> to vector<8x8xf32>
    %10 = vector.extract_strided_slice %8 {offsets = [0, 8], sizes = [8, 8], strides = [1, 1]} : vector<8x24xf32> to vector<8x8xf32>
    %11 = vector.extract_strided_slice %8 {offsets = [0, 16], sizes = [8, 8], strides = [1, 1]} : vector<8x24xf32> to vector<8x8xf32>
    %12 = vector.shape_cast %9 : vector<8x8xf32> to vector<8x1x8xf32>
    %13 = vector.shape_cast %10 : vector<8x8xf32> to vector<1x8x8xf32>
    %14 = vector.broadcast %12 : vector<8x1x8xf32> to vector<8x8x8xf32>
    %15 = vector.broadcast %13 : vector<1x8x8xf32> to vector<8x8x8xf32>
    %16 = arith.mulf %14, %15 : vector<8x8x8xf32>
    %cst_9 = arith.constant dense<0xFF800000> : vector<8x8xf32>
    %17 = vector.multi_reduction <maximumf>, %16, %cst_9 [1] : vector<8x8x8xf32> to vector<8x8xf32>
    %18 = vector.shape_cast %17 : vector<8x8xf32> to vector<8x1x8xf32>
    %19 = vector.broadcast %18 : vector<8x1x8xf32> to vector<8x8x8xf32>
    %20 = arith.subf %16, %19 : vector<8x8x8xf32>
    %21 = math.exp %20 : vector<8x8x8xf32>
    %cst_10 = arith.constant dense<0.000000e+00> : vector<8x8xf32>
    %22 = vector.multi_reduction <add>, %21, %cst_10 [1] : vector<8x8x8xf32> to vector<8x8xf32>
    %23 = vector.shape_cast %22 : vector<8x8xf32> to vector<8x1x8xf32>
    %24 = tpu.reciprocal %23 {approx = true} : vector<8x1x8xf32> -> vector<8x1x8xf32>
    %25 = vector.broadcast %24 : vector<8x1x8xf32> to vector<8x8x8xf32>
    %26 = arith.mulf %21, %25 : vector<8x8x8xf32>
    %27 = vector.shape_cast %11 : vector<8x8xf32> to vector<1x8x8xf32>
    %28 = vector.broadcast %27 : vector<1x8x8xf32> to vector<8x8x8xf32>
    %29 = arith.mulf %26, %28 : vector<8x8x8xf32>
    %cst_11 = arith.constant dense<0.000000e+00> : vector<8x8xf32>
    %30 = vector.multi_reduction <add>, %29, %cst_11 [1] : vector<8x8x8xf32> to vector<8x8xf32>
    %c0_12 = arith.constant 0 : index
    %c0_13 = arith.constant 0 : index
    %31 = vector.load %arg5[%c0_12, %c0_13] : memref<8x8xf32, #tpu.memory_space<vmem>>, vector<8x8xf32>
    %cst_14 = arith.constant dense<0.000000e+00> : vector<8x8xf32>
    %32 = tpu.matmul %30, %31, %cst_14 {dimension_numbers = #tpu.dot_dimension_numbers<[1], [0], [0], [1], [0, 0, 1, 1], [], []>} : vector<8x8xf32>, vector<8x8xf32>, vector<8x8xf32> -> vector<8x8xf32>
    %c0_15 = arith.constant 0 : index
    %c0_16 = arith.constant 0 : index
    %33 = vector.load %arg6[%c0_15, %c0_16] : memref<1x8xf32, #tpu.memory_space<vmem>>, vector<1x8xf32>
    %34 = vector.broadcast %33 : vector<1x8xf32> to vector<8x8xf32>
    %35 = arith.addf %32, %34 : vector<8x8xf32>
    %36 = arith.addf %1, %35 : vector<8x8xf32>
    %c0_17 = arith.constant 0 : index
    %c0_18 = arith.constant 0 : index
    %37 = vector.load %arg7[%c0_17, %c0_18] : memref<1x8xf32, #tpu.memory_space<vmem>>, vector<1x8xf32>
    %c0_19 = arith.constant 0 : index
    %c0_20 = arith.constant 0 : index
    %38 = vector.load %arg8[%c0_19, %c0_20] : memref<1x8xf32, #tpu.memory_space<vmem>>, vector<1x8xf32>
    %cst_21 = arith.constant dense<0.000000e+00> : vector<8xf32>
    %39 = vector.multi_reduction <add>, %36, %cst_21 [1] : vector<8x8xf32> to vector<8xf32>
    %40 = vector.shape_cast %39 : vector<8xf32> to vector<8x1xf32>
    %cst_22 = arith.constant 8.000000e+00 : f32
    %41 = vector.broadcast %cst_22 : f32 to vector<8x1xf32>
    %42 = arith.divf %40, %41 : vector<8x1xf32>
    %43 = vector.broadcast %42 : vector<8x1xf32> to vector<8x8xf32>
    %44 = arith.subf %36, %43 : vector<8x8xf32>
    %45 = arith.mulf %44, %44 : vector<8x8xf32>
    %cst_23 = arith.constant dense<0.000000e+00> : vector<8xf32>
    %46 = vector.multi_reduction <add>, %45, %cst_23 [1] : vector<8x8xf32> to vector<8xf32>
    %47 = vector.shape_cast %46 : vector<8xf32> to vector<8x1xf32>
    %cst_24 = arith.constant 8.000000e+00 : f32
    %48 = vector.broadcast %cst_24 : f32 to vector<8x1xf32>
    %49 = arith.divf %47, %48 : vector<8x1xf32>
    %50 = vector.broadcast %42 : vector<8x1xf32> to vector<8x8xf32>
    %51 = arith.subf %36, %50 : vector<8x8xf32>
    %cst_25 = arith.constant 9.99999974E-6 : f32
    %52 = vector.broadcast %cst_25 : f32 to vector<8x1xf32>
    %53 = arith.addf %49, %52 : vector<8x1xf32>
    %54 = math.rsqrt %53 : vector<8x1xf32>
    %55 = vector.broadcast %54 : vector<8x1xf32> to vector<8x8xf32>
    %56 = arith.mulf %51, %55 : vector<8x8xf32>
    %57 = vector.broadcast %37 : vector<1x8xf32> to vector<8x8xf32>
    %58 = arith.mulf %56, %57 : vector<8x8xf32>
    %59 = vector.broadcast %38 : vector<1x8xf32> to vector<8x8xf32>
    %60 = arith.addf %58, %59 : vector<8x8xf32>
    %c0_26 = arith.constant 0 : index
    %c0_27 = arith.constant 0 : index
    %61 = vector.load %arg9[%c0_26, %c0_27] : memref<8x8xf32, #tpu.memory_space<vmem>>, vector<8x8xf32>
    %cst_28 = arith.constant dense<0.000000e+00> : vector<8x8xf32>
    %62 = tpu.matmul %60, %61, %cst_28 {dimension_numbers = #tpu.dot_dimension_numbers<[1], [0], [0], [1], [0, 0, 1, 1], [], []>} : vector<8x8xf32>, vector<8x8xf32>, vector<8x8xf32> -> vector<8x8xf32>
    %c0_29 = arith.constant 0 : index
    %c0_30 = arith.constant 0 : index
    %63 = vector.load %arg10[%c0_29, %c0_30] : memref<1x8xf32, #tpu.memory_space<vmem>>, vector<1x8xf32>
    %64 = vector.broadcast %63 : vector<1x8xf32> to vector<8x8xf32>
    %65 = arith.addf %62, %64 : vector<8x8xf32>
    %c0_31 = arith.constant 0 : index
    %c0_32 = arith.constant 0 : index
    %66 = vector.load %arg11[%c0_31, %c0_32] : memref<8x16xf32, #tpu.memory_space<vmem>>, vector<8x16xf32>
    %cst_33 = arith.constant dense<0.000000e+00> : vector<8x16xf32>
    %67 = tpu.matmul %3, %66, %cst_33 {dimension_numbers = #tpu.dot_dimension_numbers<[1], [0], [0], [1], [0, 0, 1, 1], [], []>} : vector<8x8xf32>, vector<8x16xf32>, vector<8x16xf32> -> vector<8x16xf32>
    %c0_34 = arith.constant 0 : index
    %c0_35 = arith.constant 0 : index
    %68 = vector.load %arg12[%c0_34, %c0_35] : memref<1x16xf32, #tpu.memory_space<vmem>>, vector<1x16xf32>
    %69 = vector.broadcast %68 : vector<1x16xf32> to vector<8x16xf32>
    %70 = arith.addf %67, %69 : vector<8x16xf32>
    %71 = vector.extract_strided_slice %70 {offsets = [0, 0], sizes = [8, 8], strides = [1, 1]} : vector<8x16xf32> to vector<8x8xf32>
    %72 = vector.extract_strided_slice %70 {offsets = [0, 8], sizes = [8, 8], strides = [1, 1]} : vector<8x16xf32> to vector<8x8xf32>
    %73 = vector.shape_cast %65 : vector<8x8xf32> to vector<8x1x8xf32>
    %74 = vector.shape_cast %71 : vector<8x8xf32> to vector<1x8x8xf32>
    %75 = vector.broadcast %73 : vector<8x1x8xf32> to vector<8x8x8xf32>
    %76 = vector.broadcast %74 : vector<1x8x8xf32> to vector<8x8x8xf32>
    %77 = arith.mulf %75, %76 : vector<8x8x8xf32>
    %cst_36 = arith.constant dense<0xFF800000> : vector<8x8xf32>
    %78 = vector.multi_reduction <maximumf>, %77, %cst_36 [1] : vector<8x8x8xf32> to vector<8x8xf32>
    %79 = vector.shape_cast %78 : vector<8x8xf32> to vector<8x1x8xf32>
    %80 = vector.broadcast %79 : vector<8x1x8xf32> to vector<8x8x8xf32>
    %81 = arith.subf %77, %80 : vector<8x8x8xf32>
    %82 = math.exp %81 : vector<8x8x8xf32>
    %cst_37 = arith.constant dense<0.000000e+00> : vector<8x8xf32>
    %83 = vector.multi_reduction <add>, %82, %cst_37 [1] : vector<8x8x8xf32> to vector<8x8xf32>
    %84 = vector.shape_cast %83 : vector<8x8xf32> to vector<8x1x8xf32>
    %85 = tpu.reciprocal %84 {approx = true} : vector<8x1x8xf32> -> vector<8x1x8xf32>
    %86 = vector.broadcast %85 : vector<8x1x8xf32> to vector<8x8x8xf32>
    %87 = arith.mulf %82, %86 : vector<8x8x8xf32>
    %88 = vector.shape_cast %72 : vector<8x8xf32> to vector<1x8x8xf32>
    %89 = vector.broadcast %88 : vector<1x8x8xf32> to vector<8x8x8xf32>
    %90 = arith.mulf %87, %89 : vector<8x8x8xf32>
    %cst_38 = arith.constant dense<0.000000e+00> : vector<8x8xf32>
    %91 = vector.multi_reduction <add>, %90, %cst_38 [1] : vector<8x8x8xf32> to vector<8x8xf32>
    %c0_39 = arith.constant 0 : index
    %c0_40 = arith.constant 0 : index
    %92 = vector.load %arg13[%c0_39, %c0_40] : memref<8x8xf32, #tpu.memory_space<vmem>>, vector<8x8xf32>
    %cst_41 = arith.constant dense<0.000000e+00> : vector<8x8xf32>
    %93 = tpu.matmul %91, %92, %cst_41 {dimension_numbers = #tpu.dot_dimension_numbers<[1], [0], [0], [1], [0, 0, 1, 1], [], []>} : vector<8x8xf32>, vector<8x8xf32>, vector<8x8xf32> -> vector<8x8xf32>
    %c0_42 = arith.constant 0 : index
    %c0_43 = arith.constant 0 : index
    %94 = vector.load %arg14[%c0_42, %c0_43] : memref<1x8xf32, #tpu.memory_space<vmem>>, vector<1x8xf32>
    %95 = vector.broadcast %94 : vector<1x8xf32> to vector<8x8xf32>
    %96 = arith.addf %93, %95 : vector<8x8xf32>
    %97 = arith.addf %60, %96 : vector<8x8xf32>
    %c0_44 = arith.constant 0 : index
    %c0_45 = arith.constant 0 : index
    %98 = vector.load %arg15[%c0_44, %c0_45] : memref<1x8xf32, #tpu.memory_space<vmem>>, vector<1x8xf32>
    %c0_46 = arith.constant 0 : index
    %c0_47 = arith.constant 0 : index
    %99 = vector.load %arg16[%c0_46, %c0_47] : memref<1x8xf32, #tpu.memory_space<vmem>>, vector<1x8xf32>
    %cst_48 = arith.constant dense<0.000000e+00> : vector<8xf32>
    %100 = vector.multi_reduction <add>, %97, %cst_48 [1] : vector<8x8xf32> to vector<8xf32>
    %101 = vector.shape_cast %100 : vector<8xf32> to vector<8x1xf32>
    %cst_49 = arith.constant 8.000000e+00 : f32
    %102 = vector.broadcast %cst_49 : f32 to vector<8x1xf32>
    %103 = arith.divf %101, %102 : vector<8x1xf32>
    %104 = vector.broadcast %103 : vector<8x1xf32> to vector<8x8xf32>
    %105 = arith.subf %97, %104 : vector<8x8xf32>
    %106 = arith.mulf %105, %105 : vector<8x8xf32>
    %cst_50 = arith.constant dense<0.000000e+00> : vector<8xf32>
    %107 = vector.multi_reduction <add>, %106, %cst_50 [1] : vector<8x8xf32> to vector<8xf32>
    %108 = vector.shape_cast %107 : vector<8xf32> to vector<8x1xf32>
    %cst_51 = arith.constant 8.000000e+00 : f32
    %109 = vector.broadcast %cst_51 : f32 to vector<8x1xf32>
    %110 = arith.divf %108, %109 : vector<8x1xf32>
    %111 = vector.broadcast %103 : vector<8x1xf32> to vector<8x8xf32>
    %112 = arith.subf %97, %111 : vector<8x8xf32>
    %cst_52 = arith.constant 9.99999974E-6 : f32
    %113 = vector.broadcast %cst_52 : f32 to vector<8x1xf32>
    %114 = arith.addf %110, %113 : vector<8x1xf32>
    %115 = math.rsqrt %114 : vector<8x1xf32>
    %116 = vector.broadcast %115 : vector<8x1xf32> to vector<8x8xf32>
    %117 = arith.mulf %112, %116 : vector<8x8xf32>
    %118 = vector.broadcast %98 : vector<1x8xf32> to vector<8x8xf32>
    %119 = arith.mulf %117, %118 : vector<8x8xf32>
    %120 = vector.broadcast %99 : vector<1x8xf32> to vector<8x8xf32>
    %121 = arith.addf %119, %120 : vector<8x8xf32>
    %c0_53 = arith.constant 0 : index
    %c0_54 = arith.constant 0 : index
    %122 = vector.load %arg17[%c0_53, %c0_54] : memref<8x32xf32, #tpu.memory_space<vmem>>, vector<8x32xf32>
    %cst_55 = arith.constant dense<0.000000e+00> : vector<8x32xf32>
    %123 = tpu.matmul %121, %122, %cst_55 {dimension_numbers = #tpu.dot_dimension_numbers<[1], [0], [0], [1], [0, 0, 1, 1], [], []>} : vector<8x8xf32>, vector<8x32xf32>, vector<8x32xf32> -> vector<8x32xf32>
    %c0_56 = arith.constant 0 : index
    %c0_57 = arith.constant 0 : index
    %124 = vector.load %arg18[%c0_56, %c0_57] : memref<1x32xf32, #tpu.memory_space<vmem>>, vector<1x32xf32>
    %125 = vector.broadcast %124 : vector<1x32xf32> to vector<8x32xf32>
    %126 = arith.addf %123, %125 : vector<8x32xf32>
    %cst_58 = arith.constant 0.000000e+00 : f32
    %127 = vector.broadcast %cst_58 : f32 to vector<8x32xf32>
    %128 = arith.maximumf %126, %127 : vector<8x32xf32>
    %c0_59 = arith.constant 0 : index
    %c0_60 = arith.constant 0 : index
    %129 = vector.load %arg19[%c0_59, %c0_60] : memref<32x8xf32, #tpu.memory_space<vmem>>, vector<32x8xf32>
    %cst_61 = arith.constant dense<0.000000e+00> : vector<8x8xf32>
    %130 = tpu.matmul %128, %129, %cst_61 {dimension_numbers = #tpu.dot_dimension_numbers<[1], [0], [0], [1], [0, 0, 1, 1], [], []>} : vector<8x32xf32>, vector<32x8xf32>, vector<8x8xf32> -> vector<8x8xf32>
    %c0_62 = arith.constant 0 : index
    %c0_63 = arith.constant 0 : index
    %131 = vector.load %arg20[%c0_62, %c0_63] : memref<1x8xf32, #tpu.memory_space<vmem>>, vector<1x8xf32>
    %132 = vector.broadcast %131 : vector<1x8xf32> to vector<8x8xf32>
    %133 = arith.addf %130, %132 : vector<8x8xf32>
    %134 = arith.addf %121, %133 : vector<8x8xf32>
    %c0_64 = arith.constant 0 : index
    %c0_65 = arith.constant 0 : index
    %135 = vector.load %arg21[%c0_64, %c0_65] : memref<1x8xf32, #tpu.memory_space<vmem>>, vector<1x8xf32>
    %c0_66 = arith.constant 0 : index
    %c0_67 = arith.constant 0 : index
    %136 = vector.load %arg22[%c0_66, %c0_67] : memref<1x8xf32, #tpu.memory_space<vmem>>, vector<1x8xf32>
    %cst_68 = arith.constant dense<0.000000e+00> : vector<8xf32>
    %137 = vector.multi_reduction <add>, %134, %cst_68 [1] : vector<8x8xf32> to vector<8xf32>
    %138 = vector.shape_cast %137 : vector<8xf32> to vector<8x1xf32>
    %cst_69 = arith.constant 8.000000e+00 : f32
    %139 = vector.broadcast %cst_69 : f32 to vector<8x1xf32>
    %140 = arith.divf %138, %139 : vector<8x1xf32>
    %141 = vector.broadcast %140 : vector<8x1xf32> to vector<8x8xf32>
    %142 = arith.subf %134, %141 : vector<8x8xf32>
    %143 = arith.mulf %142, %142 : vector<8x8xf32>
    %cst_70 = arith.constant dense<0.000000e+00> : vector<8xf32>
    %144 = vector.multi_reduction <add>, %143, %cst_70 [1] : vector<8x8xf32> to vector<8xf32>
    %145 = vector.shape_cast %144 : vector<8xf32> to vector<8x1xf32>
    %cst_71 = arith.constant 8.000000e+00 : f32
    %146 = vector.broadcast %cst_71 : f32 to vector<8x1xf32>
    %147 = arith.divf %145, %146 : vector<8x1xf32>
    %148 = vector.broadcast %140 : vector<8x1xf32> to vector<8x8xf32>
    %149 = arith.subf %134, %148 : vector<8x8xf32>
    %cst_72 = arith.constant 9.99999974E-6 : f32
    %150 = vector.broadcast %cst_72 : f32 to vector<8x1xf32>
    %151 = arith.addf %147, %150 : vector<8x1xf32>
    %152 = math.rsqrt %151 : vector<8x1xf32>
    %153 = vector.broadcast %152 : vector<8x1xf32> to vector<8x8xf32>
    %154 = arith.mulf %149, %153 : vector<8x8xf32>
    %155 = vector.broadcast %135 : vector<1x8xf32> to vector<8x8xf32>
    %156 = arith.mulf %154, %155 : vector<8x8xf32>
    %157 = vector.broadcast %136 : vector<1x8xf32> to vector<8x8xf32>
    %158 = arith.addf %156, %157 : vector<8x8xf32>
    %c0_73 = arith.constant 0 : index
    %c0_74 = arith.constant 0 : index
    %c0_75 = arith.constant 0 : index
    %159 = vector.load %arg23[%c0_73, %c0_74, %c0_75] : memref<1x8x8xf32, #tpu.memory_space<vmem>>, vector<1x8x8xf32>
    %160 = vector.shape_cast %159 : vector<1x8x8xf32> to vector<8x8xf32>
    %161 = vector.shape_cast %158 : vector<8x8xf32> to vector<1x8x8xf32>
    tpu.vector_store %arg23[%c0_73, %c0_74, %c0_75], %161 {strides = array<i32>} : memref<1x8x8xf32, #tpu.memory_space<vmem>>, vector<1x8x8xf32>,
    return
  }
  func.func @transform_0(%arg0: i32) -> (i32, i32, i32) {
    %c0_i32 = arith.constant 0 : i32
    %c0_i32_0 = arith.constant 0 : i32
    %c0_i32_1 = arith.constant 0 : i32
    return %arg0, %c0_i32, %c0_i32_0 : i32, i32, i32
  }
  func.func @transform_1(%arg0: i32) -> (i32, i32, i32) {
    %c0_i32 = arith.constant 0 : i32
    %c0_i32_0 = arith.constant 0 : i32
    %c0_i32_1 = arith.constant 0 : i32
    return %arg0, %c0_i32, %c0_i32_0 : i32, i32, i32
  }
  func.func @transform_2(%arg0: i32) -> (i32, i32) {
    %c0_i32 = arith.constant 0 : i32
    %c0_i32_0 = arith.constant 0 : i32
    %c0_i32_1 = arith.constant 0 : i32
    return %c0_i32, %c0_i32_0 : i32, i32
  }
  func.func @transform_3(%arg0: i32) -> (i32, i32) {
    %c0_i32 = arith.constant 0 : i32
    %c0_i32_0 = arith.constant 0 : i32
    %c0_i32_1 = arith.constant 0 : i32
    return %c0_i32, %c0_i32_0 : i32, i32
  }
  func.func @transform_4(%arg0: i32) -> (i32, i32) {
    %c0_i32 = arith.constant 0 : i32
    %c0_i32_0 = arith.constant 0 : i32
    %c0_i32_1 = arith.constant 0 : i32
    return %c0_i32, %c0_i32_0 : i32, i32
  }
  func.func @transform_5(%arg0: i32) -> (i32, i32) {
    %c0_i32 = arith.constant 0 : i32
    %c0_i32_0 = arith.constant 0 : i32
    %c0_i32_1 = arith.constant 0 : i32
    return %c0_i32, %c0_i32_0 : i32, i32
  }
  func.func @transform_6(%arg0: i32) -> (i32, i32) {
    %c0_i32 = arith.constant 0 : i32
    %c0_i32_0 = arith.constant 0 : i32
    %c0_i32_1 = arith.constant 0 : i32
    return %c0_i32, %c0_i32_0 : i32, i32
  }
  func.func @transform_7(%arg0: i32) -> (i32, i32) {
    %c0_i32 = arith.constant 0 : i32
    %c0_i32_0 = arith.constant 0 : i32
    %c0_i32_1 = arith.constant 0 : i32
    return %c0_i32, %c0_i32_0 : i32, i32
  }
  func.func @transform_8(%arg0: i32) -> (i32, i32) {
    %c0_i32 = arith.constant 0 : i32
    %c0_i32_0 = arith.constant 0 : i32
    %c0_i32_1 = arith.constant 0 : i32
    return %c0_i32, %c0_i32_0 : i32, i32
  }
  func.func @transform_9(%arg0: i32) -> (i32, i32) {
    %c0_i32 = arith.constant 0 : i32
    %c0_i32_0 = arith.constant 0 : i32
    %c0_i32_1 = arith.constant 0 : i32
    return %c0_i32, %c0_i32_0 : i32, i32
  }
  func.func @transform_10(%arg0: i32) -> (i32, i32) {
    %c0_i32 = arith.constant 0 : i32
    %c0_i32_0 = arith.constant 0 : i32
    %c0_i32_1 = arith.constant 0 : i32
    return %c0_i32, %c0_i32_0 : i32, i32
  }
  func.func @transform_11(%arg0: i32) -> (i32, i32) {
    %c0_i32 = arith.constant 0 : i32
    %c0_i32_0 = arith.constant 0 : i32
    %c0_i32_1 = arith.constant 0 : i32
    return %c0_i32, %c0_i32_0 : i32, i32
  }
  func.func @transform_12(%arg0: i32) -> (i32, i32) {
    %c0_i32 = arith.constant 0 : i32
    %c0_i32_0 = arith.constant 0 : i32
    %c0_i32_1 = arith.constant 0 : i32
    return %c0_i32, %c0_i32_0 : i32, i32
  }
  func.func @transform_13(%arg0: i32) -> (i32, i32) {
    %c0_i32 = arith.constant 0 : i32
    %c0_i32_0 = arith.constant 0 : i32
    %c0_i32_1 = arith.constant 0 : i32
    return %c0_i32, %c0_i32_0 : i32, i32
  }
  func.func @transform_14(%arg0: i32) -> (i32, i32) {
    %c0_i32 = arith.constant 0 : i32
    %c0_i32_0 = arith.constant 0 : i32
    %c0_i32_1 = arith.constant 0 : i32
    return %c0_i32, %c0_i32_0 : i32, i32
  }
  func.func @transform_15(%arg0: i32) -> (i32, i32) {
    %c0_i32 = arith.constant 0 : i32
    %c0_i32_0 = arith.constant 0 : i32
    %c0_i32_1 = arith.constant 0 : i32
    return %c0_i32, %c0_i32_0 : i32, i32
  }
  func.func @transform_16(%arg0: i32) -> (i32, i32) {
    %c0_i32 = arith.constant 0 : i32
    %c0_i32_0 = arith.constant 0 : i32
    %c0_i32_1 = arith.constant 0 : i32
    return %c0_i32, %c0_i32_0 : i32, i32
  }
  func.func @transform_17(%arg0: i32) -> (i32, i32) {
    %c0_i32 = arith.constant 0 : i32
    %c0_i32_0 = arith.constant 0 : i32
    %c0_i32_1 = arith.constant 0 : i32
    return %c0_i32, %c0_i32_0 : i32, i32
  }
  func.func @transform_18(%arg0: i32) -> (i32, i32) {
    %c0_i32 = arith.constant 0 : i32
    %c0_i32_0 = arith.constant 0 : i32
    %c0_i32_1 = arith.constant 0 : i32
    return %c0_i32, %c0_i32_0 : i32, i32
  }
  func.func @transform_19(%arg0: i32) -> (i32, i32) {
    %c0_i32 = arith.constant 0 : i32
    %c0_i32_0 = arith.constant 0 : i32
    %c0_i32_1 = arith.constant 0 : i32
    return %c0_i32, %c0_i32_0 : i32, i32
  }
  func.func @transform_20(%arg0: i32) -> (i32, i32) {
    %c0_i32 = arith.constant 0 : i32
    %c0_i32_0 = arith.constant 0 : i32
    %c0_i32_1 = arith.constant 0 : i32
    return %c0_i32, %c0_i32_0 : i32, i32
  }
  func.func @transform_21(%arg0: i32) -> (i32, i32) {
    %c0_i32 = arith.constant 0 : i32
    %c0_i32_0 = arith.constant 0 : i32
    %c0_i32_1 = arith.constant 0 : i32
    return %c0_i32, %c0_i32_0 : i32, i32
  }
  func.func @transform_22(%arg0: i32) -> (i32, i32, i32) {
    %c0_i32 = arith.constant 0 : i32
    %c0_i32_0 = arith.constant 0 : i32
    %c0_i32_1 = arith.constant 0 : i32
    return %arg0, %c0_i32, %c0_i32_0 : i32, i32, i32
  }
}

</mosaic_0001>

<llo_original>
// kernel: optimated_transformer_forward.9
$region0: #{optimated_transformer_forward.9}
  #allocation0 [shape = 'u32[]', space=smem, size = 0x4, offset = 0x4, fixed_abs, tag = 'smem constant byte address 0x4 - core index']
  #allocation1 [shape = 'u32[144,128]{1,0:T(1,128)}', space=vmem, size = 0x12000, scoped, tag = 'internal scratch']
  #allocation2 [shape = 'f32[1,1]{1,0:T(1,128)S(1)}', space=vmem, size = 0x200, scoped, tag = 'scoped memory for optimated_transformer_forward.9']
  %s0 = inlined_call_operand.vmem [shape: f32[16,8], index: 0, kind: input, shape index: {}]
  %s1 = inlined_call_operand.vmem [shape: f32[8,16], index: 1, kind: input, shape index: {}]
  %s2 = inlined_call_operand.vmem [shape: f32[1,16], index: 2, kind: input, shape index: {}]
  %s3 = inlined_call_operand.vmem [shape: f32[16,8], index: 3, kind: input, shape index: {}]
  %s4 = inlined_call_operand.vmem [shape: f32[1,8], index: 4, kind: input, shape index: {}]
  %s5 = inlined_call_operand.<no memory space> [shape: f32[1,1], index: 5, kind: input, shape index: {}]
  %s6 = inlined_call_operand.vmem [shape: f32[16,8], index: 6, kind: output, shape index: {}]
  %s7 = sld [smem:[#allocation0]]
  $region34: #{optimated_transformer_forward.9} parent=0
    _
  %s9 = ssub.s32 1, %s7
  %s10 = scalar_select 0, %s9, %s7
  %v11 = vstv %s5
  %12 = vst [vmem:[#allocation2] sm:$0x1] %v11
  // Predicated region
  $region2: #{optimated_transformer_forward.9} parent=0 // pred_check
    _
  $region3: #{optimated_transformer_forward.9} parent=0 // pred_check_branch
    %14 = sbr.rel (0) target = $region5
  $region4: #{optimated_transformer_forward.9} parent=0 // pred_region
    _
  $region5: #{optimated_transformer_forward.9} parent=0 // pred_fallthru
    _
  // Predicated region
  $region6: #{optimated_transformer_forward.9} parent=0 // pred_check
    _
  $region7: #{optimated_transformer_forward.9} parent=0 // pred_check_branch
    %16 = sbr.rel (0) target = $region9
  $region8: #{optimated_transformer_forward.9} parent=0 // pred_region
    _
  $region9: #{optimated_transformer_forward.9} parent=0 // pred_fallthru
    _
  // Predicated region
  $region10: #{optimated_transformer_forward.9} parent=0 // pred_check
    _
  $region11: #{optimated_transformer_forward.9} parent=0 // pred_check_branch
    %18 = sbr.rel (0) target = $region13
  $region12: #{optimated_transformer_forward.9} parent=0 // pred_region
    _
  $region13: #{optimated_transformer_forward.9} parent=0 // pred_fallthru
    _
  // Predicated region
  $region14: #{optimated_transformer_forward.9} parent=0 // pred_check
    _
  $region15: #{optimated_transformer_forward.9} parent=0 // pred_check_branch
    %20 = sbr.rel (0) target = $region17
  $region16: #{optimated_transformer_forward.9} parent=0 // pred_region
    _
  $region17: #{optimated_transformer_forward.9} parent=0 // pred_fallthru
    _
  // Predicated region
  $region18: #{optimated_transformer_forward.9} parent=0 // pred_check
    _
  $region19: #{optimated_transformer_forward.9} parent=0 // pred_check_branch
    %22 = sbr.rel (0) target = $region21
  $region20: #{optimated_transformer_forward.9} parent=0 // pred_region
    _
  $region21: #{optimated_transformer_forward.9} parent=0 // pred_fallthru
    _
  // Predicated region
  $region22: #{optimated_transformer_forward.9} parent=0 // pred_check
    _
  $region23: #{optimated_transformer_forward.9} parent=0 // pred_check_branch
    %24 = sbr.rel (0) target = $region25
  $region24: #{optimated_transformer_forward.9} parent=0 // pred_region
    _
  $region25: #{optimated_transformer_forward.9} parent=0 // pred_fallthru
    _
  %v25 = vld [vmem:[%s0] sm:$0xff]
  %v26 = vld [vmem:[%s0 + $0x8] sm:$0xff]
  %v27 = vld [vmem:[%s1] sm:$0xff]
  %v28 = vld [vmem:[%s2] sm:$0x1]
  %v30 = vlaneseq
  %v31 = vshrl.u32 %v30, 7
  %v32 = vsub.s32 0, %v31
  %v33 = vrot.slane %v28, %v32
  %vm35 = vcmask 64512
  %v37 = vsel %vm35, %v25, 0
  %v40 = vsel %vm35, %v26, 0
  %42 = vmatprep.subr.mxu0 0.0
  %43 = vmatpush1.msra.mxu0 0.0
  %44 = vmatprep.subr.mxu0 0.0
  %45 = vmatpush1.msra.mxu0 0.0
  %46 = vmatprep.subr.mxu0 0.0
  %47 = vmatpush1.msra.mxu0 0.0
  %48 = vmatprep.subr.mxu0 0.0
  %49 = vmatpush1.msra.mxu0 0.0
  %50 = vmatprep.subr.mxu0 0.0
  %51 = vmatpush1.msra.mxu0 0.0
  %52 = vmatprep.subr.mxu0 0.0
  %53 = vmatpush1.msra.mxu0 0.0
  %54 = vmatprep.subr.mxu0 0.0
  %55 = vmatpush1.msra.mxu0 0.0
  %56 = vmatprep.subr.mxu0 0.0
  %57 = vmatpush1.msra.mxu0 0.0
  %58 = vmatprep.subr.mxu0 0.0
  %59 = vmatpush1.msra.mxu0 0.0
  %60 = vmatprep.subr.mxu0 0.0
  %61 = vmatpush1.msra.mxu0 0.0
  %62 = vmatprep.subr.mxu0 0.0
  %63 = vmatpush1.msra.mxu0 0.0
  %64 = vmatprep.subr.mxu0 0.0
  %65 = vmatpush1.msra.mxu0 0.0
  %66 = vmatprep.subr.mxu0 0.0
  %67 = vmatpush1.msra.mxu0 0.0
  %68 = vmatprep.subr.mxu0 0.0
  %69 = vmatpush1.msra.mxu0 0.0
  %70 = vmatprep.subr.mxu0 0.0
  %71 = vmatpush1.msra.mxu0 0.0
  %72 = vmatprep.subr.mxu0 0.0
  %73 = vmatpush1.msra.mxu0 %v27
  %74 = vmatprep.subr.mxu0 0.0
  %75 = vmatpush2.msra.mxu0 0.0
  %76 = vmatprep.subr.mxu0 0.0
  %77 = vmatpush2.msra.mxu0 0.0
  %78 = vmatprep.subr.mxu0 0.0
  %79 = vmatpush2.msra.mxu0 0.0
  %80 = vmatprep.subr.mxu0 0.0
  %81 = vmatpush2.msra.mxu0 0.0
  %82 = vmatprep.subr.mxu0 0.0
  %83 = vmatpush2.msra.mxu0 0.0
  %84 = vmatprep.subr.mxu0 0.0
  %85 = vmatpush2.msra.mxu0 0.0
  %86 = vmatprep.subr.mxu0 0.0
  %87 = vmatpush2.msra.mxu0 0.0
  %88 = vmatprep.subr.mxu0 0.0
  %89 = vmatpush2.msra.mxu0 0.0
  %90 = vmatprep.subr.mxu0 0.0
  %91 = vmatpush2.msra.mxu0 0.0
  %92 = vmatprep.subr.mxu0 0.0
  %93 = vmatpush2.msra.mxu0 0.0
  %94 = vmatprep.subr.mxu0 0.0
  %95 = vmatpush2.msra.mxu0 0.0
  %96 = vmatprep.subr.mxu0 0.0
  %97 = vmatpush2.msra.mxu0 0.0
  %98 = vmatprep.subr.mxu0 0.0
  %99 = vmatpush2.msra.mxu0 0.0
  %100 = vmatprep.subr.mxu0 0.0
  %101 = vmatpush2.msra.mxu0 0.0
  %102 = vmatprep.subr.mxu0 0.0
  %103 = vmatpush2.msra.mxu0 0.0
  %104 = vmatprep.subr.mxu0 0.0
  %105 = vmatpush2.msra.mxu0 0.0
  %106 = vmatprep.mubr.f32.mxu0 0.0
  %107 = vmatmul.mubr.f32.gmra.mxu0 %v37
  %v108 = vpop.f32.mrf.mxu0
  %v109 = vadd.f32 %v33, %v108
  %v110 = vpop.f32.mrf.mxu0
  %111 = vmatprep.mubr.f32.mxu0 0.0
  %112 = vmatmul.mubr.f32.gmra.mxu0 %v40
  %v113 = vpop.f32.mrf.mxu0
  %v114 = vadd.f32 %v33, %v113
  %v115 = vpop.f32.mrf.mxu0
  %116 = vdwg.mxu0
  %v117 = vmul.f32 %v109, 0.5
  %v118 = vmul.f32 %v114, 0.5
  %v119 = vmul.f32 %v109, 0.70710677
  %v120 = vmul.f32 %v114, 0.70710677
  %v121 = vand.u32 2147483647, %v119
  %v122 = vand.u32 2147483647, %v120
  %v123 = vmul.f32 %v121, 0.3275911
  %v124 = vmul.f32 %v122, 0.3275911
  %v125 = vadd.f32 %v123, 1.0
  %v126 = vadd.f32 %v124, 1.0
  %v127 = vrcp.pop %v125
  %v128 = vmul.f32 1.0, %v127
  %v129 = vrcp.pop %v126
  %v130 = vmul.f32 1.0, %v129
  %v131 = vmul.f32 %v128, 1.0614054
  %v132 = vmul.f32 %v130, 1.0614054
  %v133 = vsub.f32 %v131, 1.4531521
  %v134 = vsub.f32 %v132, 1.4531521
  %v135 = vmul.f32 %v133, %v128
  %v136 = vmul.f32 %v134, %v130
  %v137 = vadd.f32 %v135, 1.4214138
  %v138 = vadd.f32 %v136, 1.4214138
  %v139 = vmul.f32 %v137, %v128
  %v140 = vmul.f32 %v138, %v130
  %v141 = vsub.f32 %v139, 0.28449672
  %v142 = vsub.f32 %v140, 0.28449672
  %v143 = vmul.f32 %v141, %v128
  %v144 = vmul.f32 %v142, %v130
  %v145 = vadd.f32 %v143, 0.2548296
  %v146 = vadd.f32 %v144, 0.2548296
  %v147 = vmul.f32 %v145, %v128
  %v148 = vmul.f32 %v146, %v130
  %v149 = vsub.f32 0.0, %v121
  %v150 = vsub.f32 0.0, %v122
  %v151 = vmul.f32 %v149, %v121
  %v152 = vmul.f32 %v150, %v122
  %v153 = vmul.f32 %v151, 1.442695
  %v154 = vpow.pop %v153
  %v155 = vmul.f32 %v152, 1.442695
  %v156 = vpow.pop %v155
  %v157 = vmul.f32 %v147, %v154
  %v158 = vmul.f32 %v148, %v156
  %v159 = vsub.f32 1.0, %v157
  %v160 = vsub.f32 1.0, %v158
  %vm161 = vcmp.lt.f32.partialorder %v119, 0.0
  %vm162 = vcmp.lt.f32.partialorder %v120, 0.0
  %v163 = vsub.f32 0.0, %v159
  %v164 = vsub.f32 0.0, %v160
  %v165 = vsel %vm161, %v163, %v159
  %v166 = vsel %vm162, %v164, %v160
  %v167 = vadd.f32 %v165, 1.0
  %v168 = vadd.f32 %v166, 1.0
  %v169 = vmul.f32 %v117, %v167
  %v170 = vmul.f32 %v118, %v168
  %v171 = vld [vmem:[%s3] sm:$0xff]
  %v172 = vld [vmem:[%s3 + $0x8] sm:$0xff]
  %v173 = vld [vmem:[%s4] sm:$0x1]
  %v175 = vlaneseq
  %v176 = vshrl.u32 %v175, 7
  %v177 = vsub.s32 0, %v176
  %v178 = vrot.slane %v173, %v177
  %vm180 = vcmask 130048
  %v182 = vsel %vm180, %v169, 0
  %v185 = vsel %vm180, %v170, 0
  %187 = vmatprep.subr.mxu0 0.0
  %188 = vmatpush1.msra.mxu0 0.0
  %189 = vmatprep.subr.mxu0 0.0
  %190 = vmatpush1.msra.mxu0 0.0
  %191 = vmatprep.subr.mxu0 0.0
  %192 = vmatpush1.msra.mxu0 0.0
  %193 = vmatprep.subr.mxu0 0.0
  %194 = vmatpush1.msra.mxu0 0.0
  %195 = vmatprep.subr.mxu0 0.0
  %196 = vmatpush1.msra.mxu0 0.0
  %197 = vmatprep.subr.mxu0 0.0
  %198 = vmatpush1.msra.mxu0 0.0
  %199 = vmatprep.subr.mxu0 0.0
  %200 = vmatpush1.msra.mxu0 0.0
  %201 = vmatprep.subr.mxu0 0.0
  %202 = vmatpush1.msra.mxu0 0.0
  %203 = vmatprep.subr.mxu0 0.0
  %204 = vmatpush1.msra.mxu0 0.0
  %205 = vmatprep.subr.mxu0 0.0
  %206 = vmatpush1.msra.mxu0 0.0
  %207 = vmatprep.subr.mxu0 0.0
  %208 = vmatpush1.msra.mxu0 0.0
  %209 = vmatprep.subr.mxu0 0.0
  %210 = vmatpush1.msra.mxu0 0.0
  %211 = vmatprep.subr.mxu0 0.0
  %212 = vmatpush1.msra.mxu0 0.0
  %213 = vmatprep.subr.mxu0 0.0
  %214 = vmatpush1.msra.mxu0 0.0
  %215 = vmatprep.subr.mxu0 0.0
  %216 = vmatpush1.msra.mxu0 %v172
  %217 = vmatprep.subr.mxu0 0.0
  %218 = vmatpush1.msra.mxu0 %v171
  %219 = vmatprep.subr.mxu0 0.0
  %220 = vmatpush2.msra.mxu0 0.0
  %221 = vmatprep.subr.mxu0 0.0
  %222 = vmatpush2.msra.mxu0 0.0
  %223 = vmatprep.subr.mxu0 0.0
  %224 = vmatpush2.msra.mxu0 0.0
  %225 = vmatprep.subr.mxu0 0.0
  %226 = vmatpush2.msra.mxu0 0.0
  %227 = vmatprep.subr.mxu0 0.0
  %228 = vmatpush2.msra.mxu0 0.0
  %229 = vmatprep.subr.mxu0 0.0
  %230 = vmatpush2.msra.mxu0 0.0
  %231 = vmatprep.subr.mxu0 0.0
  %232 = vmatpush2.msra.mxu0 0.0
  %233 = vmatprep.subr.mxu0 0.0
  %234 = vmatpush2.msra.mxu0 0.0
  %235 = vmatprep.subr.mxu0 0.0
  %236 = vmatpush2.msra.mxu0 0.0
  %237 = vmatprep.subr.mxu0 0.0
  %238 = vmatpush2.msra.mxu0 0.0
  %239 = vmatprep.subr.mxu0 0.0
  %240 = vmatpush2.msra.mxu0 0.0
  %241 = vmatprep.subr.mxu0 0.0
  %242 = vmatpush2.msra.mxu0 0.0
  %243 = vmatprep.subr.mxu0 0.0
  %244 = vmatpush2.msra.mxu0 0.0
  %245 = vmatprep.subr.mxu0 0.0
  %246 = vmatpush2.msra.mxu0 0.0
  %247 = vmatprep.subr.mxu0 0.0
  %248 = vmatpush2.msra.mxu0 0.0
  %249 = vmatprep.subr.mxu0 0.0
  %250 = vmatpush2.msra.mxu0 0.0
  %251 = vmatprep.mubr.f32.mxu0 0.0
  %252 = vmatmul.mubr.f32.gmra.mxu0 %v182
  %v253 = vpop.f32.mrf.mxu0
  %v254 = vadd.f32 %v178, %v253
  %v255 = vpop.f32.mrf.mxu0
  %256 = vmatprep.mubr.f32.mxu0 0.0
  %257 = vmatmul.mubr.f32.gmra.mxu0 %v185
  %v258 = vpop.f32.mrf.mxu0
  %v259 = vadd.f32 %v178, %v258
  %v260 = vpop.f32.mrf.mxu0
  %261 = vdwg.mxu0
  %v262 = vld [vmem:[#allocation2] sm:$0x1]
  %v264 = vlaneseq
  %v265 = vshrl.u32 %v264, 7
  %v266 = vsub.s32 0, %v265
  %v267 = vrot.slane %v262, %v266
  %268 = vset.pattern.permute.xlu0 0
  %269 = vperm.xlu0 %268, %v267
  %v270 = vpop.permute.xlu0 %269
  %v272 = vmul.f32 %v25, %v270
  %v273 = vmul.f32 %v26, %v270
  %v274 = vsub.f32 1.0, %v262
  %v276 = vlaneseq
  %v277 = vshrl.u32 %v276, 7
  %v278 = vsub.s32 0, %v277
  %v279 = vrot.slane %v274, %v278
  %280 = vset.pattern.permute.xlu0 0
  %281 = vperm.xlu0 %280, %v279
  %v282 = vpop.permute.xlu0 %281
  %v284 = vmul.f32 %v254, %v282
  %v285 = vmul.f32 %v259, %v282
  %v286 = vadd.f32 %v272, %v284
  %v287 = vadd.f32 %v273, %v285
  %288 = vst.msk [vmem:[%s6] sm:$0xff] %vm35, %v286
  %289 = vst.msk [vmem:[%s6 + $0x8] sm:$0xff] %vm35, %v287
  // Predicated region
  $region26: #{optimated_transformer_forward.9} parent=0 // pred_check
    _
  $region27: #{optimated_transformer_forward.9} parent=0 // pred_check_branch
    %291 = sbr.rel (0) target = $region29
  $region28: #{optimated_transformer_forward.9} parent=0 // pred_region
    _
  $region29: #{optimated_transformer_forward.9} parent=0 // pred_fallthru
    _
  // Predicated region
  $region30: #{optimated_transformer_forward.9} parent=0 // pred_check
    _
  $region31: #{optimated_transformer_forward.9} parent=0 // pred_check_branch
    %293 = sbr.rel (0) target = $region33
  $region32: #{optimated_transformer_forward.9} parent=0 // pred_region
    _
  $region33: #{optimated_transformer_forward.9} parent=0 // pred_fallthru
    _

// kernel: optimated_transformer_forward.10
$region0: #{optimated_transformer_forward.10}
  #allocation0 [shape = 'u32[]', space=smem, size = 0x4, offset = 0x4, fixed_abs, tag = 'smem constant byte address 0x4 - core index']
  #allocation1 [shape = 'u32[144,128]{1,0:T(1,128)}', space=vmem, size = 0x12000, scoped, tag = 'internal scratch']
  %s0 = inlined_call_operand.vmem [shape: f32[2,8,8], index: 0, kind: input, shape index: {}]
  %s1 = inlined_call_operand.vmem [shape: f32[2,8,8], index: 1, kind: input, shape index: {}]
  %s2 = inlined_call_operand.vmem [shape: f32[8,8], index: 2, kind: input, shape index: {}]
  %s3 = inlined_call_operand.vmem [shape: f32[1,8], index: 3, kind: input, shape index: {}]
  %s4 = inlined_call_operand.vmem [shape: f32[8,16], index: 4, kind: input, shape index: {}]
  %s5 = inlined_call_operand.vmem [shape: f32[1,16], index: 5, kind: input, shape index: {}]
  %s6 = inlined_call_operand.vmem [shape: f32[8,8], index: 6, kind: input, shape index: {}]
  %s7 = inlined_call_operand.vmem [shape: f32[1,8], index: 7, kind: input, shape index: {}]
  %s8 = inlined_call_operand.vmem [shape: f32[1,8], index: 8, kind: input, shape index: {}]
  %s9 = inlined_call_operand.vmem [shape: f32[2,8,8], index: 9, kind: output, shape index: {}]
  %s10 = sld [smem:[#allocation0]]
  $region69: #{optimated_transformer_forward.10} parent=0
    _
  %s12 = ssub.s32 1, %s10
  %s13 = scalar_select 0, %s12, %s10
  loop: start=0, step=1, limit=4
  $region2: #{optimated_transformer_forward.10} parent=0 // loop_pre_header
    _
  $region3: #{optimated_transformer_forward.10} parent=0 // loop_header
    %s15 = sphi 0, %s19
    %p16 = scmp.ge.s32.totalorder %s15, 4
    %s25 = sphi 0, %s27
    %s28 = sphi 0, %s25
    %s29 = sphi 0, %s28
    %s45 = sphi 0, %s29
    %s51 = sphi 0, %s53
    %s54 = sphi 0, %s51
    %s55 = sphi 0, %s54
    %s71 = sphi 0, %s55
    %s75 = sphi 0, %s75
    %s77 = sphi 0, %s75
    %s78 = sphi 0, %s77
    %s92 = sphi 0, %s78
    %s96 = sphi 0, %s96
    %s98 = sphi 0, %s96
    %s99 = sphi 0, %s98
    %s113 = sphi 0, %s99
    %s117 = sphi 0, %s117
    %s119 = sphi 0, %s117
    %s120 = sphi 0, %s119
    %s134 = sphi 0, %s120
    %s138 = sphi 0, %s138
    %s140 = sphi 0, %s138
    %s141 = sphi 0, %s140
    %s155 = sphi 0, %s141
    %s159 = sphi 0, %s159
    %s161 = sphi 0, %s159
    %s162 = sphi 0, %s161
    %s176 = sphi 0, %s162
    %s180 = sphi 0, %s180
    %s182 = sphi 0, %s180
    %s183 = sphi 0, %s182
    %s197 = sphi 0, %s183
    %s201 = sphi 0, %s201
    %s203 = sphi 0, %s201
    %s204 = sphi 0, %s203
    %s218 = sphi 0, %s204
    %s224 = sphi 0, %s226
    %s227 = sphi 0, %s224
    %s228 = sphi 0, %s227
    %s244 = sphi 0, %s228
  $region4: #{optimated_transformer_forward.10} parent=0 // loop_header_branch
    %18 = sbr.rel (%p16) target = $region8
  $region5: #{optimated_transformer_forward.10} parent=0 // loop_body
    %s20 = ssub.s32 %s15, 1
    %s21 = ssub.s32 %s15, 2
    %s22 = sadd.s32 %s15, 1
    %s23 = ssub.s32 %s15, %s22
    %p24 = scmp.eq.s32.totalorder %s23, 0
    %s26 = sadd.s32 %s25, 1
    %s27 = scalar_select %p24, %s25, %s26
    %p30 = pneg %p24
    %p31 = scmp.eq.s32.totalorder %s15, 1
    %p32 = por %p30, %p31
    %p33 = scmp.ne.s32.totalorder %s25, %s28
    %p34 = scmp.eq.s32.totalorder %s15, 0
    %p35 = por %p33, %p34
    %p36 = scmp.ne.s32.totalorder %s25, %s28
    %p37 = scmp.eq.s32.totalorder %s20, 1
    %p38 = por %p36, %p37
    %p39 = scmp.ne.s32.totalorder %s28, %s29
    %p40 = scmp.eq.s32.totalorder %s20, 0
    %p41 = por %p39, %p40
    %p42 = scmp.ne.s32.totalorder %s28, %s29
    %p43 = scmp.eq.s32.totalorder %s21, 1
    %p44 = por %p42, %p43
    %p46 = scmp.ne.s32.totalorder %s29, %s45
    %p47 = scmp.eq.s32.totalorder %s21, 0
    %p48 = por %p46, %p47
    %s49 = ssub.s32 %s15, %s22
    %p50 = scmp.eq.s32.totalorder %s49, 0
    %s52 = sadd.s32 %s51, 1
    %s53 = scalar_select %p50, %s51, %s52
    %p56 = pneg %p50
    %p57 = scmp.eq.s32.totalorder %s15, 1
    %p58 = por %p56, %p57
    %p59 = scmp.ne.s32.totalorder %s51, %s54
    %p60 = scmp.eq.s32.totalorder %s15, 0
    %p61 = por %p59, %p60
    %p62 = scmp.ne.s32.totalorder %s51, %s54
    %p63 = scmp.eq.s32.totalorder %s20, 1
    %p64 = por %p62, %p63
    %p65 = scmp.ne.s32.totalorder %s54, %s55
    %p66 = scmp.eq.s32.totalorder %s20, 0
    %p67 = por %p65, %p66
    %p68 = scmp.ne.s32.totalorder %s54, %s55
    %p69 = scmp.eq.s32.totalorder %s21, 1
    %p70 = por %p68, %p69
    %p72 = scmp.ne.s32.totalorder %s55, %s71
    %p73 = scmp.eq.s32.totalorder %s21, 0
    %p74 = por %p72, %p73
    %s76 = sadd.s32 %s75, 1
    %p79 = scmp.eq.s32.totalorder %s15, 1
    %p80 = scmp.ne.s32.totalorder %s75, %s77
    %p81 = scmp.eq.s32.totalorder %s15, 0
    %p82 = por %p80, %p81
    %p83 = scmp.ne.s32.totalorder %s75, %s77
    %p84 = scmp.eq.s32.totalorder %s20, 1
    %p85 = por %p83, %p84
    %p86 = scmp.ne.s32.totalorder %s77, %s78
    %p87 = scmp.eq.s32.totalorder %s20, 0
    %p88 = por %p86, %p87
    %p89 = scmp.ne.s32.totalorder %s77, %s78
    %p90 = scmp.eq.s32.totalorder %s21, 1
    %p91 = por %p89, %p90
    %p93 = scmp.ne.s32.totalorder %s78, %s92
    %p94 = scmp.eq.s32.totalorder %s21, 0
    %p95 = por %p93, %p94
    %s97 = sadd.s32 %s96, 1
    %p100 = scmp.eq.s32.totalorder %s15, 1
    %p101 = scmp.ne.s32.totalorder %s96, %s98
    %p102 = scmp.eq.s32.totalorder %s15, 0
    %p103 = por %p101, %p102
    %p104 = scmp.ne.s32.totalorder %s96, %s98
    %p105 = scmp.eq.s32.totalorder %s20, 1
    %p106 = por %p104, %p105
    %p107 = scmp.ne.s32.totalorder %s98, %s99
    %p108 = scmp.eq.s32.totalorder %s20, 0
    %p109 = por %p107, %p108
    %p110 = scmp.ne.s32.totalorder %s98, %s99
    %p111 = scmp.eq.s32.totalorder %s21, 1
    %p112 = por %p110, %p111
    %p114 = scmp.ne.s32.totalorder %s99, %s113
    %p115 = scmp.eq.s32.totalorder %s21, 0
    %p116 = por %p114, %p115
    %s118 = sadd.s32 %s117, 1
    %p121 = scmp.eq.s32.totalorder %s15, 1
    %p122 = scmp.ne.s32.totalorder %s117, %s119
    %p123 = scmp.eq.s32.totalorder %s15, 0
    %p124 = por %p122, %p123
    %p125 = scmp.ne.s32.totalorder %s117, %s119
    %p126 = scmp.eq.s32.totalorder %s20, 1
    %p127 = por %p125, %p126
    %p128 = scmp.ne.s32.totalorder %s119, %s120
    %p129 = scmp.eq.s32.totalorder %s20, 0
    %p130 = por %p128, %p129
    %p131 = scmp.ne.s32.totalorder %s119, %s120
    %p132 = scmp.eq.s32.totalorder %s21, 1
    %p133 = por %p131, %p132
    %p135 = scmp.ne.s32.totalorder %s120, %s134
    %p136 = scmp.eq.s32.totalorder %s21, 0
    %p137 = por %p135, %p136
    %s139 = sadd.s32 %s138, 1
    %p142 = scmp.eq.s32.totalorder %s15, 1
    %p143 = scmp.ne.s32.totalorder %s138, %s140
    %p144 = scmp.eq.s32.totalorder %s15, 0
    %p145 = por %p143, %p144
    %p146 = scmp.ne.s32.totalorder %s138, %s140
    %p147 = scmp.eq.s32.totalorder %s20, 1
    %p148 = por %p146, %p147
    %p149 = scmp.ne.s32.totalorder %s140, %s141
    %p150 = scmp.eq.s32.totalorder %s20, 0
    %p151 = por %p149, %p150
    %p152 = scmp.ne.s32.totalorder %s140, %s141
    %p153 = scmp.eq.s32.totalorder %s21, 1
    %p154 = por %p152, %p153
    %p156 = scmp.ne.s32.totalorder %s141, %s155
    %p157 = scmp.eq.s32.totalorder %s21, 0
    %p158 = por %p156, %p157
    %s160 = sadd.s32 %s159, 1
    %p163 = scmp.eq.s32.totalorder %s15, 1
    %p164 = scmp.ne.s32.totalorder %s159, %s161
    %p165 = scmp.eq.s32.totalorder %s15, 0
    %p166 = por %p164, %p165
    %p167 = scmp.ne.s32.totalorder %s159, %s161
    %p168 = scmp.eq.s32.totalorder %s20, 1
    %p169 = por %p167, %p168
    %p170 = scmp.ne.s32.totalorder %s161, %s162
    %p171 = scmp.eq.s32.totalorder %s20, 0
    %p172 = por %p170, %p171
    %p173 = scmp.ne.s32.totalorder %s161, %s162
    %p174 = scmp.eq.s32.totalorder %s21, 1
    %p175 = por %p173, %p174
    %p177 = scmp.ne.s32.totalorder %s162, %s176
    %p178 = scmp.eq.s32.totalorder %s21, 0
    %p179 = por %p177, %p178
    %s181 = sadd.s32 %s180, 1
    %p184 = scmp.eq.s32.totalorder %s15, 1
    %p185 = scmp.ne.s32.totalorder %s180, %s182
    %p186 = scmp.eq.s32.totalorder %s15, 0
    %p187 = por %p185, %p186
    %p188 = scmp.ne.s32.totalorder %s180, %s182
    %p189 = scmp.eq.s32.totalorder %s20, 1
    %p190 = por %p188, %p189
    %p191 = scmp.ne.s32.totalorder %s182, %s183
    %p192 = scmp.eq.s32.totalorder %s20, 0
    %p193 = por %p191, %p192
    %p194 = scmp.ne.s32.totalorder %s182, %s183
    %p195 = scmp.eq.s32.totalorder %s21, 1
    %p196 = por %p194, %p195
    %p198 = scmp.ne.s32.totalorder %s183, %s197
    %p199 = scmp.eq.s32.totalorder %s21, 0
    %p200 = por %p198, %p199
    %s202 = sadd.s32 %s201, 1
    %p205 = scmp.eq.s32.totalorder %s15, 1
    %p206 = scmp.ne.s32.totalorder %s201, %s203
    %p207 = scmp.eq.s32.totalorder %s15, 0
    %p208 = por %p206, %p207
    %p209 = scmp.ne.s32.totalorder %s201, %s203
    %p210 = scmp.eq.s32.totalorder %s20, 1
    %p211 = por %p209, %p210
    %p212 = scmp.ne.s32.totalorder %s203, %s204
    %p213 = scmp.eq.s32.totalorder %s20, 0
    %p214 = por %p212, %p213
    %p215 = scmp.ne.s32.totalorder %s203, %s204
    %p216 = scmp.eq.s32.totalorder %s21, 1
    %p217 = por %p215, %p216
    %p219 = scmp.ne.s32.totalorder %s204, %s218
    %p220 = scmp.eq.s32.totalorder %s21, 0
    %p221 = por %p219, %p220
    %s222 = ssub.s32 %s15, %s22
    %p223 = scmp.eq.s32.totalorder %s222, 0
    %s225 = sadd.s32 %s224, 1
    %s226 = scalar_select %p223, %s224, %s225
    %p229 = pneg %p223
    %p230 = scmp.eq.s32.totalorder %s15, 1
    %p231 = por %p229, %p230
    %p232 = scmp.ne.s32.totalorder %s224, %s227
    %p233 = scmp.eq.s32.totalorder %s15, 0
    %p234 = por %p232, %p233
    %p235 = scmp.ne.s32.totalorder %s224, %s227
    %p236 = scmp.eq.s32.totalorder %s20, 1
    %p237 = por %p235, %p236
    %p238 = scmp.ne.s32.totalorder %s227, %s228
    %p239 = scmp.eq.s32.totalorder %s20, 0
    %p240 = por %p238, %p239
    %p241 = scmp.ne.s32.totalorder %s227, %s228
    %p242 = scmp.eq.s32.totalorder %s21, 1
    %p243 = por %p241, %p242
    %p245 = scmp.ne.s32.totalorder %s228, %s244
    %p246 = scmp.eq.s32.totalorder %s21, 0
    %p247 = por %p245, %p246
    %p248 = scmp.le.s32.totalorder 1, %s15
    %p249 = scmp.lt.s32.totalorder %s15, 3
    %p250 = pnand %p248, %p249
    %p251 = pneg %p250
    // Predicated region
    $region9: #{optimated_transformer_forward.10} parent=5 // pred_check
      _
    $region10: #{optimated_transformer_forward.10} parent=5 // pred_check_branch
      %253 = sbr.rel (%p250) target = $region12
    $region11: #{optimated_transformer_forward.10} parent=5 // pred_region
      %s254 = ssub.s32 %s15, 1
      // Predicated region
      $region13: #{optimated_transformer_forward.10} parent=11 // pred_check
        %p255 = pneg %p88
      $region14: #{optimated_transformer_forward.10} parent=11 // pred_check_branch
        %257 = sbr.rel (%p255) target = $region16
      $region15: #{optimated_transformer_forward.10} parent=11 // pred_region
        _
      $region16: #{optimated_transformer_forward.10} parent=11 // pred_fallthru
        _
      // Predicated region
      $region17: #{optimated_transformer_forward.10} parent=11 // pred_check
        %p258 = pneg %p109
      $region18: #{optimated_transformer_forward.10} parent=11 // pred_check_branch
        %260 = sbr.rel (%p258) target = $region20
      $region19: #{optimated_transformer_forward.10} parent=11 // pred_region
        _
      $region20: #{optimated_transformer_forward.10} parent=11 // pred_fallthru
        _
      // Predicated region
      $region21: #{optimated_transformer_forward.10} parent=11 // pred_check
        %p261 = pneg %p130
      $region22: #{optimated_transformer_forward.10} parent=11 // pred_check_branch
        %263 = sbr.rel (%p261) target = $region24
      $region23: #{optimated_transformer_forward.10} parent=11 // pred_region
        _
      $region24: #{optimated_transformer_forward.10} parent=11 // pred_fallthru
        _
      // Predicated region
      $region25: #{optimated_transformer_forward.10} parent=11 // pred_check
        %p264 = pneg %p151
      $region26: #{optimated_transformer_forward.10} parent=11 // pred_check_branch
        %266 = sbr.rel (%p264) target = $region28
      $region27: #{optimated_transformer_forward.10} parent=11 // pred_region
        _
      $region28: #{optimated_transformer_forward.10} parent=11 // pred_fallthru
        _
      // Predicated region
      $region29: #{optimated_transformer_forward.10} parent=11 // pred_check
        %p267 = pneg %p172
      $region30: #{optimated_transformer_forward.10} parent=11 // pred_check_branch
        %269 = sbr.rel (%p267) target = $region32
      $region31: #{optimated_transformer_forward.10} parent=11 // pred_region
        _
      $region32: #{optimated_transformer_forward.10} parent=11 // pred_fallthru
        _
      // Predicated region
      $region33: #{optimated_transformer_forward.10} parent=11 // pred_check
        %p270 = pneg %p193
      $region34: #{optimated_transformer_forward.10} parent=11 // pred_check_branch
        %272 = sbr.rel (%p270) target = $region36
      $region35: #{optimated_transformer_forward.10} parent=11 // pred_region
        _
      $region36: #{optimated_transformer_forward.10} parent=11 // pred_fallthru
        _
      // Predicated region
      $region37: #{optimated_transformer_forward.10} parent=11 // pred_check
        %p273 = pneg %p214
      $region38: #{optimated_transformer_forward.10} parent=11 // pred_check_branch
        %275 = sbr.rel (%p273) target = $region40
      $region39: #{optimated_transformer_forward.10} parent=11 // pred_region
        _
      $region40: #{optimated_transformer_forward.10} parent=11 // pred_fallthru
        _
    $region12: #{optimated_transformer_forward.10} parent=5 // pred_fallthru
      _
    %p276 = scmp.lt.s32.totalorder %s15, 2
    // Predicated region
    $region41: #{optimated_transformer_forward.10} parent=5 // pred_check
      %p277 = pneg %p276
    $region42: #{optimated_transformer_forward.10} parent=5 // pred_check_branch
      %279 = sbr.rel (%p277) target = $region44
    $region43: #{optimated_transformer_forward.10} parent=5 // pred_region
      // Predicated region
      $region45: #{optimated_transformer_forward.10} parent=43 // pred_check
        %p280 = pneg %p35
      $region46: #{optimated_transformer_forward.10} parent=43 // pred_check_branch
        %282 = sbr.rel (%p280) target = $region48
      $region47: #{optimated_transformer_forward.10} parent=43 // pred_region
        %p283 = scmp.lt.s32.totalorder %s15, 1
        %s284 = scalar_select %p283, %s15, 1
        %s285 = smul.addr %s284, 8
        %s286 = scalar_lea.vmem %s0, %s285
      $region48: #{optimated_transformer_forward.10} parent=43 // pred_fallthru
        _
      // Predicated region
      $region49: #{optimated_transformer_forward.10} parent=43 // pred_check
        %p287 = pneg %p61
      $region50: #{optimated_transformer_forward.10} parent=43 // pred_check_branch
        %289 = sbr.rel (%p287) target = $region52
      $region51: #{optimated_transformer_forward.10} parent=43 // pred_region
        %p290 = scmp.lt.s32.totalorder %s15, 1
        %s291 = scalar_select %p290, %s15, 1
        %s292 = smul.addr %s291, 8
        %s293 = scalar_lea.vmem %s1, %s292
      $region52: #{optimated_transformer_forward.10} parent=43 // pred_fallthru
        _
    $region44: #{optimated_transformer_forward.10} parent=5 // pred_fallthru
      _
    %p294 = scmp.le.s32.totalorder 1, %s15
    %p295 = scmp.lt.s32.totalorder %s15, 3
    %p296 = pnand %p294, %p295
    %p297 = pneg %p296
    // Predicated region
    $region53: #{optimated_transformer_forward.10} parent=5 // pred_check
      _
    $region54: #{optimated_transformer_forward.10} parent=5 // pred_check_branch
      %299 = sbr.rel (%p296) target = $region56
    $region55: #{optimated_transformer_forward.10} parent=5 // pred_region
      %s300 = ssub.s32 %s15, 1
      %p301 = scmp.lt.s32.totalorder %s20, 1
      %s302 = scalar_select %p301, %s20, 1
      %s303 = smul.addr %s302, 8
      %s304 = scalar_lea.vmem %s0, %s303
      %p305 = pneg %p41
      %p306 = pneg %p38
      %p307 = scmp.lt.s32.totalorder %s20, 1
      %s308 = scalar_select %p307, %s20, 1
      %s309 = smul.addr %s308, 8
      %s310 = scalar_lea.vmem %s1, %s309
      %p311 = pneg %p67
      %p312 = pneg %p64
      %p313 = pneg %p88
      %p314 = pneg %p85
      %p315 = pneg %p109
      %p316 = pneg %p106
      %p317 = pneg %p130
      %p318 = pneg %p127
      %p319 = pneg %p151
      %p320 = pneg %p148
      %p321 = pneg %p172
      %p322 = pneg %p169
      %p323 = pneg %p193
      %p324 = pneg %p190
      %p325 = pneg %p214
      %p326 = pneg %p211
      %p327 = pneg %p240
      %p328 = pneg %p237
      %p329 = scmp.lt.s32.totalorder %s20, 1
      %s330 = scalar_select %p329, %s20, 1
      %s331 = smul.addr %s330, 8
      %s332 = scalar_lea.vmem %s9, %s331
      %p333 = scmp.lt.s32.totalorder %s20, 1
      %s334 = scalar_select %p333, %s20, 1
      %s335 = smul.addr %s334, 8
      %s336 = scalar_lea.vmem %s0, %s335
      %p337 = scmp.lt.s32.totalorder %s20, 1
      %s338 = scalar_select %p337, %s20, 1
      %s339 = smul.addr %s338, 8
      %s340 = scalar_lea.vmem %s1, %s339
      %p341 = scmp.lt.s32.totalorder %s20, 1
      %s342 = scalar_select %p341, %s20, 1
      %s343 = smul.addr %s342, 8
      %s344 = scalar_lea.vmem %s9, %s343
      %v345 = vld [vmem:[%s336] sm:$0xff]
      %v346 = vld [vmem:[%s340] sm:$0xff]
      %v347 = vld [vmem:[%s2] sm:$0xff]
      %v348 = vld [vmem:[%s3] sm:$0x1]
      %v350 = vlaneseq
      %v351 = vshrl.u32 %v350, 7
      %v352 = vsub.s32 0, %v351
      %v353 = vrot.slane %v348, %v352
      %vm355 = vcmask 64512
      %v357 = vsel %vm355, %v345, 0
      %359 = vmatprep.subr.mxu0 0.0
      %360 = vmatpush1.msra.mxu0 0.0
      %361 = vmatprep.subr.mxu0 0.0
      %362 = vmatpush1.msra.mxu0 0.0
      %363 = vmatprep.subr.mxu0 0.0
      %364 = vmatpush1.msra.mxu0 0.0
      %365 = vmatprep.subr.mxu0 0.0
      %366 = vmatpush1.msra.mxu0 0.0
      %367 = vmatprep.subr.mxu0 0.0
      %368 = vmatpush1.msra.mxu0 0.0
      %369 = vmatprep.subr.mxu0 0.0
      %370 = vmatpush1.msra.mxu0 0.0
      %371 = vmatprep.subr.mxu0 0.0
      %372 = vmatpush1.msra.mxu0 0.0
      %373 = vmatprep.subr.mxu0 0.0
      %374 = vmatpush1.msra.mxu0 0.0
      %375 = vmatprep.subr.mxu0 0.0
      %376 = vmatpush1.msra.mxu0 0.0
      %377 = vmatprep.subr.mxu0 0.0
      %378 = vmatpush1.msra.mxu0 0.0
      %379 = vmatprep.subr.mxu0 0.0
      %380 = vmatpush1.msra.mxu0 0.0
      %381 = vmatprep.subr.mxu0 0.0
      %382 = vmatpush1.msra.mxu0 0.0
      %383 = vmatprep.subr.mxu0 0.0
      %384 = vmatpush1.msra.mxu0 0.0
      %385 = vmatprep.subr.mxu0 0.0
      %386 = vmatpush1.msra.mxu0 0.0
      %387 = vmatprep.subr.mxu0 0.0
      %388 = vmatpush1.msra.mxu0 0.0
      %389 = vmatprep.subr.mxu0 0.0
      %390 = vmatpush1.msra.mxu0 %v347
      %391 = vmatprep.subr.mxu0 0.0
      %392 = vmatpush2.msra.mxu0 0.0
      %393 = vmatprep.subr.mxu0 0.0
      %394 = vmatpush2.msra.mxu0 0.0
      %395 = vmatprep.subr.mxu0 0.0
      %396 = vmatpush2.msra.mxu0 0.0
      %397 = vmatprep.subr.mxu0 0.0
      %398 = vmatpush2.msra.mxu0 0.0
      %399 = vmatprep.subr.mxu0 0.0
      %400 = vmatpush2.msra.mxu0 0.0
      %401 = vmatprep.subr.mxu0 0.0
      %402 = vmatpush2.msra.mxu0 0.0
      %403 = vmatprep.subr.mxu0 0.0
      %404 = vmatpush2.msra.mxu0 0.0
      %405 = vmatprep.subr.mxu0 0.0
      %406 = vmatpush2.msra.mxu0 0.0
      %407 = vmatprep.subr.mxu0 0.0
      %408 = vmatpush2.msra.mxu0 0.0
      %409 = vmatprep.subr.mxu0 0.0
      %410 = vmatpush2.msra.mxu0 0.0
      %411 = vmatprep.subr.mxu0 0.0
      %412 = vmatpush2.msra.mxu0 0.0
      %413 = vmatprep.subr.mxu0 0.0
      %414 = vmatpush2.msra.mxu0 0.0
      %415 = vmatprep.subr.mxu0 0.0
      %416 = vmatpush2.msra.mxu0 0.0
      %417 = vmatprep.subr.mxu0 0.0
      %418 = vmatpush2.msra.mxu0 0.0
      %419 = vmatprep.subr.mxu0 0.0
      %420 = vmatpush2.msra.mxu0 0.0
      %421 = vmatprep.subr.mxu0 0.0
      %422 = vmatpush2.msra.mxu0 0.0
      %423 = vmatprep.mubr.f32.mxu0 0.0
      %424 = vmatmul.mubr.f32.gmra.mxu0 %v357
      %v425 = vpop.f32.mrf.mxu0
      %v426 = vadd.f32 %v353, %v425
      %v427 = vpop.f32.mrf.mxu0
      %428 = vdwg.mxu0
      %v429 = vld [vmem:[%s4] sm:$0xff]
      %v430 = vld [vmem:[%s5] sm:$0x1]
      %v432 = vlaneseq
      %v433 = vshrl.u32 %v432, 7
      %v434 = vsub.s32 0, %v433
      %v435 = vrot.slane %v430, %v434
      %v438 = vsel %vm355, %v346, 0
      %440 = vmatprep.subr.mxu0 0.0
      %441 = vmatpush1.msra.mxu0 0.0
      %442 = vmatprep.subr.mxu0 0.0
      %443 = vmatpush1.msra.mxu0 0.0
      %444 = vmatprep.subr.mxu0 0.0
      %445 = vmatpush1.msra.mxu0 0.0
      %446 = vmatprep.subr.mxu0 0.0
      %447 = vmatpush1.msra.mxu0 0.0
      %448 = vmatprep.subr.mxu0 0.0
      %449 = vmatpush1.msra.mxu0 0.0
      %450 = vmatprep.subr.mxu0 0.0
      %451 = vmatpush1.msra.mxu0 0.0
      %452 = vmatprep.subr.mxu0 0.0
      %453 = vmatpush1.msra.mxu0 0.0
      %454 = vmatprep.subr.mxu0 0.0
      %455 = vmatpush1.msra.mxu0 0.0
      %456 = vmatprep.subr.mxu0 0.0
      %457 = vmatpush1.msra.mxu0 0.0
      %458 = vmatprep.subr.mxu0 0.0
      %459 = vmatpush1.msra.mxu0 0.0
      %460 = vmatprep.subr.mxu0 0.0
      %461 = vmatpush1.msra.mxu0 0.0
      %462 = vmatprep.subr.mxu0 0.0
      %463 = vmatpush1.msra.mxu0 0.0
      %464 = vmatprep.subr.mxu0 0.0
      %465 = vmatpush1.msra.mxu0 0.0
      %466 = vmatprep.subr.mxu0 0.0
      %467 = vmatpush1.msra.mxu0 0.0
      %468 = vmatprep.subr.mxu0 0.0
      %469 = vmatpush1.msra.mxu0 0.0
      %470 = vmatprep.subr.mxu0 0.0
      %471 = vmatpush1.msra.mxu0 %v429
      %472 = vmatprep.subr.mxu0 0.0
      %473 = vmatpush2.msra.mxu0 0.0
      %474 = vmatprep.subr.mxu0 0.0
      %475 = vmatpush2.msra.mxu0 0.0
      %476 = vmatprep.subr.mxu0 0.0
      %477 = vmatpush2.msra.mxu0 0.0
      %478 = vmatprep.subr.mxu0 0.0
      %479 = vmatpush2.msra.mxu0 0.0
      %480 = vmatprep.subr.mxu0 0.0
      %481 = vmatpush2.msra.mxu0 0.0
      %482 = vmatprep.subr.mxu0 0.0
      %483 = vmatpush2.msra.mxu0 0.0
      %484 = vmatprep.subr.mxu0 0.0
      %485 = vmatpush2.msra.mxu0 0.0
      %486 = vmatprep.subr.mxu0 0.0
      %487 = vmatpush2.msra.mxu0 0.0
      %488 = vmatprep.subr.mxu0 0.0
      %489 = vmatpush2.msra.mxu0 0.0
      %490 = vmatprep.subr.mxu0 0.0
      %491 = vmatpush2.msra.mxu0 0.0
      %492 = vmatprep.subr.mxu0 0.0
      %493 = vmatpush2.msra.mxu0 0.0
      %494 = vmatprep.subr.mxu0 0.0
      %495 = vmatpush2.msra.mxu0 0.0
      %496 = vmatprep.subr.mxu0 0.0
      %497 = vmatpush2.msra.mxu0 0.0
      %498 = vmatprep.subr.mxu0 0.0
      %499 = vmatpush2.msra.mxu0 0.0
      %500 = vmatprep.subr.mxu0 0.0
      %501 = vmatpush2.msra.mxu0 0.0
      %502 = vmatprep.subr.mxu0 0.0
      %503 = vmatpush2.msra.mxu0 0.0
      %504 = vmatprep.mubr.f32.mxu0 0.0
      %505 = vmatmul.mubr.f32.gmra.mxu0 %v438
      %v506 = vpop.f32.mrf.mxu0
      %v507 = vadd.f32 %v435, %v506
      %v508 = vpop.f32.mrf.mxu0
      %509 = vdwg.mxu0
      %v511 = vcombine.high %v426, %v426
      %v513 = vunpack.c.l.s4 1966171168
      %v514 = vunpack.c.0.s8 %v513
      %v515 = vlaneseq
      %v516 = vshrl.u32 %v515, 7
      %v517 = vsub.s32 %v514, %v516
      %v518 = vrot.slane %v426, %v517
      %v520 = vunpack.c.l.s4 1966171168
      %v521 = vunpack.c.0.s8 %v520
      %v522 = vlaneseq
      %v523 = vshrl.u32 %v522, 7
      %v524 = vsub.s32 %v521, %v523
      %v525 = vrot.slane %v511, %v524
      %v526 = vcombine.high %v518, %v518
      %v527 = vcombine.high %v525, %v525
      %v529 = vunpack.c.l.s4 1966171168
      %v530 = vunpack.c.0.s8 %v529
      %v531 = vlaneseq
      %v532 = vshrl.u32 %v531, 7
      %v533 = vsub.s32 %v530, %v532
      %v534 = vrot.slane %v518, %v533
      %v536 = vunpack.c.l.s4 1966171168
      %v537 = vunpack.c.0.s8 %v536
      %v538 = vlaneseq
      %v539 = vshrl.u32 %v538, 7
      %v540 = vsub.s32 %v537, %v539
      %v541 = vrot.slane %v525, %v540
      %v543 = vunpack.c.l.s4 1966171168
      %v544 = vunpack.c.0.s8 %v543
      %v545 = vlaneseq
      %v546 = vshrl.u32 %v545, 7
      %v547 = vsub.s32 %v544, %v546
      %v548 = vrot.slane %v526, %v547
      %v550 = vunpack.c.l.s4 1966171168
      %v551 = vunpack.c.0.s8 %v550
      %v552 = vlaneseq
      %v553 = vshrl.u32 %v552, 7
      %v554 = vsub.s32 %v551, %v553
      %v555 = vrot.slane %v527, %v554
      %v556 = vcombine.high %v534, %v534
      %v557 = vcombine.high %v541, %v541
      %v558 = vcombine.high %v548, %v548
      %v559 = vcombine.high %v555, %v555
      %v560 = vlaneseq
      %v561 = vshrl.u32 %v560, 7
      %v562 = vsub.s32 0, %v561
      %v563 = vrot.slane %v534, %v562
      %v564 = vlaneseq
      %v565 = vshrl.u32 %v564, 7
      %v566 = vsub.s32 0, %v565
      %v567 = vrot.slane %v548, %v566
      %v568 = vlaneseq
      %v569 = vshrl.u32 %v568, 7
      %v570 = vsub.s32 0, %v569
      %v571 = vrot.slane %v556, %v570
      %v572 = vlaneseq
      %v573 = vshrl.u32 %v572, 7
      %v574 = vsub.s32 0, %v573
      %v575 = vrot.slane %v558, %v574
      %v576 = vlaneseq
      %v577 = vshrl.u32 %v576, 7
      %v578 = vsub.s32 0, %v577
      %v579 = vrot.slane %v541, %v578
      %v580 = vlaneseq
      %v581 = vshrl.u32 %v580, 7
      %v582 = vsub.s32 0, %v581
      %v583 = vrot.slane %v555, %v582
      %v584 = vlaneseq
      %v585 = vshrl.u32 %v584, 7
      %v586 = vsub.s32 0, %v585
      %v587 = vrot.slane %v557, %v586
      %v588 = vlaneseq
      %v589 = vshrl.u32 %v588, 7
      %v590 = vsub.s32 0, %v589
      %v591 = vrot.slane %v559, %v590
      %v600 = vmul.f32 %v563, %v507
      %v601 = vmul.f32 %v567, %v507
      %v602 = vmul.f32 %v571, %v507
      %v603 = vmul.f32 %v575, %v507
      %v604 = vmul.f32 %v579, %v507
      %v605 = vmul.f32 %v583, %v507
      %v606 = vmul.f32 %v587, %v507
      %v607 = vmul.f32 %v591, %v507
      %v608 = vsel %vm355, %v600, -inf
      %v609 = vrot.slane %v608, 4
      %v610 = vmax.f32 %v608, %v609
      %v611 = vrot.slane %v610, 2
      %v612 = vmax.f32 %v610, %v611
      %v613 = vrot.slane %v612, 1
      %v614 = vmax.f32 %v612, %v613
      %v615 = vsel %vm355, %v601, -inf
      %v616 = vrot.slane %v615, 4
      %v617 = vmax.f32 %v615, %v616
      %v618 = vrot.slane %v617, 2
      %v619 = vmax.f32 %v617, %v618
      %v620 = vrot.slane %v619, 1
      %v621 = vmax.f32 %v619, %v620
      %v622 = vsel %vm355, %v602, -inf
      %v623 = vrot.slane %v622, 4
      %v624 = vmax.f32 %v622, %v623
      %v625 = vrot.slane %v624, 2
      %v626 = vmax.f32 %v624, %v625
      %v627 = vrot.slane %v626, 1
      %v628 = vmax.f32 %v626, %v627
      %v629 = vsel %vm355, %v603, -inf
      %v630 = vrot.slane %v629, 4
      %v631 = vmax.f32 %v629, %v630
      %v632 = vrot.slane %v631, 2
      %v633 = vmax.f32 %v631, %v632
      %v634 = vrot.slane %v633, 1
      %v635 = vmax.f32 %v633, %v634
      %v636 = vsel %vm355, %v604, -inf
      %v637 = vrot.slane %v636, 4
      %v638 = vmax.f32 %v636, %v637
      %v639 = vrot.slane %v638, 2
      %v640 = vmax.f32 %v638, %v639
      %v641 = vrot.slane %v640, 1
      %v642 = vmax.f32 %v640, %v641
      %v643 = vsel %vm355, %v605, -inf
      %v644 = vrot.slane %v643, 4
      %v645 = vmax.f32 %v643, %v644
      %v646 = vrot.slane %v645, 2
      %v647 = vmax.f32 %v645, %v646
      %v648 = vrot.slane %v647, 1
      %v649 = vmax.f32 %v647, %v648
      %v650 = vsel %vm355, %v606, -inf
      %v651 = vrot.slane %v650, 4
      %v652 = vmax.f32 %v650, %v651
      %v653 = vrot.slane %v652, 2
      %v654 = vmax.f32 %v652, %v653
      %v655 = vrot.slane %v654, 1
      %v656 = vmax.f32 %v654, %v655
      %v657 = vsel %vm355, %v607, -inf
      %v658 = vrot.slane %v657, 4
      %v659 = vmax.f32 %v657, %v658
      %v660 = vrot.slane %v659, 2
      %v661 = vmax.f32 %v659, %v660
      %v662 = vrot.slane %v661, 1
      %v663 = vmax.f32 %v661, %v662
      %v664 = vsub.f32 %v600, %v614
      %v665 = vsub.f32 %v601, %v621
      %v666 = vsub.f32 %v602, %v628
      %v667 = vsub.f32 %v603, %v635
      %v668 = vsub.f32 %v604, %v642
      %v669 = vsub.f32 %v605, %v649
      %v670 = vsub.f32 %v606, %v656
      %v671 = vsub.f32 %v607, %v663
      %v672 = vmul.f32 %v664, 1.442695
      %v673 = vpow.pop %v672
      %v674 = vmul.f32 %v665, 1.442695
      %v675 = vpow.pop %v674
      %v676 = vmul.f32 %v666, 1.442695
      %v677 = vpow.pop %v676
      %v678 = vmul.f32 %v667, 1.442695
      %v679 = vpow.pop %v678
      %v680 = vmul.f32 %v668, 1.442695
      %v681 = vpow.pop %v680
      %v682 = vmul.f32 %v669, 1.442695
      %v683 = vpow.pop %v682
      %v684 = vmul.f32 %v670, 1.442695
      %v685 = vpow.pop %v684
      %v686 = vmul.f32 %v671, 1.442695
      %v687 = vpow.pop %v686
      %v688 = vsel %vm355, %v673, 0.0
      %v689 = vrot.slane %v688, 4
      %v690 = vadd.f32 %v688, %v689
      %v691 = vrot.slane %v690, 2
      %v692 = vadd.f32 %v690, %v691
      %v693 = vrot.slane %v692, 1
      %v694 = vadd.f32 %v692, %v693
      %v695 = vsel %vm355, %v675, 0.0
      %v696 = vrot.slane %v695, 4
      %v697 = vadd.f32 %v695, %v696
      %v698 = vrot.slane %v697, 2
      %v699 = vadd.f32 %v697, %v698
      %v700 = vrot.slane %v699, 1
      %v701 = vadd.f32 %v699, %v700
      %v702 = vsel %vm355, %v677, 0.0
      %v703 = vrot.slane %v702, 4
      %v704 = vadd.f32 %v702, %v703
      %v705 = vrot.slane %v704, 2
      %v706 = vadd.f32 %v704, %v705
      %v707 = vrot.slane %v706, 1
      %v708 = vadd.f32 %v706, %v707
      %v709 = vsel %vm355, %v679, 0.0
      %v710 = vrot.slane %v709, 4
      %v711 = vadd.f32 %v709, %v710
      %v712 = vrot.slane %v711, 2
      %v713 = vadd.f32 %v711, %v712
      %v714 = vrot.slane %v713, 1
      %v715 = vadd.f32 %v713, %v714
      %v716 = vsel %vm355, %v681, 0.0
      %v717 = vrot.slane %v716, 4
      %v718 = vadd.f32 %v716, %v717
      %v719 = vrot.slane %v718, 2
      %v720 = vadd.f32 %v718, %v719
      %v721 = vrot.slane %v720, 1
      %v722 = vadd.f32 %v720, %v721
      %v723 = vsel %vm355, %v683, 0.0
      %v724 = vrot.slane %v723, 4
      %v725 = vadd.f32 %v723, %v724
      %v726 = vrot.slane %v725, 2
      %v727 = vadd.f32 %v725, %v726
      %v728 = vrot.slane %v727, 1
      %v729 = vadd.f32 %v727, %v728
      %v730 = vsel %vm355, %v685, 0.0
      %v731 = vrot.slane %v730, 4
      %v732 = vadd.f32 %v730, %v731
      %v733 = vrot.slane %v732, 2
      %v734 = vadd.f32 %v732, %v733
      %v735 = vrot.slane %v734, 1
      %v736 = vadd.f32 %v734, %v735
      %v737 = vsel %vm355, %v687, 0.0
      %v738 = vrot.slane %v737, 4
      %v739 = vadd.f32 %v737, %v738
      %v740 = vrot.slane %v739, 2
      %v741 = vadd.f32 %v739, %v740
      %v742 = vrot.slane %v741, 1
      %v743 = vadd.f32 %v741, %v742
      %v744 = vrcp.pop %v694
      %v745 = vrcp.pop %v701
      %v746 = vrcp.pop %v708
      %v747 = vrcp.pop %v715
      %v748 = vrcp.pop %v722
      %v749 = vrcp.pop %v729
      %v750 = vrcp.pop %v736
      %v751 = vrcp.pop %v743
      %v752 = vmul.f32 %v673, %v744
      %v753 = vmul.f32 %v675, %v745
      %v754 = vmul.f32 %v677, %v746
      %v755 = vmul.f32 %v679, %v747
      %v756 = vmul.f32 %v681, %v748
      %v757 = vmul.f32 %v683, %v749
      %v758 = vmul.f32 %v685, %v750
      %v759 = vmul.f32 %v687, %v751
      %761 = vrot.lane.b32.xlu0 %v507, 120
      %v762 = vpop.permute.xlu0 %761
      %v764 = vmul.f32 %v752, %v762
      %v765 = vmul.f32 %v753, %v762
      %v766 = vmul.f32 %v754, %v762
      %v767 = vmul.f32 %v755, %v762
      %v768 = vmul.f32 %v756, %v762
      %v769 = vmul.f32 %v757, %v762
      %v770 = vmul.f32 %v758, %v762
      %v771 = vmul.f32 %v759, %v762
      %v772 = vsel %vm355, %v764, 0.0
      %v773 = vrot.slane %v772, 4
      %v774 = vadd.f32 %v772, %v773
      %v775 = vrot.slane %v774, 2
      %v776 = vadd.f32 %v774, %v775
      %v777 = vrot.slane %v776, 1
      %v778 = vadd.f32 %v776, %v777
      %v779 = vsel %vm355, %v765, 0.0
      %v780 = vrot.slane %v779, 4
      %v781 = vadd.f32 %v779, %v780
      %v782 = vrot.slane %v781, 2
      %v783 = vadd.f32 %v781, %v782
      %v784 = vrot.slane %v783, 1
      %v785 = vadd.f32 %v783, %v784
      %v786 = vsel %vm355, %v766, 0.0
      %v787 = vrot.slane %v786, 4
      %v788 = vadd.f32 %v786, %v787
      %v789 = vrot.slane %v788, 2
      %v790 = vadd.f32 %v788, %v789
      %v791 = vrot.slane %v790, 1
      %v792 = vadd.f32 %v790, %v791
      %v793 = vsel %vm355, %v767, 0.0
      %v794 = vrot.slane %v793, 4
      %v795 = vadd.f32 %v793, %v794
      %v796 = vrot.slane %v795, 2
      %v797 = vadd.f32 %v795, %v796
      %v798 = vrot.slane %v797, 1
      %v799 = vadd.f32 %v797, %v798
      %v800 = vsel %vm355, %v768, 0.0
      %v801 = vrot.slane %v800, 4
      %v802 = vadd.f32 %v800, %v801
      %v803 = vrot.slane %v802, 2
      %v804 = vadd.f32 %v802, %v803
      %v805 = vrot.slane %v804, 1
      %v806 = vadd.f32 %v804, %v805
      %v807 = vsel %vm355, %v769, 0.0
      %v808 = vrot.slane %v807, 4
      %v809 = vadd.f32 %v807, %v808
      %v810 = vrot.slane %v809, 2
      %v811 = vadd.f32 %v809, %v810
      %v812 = vrot.slane %v811, 1
      %v813 = vadd.f32 %v811, %v812
      %v814 = vsel %vm355, %v770, 0.0
      %v815 = vrot.slane %v814, 4
      %v816 = vadd.f32 %v814, %v815
      %v817 = vrot.slane %v816, 2
      %v818 = vadd.f32 %v816, %v817
      %v819 = vrot.slane %v818, 1
      %v820 = vadd.f32 %v818, %v819
      %v821 = vsel %vm355, %v771, 0.0
      %v822 = vrot.slane %v821, 4
      %v823 = vadd.f32 %v821, %v822
      %v824 = vrot.slane %v823, 2
      %v825 = vadd.f32 %v823, %v824
      %v826 = vrot.slane %v825, 1
      %v827 = vadd.f32 %v825, %v826
      %v828 = vld [vmem:[%s6] sm:$0xff]
      %v829 = vld [vmem:[%s7] sm:$0x1]
      %v831 = vlaneseq
      %v832 = vshrl.u32 %v831, 7
      %v833 = vsub.s32 0, %v832
      %v834 = vrot.slane %v829, %v833
      %vm844 = vcmask 1041409
      %v845 = vsel %vm844, %v785, %v778
      %vm846 = vcmask 1042434
      %v847 = vsel %vm846, %v792, %v845
      %vm848 = vcmask 1043459
      %v849 = vsel %vm848, %v799, %v847
      %vm850 = vcmask 1044484
      %v851 = vsel %vm850, %v806, %v849
      %vm852 = vcmask 1045509
      %v853 = vsel %vm852, %v813, %v851
      %vm854 = vcmask 1046534
      %v855 = vsel %vm854, %v820, %v853
      %vm856 = vcmask 1047559
      %v857 = vsel %vm856, %v827, %v855
      %v858 = vsel %vm355, %v857, 0
      %860 = vmatprep.subr.mxu0 0.0
      %861 = vmatpush1.msra.mxu0 0.0
      %862 = vmatprep.subr.mxu0 0.0
      %863 = vmatpush1.msra.mxu0 0.0
      %864 = vmatprep.subr.mxu0 0.0
      %865 = vmatpush1.msra.mxu0 0.0
      %866 = vmatprep.subr.mxu0 0.0
      %867 = vmatpush1.msra.mxu0 0.0
      %868 = vmatprep.subr.mxu0 0.0
      %869 = vmatpush1.msra.mxu0 0.0
      %870 = vmatprep.subr.mxu0 0.0
      %871 = vmatpush1.msra.mxu0 0.0
      %872 = vmatprep.subr.mxu0 0.0
      %873 = vmatpush1.msra.mxu0 0.0
      %874 = vmatprep.subr.mxu0 0.0
      %875 = vmatpush1.msra.mxu0 0.0
      %876 = vmatprep.subr.mxu0 0.0
      %877 = vmatpush1.msra.mxu0 0.0
      %878 = vmatprep.subr.mxu0 0.0
      %879 = vmatpush1.msra.mxu0 0.0
      %880 = vmatprep.subr.mxu0 0.0
      %881 = vmatpush1.msra.mxu0 0.0
      %882 = vmatprep.subr.mxu0 0.0
      %883 = vmatpush1.msra.mxu0 0.0
      %884 = vmatprep.subr.mxu0 0.0
      %885 = vmatpush1.msra.mxu0 0.0
      %886 = vmatprep.subr.mxu0 0.0
      %887 = vmatpush1.msra.mxu0 0.0
      %888 = vmatprep.subr.mxu0 0.0
      %889 = vmatpush1.msra.mxu0 0.0
      %890 = vmatprep.subr.mxu0 0.0
      %891 = vmatpush1.msra.mxu0 %v828
      %892 = vmatprep.subr.mxu0 0.0
      %893 = vmatpush2.msra.mxu0 0.0
      %894 = vmatprep.subr.mxu0 0.0
      %895 = vmatpush2.msra.mxu0 0.0
      %896 = vmatprep.subr.mxu0 0.0
      %897 = vmatpush2.msra.mxu0 0.0
      %898 = vmatprep.subr.mxu0 0.0
      %899 = vmatpush2.msra.mxu0 0.0
      %900 = vmatprep.subr.mxu0 0.0
      %901 = vmatpush2.msra.mxu0 0.0
      %902 = vmatprep.subr.mxu0 0.0
      %903 = vmatpush2.msra.mxu0 0.0
      %904 = vmatprep.subr.mxu0 0.0
      %905 = vmatpush2.msra.mxu0 0.0
      %906 = vmatprep.subr.mxu0 0.0
      %907 = vmatpush2.msra.mxu0 0.0
      %908 = vmatprep.subr.mxu0 0.0
      %909 = vmatpush2.msra.mxu0 0.0
      %910 = vmatprep.subr.mxu0 0.0
      %911 = vmatpush2.msra.mxu0 0.0
      %912 = vmatprep.subr.mxu0 0.0
      %913 = vmatpush2.msra.mxu0 0.0
      %914 = vmatprep.subr.mxu0 0.0
      %915 = vmatpush2.msra.mxu0 0.0
      %916 = vmatprep.subr.mxu0 0.0
      %917 = vmatpush2.msra.mxu0 0.0
      %918 = vmatprep.subr.mxu0 0.0
      %919 = vmatpush2.msra.mxu0 0.0
      %920 = vmatprep.subr.mxu0 0.0
      %921 = vmatpush2.msra.mxu0 0.0
      %922 = vmatprep.subr.mxu0 0.0
      %923 = vmatpush2.msra.mxu0 0.0
      %924 = vmatprep.mubr.f32.mxu0 0.0
      %925 = vmatmul.mubr.f32.gmra.mxu0 %v858
      %v926 = vpop.f32.mrf.mxu0
      %v927 = vadd.f32 %v834, %v926
      %v928 = vpop.f32.mrf.mxu0
      %929 = vdwg.mxu0
      %v930 = vld [vmem:[%s8] sm:$0x1]
      %v932 = vlaneseq
      %v933 = vshrl.u32 %v932, 7
      %v934 = vsub.s32 0, %v933
      %v935 = vrot.slane %v930, %v934
      %v937 = vmul.f32 %v927, %v935
      %938 = vst.msk [vmem:[%s344] sm:$0xff] %vm355, %v937
      %p939 = scmp.lt.s32.totalorder %s20, 1
      %s940 = scalar_select %p939, %s20, 1
      %s941 = smul.addr %s940, 8
      %s942 = scalar_lea.vmem %s9, %s941
      // Predicated region
      $region57: #{optimated_transformer_forward.10} parent=55 // pred_check
        %p943 = pneg %p237
      $region58: #{optimated_transformer_forward.10} parent=55 // pred_check_branch
        %945 = sbr.rel (%p943) target = $region60
      $region59: #{optimated_transformer_forward.10} parent=55 // pred_region
        _
      $region60: #{optimated_transformer_forward.10} parent=55 // pred_fallthru
        _
    $region56: #{optimated_transformer_forward.10} parent=5 // pred_fallthru
      _
    %p946 = scmp.le.s32.totalorder 2, %s15
    // Predicated region
    $region61: #{optimated_transformer_forward.10} parent=5 // pred_check
      %p947 = pneg %p946
    $region62: #{optimated_transformer_forward.10} parent=5 // pred_check_branch
      %949 = sbr.rel (%p947) target = $region64
    $region63: #{optimated_transformer_forward.10} parent=5 // pred_region
      %s950 = ssub.s32 %s15, 2
      // Predicated region
      $region65: #{optimated_transformer_forward.10} parent=63 // pred_check
        %p951 = pneg %p243
      $region66: #{optimated_transformer_forward.10} parent=63 // pred_check_branch
        %953 = sbr.rel (%p951) target = $region68
      $region67: #{optimated_transformer_forward.10} parent=63 // pred_region
        %p954 = scmp.lt.s32.totalorder %s21, 1
        %s955 = scalar_select %p954, %s21, 1
        %s956 = smul.addr %s955, 8
        %s957 = scalar_lea.vmem %s9, %s956
      $region68: #{optimated_transformer_forward.10} parent=63 // pred_fallthru
        _
    $region64: #{optimated_transformer_forward.10} parent=5 // pred_fallthru
      _
  $region6: #{optimated_transformer_forward.10} parent=0 // loop_footer
    %s19 = sadd.s32 1, %s15
  $region7: #{optimated_transformer_forward.10} parent=0 // loop_footer_branch
    %14 = sbr.rel target = $region3
  $region8: #{optimated_transformer_forward.10} parent=0 // loop_exit
    _

// kernel: optimated_transformer_forward.7
$region0: #{optimated_transformer_forward.7}
  #allocation0 [shape = 'u32[]', space=smem, size = 0x4, offset = 0x4, fixed_abs, tag = 'smem constant byte address 0x4 - core index']
  #allocation1 [shape = 'u32[144,128]{1,0:T(1,128)}', space=vmem, size = 0x12000, scoped, tag = 'internal scratch']
  %s0 = inlined_call_operand.vmem [shape: f32[2,8,8], index: 0, kind: input, shape index: {}]
  %s1 = inlined_call_operand.vmem [shape: f32[8,24], index: 1, kind: input, shape index: {}]
  %s2 = inlined_call_operand.vmem [shape: f32[1,24], index: 2, kind: input, shape index: {}]
  %s3 = inlined_call_operand.vmem [shape: f32[8,8], index: 3, kind: input, shape index: {}]
  %s4 = inlined_call_operand.vmem [shape: f32[1,8], index: 4, kind: input, shape index: {}]
  %s5 = inlined_call_operand.vmem [shape: f32[1,8], index: 5, kind: input, shape index: {}]
  %s6 = inlined_call_operand.vmem [shape: f32[1,8], index: 6, kind: input, shape index: {}]
  %s7 = inlined_call_operand.vmem [shape: f32[8,32], index: 7, kind: input, shape index: {}]
  %s8 = inlined_call_operand.vmem [shape: f32[1,32], index: 8, kind: input, shape index: {}]
  %s9 = inlined_call_operand.vmem [shape: f32[32,8], index: 9, kind: input, shape index: {}]
  %s10 = inlined_call_operand.vmem [shape: f32[1,8], index: 10, kind: input, shape index: {}]
  %s11 = inlined_call_operand.vmem [shape: f32[1,8], index: 11, kind: input, shape index: {}]
  %s12 = inlined_call_operand.vmem [shape: f32[1,8], index: 12, kind: input, shape index: {}]
  %s13 = inlined_call_operand.vmem [shape: f32[2,8,8], index: 13, kind: output, shape index: {}]
  %s14 = sld [smem:[#allocation0]]
  $region85: #{optimated_transformer_forward.7} parent=0
    _
  %s16 = ssub.s32 1, %s14
  %s17 = scalar_select 0, %s16, %s14
  loop: start=0, step=1, limit=4
  $region2: #{optimated_transformer_forward.7} parent=0 // loop_pre_header
    _
  $region3: #{optimated_transformer_forward.7} parent=0 // loop_header
    %s19 = sphi 0, %s23
    %p20 = scmp.ge.s32.totalorder %s19, 4
    %s29 = sphi 0, %s31
    %s32 = sphi 0, %s29
    %s33 = sphi 0, %s32
    %s49 = sphi 0, %s33
    %s53 = sphi 0, %s53
    %s55 = sphi 0, %s53
    %s56 = sphi 0, %s55
    %s70 = sphi 0, %s56
    %s74 = sphi 0, %s74
    %s76 = sphi 0, %s74
    %s77 = sphi 0, %s76
    %s91 = sphi 0, %s77
    %s95 = sphi 0, %s95
    %s97 = sphi 0, %s95
    %s98 = sphi 0, %s97
    %s112 = sphi 0, %s98
    %s116 = sphi 0, %s116
    %s118 = sphi 0, %s116
    %s119 = sphi 0, %s118
    %s133 = sphi 0, %s119
    %s137 = sphi 0, %s137
    %s139 = sphi 0, %s137
    %s140 = sphi 0, %s139
    %s154 = sphi 0, %s140
    %s158 = sphi 0, %s158
    %s160 = sphi 0, %s158
    %s161 = sphi 0, %s160
    %s175 = sphi 0, %s161
    %s179 = sphi 0, %s179
    %s181 = sphi 0, %s179
    %s182 = sphi 0, %s181
    %s196 = sphi 0, %s182
    %s200 = sphi 0, %s200
    %s202 = sphi 0, %s200
    %s203 = sphi 0, %s202
    %s217 = sphi 0, %s203
    %s221 = sphi 0, %s221
    %s223 = sphi 0, %s221
    %s224 = sphi 0, %s223
    %s238 = sphi 0, %s224
    %s242 = sphi 0, %s242
    %s244 = sphi 0, %s242
    %s245 = sphi 0, %s244
    %s259 = sphi 0, %s245
    %s263 = sphi 0, %s263
    %s265 = sphi 0, %s263
    %s266 = sphi 0, %s265
    %s280 = sphi 0, %s266
    %s284 = sphi 0, %s284
    %s286 = sphi 0, %s284
    %s287 = sphi 0, %s286
    %s301 = sphi 0, %s287
    %s307 = sphi 0, %s309
    %s310 = sphi 0, %s307
    %s311 = sphi 0, %s310
    %s327 = sphi 0, %s311
  $region4: #{optimated_transformer_forward.7} parent=0 // loop_header_branch
    %22 = sbr.rel (%p20) target = $region8
  $region5: #{optimated_transformer_forward.7} parent=0 // loop_body
    %s24 = ssub.s32 %s19, 1
    %s25 = ssub.s32 %s19, 2
    %s26 = sadd.s32 %s19, 1
    %s27 = ssub.s32 %s19, %s26
    %p28 = scmp.eq.s32.totalorder %s27, 0
    %s30 = sadd.s32 %s29, 1
    %s31 = scalar_select %p28, %s29, %s30
    %p34 = pneg %p28
    %p35 = scmp.eq.s32.totalorder %s19, 1
    %p36 = por %p34, %p35
    %p37 = scmp.ne.s32.totalorder %s29, %s32
    %p38 = scmp.eq.s32.totalorder %s19, 0
    %p39 = por %p37, %p38
    %p40 = scmp.ne.s32.totalorder %s29, %s32
    %p41 = scmp.eq.s32.totalorder %s24, 1
    %p42 = por %p40, %p41
    %p43 = scmp.ne.s32.totalorder %s32, %s33
    %p44 = scmp.eq.s32.totalorder %s24, 0
    %p45 = por %p43, %p44
    %p46 = scmp.ne.s32.totalorder %s32, %s33
    %p47 = scmp.eq.s32.totalorder %s25, 1
    %p48 = por %p46, %p47
    %p50 = scmp.ne.s32.totalorder %s33, %s49
    %p51 = scmp.eq.s32.totalorder %s25, 0
    %p52 = por %p50, %p51
    %s54 = sadd.s32 %s53, 1
    %p57 = scmp.eq.s32.totalorder %s19, 1
    %p58 = scmp.ne.s32.totalorder %s53, %s55
    %p59 = scmp.eq.s32.totalorder %s19, 0
    %p60 = por %p58, %p59
    %p61 = scmp.ne.s32.totalorder %s53, %s55
    %p62 = scmp.eq.s32.totalorder %s24, 1
    %p63 = por %p61, %p62
    %p64 = scmp.ne.s32.totalorder %s55, %s56
    %p65 = scmp.eq.s32.totalorder %s24, 0
    %p66 = por %p64, %p65
    %p67 = scmp.ne.s32.totalorder %s55, %s56
    %p68 = scmp.eq.s32.totalorder %s25, 1
    %p69 = por %p67, %p68
    %p71 = scmp.ne.s32.totalorder %s56, %s70
    %p72 = scmp.eq.s32.totalorder %s25, 0
    %p73 = por %p71, %p72
    %s75 = sadd.s32 %s74, 1
    %p78 = scmp.eq.s32.totalorder %s19, 1
    %p79 = scmp.ne.s32.totalorder %s74, %s76
    %p80 = scmp.eq.s32.totalorder %s19, 0
    %p81 = por %p79, %p80
    %p82 = scmp.ne.s32.totalorder %s74, %s76
    %p83 = scmp.eq.s32.totalorder %s24, 1
    %p84 = por %p82, %p83
    %p85 = scmp.ne.s32.totalorder %s76, %s77
    %p86 = scmp.eq.s32.totalorder %s24, 0
    %p87 = por %p85, %p86
    %p88 = scmp.ne.s32.totalorder %s76, %s77
    %p89 = scmp.eq.s32.totalorder %s25, 1
    %p90 = por %p88, %p89
    %p92 = scmp.ne.s32.totalorder %s77, %s91
    %p93 = scmp.eq.s32.totalorder %s25, 0
    %p94 = por %p92, %p93
    %s96 = sadd.s32 %s95, 1
    %p99 = scmp.eq.s32.totalorder %s19, 1
    %p100 = scmp.ne.s32.totalorder %s95, %s97
    %p101 = scmp.eq.s32.totalorder %s19, 0
    %p102 = por %p100, %p101
    %p103 = scmp.ne.s32.totalorder %s95, %s97
    %p104 = scmp.eq.s32.totalorder %s24, 1
    %p105 = por %p103, %p104
    %p106 = scmp.ne.s32.totalorder %s97, %s98
    %p107 = scmp.eq.s32.totalorder %s24, 0
    %p108 = por %p106, %p107
    %p109 = scmp.ne.s32.totalorder %s97, %s98
    %p110 = scmp.eq.s32.totalorder %s25, 1
    %p111 = por %p109, %p110
    %p113 = scmp.ne.s32.totalorder %s98, %s112
    %p114 = scmp.eq.s32.totalorder %s25, 0
    %p115 = por %p113, %p114
    %s117 = sadd.s32 %s116, 1
    %p120 = scmp.eq.s32.totalorder %s19, 1
    %p121 = scmp.ne.s32.totalorder %s116, %s118
    %p122 = scmp.eq.s32.totalorder %s19, 0
    %p123 = por %p121, %p122
    %p124 = scmp.ne.s32.totalorder %s116, %s118
    %p125 = scmp.eq.s32.totalorder %s24, 1
    %p126 = por %p124, %p125
    %p127 = scmp.ne.s32.totalorder %s118, %s119
    %p128 = scmp.eq.s32.totalorder %s24, 0
    %p129 = por %p127, %p128
    %p130 = scmp.ne.s32.totalorder %s118, %s119
    %p131 = scmp.eq.s32.totalorder %s25, 1
    %p132 = por %p130, %p131
    %p134 = scmp.ne.s32.totalorder %s119, %s133
    %p135 = scmp.eq.s32.totalorder %s25, 0
    %p136 = por %p134, %p135
    %s138 = sadd.s32 %s137, 1
    %p141 = scmp.eq.s32.totalorder %s19, 1
    %p142 = scmp.ne.s32.totalorder %s137, %s139
    %p143 = scmp.eq.s32.totalorder %s19, 0
    %p144 = por %p142, %p143
    %p145 = scmp.ne.s32.totalorder %s137, %s139
    %p146 = scmp.eq.s32.totalorder %s24, 1
    %p147 = por %p145, %p146
    %p148 = scmp.ne.s32.totalorder %s139, %s140
    %p149 = scmp.eq.s32.totalorder %s24, 0
    %p150 = por %p148, %p149
    %p151 = scmp.ne.s32.totalorder %s139, %s140
    %p152 = scmp.eq.s32.totalorder %s25, 1
    %p153 = por %p151, %p152
    %p155 = scmp.ne.s32.totalorder %s140, %s154
    %p156 = scmp.eq.s32.totalorder %s25, 0
    %p157 = por %p155, %p156
    %s159 = sadd.s32 %s158, 1
    %p162 = scmp.eq.s32.totalorder %s19, 1
    %p163 = scmp.ne.s32.totalorder %s158, %s160
    %p164 = scmp.eq.s32.totalorder %s19, 0
    %p165 = por %p163, %p164
    %p166 = scmp.ne.s32.totalorder %s158, %s160
    %p167 = scmp.eq.s32.totalorder %s24, 1
    %p168 = por %p166, %p167
    %p169 = scmp.ne.s32.totalorder %s160, %s161
    %p170 = scmp.eq.s32.totalorder %s24, 0
    %p171 = por %p169, %p170
    %p172 = scmp.ne.s32.totalorder %s160, %s161
    %p173 = scmp.eq.s32.totalorder %s25, 1
    %p174 = por %p172, %p173
    %p176 = scmp.ne.s32.totalorder %s161, %s175
    %p177 = scmp.eq.s32.totalorder %s25, 0
    %p178 = por %p176, %p177
    %s180 = sadd.s32 %s179, 1
    %p183 = scmp.eq.s32.totalorder %s19, 1
    %p184 = scmp.ne.s32.totalorder %s179, %s181
    %p185 = scmp.eq.s32.totalorder %s19, 0
    %p186 = por %p184, %p185
    %p187 = scmp.ne.s32.totalorder %s179, %s181
    %p188 = scmp.eq.s32.totalorder %s24, 1
    %p189 = por %p187, %p188
    %p190 = scmp.ne.s32.totalorder %s181, %s182
    %p191 = scmp.eq.s32.totalorder %s24, 0
    %p192 = por %p190, %p191
    %p193 = scmp.ne.s32.totalorder %s181, %s182
    %p194 = scmp.eq.s32.totalorder %s25, 1
    %p195 = por %p193, %p194
    %p197 = scmp.ne.s32.totalorder %s182, %s196
    %p198 = scmp.eq.s32.totalorder %s25, 0
    %p199 = por %p197, %p198
    %s201 = sadd.s32 %s200, 1
    %p204 = scmp.eq.s32.totalorder %s19, 1
    %p205 = scmp.ne.s32.totalorder %s200, %s202
    %p206 = scmp.eq.s32.totalorder %s19, 0
    %p207 = por %p205, %p206
    %p208 = scmp.ne.s32.totalorder %s200, %s202
    %p209 = scmp.eq.s32.totalorder %s24, 1
    %p210 = por %p208, %p209
    %p211 = scmp.ne.s32.totalorder %s202, %s203
    %p212 = scmp.eq.s32.totalorder %s24, 0
    %p213 = por %p211, %p212
    %p214 = scmp.ne.s32.totalorder %s202, %s203
    %p215 = scmp.eq.s32.totalorder %s25, 1
    %p216 = por %p214, %p215
    %p218 = scmp.ne.s32.totalorder %s203, %s217
    %p219 = scmp.eq.s32.totalorder %s25, 0
    %p220 = por %p218, %p219
    %s222 = sadd.s32 %s221, 1
    %p225 = scmp.eq.s32.totalorder %s19, 1
    %p226 = scmp.ne.s32.totalorder %s221, %s223
    %p227 = scmp.eq.s32.totalorder %s19, 0
    %p228 = por %p226, %p227
    %p229 = scmp.ne.s32.totalorder %s221, %s223
    %p230 = scmp.eq.s32.totalorder %s24, 1
    %p231 = por %p229, %p230
    %p232 = scmp.ne.s32.totalorder %s223, %s224
    %p233 = scmp.eq.s32.totalorder %s24, 0
    %p234 = por %p232, %p233
    %p235 = scmp.ne.s32.totalorder %s223, %s224
    %p236 = scmp.eq.s32.totalorder %s25, 1
    %p237 = por %p235, %p236
    %p239 = scmp.ne.s32.totalorder %s224, %s238
    %p240 = scmp.eq.s32.totalorder %s25, 0
    %p241 = por %p239, %p240
    %s243 = sadd.s32 %s242, 1
    %p246 = scmp.eq.s32.totalorder %s19, 1
    %p247 = scmp.ne.s32.totalorder %s242, %s244
    %p248 = scmp.eq.s32.totalorder %s19, 0
    %p249 = por %p247, %p248
    %p250 = scmp.ne.s32.totalorder %s242, %s244
    %p251 = scmp.eq.s32.totalorder %s24, 1
    %p252 = por %p250, %p251
    %p253 = scmp.ne.s32.totalorder %s244, %s245
    %p254 = scmp.eq.s32.totalorder %s24, 0
    %p255 = por %p253, %p254
    %p256 = scmp.ne.s32.totalorder %s244, %s245
    %p257 = scmp.eq.s32.totalorder %s25, 1
    %p258 = por %p256, %p257
    %p260 = scmp.ne.s32.totalorder %s245, %s259
    %p261 = scmp.eq.s32.totalorder %s25, 0
    %p262 = por %p260, %p261
    %s264 = sadd.s32 %s263, 1
    %p267 = scmp.eq.s32.totalorder %s19, 1
    %p268 = scmp.ne.s32.totalorder %s263, %s265
    %p269 = scmp.eq.s32.totalorder %s19, 0
    %p270 = por %p268, %p269
    %p271 = scmp.ne.s32.totalorder %s263, %s265
    %p272 = scmp.eq.s32.totalorder %s24, 1
    %p273 = por %p271, %p272
    %p274 = scmp.ne.s32.totalorder %s265, %s266
    %p275 = scmp.eq.s32.totalorder %s24, 0
    %p276 = por %p274, %p275
    %p277 = scmp.ne.s32.totalorder %s265, %s266
    %p278 = scmp.eq.s32.totalorder %s25, 1
    %p279 = por %p277, %p278
    %p281 = scmp.ne.s32.totalorder %s266, %s280
    %p282 = scmp.eq.s32.totalorder %s25, 0
    %p283 = por %p281, %p282
    %s285 = sadd.s32 %s284, 1
    %p288 = scmp.eq.s32.totalorder %s19, 1
    %p289 = scmp.ne.s32.totalorder %s284, %s286
    %p290 = scmp.eq.s32.totalorder %s19, 0
    %p291 = por %p289, %p290
    %p292 = scmp.ne.s32.totalorder %s284, %s286
    %p293 = scmp.eq.s32.totalorder %s24, 1
    %p294 = por %p292, %p293
    %p295 = scmp.ne.s32.totalorder %s286, %s287
    %p296 = scmp.eq.s32.totalorder %s24, 0
    %p297 = por %p295, %p296
    %p298 = scmp.ne.s32.totalorder %s286, %s287
    %p299 = scmp.eq.s32.totalorder %s25, 1
    %p300 = por %p298, %p299
    %p302 = scmp.ne.s32.totalorder %s287, %s301
    %p303 = scmp.eq.s32.totalorder %s25, 0
    %p304 = por %p302, %p303
    %s305 = ssub.s32 %s19, %s26
    %p306 = scmp.eq.s32.totalorder %s305, 0
    %s308 = sadd.s32 %s307, 1
    %s309 = scalar_select %p306, %s307, %s308
    %p312 = pneg %p306
    %p313 = scmp.eq.s32.totalorder %s19, 1
    %p314 = por %p312, %p313
    %p315 = scmp.ne.s32.totalorder %s307, %s310
    %p316 = scmp.eq.s32.totalorder %s19, 0
    %p317 = por %p315, %p316
    %p318 = scmp.ne.s32.totalorder %s307, %s310
    %p319 = scmp.eq.s32.totalorder %s24, 1
    %p320 = por %p318, %p319
    %p321 = scmp.ne.s32.totalorder %s310, %s311
    %p322 = scmp.eq.s32.totalorder %s24, 0
    %p323 = por %p321, %p322
    %p324 = scmp.ne.s32.totalorder %s310, %s311
    %p325 = scmp.eq.s32.totalorder %s25, 1
    %p326 = por %p324, %p325
    %p328 = scmp.ne.s32.totalorder %s311, %s327
    %p329 = scmp.eq.s32.totalorder %s25, 0
    %p330 = por %p328, %p329
    %p331 = scmp.le.s32.totalorder 1, %s19
    %p332 = scmp.lt.s32.totalorder %s19, 3
    %p333 = pnand %p331, %p332
    %p334 = pneg %p333
    // Predicated region
    $region9: #{optimated_transformer_forward.7} parent=5 // pred_check
      _
    $region10: #{optimated_transformer_forward.7} parent=5 // pred_check_branch
      %336 = sbr.rel (%p333) target = $region12
    $region11: #{optimated_transformer_forward.7} parent=5 // pred_region
      %s337 = ssub.s32 %s19, 1
      // Predicated region
      $region13: #{optimated_transformer_forward.7} parent=11 // pred_check
        %p338 = pneg %p66
      $region14: #{optimated_transformer_forward.7} parent=11 // pred_check_branch
        %340 = sbr.rel (%p338) target = $region16
      $region15: #{optimated_transformer_forward.7} parent=11 // pred_region
        _
      $region16: #{optimated_transformer_forward.7} parent=11 // pred_fallthru
        _
      // Predicated region
      $region17: #{optimated_transformer_forward.7} parent=11 // pred_check
        %p341 = pneg %p87
      $region18: #{optimated_transformer_forward.7} parent=11 // pred_check_branch
        %343 = sbr.rel (%p341) target = $region20
      $region19: #{optimated_transformer_forward.7} parent=11 // pred_region
        _
      $region20: #{optimated_transformer_forward.7} parent=11 // pred_fallthru
        _
      // Predicated region
      $region21: #{optimated_transformer_forward.7} parent=11 // pred_check
        %p344 = pneg %p108
      $region22: #{optimated_transformer_forward.7} parent=11 // pred_check_branch
        %346 = sbr.rel (%p344) target = $region24
      $region23: #{optimated_transformer_forward.7} parent=11 // pred_region
        _
      $region24: #{optimated_transformer_forward.7} parent=11 // pred_fallthru
        _
      // Predicated region
      $region25: #{optimated_transformer_forward.7} parent=11 // pred_check
        %p347 = pneg %p129
      $region26: #{optimated_transformer_forward.7} parent=11 // pred_check_branch
        %349 = sbr.rel (%p347) target = $region28
      $region27: #{optimated_transformer_forward.7} parent=11 // pred_region
        _
      $region28: #{optimated_transformer_forward.7} parent=11 // pred_fallthru
        _
      // Predicated region
      $region29: #{optimated_transformer_forward.7} parent=11 // pred_check
        %p350 = pneg %p150
      $region30: #{optimated_transformer_forward.7} parent=11 // pred_check_branch
        %352 = sbr.rel (%p350) target = $region32
      $region31: #{optimated_transformer_forward.7} parent=11 // pred_region
        _
      $region32: #{optimated_transformer_forward.7} parent=11 // pred_fallthru
        _
      // Predicated region
      $region33: #{optimated_transformer_forward.7} parent=11 // pred_check
        %p353 = pneg %p171
      $region34: #{optimated_transformer_forward.7} parent=11 // pred_check_branch
        %355 = sbr.rel (%p353) target = $region36
      $region35: #{optimated_transformer_forward.7} parent=11 // pred_region
        _
      $region36: #{optimated_transformer_forward.7} parent=11 // pred_fallthru
        _
      // Predicated region
      $region37: #{optimated_transformer_forward.7} parent=11 // pred_check
        %p356 = pneg %p192
      $region38: #{optimated_transformer_forward.7} parent=11 // pred_check_branch
        %358 = sbr.rel (%p356) target = $region40
      $region39: #{optimated_transformer_forward.7} parent=11 // pred_region
        _
      $region40: #{optimated_transformer_forward.7} parent=11 // pred_fallthru
        _
      // Predicated region
      $region41: #{optimated_transformer_forward.7} parent=11 // pred_check
        %p359 = pneg %p213
      $region42: #{optimated_transformer_forward.7} parent=11 // pred_check_branch
        %361 = sbr.rel (%p359) target = $region44
      $region43: #{optimated_transformer_forward.7} parent=11 // pred_region
        _
      $region44: #{optimated_transformer_forward.7} parent=11 // pred_fallthru
        _
      // Predicated region
      $region45: #{optimated_transformer_forward.7} parent=11 // pred_check
        %p362 = pneg %p234
      $region46: #{optimated_transformer_forward.7} parent=11 // pred_check_branch
        %364 = sbr.rel (%p362) target = $region48
      $region47: #{optimated_transformer_forward.7} parent=11 // pred_region
        _
      $region48: #{optimated_transformer_forward.7} parent=11 // pred_fallthru
        _
      // Predicated region
      $region49: #{optimated_transformer_forward.7} parent=11 // pred_check
        %p365 = pneg %p255
      $region50: #{optimated_transformer_forward.7} parent=11 // pred_check_branch
        %367 = sbr.rel (%p365) target = $region52
      $region51: #{optimated_transformer_forward.7} parent=11 // pred_region
        _
      $region52: #{optimated_transformer_forward.7} parent=11 // pred_fallthru
        _
      // Predicated region
      $region53: #{optimated_transformer_forward.7} parent=11 // pred_check
        %p368 = pneg %p276
      $region54: #{optimated_transformer_forward.7} parent=11 // pred_check_branch
        %370 = sbr.rel (%p368) target = $region56
      $region55: #{optimated_transformer_forward.7} parent=11 // pred_region
        _
      $region56: #{optimated_transformer_forward.7} parent=11 // pred_fallthru
        _
      // Predicated region
      $region57: #{optimated_transformer_forward.7} parent=11 // pred_check
        %p371 = pneg %p297
      $region58: #{optimated_transformer_forward.7} parent=11 // pred_check_branch
        %373 = sbr.rel (%p371) target = $region60
      $region59: #{optimated_transformer_forward.7} parent=11 // pred_region
        _
      $region60: #{optimated_transformer_forward.7} parent=11 // pred_fallthru
        _
    $region12: #{optimated_transformer_forward.7} parent=5 // pred_fallthru
      _
    %p374 = scmp.lt.s32.totalorder %s19, 2
    // Predicated region
    $region61: #{optimated_transformer_forward.7} parent=5 // pred_check
      %p375 = pneg %p374
    $region62: #{optimated_transformer_forward.7} parent=5 // pred_check_branch
      %377 = sbr.rel (%p375) target = $region64
    $region63: #{optimated_transformer_forward.7} parent=5 // pred_region
      // Predicated region
      $region65: #{optimated_transformer_forward.7} parent=63 // pred_check
        %p378 = pneg %p39
      $region66: #{optimated_transformer_forward.7} parent=63 // pred_check_branch
        %380 = sbr.rel (%p378) target = $region68
      $region67: #{optimated_transformer_forward.7} parent=63 // pred_region
        %p381 = scmp.lt.s32.totalorder %s19, 1
        %s382 = scalar_select %p381, %s19, 1
        %s383 = smul.addr %s382, 8
        %s384 = scalar_lea.vmem %s0, %s383
      $region68: #{optimated_transformer_forward.7} parent=63 // pred_fallthru
        _
    $region64: #{optimated_transformer_forward.7} parent=5 // pred_fallthru
      _
    %p385 = scmp.le.s32.totalorder 1, %s19
    %p386 = scmp.lt.s32.totalorder %s19, 3
    %p387 = pnand %p385, %p386
    %p388 = pneg %p387
    // Predicated region
    $region69: #{optimated_transformer_forward.7} parent=5 // pred_check
      _
    $region70: #{optimated_transformer_forward.7} parent=5 // pred_check_branch
      %390 = sbr.rel (%p387) target = $region72
    $region71: #{optimated_transformer_forward.7} parent=5 // pred_region
      %s391 = ssub.s32 %s19, 1
      %p392 = scmp.lt.s32.totalorder %s24, 1
      %s393 = scalar_select %p392, %s24, 1
      %s394 = smul.addr %s393, 8
      %s395 = scalar_lea.vmem %s0, %s394
      %p396 = pneg %p45
      %p397 = pneg %p42
      %p398 = pneg %p66
      %p399 = pneg %p63
      %p400 = pneg %p87
      %p401 = pneg %p84
      %p402 = pneg %p108
      %p403 = pneg %p105
      %p404 = pneg %p129
      %p405 = pneg %p126
      %p406 = pneg %p150
      %p407 = pneg %p147
      %p408 = pneg %p171
      %p409 = pneg %p168
      %p410 = pneg %p192
      %p411 = pneg %p189
      %p412 = pneg %p213
      %p413 = pneg %p210
      %p414 = pneg %p234
      %p415 = pneg %p231
      %p416 = pneg %p255
      %p417 = pneg %p252
      %p418 = pneg %p276
      %p419 = pneg %p273
      %p420 = pneg %p297
      %p421 = pneg %p294
      %p422 = pneg %p323
      %p423 = pneg %p320
      %p424 = scmp.lt.s32.totalorder %s24, 1
      %s425 = scalar_select %p424, %s24, 1
      %s426 = smul.addr %s425, 8
      %s427 = scalar_lea.vmem %s13, %s426
      %p428 = scmp.lt.s32.totalorder %s24, 1
      %s429 = scalar_select %p428, %s24, 1
      %s430 = smul.addr %s429, 8
      %s431 = scalar_lea.vmem %s0, %s430
      %p432 = scmp.lt.s32.totalorder %s24, 1
      %s433 = scalar_select %p432, %s24, 1
      %s434 = smul.addr %s433, 8
      %s435 = scalar_lea.vmem %s13, %s434
      %v436 = vld [vmem:[%s431] sm:$0xff]
      %v437 = vld [vmem:[%s1] sm:$0xff]
      %v438 = vld [vmem:[%s2] sm:$0x1]
      %v440 = vlaneseq
      %v441 = vshrl.u32 %v440, 7
      %v442 = vsub.s32 0, %v441
      %v443 = vrot.slane %v438, %v442
      %vm445 = vcmask 64512
      %v447 = vsel %vm445, %v436, 0
      %449 = vmatprep.subr.mxu0 0.0
      %450 = vmatpush1.msra.mxu0 0.0
      %451 = vmatprep.subr.mxu0 0.0
      %452 = vmatpush1.msra.mxu0 0.0
      %453 = vmatprep.subr.mxu0 0.0
      %454 = vmatpush1.msra.mxu0 0.0
      %455 = vmatprep.subr.mxu0 0.0
      %456 = vmatpush1.msra.mxu0 0.0
      %457 = vmatprep.subr.mxu0 0.0
      %458 = vmatpush1.msra.mxu0 0.0
      %459 = vmatprep.subr.mxu0 0.0
      %460 = vmatpush1.msra.mxu0 0.0
      %461 = vmatprep.subr.mxu0 0.0
      %462 = vmatpush1.msra.mxu0 0.0
      %463 = vmatprep.subr.mxu0 0.0
      %464 = vmatpush1.msra.mxu0 0.0
      %465 = vmatprep.subr.mxu0 0.0
      %466 = vmatpush1.msra.mxu0 0.0
      %467 = vmatprep.subr.mxu0 0.0
      %468 = vmatpush1.msra.mxu0 0.0
      %469 = vmatprep.subr.mxu0 0.0
      %470 = vmatpush1.msra.mxu0 0.0
      %471 = vmatprep.subr.mxu0 0.0
      %472 = vmatpush1.msra.mxu0 0.0
      %473 = vmatprep.subr.mxu0 0.0
      %474 = vmatpush1.msra.mxu0 0.0
      %475 = vmatprep.subr.mxu0 0.0
      %476 = vmatpush1.msra.mxu0 0.0
      %477 = vmatprep.subr.mxu0 0.0
      %478 = vmatpush1.msra.mxu0 0.0
      %479 = vmatprep.subr.mxu0 0.0
      %480 = vmatpush1.msra.mxu0 %v437
      %481 = vmatprep.subr.mxu0 0.0
      %482 = vmatpush2.msra.mxu0 0.0
      %483 = vmatprep.subr.mxu0 0.0
      %484 = vmatpush2.msra.mxu0 0.0
      %485 = vmatprep.subr.mxu0 0.0
      %486 = vmatpush2.msra.mxu0 0.0
      %487 = vmatprep.subr.mxu0 0.0
      %488 = vmatpush2.msra.mxu0 0.0
      %489 = vmatprep.subr.mxu0 0.0
      %490 = vmatpush2.msra.mxu0 0.0
      %491 = vmatprep.subr.mxu0 0.0
      %492 = vmatpush2.msra.mxu0 0.0
      %493 = vmatprep.subr.mxu0 0.0
      %494 = vmatpush2.msra.mxu0 0.0
      %495 = vmatprep.subr.mxu0 0.0
      %496 = vmatpush2.msra.mxu0 0.0
      %497 = vmatprep.subr.mxu0 0.0
      %498 = vmatpush2.msra.mxu0 0.0
      %499 = vmatprep.subr.mxu0 0.0
      %500 = vmatpush2.msra.mxu0 0.0
      %501 = vmatprep.subr.mxu0 0.0
      %502 = vmatpush2.msra.mxu0 0.0
      %503 = vmatprep.subr.mxu0 0.0
      %504 = vmatpush2.msra.mxu0 0.0
      %505 = vmatprep.subr.mxu0 0.0
      %506 = vmatpush2.msra.mxu0 0.0
      %507 = vmatprep.subr.mxu0 0.0
      %508 = vmatpush2.msra.mxu0 0.0
      %509 = vmatprep.subr.mxu0 0.0
      %510 = vmatpush2.msra.mxu0 0.0
      %511 = vmatprep.subr.mxu0 0.0
      %512 = vmatpush2.msra.mxu0 0.0
      %513 = vmatprep.mubr.f32.mxu0 0.0
      %514 = vmatmul.mubr.f32.gmra.mxu0 %v447
      %v515 = vpop.f32.mrf.mxu0
      %v516 = vadd.f32 %v443, %v515
      %v517 = vpop.f32.mrf.mxu0
      %518 = vdwg.mxu0
      %v520 = vcombine.high %v516, %v516
      %v522 = vunpack.c.l.s4 1966171168
      %v523 = vunpack.c.0.s8 %v522
      %v524 = vlaneseq
      %v525 = vshrl.u32 %v524, 7
      %v526 = vsub.s32 %v523, %v525
      %v527 = vrot.slane %v516, %v526
      %v529 = vunpack.c.l.s4 1966171168
      %v530 = vunpack.c.0.s8 %v529
      %v531 = vlaneseq
      %v532 = vshrl.u32 %v531, 7
      %v533 = vsub.s32 %v530, %v532
      %v534 = vrot.slane %v520, %v533
      %v535 = vcombine.high %v527, %v527
      %v536 = vcombine.high %v534, %v534
      %v538 = vunpack.c.l.s4 1966171168
      %v539 = vunpack.c.0.s8 %v538
      %v540 = vlaneseq
      %v541 = vshrl.u32 %v540, 7
      %v542 = vsub.s32 %v539, %v541
      %v543 = vrot.slane %v527, %v542
      %v545 = vunpack.c.l.s4 1966171168
      %v546 = vunpack.c.0.s8 %v545
      %v547 = vlaneseq
      %v548 = vshrl.u32 %v547, 7
      %v549 = vsub.s32 %v546, %v548
      %v550 = vrot.slane %v534, %v549
      %v552 = vunpack.c.l.s4 1966171168
      %v553 = vunpack.c.0.s8 %v552
      %v554 = vlaneseq
      %v555 = vshrl.u32 %v554, 7
      %v556 = vsub.s32 %v553, %v555
      %v557 = vrot.slane %v535, %v556
      %v559 = vunpack.c.l.s4 1966171168
      %v560 = vunpack.c.0.s8 %v559
      %v561 = vlaneseq
      %v562 = vshrl.u32 %v561, 7
      %v563 = vsub.s32 %v560, %v562
      %v564 = vrot.slane %v536, %v563
      %v565 = vcombine.high %v543, %v543
      %v566 = vcombine.high %v550, %v550
      %v567 = vcombine.high %v557, %v557
      %v568 = vcombine.high %v564, %v564
      %v569 = vlaneseq
      %v570 = vshrl.u32 %v569, 7
      %v571 = vsub.s32 0, %v570
      %v572 = vrot.slane %v543, %v571
      %v573 = vlaneseq
      %v574 = vshrl.u32 %v573, 7
      %v575 = vsub.s32 0, %v574
      %v576 = vrot.slane %v557, %v575
      %v577 = vlaneseq
      %v578 = vshrl.u32 %v577, 7
      %v579 = vsub.s32 0, %v578
      %v580 = vrot.slane %v565, %v579
      %v581 = vlaneseq
      %v582 = vshrl.u32 %v581, 7
      %v583 = vsub.s32 0, %v582
      %v584 = vrot.slane %v567, %v583
      %v585 = vlaneseq
      %v586 = vshrl.u32 %v585, 7
      %v587 = vsub.s32 0, %v586
      %v588 = vrot.slane %v550, %v587
      %v589 = vlaneseq
      %v590 = vshrl.u32 %v589, 7
      %v591 = vsub.s32 0, %v590
      %v592 = vrot.slane %v564, %v591
      %v593 = vlaneseq
      %v594 = vshrl.u32 %v593, 7
      %v595 = vsub.s32 0, %v594
      %v596 = vrot.slane %v566, %v595
      %v597 = vlaneseq
      %v598 = vshrl.u32 %v597, 7
      %v599 = vsub.s32 0, %v598
      %v600 = vrot.slane %v568, %v599
      %609 = vrot.lane.b32.xlu0 %v516, 120
      %v610 = vpop.permute.xlu0 %609
      %v612 = vmul.f32 %v572, %v610
      %v613 = vmul.f32 %v576, %v610
      %v614 = vmul.f32 %v580, %v610
      %v615 = vmul.f32 %v584, %v610
      %v616 = vmul.f32 %v588, %v610
      %v617 = vmul.f32 %v592, %v610
      %v618 = vmul.f32 %v596, %v610
      %v619 = vmul.f32 %v600, %v610
      %v620 = vsel %vm445, %v612, -inf
      %v621 = vrot.slane %v620, 4
      %v622 = vmax.f32 %v620, %v621
      %v623 = vrot.slane %v622, 2
      %v624 = vmax.f32 %v622, %v623
      %v625 = vrot.slane %v624, 1
      %v626 = vmax.f32 %v624, %v625
      %v627 = vsel %vm445, %v613, -inf
      %v628 = vrot.slane %v627, 4
      %v629 = vmax.f32 %v627, %v628
      %v630 = vrot.slane %v629, 2
      %v631 = vmax.f32 %v629, %v630
      %v632 = vrot.slane %v631, 1
      %v633 = vmax.f32 %v631, %v632
      %v634 = vsel %vm445, %v614, -inf
      %v635 = vrot.slane %v634, 4
      %v636 = vmax.f32 %v634, %v635
      %v637 = vrot.slane %v636, 2
      %v638 = vmax.f32 %v636, %v637
      %v639 = vrot.slane %v638, 1
      %v640 = vmax.f32 %v638, %v639
      %v641 = vsel %vm445, %v615, -inf
      %v642 = vrot.slane %v641, 4
      %v643 = vmax.f32 %v641, %v642
      %v644 = vrot.slane %v643, 2
      %v645 = vmax.f32 %v643, %v644
      %v646 = vrot.slane %v645, 1
      %v647 = vmax.f32 %v645, %v646
      %v648 = vsel %vm445, %v616, -inf
      %v649 = vrot.slane %v648, 4
      %v650 = vmax.f32 %v648, %v649
      %v651 = vrot.slane %v650, 2
      %v652 = vmax.f32 %v650, %v651
      %v653 = vrot.slane %v652, 1
      %v654 = vmax.f32 %v652, %v653
      %v655 = vsel %vm445, %v617, -inf
      %v656 = vrot.slane %v655, 4
      %v657 = vmax.f32 %v655, %v656
      %v658 = vrot.slane %v657, 2
      %v659 = vmax.f32 %v657, %v658
      %v660 = vrot.slane %v659, 1
      %v661 = vmax.f32 %v659, %v660
      %v662 = vsel %vm445, %v618, -inf
      %v663 = vrot.slane %v662, 4
      %v664 = vmax.f32 %v662, %v663
      %v665 = vrot.slane %v664, 2
      %v666 = vmax.f32 %v664, %v665
      %v667 = vrot.slane %v666, 1
      %v668 = vmax.f32 %v666, %v667
      %v669 = vsel %vm445, %v619, -inf
      %v670 = vrot.slane %v669, 4
      %v671 = vmax.f32 %v669, %v670
      %v672 = vrot.slane %v671, 2
      %v673 = vmax.f32 %v671, %v672
      %v674 = vrot.slane %v673, 1
      %v675 = vmax.f32 %v673, %v674
      %v676 = vsub.f32 %v612, %v626
      %v677 = vsub.f32 %v613, %v633
      %v678 = vsub.f32 %v614, %v640
      %v679 = vsub.f32 %v615, %v647
      %v680 = vsub.f32 %v616, %v654
      %v681 = vsub.f32 %v617, %v661
      %v682 = vsub.f32 %v618, %v668
      %v683 = vsub.f32 %v619, %v675
      %v684 = vmul.f32 %v676, 1.442695
      %v685 = vpow.pop %v684
      %v686 = vmul.f32 %v677, 1.442695
      %v687 = vpow.pop %v686
      %v688 = vmul.f32 %v678, 1.442695
      %v689 = vpow.pop %v688
      %v690 = vmul.f32 %v679, 1.442695
      %v691 = vpow.pop %v690
      %v692 = vmul.f32 %v680, 1.442695
      %v693 = vpow.pop %v692
      %v694 = vmul.f32 %v681, 1.442695
      %v695 = vpow.pop %v694
      %v696 = vmul.f32 %v682, 1.442695
      %v697 = vpow.pop %v696
      %v698 = vmul.f32 %v683, 1.442695
      %v699 = vpow.pop %v698
      %v700 = vsel %vm445, %v685, 0.0
      %v701 = vrot.slane %v700, 4
      %v702 = vadd.f32 %v700, %v701
      %v703 = vrot.slane %v702, 2
      %v704 = vadd.f32 %v702, %v703
      %v705 = vrot.slane %v704, 1
      %v706 = vadd.f32 %v704, %v705
      %v707 = vsel %vm445, %v687, 0.0
      %v708 = vrot.slane %v707, 4
      %v709 = vadd.f32 %v707, %v708
      %v710 = vrot.slane %v709, 2
      %v711 = vadd.f32 %v709, %v710
      %v712 = vrot.slane %v711, 1
      %v713 = vadd.f32 %v711, %v712
      %v714 = vsel %vm445, %v689, 0.0
      %v715 = vrot.slane %v714, 4
      %v716 = vadd.f32 %v714, %v715
      %v717 = vrot.slane %v716, 2
      %v718 = vadd.f32 %v716, %v717
      %v719 = vrot.slane %v718, 1
      %v720 = vadd.f32 %v718, %v719
      %v721 = vsel %vm445, %v691, 0.0
      %v722 = vrot.slane %v721, 4
      %v723 = vadd.f32 %v721, %v722
      %v724 = vrot.slane %v723, 2
      %v725 = vadd.f32 %v723, %v724
      %v726 = vrot.slane %v725, 1
      %v727 = vadd.f32 %v725, %v726
      %v728 = vsel %vm445, %v693, 0.0
      %v729 = vrot.slane %v728, 4
      %v730 = vadd.f32 %v728, %v729
      %v731 = vrot.slane %v730, 2
      %v732 = vadd.f32 %v730, %v731
      %v733 = vrot.slane %v732, 1
      %v734 = vadd.f32 %v732, %v733
      %v735 = vsel %vm445, %v695, 0.0
      %v736 = vrot.slane %v735, 4
      %v737 = vadd.f32 %v735, %v736
      %v738 = vrot.slane %v737, 2
      %v739 = vadd.f32 %v737, %v738
      %v740 = vrot.slane %v739, 1
      %v741 = vadd.f32 %v739, %v740
      %v742 = vsel %vm445, %v697, 0.0
      %v743 = vrot.slane %v742, 4
      %v744 = vadd.f32 %v742, %v743
      %v745 = vrot.slane %v744, 2
      %v746 = vadd.f32 %v744, %v745
      %v747 = vrot.slane %v746, 1
      %v748 = vadd.f32 %v746, %v747
      %v749 = vsel %vm445, %v699, 0.0
      %v750 = vrot.slane %v749, 4
      %v751 = vadd.f32 %v749, %v750
      %v752 = vrot.slane %v751, 2
      %v753 = vadd.f32 %v751, %v752
      %v754 = vrot.slane %v753, 1
      %v755 = vadd.f32 %v753, %v754
      %v756 = vrcp.pop %v706
      %v757 = vrcp.pop %v713
      %v758 = vrcp.pop %v720
      %v759 = vrcp.pop %v727
      %v760 = vrcp.pop %v734
      %v761 = vrcp.pop %v741
      %v762 = vrcp.pop %v748
      %v763 = vrcp.pop %v755
      %v764 = vmul.f32 %v685, %v756
      %v765 = vmul.f32 %v687, %v757
      %v766 = vmul.f32 %v689, %v758
      %v767 = vmul.f32 %v691, %v759
      %v768 = vmul.f32 %v693, %v760
      %v769 = vmul.f32 %v695, %v761
      %v770 = vmul.f32 %v697, %v762
      %v771 = vmul.f32 %v699, %v763
      %772 = vrot.lane.b32.xlu0 %v516, 112
      %v773 = vpop.permute.xlu0 %772
      %v775 = vmul.f32 %v764, %v773
      %v776 = vmul.f32 %v765, %v773
      %v777 = vmul.f32 %v766, %v773
      %v778 = vmul.f32 %v767, %v773
      %v779 = vmul.f32 %v768, %v773
      %v780 = vmul.f32 %v769, %v773
      %v781 = vmul.f32 %v770, %v773
      %v782 = vmul.f32 %v771, %v773
      %v783 = vsel %vm445, %v775, 0.0
      %v784 = vrot.slane %v783, 4
      %v785 = vadd.f32 %v783, %v784
      %v786 = vrot.slane %v785, 2
      %v787 = vadd.f32 %v785, %v786
      %v788 = vrot.slane %v787, 1
      %v789 = vadd.f32 %v787, %v788
      %v790 = vsel %vm445, %v776, 0.0
      %v791 = vrot.slane %v790, 4
      %v792 = vadd.f32 %v790, %v791
      %v793 = vrot.slane %v792, 2
      %v794 = vadd.f32 %v792, %v793
      %v795 = vrot.slane %v794, 1
      %v796 = vadd.f32 %v794, %v795
      %v797 = vsel %vm445, %v777, 0.0
      %v798 = vrot.slane %v797, 4
      %v799 = vadd.f32 %v797, %v798
      %v800 = vrot.slane %v799, 2
      %v801 = vadd.f32 %v799, %v800
      %v802 = vrot.slane %v801, 1
      %v803 = vadd.f32 %v801, %v802
      %v804 = vsel %vm445, %v778, 0.0
      %v805 = vrot.slane %v804, 4
      %v806 = vadd.f32 %v804, %v805
      %v807 = vrot.slane %v806, 2
      %v808 = vadd.f32 %v806, %v807
      %v809 = vrot.slane %v808, 1
      %v810 = vadd.f32 %v808, %v809
      %v811 = vsel %vm445, %v779, 0.0
      %v812 = vrot.slane %v811, 4
      %v813 = vadd.f32 %v811, %v812
      %v814 = vrot.slane %v813, 2
      %v815 = vadd.f32 %v813, %v814
      %v816 = vrot.slane %v815, 1
      %v817 = vadd.f32 %v815, %v816
      %v818 = vsel %vm445, %v780, 0.0
      %v819 = vrot.slane %v818, 4
      %v820 = vadd.f32 %v818, %v819
      %v821 = vrot.slane %v820, 2
      %v822 = vadd.f32 %v820, %v821
      %v823 = vrot.slane %v822, 1
      %v824 = vadd.f32 %v822, %v823
      %v825 = vsel %vm445, %v781, 0.0
      %v826 = vrot.slane %v825, 4
      %v827 = vadd.f32 %v825, %v826
      %v828 = vrot.slane %v827, 2
      %v829 = vadd.f32 %v827, %v828
      %v830 = vrot.slane %v829, 1
      %v831 = vadd.f32 %v829, %v830
      %v832 = vsel %vm445, %v782, 0.0
      %v833 = vrot.slane %v832, 4
      %v834 = vadd.f32 %v832, %v833
      %v835 = vrot.slane %v834, 2
      %v836 = vadd.f32 %v834, %v835
      %v837 = vrot.slane %v836, 1
      %v838 = vadd.f32 %v836, %v837
      %v839 = vld [vmem:[%s3] sm:$0xff]
      %v840 = vld [vmem:[%s4] sm:$0x1]
      %v842 = vlaneseq
      %v843 = vshrl.u32 %v842, 7
      %v844 = vsub.s32 0, %v843
      %v845 = vrot.slane %v840, %v844
      %vm855 = vcmask 1041409
      %v856 = vsel %vm855, %v796, %v789
      %vm857 = vcmask 1042434
      %v858 = vsel %vm857, %v803, %v856
      %vm859 = vcmask 1043459
      %v860 = vsel %vm859, %v810, %v858
      %vm861 = vcmask 1044484
      %v862 = vsel %vm861, %v817, %v860
      %vm863 = vcmask 1045509
      %v864 = vsel %vm863, %v824, %v862
      %vm865 = vcmask 1046534
      %v866 = vsel %vm865, %v831, %v864
      %vm867 = vcmask 1047559
      %v868 = vsel %vm867, %v838, %v866
      %v869 = vsel %vm445, %v868, 0
      %871 = vmatprep.subr.mxu0 0.0
      %872 = vmatpush1.msra.mxu0 0.0
      %873 = vmatprep.subr.mxu0 0.0
      %874 = vmatpush1.msra.mxu0 0.0
      %875 = vmatprep.subr.mxu0 0.0
      %876 = vmatpush1.msra.mxu0 0.0
      %877 = vmatprep.subr.mxu0 0.0
      %878 = vmatpush1.msra.mxu0 0.0
      %879 = vmatprep.subr.mxu0 0.0
      %880 = vmatpush1.msra.mxu0 0.0
      %881 = vmatprep.subr.mxu0 0.0
      %882 = vmatpush1.msra.mxu0 0.0
      %883 = vmatprep.subr.mxu0 0.0
      %884 = vmatpush1.msra.mxu0 0.0
      %885 = vmatprep.subr.mxu0 0.0
      %886 = vmatpush1.msra.mxu0 0.0
      %887 = vmatprep.subr.mxu0 0.0
      %888 = vmatpush1.msra.mxu0 0.0
      %889 = vmatprep.subr.mxu0 0.0
      %890 = vmatpush1.msra.mxu0 0.0
      %891 = vmatprep.subr.mxu0 0.0
      %892 = vmatpush1.msra.mxu0 0.0
      %893 = vmatprep.subr.mxu0 0.0
      %894 = vmatpush1.msra.mxu0 0.0
      %895 = vmatprep.subr.mxu0 0.0
      %896 = vmatpush1.msra.mxu0 0.0
      %897 = vmatprep.subr.mxu0 0.0
      %898 = vmatpush1.msra.mxu0 0.0
      %899 = vmatprep.subr.mxu0 0.0
      %900 = vmatpush1.msra.mxu0 0.0
      %901 = vmatprep.subr.mxu0 0.0
      %902 = vmatpush1.msra.mxu0 %v839
      %903 = vmatprep.subr.mxu0 0.0
      %904 = vmatpush2.msra.mxu0 0.0
      %905 = vmatprep.subr.mxu0 0.0
      %906 = vmatpush2.msra.mxu0 0.0
      %907 = vmatprep.subr.mxu0 0.0
      %908 = vmatpush2.msra.mxu0 0.0
      %909 = vmatprep.subr.mxu0 0.0
      %910 = vmatpush2.msra.mxu0 0.0
      %911 = vmatprep.subr.mxu0 0.0
      %912 = vmatpush2.msra.mxu0 0.0
      %913 = vmatprep.subr.mxu0 0.0
      %914 = vmatpush2.msra.mxu0 0.0
      %915 = vmatprep.subr.mxu0 0.0
      %916 = vmatpush2.msra.mxu0 0.0
      %917 = vmatprep.subr.mxu0 0.0
      %918 = vmatpush2.msra.mxu0 0.0
      %919 = vmatprep.subr.mxu0 0.0
      %920 = vmatpush2.msra.mxu0 0.0
      %921 = vmatprep.subr.mxu0 0.0
      %922 = vmatpush2.msra.mxu0 0.0
      %923 = vmatprep.subr.mxu0 0.0
      %924 = vmatpush2.msra.mxu0 0.0
      %925 = vmatprep.subr.mxu0 0.0
      %926 = vmatpush2.msra.mxu0 0.0
      %927 = vmatprep.subr.mxu0 0.0
      %928 = vmatpush2.msra.mxu0 0.0
      %929 = vmatprep.subr.mxu0 0.0
      %930 = vmatpush2.msra.mxu0 0.0
      %931 = vmatprep.subr.mxu0 0.0
      %932 = vmatpush2.msra.mxu0 0.0
      %933 = vmatprep.subr.mxu0 0.0
      %934 = vmatpush2.msra.mxu0 0.0
      %935 = vmatprep.mubr.f32.mxu0 0.0
      %936 = vmatmul.mubr.f32.gmra.mxu0 %v869
      %v937 = vpop.f32.mrf.mxu0
      %v938 = vadd.f32 %v845, %v937
      %v939 = vpop.f32.mrf.mxu0
      %940 = vdwg.mxu0
      %v941 = vadd.f32 %v436, %v938
      %v942 = vld [vmem:[%s5] sm:$0x1]
      %v943 = vld [vmem:[%s6] sm:$0x1]
      %v944 = vsel %vm445, %v941, 0.0
      %945 = vadd.xlane.f32.xlu0 %v944
      %v946 = vpop.xlane.xlu0 %945
      %v947 = vrcp.pop 8.0
      %v948 = vmul.f32 %v946, %v947
      %v949 = vsub.f32 %v941, %v948
      %v950 = vmul.f32 %v949, %v949
      %v951 = vsel %vm445, %v950, 0.0
      %952 = vadd.xlane.f32.xlu0 %v951
      %v953 = vpop.xlane.xlu0 %952
      %v954 = vmul.f32 %v953, %v947
      %v955 = vadd.f32 %v954, 1e-05
      %v956 = vrsqrt.pop %v955
      %v957 = vmul.f32 %v949, %v956
      %v959 = vlaneseq
      %v960 = vshrl.u32 %v959, 7
      %v961 = vsub.s32 0, %v960
      %v962 = vrot.slane %v942, %v961
      %v964 = vmul.f32 %v957, %v962
      %v966 = vlaneseq
      %v967 = vshrl.u32 %v966, 7
      %v968 = vsub.s32 0, %v967
      %v969 = vrot.slane %v943, %v968
      %v971 = vadd.f32 %v964, %v969
      %v972 = vld [vmem:[%s7] sm:$0xff]
      %v973 = vld [vmem:[%s8] sm:$0x1]
      %v975 = vlaneseq
      %v976 = vshrl.u32 %v975, 7
      %v977 = vsub.s32 0, %v976
      %v978 = vrot.slane %v973, %v977
      %v981 = vsel %vm445, %v971, 0
      %983 = vmatprep.subr.mxu0 0.0
      %984 = vmatpush1.msra.mxu0 0.0
      %985 = vmatprep.subr.mxu0 0.0
      %986 = vmatpush1.msra.mxu0 0.0
      %987 = vmatprep.subr.mxu0 0.0
      %988 = vmatpush1.msra.mxu0 0.0
      %989 = vmatprep.subr.mxu0 0.0
      %990 = vmatpush1.msra.mxu0 0.0
      %991 = vmatprep.subr.mxu0 0.0
      %992 = vmatpush1.msra.mxu0 0.0
      %993 = vmatprep.subr.mxu0 0.0
      %994 = vmatpush1.msra.mxu0 0.0
      %995 = vmatprep.subr.mxu0 0.0
      %996 = vmatpush1.msra.mxu0 0.0
      %997 = vmatprep.subr.mxu0 0.0
      %998 = vmatpush1.msra.mxu0 0.0
      %999 = vmatprep.subr.mxu0 0.0
      %1000 = vmatpush1.msra.mxu0 0.0
      %1001 = vmatprep.subr.mxu0 0.0
      %1002 = vmatpush1.msra.mxu0 0.0
      %1003 = vmatprep.subr.mxu0 0.0
      %1004 = vmatpush1.msra.mxu0 0.0
      %1005 = vmatprep.subr.mxu0 0.0
      %1006 = vmatpush1.msra.mxu0 0.0
      %1007 = vmatprep.subr.mxu0 0.0
      %1008 = vmatpush1.msra.mxu0 0.0
      %1009 = vmatprep.subr.mxu0 0.0
      %1010 = vmatpush1.msra.mxu0 0.0
      %1011 = vmatprep.subr.mxu0 0.0
      %1012 = vmatpush1.msra.mxu0 0.0
      %1013 = vmatprep.subr.mxu0 0.0
      %1014 = vmatpush1.msra.mxu0 %v972
      %1015 = vmatprep.subr.mxu0 0.0
      %1016 = vmatpush2.msra.mxu0 0.0
      %1017 = vmatprep.subr.mxu0 0.0
      %1018 = vmatpush2.msra.mxu0 0.0
      %1019 = vmatprep.subr.mxu0 0.0
      %1020 = vmatpush2.msra.mxu0 0.0
      %1021 = vmatprep.subr.mxu0 0.0
      %1022 = vmatpush2.msra.mxu0 0.0
      %1023 = vmatprep.subr.mxu0 0.0
      %1024 = vmatpush2.msra.mxu0 0.0
      %1025 = vmatprep.subr.mxu0 0.0
      %1026 = vmatpush2.msra.mxu0 0.0
      %1027 = vmatprep.subr.mxu0 0.0
      %1028 = vmatpush2.msra.mxu0 0.0
      %1029 = vmatprep.subr.mxu0 0.0
      %1030 = vmatpush2.msra.mxu0 0.0
      %1031 = vmatprep.subr.mxu0 0.0
      %1032 = vmatpush2.msra.mxu0 0.0
      %1033 = vmatprep.subr.mxu0 0.0
      %1034 = vmatpush2.msra.mxu0 0.0
      %1035 = vmatprep.subr.mxu0 0.0
      %1036 = vmatpush2.msra.mxu0 0.0
      %1037 = vmatprep.subr.mxu0 0.0
      %1038 = vmatpush2.msra.mxu0 0.0
      %1039 = vmatprep.subr.mxu0 0.0
      %1040 = vmatpush2.msra.mxu0 0.0
      %1041 = vmatprep.subr.mxu0 0.0
      %1042 = vmatpush2.msra.mxu0 0.0
      %1043 = vmatprep.subr.mxu0 0.0
      %1044 = vmatpush2.msra.mxu0 0.0
      %1045 = vmatprep.subr.mxu0 0.0
      %1046 = vmatpush2.msra.mxu0 0.0
      %1047 = vmatprep.mubr.f32.mxu0 0.0
      %1048 = vmatmul.mubr.f32.gmra.mxu0 %v981
      %v1049 = vpop.f32.mrf.mxu0
      %v1050 = vadd.f32 %v978, %v1049
      %v1051 = vpop.f32.mrf.mxu0
      %1052 = vdwg.mxu0
      %v1053 = vmax.f32 %v1050, 0.0
      %v1054 = vld [vmem:[%s9] sm:$0xff]
      %v1055 = vld [vmem:[%s9 + $0x8] sm:$0xff]
      %v1056 = vld [vmem:[%s9 + $0x10] sm:$0xff]
      %v1057 = vld [vmem:[%s9 + $0x18] sm:$0xff]
      %v1058 = vld [vmem:[%s10] sm:$0x1]
      %v1060 = vlaneseq
      %v1061 = vshrl.u32 %v1060, 7
      %v1062 = vsub.s32 0, %v1061
      %v1063 = vrot.slane %v1058, %v1062
      %vm1065 = vcmask 261120
      %v1067 = vsel %vm1065, %v1053, 0
      %1069 = vmatprep.subr.mxu0 0.0
      %1070 = vmatpush1.msra.mxu0 0.0
      %1071 = vmatprep.subr.mxu0 0.0
      %1072 = vmatpush1.msra.mxu0 0.0
      %1073 = vmatprep.subr.mxu0 0.0
      %1074 = vmatpush1.msra.mxu0 0.0
      %1075 = vmatprep.subr.mxu0 0.0
      %1076 = vmatpush1.msra.mxu0 0.0
      %1077 = vmatprep.subr.mxu0 0.0
      %1078 = vmatpush1.msra.mxu0 0.0
      %1079 = vmatprep.subr.mxu0 0.0
      %1080 = vmatpush1.msra.mxu0 0.0
      %1081 = vmatprep.subr.mxu0 0.0
      %1082 = vmatpush1.msra.mxu0 0.0
      %1083 = vmatprep.subr.mxu0 0.0
      %1084 = vmatpush1.msra.mxu0 0.0
      %1085 = vmatprep.subr.mxu0 0.0
      %1086 = vmatpush1.msra.mxu0 0.0
      %1087 = vmatprep.subr.mxu0 0.0
      %1088 = vmatpush1.msra.mxu0 0.0
      %1089 = vmatprep.subr.mxu0 0.0
      %1090 = vmatpush1.msra.mxu0 0.0
      %1091 = vmatprep.subr.mxu0 0.0
      %1092 = vmatpush1.msra.mxu0 0.0
      %1093 = vmatprep.subr.mxu0 0.0
      %1094 = vmatpush1.msra.mxu0 %v1057
      %1095 = vmatprep.subr.mxu0 0.0
      %1096 = vmatpush1.msra.mxu0 %v1056
      %1097 = vmatprep.subr.mxu0 0.0
      %1098 = vmatpush1.msra.mxu0 %v1055
      %1099 = vmatprep.subr.mxu0 0.0
      %1100 = vmatpush1.msra.mxu0 %v1054
      %1101 = vmatprep.subr.mxu0 0.0
      %1102 = vmatpush2.msra.mxu0 0.0
      %1103 = vmatprep.subr.mxu0 0.0
      %1104 = vmatpush2.msra.mxu0 0.0
      %1105 = vmatprep.subr.mxu0 0.0
      %1106 = vmatpush2.msra.mxu0 0.0
      %1107 = vmatprep.subr.mxu0 0.0
      %1108 = vmatpush2.msra.mxu0 0.0
      %1109 = vmatprep.subr.mxu0 0.0
      %1110 = vmatpush2.msra.mxu0 0.0
      %1111 = vmatprep.subr.mxu0 0.0
      %1112 = vmatpush2.msra.mxu0 0.0
      %1113 = vmatprep.subr.mxu0 0.0
      %1114 = vmatpush2.msra.mxu0 0.0
      %1115 = vmatprep.subr.mxu0 0.0
      %1116 = vmatpush2.msra.mxu0 0.0
      %1117 = vmatprep.subr.mxu0 0.0
      %1118 = vmatpush2.msra.mxu0 0.0
      %1119 = vmatprep.subr.mxu0 0.0
      %1120 = vmatpush2.msra.mxu0 0.0
      %1121 = vmatprep.subr.mxu0 0.0
      %1122 = vmatpush2.msra.mxu0 0.0
      %1123 = vmatprep.subr.mxu0 0.0
      %1124 = vmatpush2.msra.mxu0 0.0
      %1125 = vmatprep.subr.mxu0 0.0
      %1126 = vmatpush2.msra.mxu0 0.0
      %1127 = vmatprep.subr.mxu0 0.0
      %1128 = vmatpush2.msra.mxu0 0.0
      %1129 = vmatprep.subr.mxu0 0.0
      %1130 = vmatpush2.msra.mxu0 0.0
      %1131 = vmatprep.subr.mxu0 0.0
      %1132 = vmatpush2.msra.mxu0 0.0
      %1133 = vmatprep.mubr.f32.mxu0 0.0
      %1134 = vmatmul.mubr.f32.gmra.mxu0 %v1067
      %v1135 = vpop.f32.mrf.mxu0
      %v1136 = vadd.f32 %v1063, %v1135
      %v1137 = vpop.f32.mrf.mxu0
      %1138 = vdwg.mxu0
      %v1139 = vadd.f32 %v971, %v1136
      %v1140 = vld [vmem:[%s11] sm:$0x1]
      %v1141 = vld [vmem:[%s12] sm:$0x1]
      %v1142 = vsel %vm445, %v1139, 0.0
      %1143 = vadd.xlane.f32.xlu0 %v1142
      %v1144 = vpop.xlane.xlu0 %1143
      %v1145 = vmul.f32 %v1144, %v947
      %v1146 = vsub.f32 %v1139, %v1145
      %v1147 = vmul.f32 %v1146, %v1146
      %v1148 = vsel %vm445, %v1147, 0.0
      %1149 = vadd.xlane.f32.xlu0 %v1148
      %v1150 = vpop.xlane.xlu0 %1149
      %v1151 = vmul.f32 %v1150, %v947
      %v1152 = vadd.f32 %v1151, 1e-05
      %v1153 = vrsqrt.pop %v1152
      %v1154 = vmul.f32 %v1146, %v1153
      %v1156 = vlaneseq
      %v1157 = vshrl.u32 %v1156, 7
      %v1158 = vsub.s32 0, %v1157
      %v1159 = vrot.slane %v1140, %v1158
      %v1161 = vmul.f32 %v1154, %v1159
      %v1163 = vlaneseq
      %v1164 = vshrl.u32 %v1163, 7
      %v1165 = vsub.s32 0, %v1164
      %v1166 = vrot.slane %v1141, %v1165
      %v1168 = vadd.f32 %v1161, %v1166
      %1169 = vst.msk [vmem:[%s435] sm:$0xff] %vm445, %v1168
      %p1170 = scmp.lt.s32.totalorder %s24, 1
      %s1171 = scalar_select %p1170, %s24, 1
      %s1172 = smul.addr %s1171, 8
      %s1173 = scalar_lea.vmem %s13, %s1172
      // Predicated region
      $region73: #{optimated_transformer_forward.7} parent=71 // pred_check
        %p1174 = pneg %p320
      $region74: #{optimated_transformer_forward.7} parent=71 // pred_check_branch
        %1176 = sbr.rel (%p1174) target = $region76
      $region75: #{optimated_transformer_forward.7} parent=71 // pred_region
        _
      $region76: #{optimated_transformer_forward.7} parent=71 // pred_fallthru
        _
    $region72: #{optimated_transformer_forward.7} parent=5 // pred_fallthru
      _
    %p1177 = scmp.le.s32.totalorder 2, %s19
    // Predicated region
    $region77: #{optimated_transformer_forward.7} parent=5 // pred_check
      %p1178 = pneg %p1177
    $region78: #{optimated_transformer_forward.7} parent=5 // pred_check_branch
      %1180 = sbr.rel (%p1178) target = $region80
    $region79: #{optimated_transformer_forward.7} parent=5 // pred_region
      %s1181 = ssub.s32 %s19, 2
      // Predicated region
      $region81: #{optimated_transformer_forward.7} parent=79 // pred_check
        %p1182 = pneg %p326
      $region82: #{optimated_transformer_forward.7} parent=79 // pred_check_branch
        %1184 = sbr.rel (%p1182) target = $region84
      $region83: #{optimated_transformer_forward.7} parent=79 // pred_region
        %p1185 = scmp.lt.s32.totalorder %s25, 1
        %s1186 = scalar_select %p1185, %s25, 1
        %s1187 = smul.addr %s1186, 8
        %s1188 = scalar_lea.vmem %s13, %s1187
      $region84: #{optimated_transformer_forward.7} parent=79 // pred_fallthru
        _
    $region80: #{optimated_transformer_forward.7} parent=5 // pred_fallthru
      _
  $region6: #{optimated_transformer_forward.7} parent=0 // loop_footer
    %s23 = sadd.s32 1, %s19
  $region7: #{optimated_transformer_forward.7} parent=0 // loop_footer_branch
    %18 = sbr.rel target = $region3
  $region8: #{optimated_transformer_forward.7} parent=0 // loop_exit
    _

// kernel: optimated_transformer_forward.11
$region0: #{optimated_transformer_forward.11}
  #allocation0 [shape = 'u32[]', space=smem, size = 0x4, offset = 0x4, fixed_abs, tag = 'smem constant byte address 0x4 - core index']
  #allocation1 [shape = 'u32[144,128]{1,0:T(1,128)}', space=vmem, size = 0x12000, scoped, tag = 'internal scratch']
  %s0 = inlined_call_operand.vmem [shape: f32[2,8,8], index: 0, kind: input, shape index: {}]
  %s1 = inlined_call_operand.vmem [shape: f32[2,8,8], index: 1, kind: input, shape index: {}]
  %s2 = inlined_call_operand.vmem [shape: f32[8,24], index: 2, kind: input, shape index: {}]
  %s3 = inlined_call_operand.vmem [shape: f32[1,24], index: 3, kind: input, shape index: {}]
  %s4 = inlined_call_operand.vmem [shape: f32[8,8], index: 4, kind: input, shape index: {}]
  %s5 = inlined_call_operand.vmem [shape: f32[1,8], index: 5, kind: input, shape index: {}]
  %s6 = inlined_call_operand.vmem [shape: f32[1,8], index: 6, kind: input, shape index: {}]
  %s7 = inlined_call_operand.vmem [shape: f32[1,8], index: 7, kind: input, shape index: {}]
  %s8 = inlined_call_operand.vmem [shape: f32[8,8], index: 8, kind: input, shape index: {}]
  %s9 = inlined_call_operand.vmem [shape: f32[1,8], index: 9, kind: input, shape index: {}]
  %s10 = inlined_call_operand.vmem [shape: f32[8,16], index: 10, kind: input, shape index: {}]
  %s11 = inlined_call_operand.vmem [shape: f32[1,16], index: 11, kind: input, shape index: {}]
  %s12 = inlined_call_operand.vmem [shape: f32[8,8], index: 12, kind: input, shape index: {}]
  %s13 = inlined_call_operand.vmem [shape: f32[1,8], index: 13, kind: input, shape index: {}]
  %s14 = inlined_call_operand.vmem [shape: f32[1,8], index: 14, kind: input, shape index: {}]
  %s15 = inlined_call_operand.vmem [shape: f32[1,8], index: 15, kind: input, shape index: {}]
  %s16 = inlined_call_operand.vmem [shape: f32[8,32], index: 16, kind: input, shape index: {}]
  %s17 = inlined_call_operand.vmem [shape: f32[1,32], index: 17, kind: input, shape index: {}]
  %s18 = inlined_call_operand.vmem [shape: f32[32,8], index: 18, kind: input, shape index: {}]
  %s19 = inlined_call_operand.vmem [shape: f32[1,8], index: 19, kind: input, shape index: {}]
  %s20 = inlined_call_operand.vmem [shape: f32[1,8], index: 20, kind: input, shape index: {}]
  %s21 = inlined_call_operand.vmem [shape: f32[1,8], index: 21, kind: input, shape index: {}]
  %s22 = inlined_call_operand.vmem [shape: f32[2,8,8], index: 22, kind: output, shape index: {}]
  %s23 = sld [smem:[#allocation0]]
  $region121: #{optimated_transformer_forward.11} parent=0
    _
  %s25 = ssub.s32 1, %s23
  %s26 = scalar_select 0, %s25, %s23
  loop: start=0, step=1, limit=4
  $region2: #{optimated_transformer_forward.11} parent=0 // loop_pre_header
    _
  $region3: #{optimated_transformer_forward.11} parent=0 // loop_header
    %s28 = sphi 0, %s32
    %p29 = scmp.ge.s32.totalorder %s28, 4
    %s38 = sphi 0, %s40
    %s41 = sphi 0, %s38
    %s42 = sphi 0, %s41
    %s58 = sphi 0, %s42
    %s64 = sphi 0, %s66
    %s67 = sphi 0, %s64
    %s68 = sphi 0, %s67
    %s84 = sphi 0, %s68
    %s88 = sphi 0, %s88
    %s90 = sphi 0, %s88
    %s91 = sphi 0, %s90
    %s105 = sphi 0, %s91
    %s109 = sphi 0, %s109
    %s111 = sphi 0, %s109
    %s112 = sphi 0, %s111
    %s126 = sphi 0, %s112
    %s130 = sphi 0, %s130
    %s132 = sphi 0, %s130
    %s133 = sphi 0, %s132
    %s147 = sphi 0, %s133
    %s151 = sphi 0, %s151
    %s153 = sphi 0, %s151
    %s154 = sphi 0, %s153
    %s168 = sphi 0, %s154
    %s172 = sphi 0, %s172
    %s174 = sphi 0, %s172
    %s175 = sphi 0, %s174
    %s189 = sphi 0, %s175
    %s193 = sphi 0, %s193
    %s195 = sphi 0, %s193
    %s196 = sphi 0, %s195
    %s210 = sphi 0, %s196
    %s214 = sphi 0, %s214
    %s216 = sphi 0, %s214
    %s217 = sphi 0, %s216
    %s231 = sphi 0, %s217
    %s235 = sphi 0, %s235
    %s237 = sphi 0, %s235
    %s238 = sphi 0, %s237
    %s252 = sphi 0, %s238
    %s256 = sphi 0, %s256
    %s258 = sphi 0, %s256
    %s259 = sphi 0, %s258
    %s273 = sphi 0, %s259
    %s277 = sphi 0, %s277
    %s279 = sphi 0, %s277
    %s280 = sphi 0, %s279
    %s294 = sphi 0, %s280
    %s298 = sphi 0, %s298
    %s300 = sphi 0, %s298
    %s301 = sphi 0, %s300
    %s315 = sphi 0, %s301
    %s319 = sphi 0, %s319
    %s321 = sphi 0, %s319
    %s322 = sphi 0, %s321
    %s336 = sphi 0, %s322
    %s340 = sphi 0, %s340
    %s342 = sphi 0, %s340
    %s343 = sphi 0, %s342
    %s357 = sphi 0, %s343
    %s361 = sphi 0, %s361
    %s363 = sphi 0, %s361
    %s364 = sphi 0, %s363
    %s378 = sphi 0, %s364
    %s382 = sphi 0, %s382
    %s384 = sphi 0, %s382
    %s385 = sphi 0, %s384
    %s399 = sphi 0, %s385
    %s403 = sphi 0, %s403
    %s405 = sphi 0, %s403
    %s406 = sphi 0, %s405
    %s420 = sphi 0, %s406
    %s424 = sphi 0, %s424
    %s426 = sphi 0, %s424
    %s427 = sphi 0, %s426
    %s441 = sphi 0, %s427
    %s445 = sphi 0, %s445
    %s447 = sphi 0, %s445
    %s448 = sphi 0, %s447
    %s462 = sphi 0, %s448
    %s466 = sphi 0, %s466
    %s468 = sphi 0, %s466
    %s469 = sphi 0, %s468
    %s483 = sphi 0, %s469
    %s487 = sphi 0, %s487
    %s489 = sphi 0, %s487
    %s490 = sphi 0, %s489
    %s504 = sphi 0, %s490
    %s510 = sphi 0, %s512
    %s513 = sphi 0, %s510
    %s514 = sphi 0, %s513
    %s530 = sphi 0, %s514
  $region4: #{optimated_transformer_forward.11} parent=0 // loop_header_branch
    %31 = sbr.rel (%p29) target = $region8
  $region5: #{optimated_transformer_forward.11} parent=0 // loop_body
    %s33 = ssub.s32 %s28, 1
    %s34 = ssub.s32 %s28, 2
    %s35 = sadd.s32 %s28, 1
    %s36 = ssub.s32 %s28, %s35
    %p37 = scmp.eq.s32.totalorder %s36, 0
    %s39 = sadd.s32 %s38, 1
    %s40 = scalar_select %p37, %s38, %s39
    %p43 = pneg %p37
    %p44 = scmp.eq.s32.totalorder %s28, 1
    %p45 = por %p43, %p44
    %p46 = scmp.ne.s32.totalorder %s38, %s41
    %p47 = scmp.eq.s32.totalorder %s28, 0
    %p48 = por %p46, %p47
    %p49 = scmp.ne.s32.totalorder %s38, %s41
    %p50 = scmp.eq.s32.totalorder %s33, 1
    %p51 = por %p49, %p50
    %p52 = scmp.ne.s32.totalorder %s41, %s42
    %p53 = scmp.eq.s32.totalorder %s33, 0
    %p54 = por %p52, %p53
    %p55 = scmp.ne.s32.totalorder %s41, %s42
    %p56 = scmp.eq.s32.totalorder %s34, 1
    %p57 = por %p55, %p56
    %p59 = scmp.ne.s32.totalorder %s42, %s58
    %p60 = scmp.eq.s32.totalorder %s34, 0
    %p61 = por %p59, %p60
    %s62 = ssub.s32 %s28, %s35
    %p63 = scmp.eq.s32.totalorder %s62, 0
    %s65 = sadd.s32 %s64, 1
    %s66 = scalar_select %p63, %s64, %s65
    %p69 = pneg %p63
    %p70 = scmp.eq.s32.totalorder %s28, 1
    %p71 = por %p69, %p70
    %p72 = scmp.ne.s32.totalorder %s64, %s67
    %p73 = scmp.eq.s32.totalorder %s28, 0
    %p74 = por %p72, %p73
    %p75 = scmp.ne.s32.totalorder %s64, %s67
    %p76 = scmp.eq.s32.totalorder %s33, 1
    %p77 = por %p75, %p76
    %p78 = scmp.ne.s32.totalorder %s67, %s68
    %p79 = scmp.eq.s32.totalorder %s33, 0
    %p80 = por %p78, %p79
    %p81 = scmp.ne.s32.totalorder %s67, %s68
    %p82 = scmp.eq.s32.totalorder %s34, 1
    %p83 = por %p81, %p82
    %p85 = scmp.ne.s32.totalorder %s68, %s84
    %p86 = scmp.eq.s32.totalorder %s34, 0
    %p87 = por %p85, %p86
    %s89 = sadd.s32 %s88, 1
    %p92 = scmp.eq.s32.totalorder %s28, 1
    %p93 = scmp.ne.s32.totalorder %s88, %s90
    %p94 = scmp.eq.s32.totalorder %s28, 0
    %p95 = por %p93, %p94
    %p96 = scmp.ne.s32.totalorder %s88, %s90
    %p97 = scmp.eq.s32.totalorder %s33, 1
    %p98 = por %p96, %p97
    %p99 = scmp.ne.s32.totalorder %s90, %s91
    %p100 = scmp.eq.s32.totalorder %s33, 0
    %p101 = por %p99, %p100
    %p102 = scmp.ne.s32.totalorder %s90, %s91
    %p103 = scmp.eq.s32.totalorder %s34, 1
    %p104 = por %p102, %p103
    %p106 = scmp.ne.s32.totalorder %s91, %s105
    %p107 = scmp.eq.s32.totalorder %s34, 0
    %p108 = por %p106, %p107
    %s110 = sadd.s32 %s109, 1
    %p113 = scmp.eq.s32.totalorder %s28, 1
    %p114 = scmp.ne.s32.totalorder %s109, %s111
    %p115 = scmp.eq.s32.totalorder %s28, 0
    %p116 = por %p114, %p115
    %p117 = scmp.ne.s32.totalorder %s109, %s111
    %p118 = scmp.eq.s32.totalorder %s33, 1
    %p119 = por %p117, %p118
    %p120 = scmp.ne.s32.totalorder %s111, %s112
    %p121 = scmp.eq.s32.totalorder %s33, 0
    %p122 = por %p120, %p121
    %p123 = scmp.ne.s32.totalorder %s111, %s112
    %p124 = scmp.eq.s32.totalorder %s34, 1
    %p125 = por %p123, %p124
    %p127 = scmp.ne.s32.totalorder %s112, %s126
    %p128 = scmp.eq.s32.totalorder %s34, 0
    %p129 = por %p127, %p128
    %s131 = sadd.s32 %s130, 1
    %p134 = scmp.eq.s32.totalorder %s28, 1
    %p135 = scmp.ne.s32.totalorder %s130, %s132
    %p136 = scmp.eq.s32.totalorder %s28, 0
    %p137 = por %p135, %p136
    %p138 = scmp.ne.s32.totalorder %s130, %s132
    %p139 = scmp.eq.s32.totalorder %s33, 1
    %p140 = por %p138, %p139
    %p141 = scmp.ne.s32.totalorder %s132, %s133
    %p142 = scmp.eq.s32.totalorder %s33, 0
    %p143 = por %p141, %p142
    %p144 = scmp.ne.s32.totalorder %s132, %s133
    %p145 = scmp.eq.s32.totalorder %s34, 1
    %p146 = por %p144, %p145
    %p148 = scmp.ne.s32.totalorder %s133, %s147
    %p149 = scmp.eq.s32.totalorder %s34, 0
    %p150 = por %p148, %p149
    %s152 = sadd.s32 %s151, 1
    %p155 = scmp.eq.s32.totalorder %s28, 1
    %p156 = scmp.ne.s32.totalorder %s151, %s153
    %p157 = scmp.eq.s32.totalorder %s28, 0
    %p158 = por %p156, %p157
    %p159 = scmp.ne.s32.totalorder %s151, %s153
    %p160 = scmp.eq.s32.totalorder %s33, 1
    %p161 = por %p159, %p160
    %p162 = scmp.ne.s32.totalorder %s153, %s154
    %p163 = scmp.eq.s32.totalorder %s33, 0
    %p164 = por %p162, %p163
    %p165 = scmp.ne.s32.totalorder %s153, %s154
    %p166 = scmp.eq.s32.totalorder %s34, 1
    %p167 = por %p165, %p166
    %p169 = scmp.ne.s32.totalorder %s154, %s168
    %p170 = scmp.eq.s32.totalorder %s34, 0
    %p171 = por %p169, %p170
    %s173 = sadd.s32 %s172, 1
    %p176 = scmp.eq.s32.totalorder %s28, 1
    %p177 = scmp.ne.s32.totalorder %s172, %s174
    %p178 = scmp.eq.s32.totalorder %s28, 0
    %p179 = por %p177, %p178
    %p180 = scmp.ne.s32.totalorder %s172, %s174
    %p181 = scmp.eq.s32.totalorder %s33, 1
    %p182 = por %p180, %p181
    %p183 = scmp.ne.s32.totalorder %s174, %s175
    %p184 = scmp.eq.s32.totalorder %s33, 0
    %p185 = por %p183, %p184
    %p186 = scmp.ne.s32.totalorder %s174, %s175
    %p187 = scmp.eq.s32.totalorder %s34, 1
    %p188 = por %p186, %p187
    %p190 = scmp.ne.s32.totalorder %s175, %s189
    %p191 = scmp.eq.s32.totalorder %s34, 0
    %p192 = por %p190, %p191
    %s194 = sadd.s32 %s193, 1
    %p197 = scmp.eq.s32.totalorder %s28, 1
    %p198 = scmp.ne.s32.totalorder %s193, %s195
    %p199 = scmp.eq.s32.totalorder %s28, 0
    %p200 = por %p198, %p199
    %p201 = scmp.ne.s32.totalorder %s193, %s195
    %p202 = scmp.eq.s32.totalorder %s33, 1
    %p203 = por %p201, %p202
    %p204 = scmp.ne.s32.totalorder %s195, %s196
    %p205 = scmp.eq.s32.totalorder %s33, 0
    %p206 = por %p204, %p205
    %p207 = scmp.ne.s32.totalorder %s195, %s196
    %p208 = scmp.eq.s32.totalorder %s34, 1
    %p209 = por %p207, %p208
    %p211 = scmp.ne.s32.totalorder %s196, %s210
    %p212 = scmp.eq.s32.totalorder %s34, 0
    %p213 = por %p211, %p212
    %s215 = sadd.s32 %s214, 1
    %p218 = scmp.eq.s32.totalorder %s28, 1
    %p219 = scmp.ne.s32.totalorder %s214, %s216
    %p220 = scmp.eq.s32.totalorder %s28, 0
    %p221 = por %p219, %p220
    %p222 = scmp.ne.s32.totalorder %s214, %s216
    %p223 = scmp.eq.s32.totalorder %s33, 1
    %p224 = por %p222, %p223
    %p225 = scmp.ne.s32.totalorder %s216, %s217
    %p226 = scmp.eq.s32.totalorder %s33, 0
    %p227 = por %p225, %p226
    %p228 = scmp.ne.s32.totalorder %s216, %s217
    %p229 = scmp.eq.s32.totalorder %s34, 1
    %p230 = por %p228, %p229
    %p232 = scmp.ne.s32.totalorder %s217, %s231
    %p233 = scmp.eq.s32.totalorder %s34, 0
    %p234 = por %p232, %p233
    %s236 = sadd.s32 %s235, 1
    %p239 = scmp.eq.s32.totalorder %s28, 1
    %p240 = scmp.ne.s32.totalorder %s235, %s237
    %p241 = scmp.eq.s32.totalorder %s28, 0
    %p242 = por %p240, %p241
    %p243 = scmp.ne.s32.totalorder %s235, %s237
    %p244 = scmp.eq.s32.totalorder %s33, 1
    %p245 = por %p243, %p244
    %p246 = scmp.ne.s32.totalorder %s237, %s238
    %p247 = scmp.eq.s32.totalorder %s33, 0
    %p248 = por %p246, %p247
    %p249 = scmp.ne.s32.totalorder %s237, %s238
    %p250 = scmp.eq.s32.totalorder %s34, 1
    %p251 = por %p249, %p250
    %p253 = scmp.ne.s32.totalorder %s238, %s252
    %p254 = scmp.eq.s32.totalorder %s34, 0
    %p255 = por %p253, %p254
    %s257 = sadd.s32 %s256, 1
    %p260 = scmp.eq.s32.totalorder %s28, 1
    %p261 = scmp.ne.s32.totalorder %s256, %s258
    %p262 = scmp.eq.s32.totalorder %s28, 0
    %p263 = por %p261, %p262
    %p264 = scmp.ne.s32.totalorder %s256, %s258
    %p265 = scmp.eq.s32.totalorder %s33, 1
    %p266 = por %p264, %p265
    %p267 = scmp.ne.s32.totalorder %s258, %s259
    %p268 = scmp.eq.s32.totalorder %s33, 0
    %p269 = por %p267, %p268
    %p270 = scmp.ne.s32.totalorder %s258, %s259
    %p271 = scmp.eq.s32.totalorder %s34, 1
    %p272 = por %p270, %p271
    %p274 = scmp.ne.s32.totalorder %s259, %s273
    %p275 = scmp.eq.s32.totalorder %s34, 0
    %p276 = por %p274, %p275
    %s278 = sadd.s32 %s277, 1
    %p281 = scmp.eq.s32.totalorder %s28, 1
    %p282 = scmp.ne.s32.totalorder %s277, %s279
    %p283 = scmp.eq.s32.totalorder %s28, 0
    %p284 = por %p282, %p283
    %p285 = scmp.ne.s32.totalorder %s277, %s279
    %p286 = scmp.eq.s32.totalorder %s33, 1
    %p287 = por %p285, %p286
    %p288 = scmp.ne.s32.totalorder %s279, %s280
    %p289 = scmp.eq.s32.totalorder %s33, 0
    %p290 = por %p288, %p289
    %p291 = scmp.ne.s32.totalorder %s279, %s280
    %p292 = scmp.eq.s32.totalorder %s34, 1
    %p293 = por %p291, %p292
    %p295 = scmp.ne.s32.totalorder %s280, %s294
    %p296 = scmp.eq.s32.totalorder %s34, 0
    %p297 = por %p295, %p296
    %s299 = sadd.s32 %s298, 1
    %p302 = scmp.eq.s32.totalorder %s28, 1
    %p303 = scmp.ne.s32.totalorder %s298, %s300
    %p304 = scmp.eq.s32.totalorder %s28, 0
    %p305 = por %p303, %p304
    %p306 = scmp.ne.s32.totalorder %s298, %s300
    %p307 = scmp.eq.s32.totalorder %s33, 1
    %p308 = por %p306, %p307
    %p309 = scmp.ne.s32.totalorder %s300, %s301
    %p310 = scmp.eq.s32.totalorder %s33, 0
    %p311 = por %p309, %p310
    %p312 = scmp.ne.s32.totalorder %s300, %s301
    %p313 = scmp.eq.s32.totalorder %s34, 1
    %p314 = por %p312, %p313
    %p316 = scmp.ne.s32.totalorder %s301, %s315
    %p317 = scmp.eq.s32.totalorder %s34, 0
    %p318 = por %p316, %p317
    %s320 = sadd.s32 %s319, 1
    %p323 = scmp.eq.s32.totalorder %s28, 1
    %p324 = scmp.ne.s32.totalorder %s319, %s321
    %p325 = scmp.eq.s32.totalorder %s28, 0
    %p326 = por %p324, %p325
    %p327 = scmp.ne.s32.totalorder %s319, %s321
    %p328 = scmp.eq.s32.totalorder %s33, 1
    %p329 = por %p327, %p328
    %p330 = scmp.ne.s32.totalorder %s321, %s322
    %p331 = scmp.eq.s32.totalorder %s33, 0
    %p332 = por %p330, %p331
    %p333 = scmp.ne.s32.totalorder %s321, %s322
    %p334 = scmp.eq.s32.totalorder %s34, 1
    %p335 = por %p333, %p334
    %p337 = scmp.ne.s32.totalorder %s322, %s336
    %p338 = scmp.eq.s32.totalorder %s34, 0
    %p339 = por %p337, %p338
    %s341 = sadd.s32 %s340, 1
    %p344 = scmp.eq.s32.totalorder %s28, 1
    %p345 = scmp.ne.s32.totalorder %s340, %s342
    %p346 = scmp.eq.s32.totalorder %s28, 0
    %p347 = por %p345, %p346
    %p348 = scmp.ne.s32.totalorder %s340, %s342
    %p349 = scmp.eq.s32.totalorder %s33, 1
    %p350 = por %p348, %p349
    %p351 = scmp.ne.s32.totalorder %s342, %s343
    %p352 = scmp.eq.s32.totalorder %s33, 0
    %p353 = por %p351, %p352
    %p354 = scmp.ne.s32.totalorder %s342, %s343
    %p355 = scmp.eq.s32.totalorder %s34, 1
    %p356 = por %p354, %p355
    %p358 = scmp.ne.s32.totalorder %s343, %s357
    %p359 = scmp.eq.s32.totalorder %s34, 0
    %p360 = por %p358, %p359
    %s362 = sadd.s32 %s361, 1
    %p365 = scmp.eq.s32.totalorder %s28, 1
    %p366 = scmp.ne.s32.totalorder %s361, %s363
    %p367 = scmp.eq.s32.totalorder %s28, 0
    %p368 = por %p366, %p367
    %p369 = scmp.ne.s32.totalorder %s361, %s363
    %p370 = scmp.eq.s32.totalorder %s33, 1
    %p371 = por %p369, %p370
    %p372 = scmp.ne.s32.totalorder %s363, %s364
    %p373 = scmp.eq.s32.totalorder %s33, 0
    %p374 = por %p372, %p373
    %p375 = scmp.ne.s32.totalorder %s363, %s364
    %p376 = scmp.eq.s32.totalorder %s34, 1
    %p377 = por %p375, %p376
    %p379 = scmp.ne.s32.totalorder %s364, %s378
    %p380 = scmp.eq.s32.totalorder %s34, 0
    %p381 = por %p379, %p380
    %s383 = sadd.s32 %s382, 1
    %p386 = scmp.eq.s32.totalorder %s28, 1
    %p387 = scmp.ne.s32.totalorder %s382, %s384
    %p388 = scmp.eq.s32.totalorder %s28, 0
    %p389 = por %p387, %p388
    %p390 = scmp.ne.s32.totalorder %s382, %s384
    %p391 = scmp.eq.s32.totalorder %s33, 1
    %p392 = por %p390, %p391
    %p393 = scmp.ne.s32.totalorder %s384, %s385
    %p394 = scmp.eq.s32.totalorder %s33, 0
    %p395 = por %p393, %p394
    %p396 = scmp.ne.s32.totalorder %s384, %s385
    %p397 = scmp.eq.s32.totalorder %s34, 1
    %p398 = por %p396, %p397
    %p400 = scmp.ne.s32.totalorder %s385, %s399
    %p401 = scmp.eq.s32.totalorder %s34, 0
    %p402 = por %p400, %p401
    %s404 = sadd.s32 %s403, 1
    %p407 = scmp.eq.s32.totalorder %s28, 1
    %p408 = scmp.ne.s32.totalorder %s403, %s405
    %p409 = scmp.eq.s32.totalorder %s28, 0
    %p410 = por %p408, %p409
    %p411 = scmp.ne.s32.totalorder %s403, %s405
    %p412 = scmp.eq.s32.totalorder %s33, 1
    %p413 = por %p411, %p412
    %p414 = scmp.ne.s32.totalorder %s405, %s406
    %p415 = scmp.eq.s32.totalorder %s33, 0
    %p416 = por %p414, %p415
    %p417 = scmp.ne.s32.totalorder %s405, %s406
    %p418 = scmp.eq.s32.totalorder %s34, 1
    %p419 = por %p417, %p418
    %p421 = scmp.ne.s32.totalorder %s406, %s420
    %p422 = scmp.eq.s32.totalorder %s34, 0
    %p423 = por %p421, %p422
    %s425 = sadd.s32 %s424, 1
    %p428 = scmp.eq.s32.totalorder %s28, 1
    %p429 = scmp.ne.s32.totalorder %s424, %s426
    %p430 = scmp.eq.s32.totalorder %s28, 0
    %p431 = por %p429, %p430
    %p432 = scmp.ne.s32.totalorder %s424, %s426
    %p433 = scmp.eq.s32.totalorder %s33, 1
    %p434 = por %p432, %p433
    %p435 = scmp.ne.s32.totalorder %s426, %s427
    %p436 = scmp.eq.s32.totalorder %s33, 0
    %p437 = por %p435, %p436
    %p438 = scmp.ne.s32.totalorder %s426, %s427
    %p439 = scmp.eq.s32.totalorder %s34, 1
    %p440 = por %p438, %p439
    %p442 = scmp.ne.s32.totalorder %s427, %s441
    %p443 = scmp.eq.s32.totalorder %s34, 0
    %p444 = por %p442, %p443
    %s446 = sadd.s32 %s445, 1
    %p449 = scmp.eq.s32.totalorder %s28, 1
    %p450 = scmp.ne.s32.totalorder %s445, %s447
    %p451 = scmp.eq.s32.totalorder %s28, 0
    %p452 = por %p450, %p451
    %p453 = scmp.ne.s32.totalorder %s445, %s447
    %p454 = scmp.eq.s32.totalorder %s33, 1
    %p455 = por %p453, %p454
    %p456 = scmp.ne.s32.totalorder %s447, %s448
    %p457 = scmp.eq.s32.totalorder %s33, 0
    %p458 = por %p456, %p457
    %p459 = scmp.ne.s32.totalorder %s447, %s448
    %p460 = scmp.eq.s32.totalorder %s34, 1
    %p461 = por %p459, %p460
    %p463 = scmp.ne.s32.totalorder %s448, %s462
    %p464 = scmp.eq.s32.totalorder %s34, 0
    %p465 = por %p463, %p464
    %s467 = sadd.s32 %s466, 1
    %p470 = scmp.eq.s32.totalorder %s28, 1
    %p471 = scmp.ne.s32.totalorder %s466, %s468
    %p472 = scmp.eq.s32.totalorder %s28, 0
    %p473 = por %p471, %p472
    %p474 = scmp.ne.s32.totalorder %s466, %s468
    %p475 = scmp.eq.s32.totalorder %s33, 1
    %p476 = por %p474, %p475
    %p477 = scmp.ne.s32.totalorder %s468, %s469
    %p478 = scmp.eq.s32.totalorder %s33, 0
    %p479 = por %p477, %p478
    %p480 = scmp.ne.s32.totalorder %s468, %s469
    %p481 = scmp.eq.s32.totalorder %s34, 1
    %p482 = por %p480, %p481
    %p484 = scmp.ne.s32.totalorder %s469, %s483
    %p485 = scmp.eq.s32.totalorder %s34, 0
    %p486 = por %p484, %p485
    %s488 = sadd.s32 %s487, 1
    %p491 = scmp.eq.s32.totalorder %s28, 1
    %p492 = scmp.ne.s32.totalorder %s487, %s489
    %p493 = scmp.eq.s32.totalorder %s28, 0
    %p494 = por %p492, %p493
    %p495 = scmp.ne.s32.totalorder %s487, %s489
    %p496 = scmp.eq.s32.totalorder %s33, 1
    %p497 = por %p495, %p496
    %p498 = scmp.ne.s32.totalorder %s489, %s490
    %p499 = scmp.eq.s32.totalorder %s33, 0
    %p500 = por %p498, %p499
    %p501 = scmp.ne.s32.totalorder %s489, %s490
    %p502 = scmp.eq.s32.totalorder %s34, 1
    %p503 = por %p501, %p502
    %p505 = scmp.ne.s32.totalorder %s490, %s504
    %p506 = scmp.eq.s32.totalorder %s34, 0
    %p507 = por %p505, %p506
    %s508 = ssub.s32 %s28, %s35
    %p509 = scmp.eq.s32.totalorder %s508, 0
    %s511 = sadd.s32 %s510, 1
    %s512 = scalar_select %p509, %s510, %s511
    %p515 = pneg %p509
    %p516 = scmp.eq.s32.totalorder %s28, 1
    %p517 = por %p515, %p516
    %p518 = scmp.ne.s32.totalorder %s510, %s513
    %p519 = scmp.eq.s32.totalorder %s28, 0
    %p520 = por %p518, %p519
    %p521 = scmp.ne.s32.totalorder %s510, %s513
    %p522 = scmp.eq.s32.totalorder %s33, 1
    %p523 = por %p521, %p522
    %p524 = scmp.ne.s32.totalorder %s513, %s514
    %p525 = scmp.eq.s32.totalorder %s33, 0
    %p526 = por %p524, %p525
    %p527 = scmp.ne.s32.totalorder %s513, %s514
    %p528 = scmp.eq.s32.totalorder %s34, 1
    %p529 = por %p527, %p528
    %p531 = scmp.ne.s32.totalorder %s514, %s530
    %p532 = scmp.eq.s32.totalorder %s34, 0
    %p533 = por %p531, %p532
    %p534 = scmp.le.s32.totalorder 1, %s28
    %p535 = scmp.lt.s32.totalorder %s28, 3
    %p536 = pnand %p534, %p535
    %p537 = pneg %p536
    // Predicated region
    $region9: #{optimated_transformer_forward.11} parent=5 // pred_check
      _
    $region10: #{optimated_transformer_forward.11} parent=5 // pred_check_branch
      %539 = sbr.rel (%p536) target = $region12
    $region11: #{optimated_transformer_forward.11} parent=5 // pred_region
      %s540 = ssub.s32 %s28, 1
      // Predicated region
      $region13: #{optimated_transformer_forward.11} parent=11 // pred_check
        %p541 = pneg %p101
      $region14: #{optimated_transformer_forward.11} parent=11 // pred_check_branch
        %543 = sbr.rel (%p541) target = $region16
      $region15: #{optimated_transformer_forward.11} parent=11 // pred_region
        _
      $region16: #{optimated_transformer_forward.11} parent=11 // pred_fallthru
        _
      // Predicated region
      $region17: #{optimated_transformer_forward.11} parent=11 // pred_check
        %p544 = pneg %p122
      $region18: #{optimated_transformer_forward.11} parent=11 // pred_check_branch
        %546 = sbr.rel (%p544) target = $region20
      $region19: #{optimated_transformer_forward.11} parent=11 // pred_region
        _
      $region20: #{optimated_transformer_forward.11} parent=11 // pred_fallthru
        _
      // Predicated region
      $region21: #{optimated_transformer_forward.11} parent=11 // pred_check
        %p547 = pneg %p143
      $region22: #{optimated_transformer_forward.11} parent=11 // pred_check_branch
        %549 = sbr.rel (%p547) target = $region24
      $region23: #{optimated_transformer_forward.11} parent=11 // pred_region
        _
      $region24: #{optimated_transformer_forward.11} parent=11 // pred_fallthru
        _
      // Predicated region
      $region25: #{optimated_transformer_forward.11} parent=11 // pred_check
        %p550 = pneg %p164
      $region26: #{optimated_transformer_forward.11} parent=11 // pred_check_branch
        %552 = sbr.rel (%p550) target = $region28
      $region27: #{optimated_transformer_forward.11} parent=11 // pred_region
        _
      $region28: #{optimated_transformer_forward.11} parent=11 // pred_fallthru
        _
      // Predicated region
      $region29: #{optimated_transformer_forward.11} parent=11 // pred_check
        %p553 = pneg %p185
      $region30: #{optimated_transformer_forward.11} parent=11 // pred_check_branch
        %555 = sbr.rel (%p553) target = $region32
      $region31: #{optimated_transformer_forward.11} parent=11 // pred_region
        _
      $region32: #{optimated_transformer_forward.11} parent=11 // pred_fallthru
        _
      // Predicated region
      $region33: #{optimated_transformer_forward.11} parent=11 // pred_check
        %p556 = pneg %p206
      $region34: #{optimated_transformer_forward.11} parent=11 // pred_check_branch
        %558 = sbr.rel (%p556) target = $region36
      $region35: #{optimated_transformer_forward.11} parent=11 // pred_region
        _
      $region36: #{optimated_transformer_forward.11} parent=11 // pred_fallthru
        _
      // Predicated region
      $region37: #{optimated_transformer_forward.11} parent=11 // pred_check
        %p559 = pneg %p227
      $region38: #{optimated_transformer_forward.11} parent=11 // pred_check_branch
        %561 = sbr.rel (%p559) target = $region40
      $region39: #{optimated_transformer_forward.11} parent=11 // pred_region
        _
      $region40: #{optimated_transformer_forward.11} parent=11 // pred_fallthru
        _
      // Predicated region
      $region41: #{optimated_transformer_forward.11} parent=11 // pred_check
        %p562 = pneg %p248
      $region42: #{optimated_transformer_forward.11} parent=11 // pred_check_branch
        %564 = sbr.rel (%p562) target = $region44
      $region43: #{optimated_transformer_forward.11} parent=11 // pred_region
        _
      $region44: #{optimated_transformer_forward.11} parent=11 // pred_fallthru
        _
      // Predicated region
      $region45: #{optimated_transformer_forward.11} parent=11 // pred_check
        %p565 = pneg %p269
      $region46: #{optimated_transformer_forward.11} parent=11 // pred_check_branch
        %567 = sbr.rel (%p565) target = $region48
      $region47: #{optimated_transformer_forward.11} parent=11 // pred_region
        _
      $region48: #{optimated_transformer_forward.11} parent=11 // pred_fallthru
        _
      // Predicated region
      $region49: #{optimated_transformer_forward.11} parent=11 // pred_check
        %p568 = pneg %p290
      $region50: #{optimated_transformer_forward.11} parent=11 // pred_check_branch
        %570 = sbr.rel (%p568) target = $region52
      $region51: #{optimated_transformer_forward.11} parent=11 // pred_region
        _
      $region52: #{optimated_transformer_forward.11} parent=11 // pred_fallthru
        _
      // Predicated region
      $region53: #{optimated_transformer_forward.11} parent=11 // pred_check
        %p571 = pneg %p311
      $region54: #{optimated_transformer_forward.11} parent=11 // pred_check_branch
        %573 = sbr.rel (%p571) target = $region56
      $region55: #{optimated_transformer_forward.11} parent=11 // pred_region
        _
      $region56: #{optimated_transformer_forward.11} parent=11 // pred_fallthru
        _
      // Predicated region
      $region57: #{optimated_transformer_forward.11} parent=11 // pred_check
        %p574 = pneg %p332
      $region58: #{optimated_transformer_forward.11} parent=11 // pred_check_branch
        %576 = sbr.rel (%p574) target = $region60
      $region59: #{optimated_transformer_forward.11} parent=11 // pred_region
        _
      $region60: #{optimated_transformer_forward.11} parent=11 // pred_fallthru
        _
      // Predicated region
      $region61: #{optimated_transformer_forward.11} parent=11 // pred_check
        %p577 = pneg %p353
      $region62: #{optimated_transformer_forward.11} parent=11 // pred_check_branch
        %579 = sbr.rel (%p577) target = $region64
      $region63: #{optimated_transformer_forward.11} parent=11 // pred_region
        _
      $region64: #{optimated_transformer_forward.11} parent=11 // pred_fallthru
        _
      // Predicated region
      $region65: #{optimated_transformer_forward.11} parent=11 // pred_check
        %p580 = pneg %p374
      $region66: #{optimated_transformer_forward.11} parent=11 // pred_check_branch
        %582 = sbr.rel (%p580) target = $region68
      $region67: #{optimated_transformer_forward.11} parent=11 // pred_region
        _
      $region68: #{optimated_transformer_forward.11} parent=11 // pred_fallthru
        _
      // Predicated region
      $region69: #{optimated_transformer_forward.11} parent=11 // pred_check
        %p583 = pneg %p395
      $region70: #{optimated_transformer_forward.11} parent=11 // pred_check_branch
        %585 = sbr.rel (%p583) target = $region72
      $region71: #{optimated_transformer_forward.11} parent=11 // pred_region
        _
      $region72: #{optimated_transformer_forward.11} parent=11 // pred_fallthru
        _
      // Predicated region
      $region73: #{optimated_transformer_forward.11} parent=11 // pred_check
        %p586 = pneg %p416
      $region74: #{optimated_transformer_forward.11} parent=11 // pred_check_branch
        %588 = sbr.rel (%p586) target = $region76
      $region75: #{optimated_transformer_forward.11} parent=11 // pred_region
        _
      $region76: #{optimated_transformer_forward.11} parent=11 // pred_fallthru
        _
      // Predicated region
      $region77: #{optimated_transformer_forward.11} parent=11 // pred_check
        %p589 = pneg %p437
      $region78: #{optimated_transformer_forward.11} parent=11 // pred_check_branch
        %591 = sbr.rel (%p589) target = $region80
      $region79: #{optimated_transformer_forward.11} parent=11 // pred_region
        _
      $region80: #{optimated_transformer_forward.11} parent=11 // pred_fallthru
        _
      // Predicated region
      $region81: #{optimated_transformer_forward.11} parent=11 // pred_check
        %p592 = pneg %p458
      $region82: #{optimated_transformer_forward.11} parent=11 // pred_check_branch
        %594 = sbr.rel (%p592) target = $region84
      $region83: #{optimated_transformer_forward.11} parent=11 // pred_region
        _
      $region84: #{optimated_transformer_forward.11} parent=11 // pred_fallthru
        _
      // Predicated region
      $region85: #{optimated_transformer_forward.11} parent=11 // pred_check
        %p595 = pneg %p479
      $region86: #{optimated_transformer_forward.11} parent=11 // pred_check_branch
        %597 = sbr.rel (%p595) target = $region88
      $region87: #{optimated_transformer_forward.11} parent=11 // pred_region
        _
      $region88: #{optimated_transformer_forward.11} parent=11 // pred_fallthru
        _
      // Predicated region
      $region89: #{optimated_transformer_forward.11} parent=11 // pred_check
        %p598 = pneg %p500
      $region90: #{optimated_transformer_forward.11} parent=11 // pred_check_branch
        %600 = sbr.rel (%p598) target = $region92
      $region91: #{optimated_transformer_forward.11} parent=11 // pred_region
        _
      $region92: #{optimated_transformer_forward.11} parent=11 // pred_fallthru
        _
    $region12: #{optimated_transformer_forward.11} parent=5 // pred_fallthru
      _
    %p601 = scmp.lt.s32.totalorder %s28, 2
    // Predicated region
    $region93: #{optimated_transformer_forward.11} parent=5 // pred_check
      %p602 = pneg %p601
    $region94: #{optimated_transformer_forward.11} parent=5 // pred_check_branch
      %604 = sbr.rel (%p602) target = $region96
    $region95: #{optimated_transformer_forward.11} parent=5 // pred_region
      // Predicated region
      $region97: #{optimated_transformer_forward.11} parent=95 // pred_check
        %p605 = pneg %p48
      $region98: #{optimated_transformer_forward.11} parent=95 // pred_check_branch
        %607 = sbr.rel (%p605) target = $region100
      $region99: #{optimated_transformer_forward.11} parent=95 // pred_region
        %p608 = scmp.lt.s32.totalorder %s28, 1
        %s609 = scalar_select %p608, %s28, 1
        %s610 = smul.addr %s609, 8
        %s611 = scalar_lea.vmem %s0, %s610
      $region100: #{optimated_transformer_forward.11} parent=95 // pred_fallthru
        _
      // Predicated region
      $region101: #{optimated_transformer_forward.11} parent=95 // pred_check
        %p612 = pneg %p74
      $region102: #{optimated_transformer_forward.11} parent=95 // pred_check_branch
        %614 = sbr.rel (%p612) target = $region104
      $region103: #{optimated_transformer_forward.11} parent=95 // pred_region
        %p615 = scmp.lt.s32.totalorder %s28, 1
        %s616 = scalar_select %p615, %s28, 1
        %s617 = smul.addr %s616, 8
        %s618 = scalar_lea.vmem %s1, %s617
      $region104: #{optimated_transformer_forward.11} parent=95 // pred_fallthru
        _
    $region96: #{optimated_transformer_forward.11} parent=5 // pred_fallthru
      _
    %p619 = scmp.le.s32.totalorder 1, %s28
    %p620 = scmp.lt.s32.totalorder %s28, 3
    %p621 = pnand %p619, %p620
    %p622 = pneg %p621
    // Predicated region
    $region105: #{optimated_transformer_forward.11} parent=5 // pred_check
      _
    $region106: #{optimated_transformer_forward.11} parent=5 // pred_check_branch
      %624 = sbr.rel (%p621) target = $region108
    $region107: #{optimated_transformer_forward.11} parent=5 // pred_region
      %s625 = ssub.s32 %s28, 1
      %p626 = scmp.lt.s32.totalorder %s33, 1
      %s627 = scalar_select %p626, %s33, 1
      %s628 = smul.addr %s627, 8
      %s629 = scalar_lea.vmem %s0, %s628
      %p630 = pneg %p54
      %p631 = pneg %p51
      %p632 = scmp.lt.s32.totalorder %s33, 1
      %s633 = scalar_select %p632, %s33, 1
      %s634 = smul.addr %s633, 8
      %s635 = scalar_lea.vmem %s1, %s634
      %p636 = pneg %p80
      %p637 = pneg %p77
      %p638 = pneg %p101
      %p639 = pneg %p98
      %p640 = pneg %p122
      %p641 = pneg %p119
      %p642 = pneg %p143
      %p643 = pneg %p140
      %p644 = pneg %p164
      %p645 = pneg %p161
      %p646 = pneg %p185
      %p647 = pneg %p182
      %p648 = pneg %p206
      %p649 = pneg %p203
      %p650 = pneg %p227
      %p651 = pneg %p224
      %p652 = pneg %p248
      %p653 = pneg %p245
      %p654 = pneg %p269
      %p655 = pneg %p266
      %p656 = pneg %p290
      %p657 = pneg %p287
      %p658 = pneg %p311
      %p659 = pneg %p308
      %p660 = pneg %p332
      %p661 = pneg %p329
      %p662 = pneg %p353
      %p663 = pneg %p350
      %p664 = pneg %p374
      %p665 = pneg %p371
      %p666 = pneg %p395
      %p667 = pneg %p392
      %p668 = pneg %p416
      %p669 = pneg %p413
      %p670 = pneg %p437
      %p671 = pneg %p434
      %p672 = pneg %p458
      %p673 = pneg %p455
      %p674 = pneg %p479
      %p675 = pneg %p476
      %p676 = pneg %p500
      %p677 = pneg %p497
      %p678 = pneg %p526
      %p679 = pneg %p523
      %p680 = scmp.lt.s32.totalorder %s33, 1
      %s681 = scalar_select %p680, %s33, 1
      %s682 = smul.addr %s681, 8
      %s683 = scalar_lea.vmem %s22, %s682
      %p684 = scmp.lt.s32.totalorder %s33, 1
      %s685 = scalar_select %p684, %s33, 1
      %s686 = smul.addr %s685, 8
      %s687 = scalar_lea.vmem %s0, %s686
      %p688 = scmp.lt.s32.totalorder %s33, 1
      %s689 = scalar_select %p688, %s33, 1
      %s690 = smul.addr %s689, 8
      %s691 = scalar_lea.vmem %s1, %s690
      %p692 = scmp.lt.s32.totalorder %s33, 1
      %s693 = scalar_select %p692, %s33, 1
      %s694 = smul.addr %s693, 8
      %s695 = scalar_lea.vmem %s22, %s694
      %v696 = vld [vmem:[%s687] sm:$0xff]
      %v697 = vld [vmem:[%s691] sm:$0xff]
      %v698 = vld [vmem:[%s2] sm:$0xff]
      %v699 = vld [vmem:[%s3] sm:$0x1]
      %v701 = vlaneseq
      %v702 = vshrl.u32 %v701, 7
      %v703 = vsub.s32 0, %v702
      %v704 = vrot.slane %v699, %v703
      %vm706 = vcmask 64512
      %v708 = vsel %vm706, %v696, 0
      %710 = vmatprep.subr.mxu0 0.0
      %711 = vmatpush1.msra.mxu0 0.0
      %712 = vmatprep.subr.mxu0 0.0
      %713 = vmatpush1.msra.mxu0 0.0
      %714 = vmatprep.subr.mxu0 0.0
      %715 = vmatpush1.msra.mxu0 0.0
      %716 = vmatprep.subr.mxu0 0.0
      %717 = vmatpush1.msra.mxu0 0.0
      %718 = vmatprep.subr.mxu0 0.0
      %719 = vmatpush1.msra.mxu0 0.0
      %720 = vmatprep.subr.mxu0 0.0
      %721 = vmatpush1.msra.mxu0 0.0
      %722 = vmatprep.subr.mxu0 0.0
      %723 = vmatpush1.msra.mxu0 0.0
      %724 = vmatprep.subr.mxu0 0.0
      %725 = vmatpush1.msra.mxu0 0.0
      %726 = vmatprep.subr.mxu0 0.0
      %727 = vmatpush1.msra.mxu0 0.0
      %728 = vmatprep.subr.mxu0 0.0
      %729 = vmatpush1.msra.mxu0 0.0
      %730 = vmatprep.subr.mxu0 0.0
      %731 = vmatpush1.msra.mxu0 0.0
      %732 = vmatprep.subr.mxu0 0.0
      %733 = vmatpush1.msra.mxu0 0.0
      %734 = vmatprep.subr.mxu0 0.0
      %735 = vmatpush1.msra.mxu0 0.0
      %736 = vmatprep.subr.mxu0 0.0
      %737 = vmatpush1.msra.mxu0 0.0
      %738 = vmatprep.subr.mxu0 0.0
      %739 = vmatpush1.msra.mxu0 0.0
      %740 = vmatprep.subr.mxu0 0.0
      %741 = vmatpush1.msra.mxu0 %v698
      %742 = vmatprep.subr.mxu0 0.0
      %743 = vmatpush2.msra.mxu0 0.0
      %744 = vmatprep.subr.mxu0 0.0
      %745 = vmatpush2.msra.mxu0 0.0
      %746 = vmatprep.subr.mxu0 0.0
      %747 = vmatpush2.msra.mxu0 0.0
      %748 = vmatprep.subr.mxu0 0.0
      %749 = vmatpush2.msra.mxu0 0.0
      %750 = vmatprep.subr.mxu0 0.0
      %751 = vmatpush2.msra.mxu0 0.0
      %752 = vmatprep.subr.mxu0 0.0
      %753 = vmatpush2.msra.mxu0 0.0
      %754 = vmatprep.subr.mxu0 0.0
      %755 = vmatpush2.msra.mxu0 0.0
      %756 = vmatprep.subr.mxu0 0.0
      %757 = vmatpush2.msra.mxu0 0.0
      %758 = vmatprep.subr.mxu0 0.0
      %759 = vmatpush2.msra.mxu0 0.0
      %760 = vmatprep.subr.mxu0 0.0
      %761 = vmatpush2.msra.mxu0 0.0
      %762 = vmatprep.subr.mxu0 0.0
      %763 = vmatpush2.msra.mxu0 0.0
      %764 = vmatprep.subr.mxu0 0.0
      %765 = vmatpush2.msra.mxu0 0.0
      %766 = vmatprep.subr.mxu0 0.0
      %767 = vmatpush2.msra.mxu0 0.0
      %768 = vmatprep.subr.mxu0 0.0
      %769 = vmatpush2.msra.mxu0 0.0
      %770 = vmatprep.subr.mxu0 0.0
      %771 = vmatpush2.msra.mxu0 0.0
      %772 = vmatprep.subr.mxu0 0.0
      %773 = vmatpush2.msra.mxu0 0.0
      %774 = vmatprep.mubr.f32.mxu0 0.0
      %775 = vmatmul.mubr.f32.gmra.mxu0 %v708
      %v776 = vpop.f32.mrf.mxu0
      %v777 = vadd.f32 %v704, %v776
      %v778 = vpop.f32.mrf.mxu0
      %779 = vdwg.mxu0
      %v781 = vcombine.high %v777, %v777
      %v783 = vunpack.c.l.s4 1966171168
      %v784 = vunpack.c.0.s8 %v783
      %v785 = vlaneseq
      %v786 = vshrl.u32 %v785, 7
      %v787 = vsub.s32 %v784, %v786
      %v788 = vrot.slane %v777, %v787
      %v790 = vunpack.c.l.s4 1966171168
      %v791 = vunpack.c.0.s8 %v790
      %v792 = vlaneseq
      %v793 = vshrl.u32 %v792, 7
      %v794 = vsub.s32 %v791, %v793
      %v795 = vrot.slane %v781, %v794
      %v796 = vcombine.high %v788, %v788
      %v797 = vcombine.high %v795, %v795
      %v799 = vunpack.c.l.s4 1966171168
      %v800 = vunpack.c.0.s8 %v799
      %v801 = vlaneseq
      %v802 = vshrl.u32 %v801, 7
      %v803 = vsub.s32 %v800, %v802
      %v804 = vrot.slane %v788, %v803
      %v806 = vunpack.c.l.s4 1966171168
      %v807 = vunpack.c.0.s8 %v806
      %v808 = vlaneseq
      %v809 = vshrl.u32 %v808, 7
      %v810 = vsub.s32 %v807, %v809
      %v811 = vrot.slane %v795, %v810
      %v813 = vunpack.c.l.s4 1966171168
      %v814 = vunpack.c.0.s8 %v813
      %v815 = vlaneseq
      %v816 = vshrl.u32 %v815, 7
      %v817 = vsub.s32 %v814, %v816
      %v818 = vrot.slane %v796, %v817
      %v820 = vunpack.c.l.s4 1966171168
      %v821 = vunpack.c.0.s8 %v820
      %v822 = vlaneseq
      %v823 = vshrl.u32 %v822, 7
      %v824 = vsub.s32 %v821, %v823
      %v825 = vrot.slane %v797, %v824
      %v826 = vcombine.high %v804, %v804
      %v827 = vcombine.high %v811, %v811
      %v828 = vcombine.high %v818, %v818
      %v829 = vcombine.high %v825, %v825
      %v830 = vlaneseq
      %v831 = vshrl.u32 %v830, 7
      %v832 = vsub.s32 0, %v831
      %v833 = vrot.slane %v804, %v832
      %v834 = vlaneseq
      %v835 = vshrl.u32 %v834, 7
      %v836 = vsub.s32 0, %v835
      %v837 = vrot.slane %v818, %v836
      %v838 = vlaneseq
      %v839 = vshrl.u32 %v838, 7
      %v840 = vsub.s32 0, %v839
      %v841 = vrot.slane %v826, %v840
      %v842 = vlaneseq
      %v843 = vshrl.u32 %v842, 7
      %v844 = vsub.s32 0, %v843
      %v845 = vrot.slane %v828, %v844
      %v846 = vlaneseq
      %v847 = vshrl.u32 %v846, 7
      %v848 = vsub.s32 0, %v847
      %v849 = vrot.slane %v811, %v848
      %v850 = vlaneseq
      %v851 = vshrl.u32 %v850, 7
      %v852 = vsub.s32 0, %v851
      %v853 = vrot.slane %v825, %v852
      %v854 = vlaneseq
      %v855 = vshrl.u32 %v854, 7
      %v856 = vsub.s32 0, %v855
      %v857 = vrot.slane %v827, %v856
      %v858 = vlaneseq
      %v859 = vshrl.u32 %v858, 7
      %v860 = vsub.s32 0, %v859
      %v861 = vrot.slane %v829, %v860
      %870 = vrot.lane.b32.xlu0 %v777, 120
      %v871 = vpop.permute.xlu0 %870
      %v873 = vmul.f32 %v833, %v871
      %v874 = vmul.f32 %v837, %v871
      %v875 = vmul.f32 %v841, %v871
      %v876 = vmul.f32 %v845, %v871
      %v877 = vmul.f32 %v849, %v871
      %v878 = vmul.f32 %v853, %v871
      %v879 = vmul.f32 %v857, %v871
      %v880 = vmul.f32 %v861, %v871
      %v881 = vsel %vm706, %v873, -inf
      %v882 = vrot.slane %v881, 4
      %v883 = vmax.f32 %v881, %v882
      %v884 = vrot.slane %v883, 2
      %v885 = vmax.f32 %v883, %v884
      %v886 = vrot.slane %v885, 1
      %v887 = vmax.f32 %v885, %v886
      %v888 = vsel %vm706, %v874, -inf
      %v889 = vrot.slane %v888, 4
      %v890 = vmax.f32 %v888, %v889
      %v891 = vrot.slane %v890, 2
      %v892 = vmax.f32 %v890, %v891
      %v893 = vrot.slane %v892, 1
      %v894 = vmax.f32 %v892, %v893
      %v895 = vsel %vm706, %v875, -inf
      %v896 = vrot.slane %v895, 4
      %v897 = vmax.f32 %v895, %v896
      %v898 = vrot.slane %v897, 2
      %v899 = vmax.f32 %v897, %v898
      %v900 = vrot.slane %v899, 1
      %v901 = vmax.f32 %v899, %v900
      %v902 = vsel %vm706, %v876, -inf
      %v903 = vrot.slane %v902, 4
      %v904 = vmax.f32 %v902, %v903
      %v905 = vrot.slane %v904, 2
      %v906 = vmax.f32 %v904, %v905
      %v907 = vrot.slane %v906, 1
      %v908 = vmax.f32 %v906, %v907
      %v909 = vsel %vm706, %v877, -inf
      %v910 = vrot.slane %v909, 4
      %v911 = vmax.f32 %v909, %v910
      %v912 = vrot.slane %v911, 2
      %v913 = vmax.f32 %v911, %v912
      %v914 = vrot.slane %v913, 1
      %v915 = vmax.f32 %v913, %v914
      %v916 = vsel %vm706, %v878, -inf
      %v917 = vrot.slane %v916, 4
      %v918 = vmax.f32 %v916, %v917
      %v919 = vrot.slane %v918, 2
      %v920 = vmax.f32 %v918, %v919
      %v921 = vrot.slane %v920, 1
      %v922 = vmax.f32 %v920, %v921
      %v923 = vsel %vm706, %v879, -inf
      %v924 = vrot.slane %v923, 4
      %v925 = vmax.f32 %v923, %v924
      %v926 = vrot.slane %v925, 2
      %v927 = vmax.f32 %v925, %v926
      %v928 = vrot.slane %v927, 1
      %v929 = vmax.f32 %v927, %v928
      %v930 = vsel %vm706, %v880, -inf
      %v931 = vrot.slane %v930, 4
      %v932 = vmax.f32 %v930, %v931
      %v933 = vrot.slane %v932, 2
      %v934 = vmax.f32 %v932, %v933
      %v935 = vrot.slane %v934, 1
      %v936 = vmax.f32 %v934, %v935
      %v937 = vsub.f32 %v873, %v887
      %v938 = vsub.f32 %v874, %v894
      %v939 = vsub.f32 %v875, %v901
      %v940 = vsub.f32 %v876, %v908
      %v941 = vsub.f32 %v877, %v915
      %v942 = vsub.f32 %v878, %v922
      %v943 = vsub.f32 %v879, %v929
      %v944 = vsub.f32 %v880, %v936
      %v945 = vmul.f32 %v937, 1.442695
      %v946 = vpow.pop %v945
      %v947 = vmul.f32 %v938, 1.442695
      %v948 = vpow.pop %v947
      %v949 = vmul.f32 %v939, 1.442695
      %v950 = vpow.pop %v949
      %v951 = vmul.f32 %v940, 1.442695
      %v952 = vpow.pop %v951
      %v953 = vmul.f32 %v941, 1.442695
      %v954 = vpow.pop %v953
      %v955 = vmul.f32 %v942, 1.442695
      %v956 = vpow.pop %v955
      %v957 = vmul.f32 %v943, 1.442695
      %v958 = vpow.pop %v957
      %v959 = vmul.f32 %v944, 1.442695
      %v960 = vpow.pop %v959
      %v961 = vsel %vm706, %v946, 0.0
      %v962 = vrot.slane %v961, 4
      %v963 = vadd.f32 %v961, %v962
      %v964 = vrot.slane %v963, 2
      %v965 = vadd.f32 %v963, %v964
      %v966 = vrot.slane %v965, 1
      %v967 = vadd.f32 %v965, %v966
      %v968 = vsel %vm706, %v948, 0.0
      %v969 = vrot.slane %v968, 4
      %v970 = vadd.f32 %v968, %v969
      %v971 = vrot.slane %v970, 2
      %v972 = vadd.f32 %v970, %v971
      %v973 = vrot.slane %v972, 1
      %v974 = vadd.f32 %v972, %v973
      %v975 = vsel %vm706, %v950, 0.0
      %v976 = vrot.slane %v975, 4
      %v977 = vadd.f32 %v975, %v976
      %v978 = vrot.slane %v977, 2
      %v979 = vadd.f32 %v977, %v978
      %v980 = vrot.slane %v979, 1
      %v981 = vadd.f32 %v979, %v980
      %v982 = vsel %vm706, %v952, 0.0
      %v983 = vrot.slane %v982, 4
      %v984 = vadd.f32 %v982, %v983
      %v985 = vrot.slane %v984, 2
      %v986 = vadd.f32 %v984, %v985
      %v987 = vrot.slane %v986, 1
      %v988 = vadd.f32 %v986, %v987
      %v989 = vsel %vm706, %v954, 0.0
      %v990 = vrot.slane %v989, 4
      %v991 = vadd.f32 %v989, %v990
      %v992 = vrot.slane %v991, 2
      %v993 = vadd.f32 %v991, %v992
      %v994 = vrot.slane %v993, 1
      %v995 = vadd.f32 %v993, %v994
      %v996 = vsel %vm706, %v956, 0.0
      %v997 = vrot.slane %v996, 4
      %v998 = vadd.f32 %v996, %v997
      %v999 = vrot.slane %v998, 2
      %v1000 = vadd.f32 %v998, %v999
      %v1001 = vrot.slane %v1000, 1
      %v1002 = vadd.f32 %v1000, %v1001
      %v1003 = vsel %vm706, %v958, 0.0
      %v1004 = vrot.slane %v1003, 4
      %v1005 = vadd.f32 %v1003, %v1004
      %v1006 = vrot.slane %v1005, 2
      %v1007 = vadd.f32 %v1005, %v1006
      %v1008 = vrot.slane %v1007, 1
      %v1009 = vadd.f32 %v1007, %v1008
      %v1010 = vsel %vm706, %v960, 0.0
      %v1011 = vrot.slane %v1010, 4
      %v1012 = vadd.f32 %v1010, %v1011
      %v1013 = vrot.slane %v1012, 2
      %v1014 = vadd.f32 %v1012, %v1013
      %v1015 = vrot.slane %v1014, 1
      %v1016 = vadd.f32 %v1014, %v1015
      %v1017 = vrcp.pop %v967
      %v1018 = vrcp.pop %v974
      %v1019 = vrcp.pop %v981
      %v1020 = vrcp.pop %v988
      %v1021 = vrcp.pop %v995
      %v1022 = vrcp.pop %v1002
      %v1023 = vrcp.pop %v1009
      %v1024 = vrcp.pop %v1016
      %v1025 = vmul.f32 %v946, %v1017
      %v1026 = vmul.f32 %v948, %v1018
      %v1027 = vmul.f32 %v950, %v1019
      %v1028 = vmul.f32 %v952, %v1020
      %v1029 = vmul.f32 %v954, %v1021
      %v1030 = vmul.f32 %v956, %v1022
      %v1031 = vmul.f32 %v958, %v1023
      %v1032 = vmul.f32 %v960, %v1024
      %1033 = vrot.lane.b32.xlu0 %v777, 112
      %v1034 = vpop.permute.xlu0 %1033
      %v1036 = vmul.f32 %v1025, %v1034
      %v1037 = vmul.f32 %v1026, %v1034
      %v1038 = vmul.f32 %v1027, %v1034
      %v1039 = vmul.f32 %v1028, %v1034
      %v1040 = vmul.f32 %v1029, %v1034
      %v1041 = vmul.f32 %v1030, %v1034
      %v1042 = vmul.f32 %v1031, %v1034
      %v1043 = vmul.f32 %v1032, %v1034
      %v1044 = vsel %vm706, %v1036, 0.0
      %v1045 = vrot.slane %v1044, 4
      %v1046 = vadd.f32 %v1044, %v1045
      %v1047 = vrot.slane %v1046, 2
      %v1048 = vadd.f32 %v1046, %v1047
      %v1049 = vrot.slane %v1048, 1
      %v1050 = vadd.f32 %v1048, %v1049
      %v1051 = vsel %vm706, %v1037, 0.0
      %v1052 = vrot.slane %v1051, 4
      %v1053 = vadd.f32 %v1051, %v1052
      %v1054 = vrot.slane %v1053, 2
      %v1055 = vadd.f32 %v1053, %v1054
      %v1056 = vrot.slane %v1055, 1
      %v1057 = vadd.f32 %v1055, %v1056
      %v1058 = vsel %vm706, %v1038, 0.0
      %v1059 = vrot.slane %v1058, 4
      %v1060 = vadd.f32 %v1058, %v1059
      %v1061 = vrot.slane %v1060, 2
      %v1062 = vadd.f32 %v1060, %v1061
      %v1063 = vrot.slane %v1062, 1
      %v1064 = vadd.f32 %v1062, %v1063
      %v1065 = vsel %vm706, %v1039, 0.0
      %v1066 = vrot.slane %v1065, 4
      %v1067 = vadd.f32 %v1065, %v1066
      %v1068 = vrot.slane %v1067, 2
      %v1069 = vadd.f32 %v1067, %v1068
      %v1070 = vrot.slane %v1069, 1
      %v1071 = vadd.f32 %v1069, %v1070
      %v1072 = vsel %vm706, %v1040, 0.0
      %v1073 = vrot.slane %v1072, 4
      %v1074 = vadd.f32 %v1072, %v1073
      %v1075 = vrot.slane %v1074, 2
      %v1076 = vadd.f32 %v1074, %v1075
      %v1077 = vrot.slane %v1076, 1
      %v1078 = vadd.f32 %v1076, %v1077
      %v1079 = vsel %vm706, %v1041, 0.0
      %v1080 = vrot.slane %v1079, 4
      %v1081 = vadd.f32 %v1079, %v1080
      %v1082 = vrot.slane %v1081, 2
      %v1083 = vadd.f32 %v1081, %v1082
      %v1084 = vrot.slane %v1083, 1
      %v1085 = vadd.f32 %v1083, %v1084
      %v1086 = vsel %vm706, %v1042, 0.0
      %v1087 = vrot.slane %v1086, 4
      %v1088 = vadd.f32 %v1086, %v1087
      %v1089 = vrot.slane %v1088, 2
      %v1090 = vadd.f32 %v1088, %v1089
      %v1091 = vrot.slane %v1090, 1
      %v1092 = vadd.f32 %v1090, %v1091
      %v1093 = vsel %vm706, %v1043, 0.0
      %v1094 = vrot.slane %v1093, 4
      %v1095 = vadd.f32 %v1093, %v1094
      %v1096 = vrot.slane %v1095, 2
      %v1097 = vadd.f32 %v1095, %v1096
      %v1098 = vrot.slane %v1097, 1
      %v1099 = vadd.f32 %v1097, %v1098
      %v1100 = vld [vmem:[%s4] sm:$0xff]
      %v1101 = vld [vmem:[%s5] sm:$0x1]
      %v1103 = vlaneseq
      %v1104 = vshrl.u32 %v1103, 7
      %v1105 = vsub.s32 0, %v1104
      %v1106 = vrot.slane %v1101, %v1105
      %vm1116 = vcmask 1041409
      %v1117 = vsel %vm1116, %v1057, %v1050
      %vm1118 = vcmask 1042434
      %v1119 = vsel %vm1118, %v1064, %v1117
      %vm1120 = vcmask 1043459
      %v1121 = vsel %vm1120, %v1071, %v1119
      %vm1122 = vcmask 1044484
      %v1123 = vsel %vm1122, %v1078, %v1121
      %vm1124 = vcmask 1045509
      %v1125 = vsel %vm1124, %v1085, %v1123
      %vm1126 = vcmask 1046534
      %v1127 = vsel %vm1126, %v1092, %v1125
      %vm1128 = vcmask 1047559
      %v1129 = vsel %vm1128, %v1099, %v1127
      %v1130 = vsel %vm706, %v1129, 0
      %1132 = vmatprep.subr.mxu0 0.0
      %1133 = vmatpush1.msra.mxu0 0.0
      %1134 = vmatprep.subr.mxu0 0.0
      %1135 = vmatpush1.msra.mxu0 0.0
      %1136 = vmatprep.subr.mxu0 0.0
      %1137 = vmatpush1.msra.mxu0 0.0
      %1138 = vmatprep.subr.mxu0 0.0
      %1139 = vmatpush1.msra.mxu0 0.0
      %1140 = vmatprep.subr.mxu0 0.0
      %1141 = vmatpush1.msra.mxu0 0.0
      %1142 = vmatprep.subr.mxu0 0.0
      %1143 = vmatpush1.msra.mxu0 0.0
      %1144 = vmatprep.subr.mxu0 0.0
      %1145 = vmatpush1.msra.mxu0 0.0
      %1146 = vmatprep.subr.mxu0 0.0
      %1147 = vmatpush1.msra.mxu0 0.0
      %1148 = vmatprep.subr.mxu0 0.0
      %1149 = vmatpush1.msra.mxu0 0.0
      %1150 = vmatprep.subr.mxu0 0.0
      %1151 = vmatpush1.msra.mxu0 0.0
      %1152 = vmatprep.subr.mxu0 0.0
      %1153 = vmatpush1.msra.mxu0 0.0
      %1154 = vmatprep.subr.mxu0 0.0
      %1155 = vmatpush1.msra.mxu0 0.0
      %1156 = vmatprep.subr.mxu0 0.0
      %1157 = vmatpush1.msra.mxu0 0.0
      %1158 = vmatprep.subr.mxu0 0.0
      %1159 = vmatpush1.msra.mxu0 0.0
      %1160 = vmatprep.subr.mxu0 0.0
      %1161 = vmatpush1.msra.mxu0 0.0
      %1162 = vmatprep.subr.mxu0 0.0
      %1163 = vmatpush1.msra.mxu0 %v1100
      %1164 = vmatprep.subr.mxu0 0.0
      %1165 = vmatpush2.msra.mxu0 0.0
      %1166 = vmatprep.subr.mxu0 0.0
      %1167 = vmatpush2.msra.mxu0 0.0
      %1168 = vmatprep.subr.mxu0 0.0
      %1169 = vmatpush2.msra.mxu0 0.0
      %1170 = vmatprep.subr.mxu0 0.0
      %1171 = vmatpush2.msra.mxu0 0.0
      %1172 = vmatprep.subr.mxu0 0.0
      %1173 = vmatpush2.msra.mxu0 0.0
      %1174 = vmatprep.subr.mxu0 0.0
      %1175 = vmatpush2.msra.mxu0 0.0
      %1176 = vmatprep.subr.mxu0 0.0
      %1177 = vmatpush2.msra.mxu0 0.0
      %1178 = vmatprep.subr.mxu0 0.0
      %1179 = vmatpush2.msra.mxu0 0.0
      %1180 = vmatprep.subr.mxu0 0.0
      %1181 = vmatpush2.msra.mxu0 0.0
      %1182 = vmatprep.subr.mxu0 0.0
      %1183 = vmatpush2.msra.mxu0 0.0
      %1184 = vmatprep.subr.mxu0 0.0
      %1185 = vmatpush2.msra.mxu0 0.0
      %1186 = vmatprep.subr.mxu0 0.0
      %1187 = vmatpush2.msra.mxu0 0.0
      %1188 = vmatprep.subr.mxu0 0.0
      %1189 = vmatpush2.msra.mxu0 0.0
      %1190 = vmatprep.subr.mxu0 0.0
      %1191 = vmatpush2.msra.mxu0 0.0
      %1192 = vmatprep.subr.mxu0 0.0
      %1193 = vmatpush2.msra.mxu0 0.0
      %1194 = vmatprep.subr.mxu0 0.0
      %1195 = vmatpush2.msra.mxu0 0.0
      %1196 = vmatprep.mubr.f32.mxu0 0.0
      %1197 = vmatmul.mubr.f32.gmra.mxu0 %v1130
      %v1198 = vpop.f32.mrf.mxu0
      %v1199 = vadd.f32 %v1106, %v1198
      %v1200 = vpop.f32.mrf.mxu0
      %1201 = vdwg.mxu0
      %v1202 = vadd.f32 %v696, %v1199
      %v1203 = vld [vmem:[%s6] sm:$0x1]
      %v1204 = vld [vmem:[%s7] sm:$0x1]
      %v1205 = vsel %vm706, %v1202, 0.0
      %1206 = vadd.xlane.f32.xlu0 %v1205
      %v1207 = vpop.xlane.xlu0 %1206
      %v1208 = vrcp.pop 8.0
      %v1209 = vmul.f32 %v1207, %v1208
      %v1210 = vsub.f32 %v1202, %v1209
      %v1211 = vmul.f32 %v1210, %v1210
      %v1212 = vsel %vm706, %v1211, 0.0
      %1213 = vadd.xlane.f32.xlu0 %v1212
      %v1214 = vpop.xlane.xlu0 %1213
      %v1215 = vmul.f32 %v1214, %v1208
      %v1216 = vadd.f32 %v1215, 1e-05
      %v1217 = vrsqrt.pop %v1216
      %v1218 = vmul.f32 %v1210, %v1217
      %v1220 = vlaneseq
      %v1221 = vshrl.u32 %v1220, 7
      %v1222 = vsub.s32 0, %v1221
      %v1223 = vrot.slane %v1203, %v1222
      %v1225 = vmul.f32 %v1218, %v1223
      %v1227 = vlaneseq
      %v1228 = vshrl.u32 %v1227, 7
      %v1229 = vsub.s32 0, %v1228
      %v1230 = vrot.slane %v1204, %v1229
      %v1232 = vadd.f32 %v1225, %v1230
      %v1233 = vld [vmem:[%s8] sm:$0xff]
      %v1234 = vld [vmem:[%s9] sm:$0x1]
      %v1236 = vlaneseq
      %v1237 = vshrl.u32 %v1236, 7
      %v1238 = vsub.s32 0, %v1237
      %v1239 = vrot.slane %v1234, %v1238
      %v1242 = vsel %vm706, %v1232, 0
      %1244 = vmatprep.subr.mxu0 0.0
      %1245 = vmatpush1.msra.mxu0 0.0
      %1246 = vmatprep.subr.mxu0 0.0
      %1247 = vmatpush1.msra.mxu0 0.0
      %1248 = vmatprep.subr.mxu0 0.0
      %1249 = vmatpush1.msra.mxu0 0.0
      %1250 = vmatprep.subr.mxu0 0.0
      %1251 = vmatpush1.msra.mxu0 0.0
      %1252 = vmatprep.subr.mxu0 0.0
      %1253 = vmatpush1.msra.mxu0 0.0
      %1254 = vmatprep.subr.mxu0 0.0
      %1255 = vmatpush1.msra.mxu0 0.0
      %1256 = vmatprep.subr.mxu0 0.0
      %1257 = vmatpush1.msra.mxu0 0.0
      %1258 = vmatprep.subr.mxu0 0.0
      %1259 = vmatpush1.msra.mxu0 0.0
      %1260 = vmatprep.subr.mxu0 0.0
      %1261 = vmatpush1.msra.mxu0 0.0
      %1262 = vmatprep.subr.mxu0 0.0
      %1263 = vmatpush1.msra.mxu0 0.0
      %1264 = vmatprep.subr.mxu0 0.0
      %1265 = vmatpush1.msra.mxu0 0.0
      %1266 = vmatprep.subr.mxu0 0.0
      %1267 = vmatpush1.msra.mxu0 0.0
      %1268 = vmatprep.subr.mxu0 0.0
      %1269 = vmatpush1.msra.mxu0 0.0
      %1270 = vmatprep.subr.mxu0 0.0
      %1271 = vmatpush1.msra.mxu0 0.0
      %1272 = vmatprep.subr.mxu0 0.0
      %1273 = vmatpush1.msra.mxu0 0.0
      %1274 = vmatprep.subr.mxu0 0.0
      %1275 = vmatpush1.msra.mxu0 %v1233
      %1276 = vmatprep.subr.mxu0 0.0
      %1277 = vmatpush2.msra.mxu0 0.0
      %1278 = vmatprep.subr.mxu0 0.0
      %1279 = vmatpush2.msra.mxu0 0.0
      %1280 = vmatprep.subr.mxu0 0.0
      %1281 = vmatpush2.msra.mxu0 0.0
      %1282 = vmatprep.subr.mxu0 0.0
      %1283 = vmatpush2.msra.mxu0 0.0
      %1284 = vmatprep.subr.mxu0 0.0
      %1285 = vmatpush2.msra.mxu0 0.0
      %1286 = vmatprep.subr.mxu0 0.0
      %1287 = vmatpush2.msra.mxu0 0.0
      %1288 = vmatprep.subr.mxu0 0.0
      %1289 = vmatpush2.msra.mxu0 0.0
      %1290 = vmatprep.subr.mxu0 0.0
      %1291 = vmatpush2.msra.mxu0 0.0
      %1292 = vmatprep.subr.mxu0 0.0
      %1293 = vmatpush2.msra.mxu0 0.0
      %1294 = vmatprep.subr.mxu0 0.0
      %1295 = vmatpush2.msra.mxu0 0.0
      %1296 = vmatprep.subr.mxu0 0.0
      %1297 = vmatpush2.msra.mxu0 0.0
      %1298 = vmatprep.subr.mxu0 0.0
      %1299 = vmatpush2.msra.mxu0 0.0
      %1300 = vmatprep.subr.mxu0 0.0
      %1301 = vmatpush2.msra.mxu0 0.0
      %1302 = vmatprep.subr.mxu0 0.0
      %1303 = vmatpush2.msra.mxu0 0.0
      %1304 = vmatprep.subr.mxu0 0.0
      %1305 = vmatpush2.msra.mxu0 0.0
      %1306 = vmatprep.subr.mxu0 0.0
      %1307 = vmatpush2.msra.mxu0 0.0
      %1308 = vmatprep.mubr.f32.mxu0 0.0
      %1309 = vmatmul.mubr.f32.gmra.mxu0 %v1242
      %v1310 = vpop.f32.mrf.mxu0
      %v1311 = vadd.f32 %v1239, %v1310
      %v1312 = vpop.f32.mrf.mxu0
      %1313 = vdwg.mxu0
      %v1314 = vld [vmem:[%s10] sm:$0xff]
      %v1315 = vld [vmem:[%s11] sm:$0x1]
      %v1317 = vlaneseq
      %v1318 = vshrl.u32 %v1317, 7
      %v1319 = vsub.s32 0, %v1318
      %v1320 = vrot.slane %v1315, %v1319
      %v1323 = vsel %vm706, %v697, 0
      %1325 = vmatprep.subr.mxu0 0.0
      %1326 = vmatpush1.msra.mxu0 0.0
      %1327 = vmatprep.subr.mxu0 0.0
      %1328 = vmatpush1.msra.mxu0 0.0
      %1329 = vmatprep.subr.mxu0 0.0
      %1330 = vmatpush1.msra.mxu0 0.0
      %1331 = vmatprep.subr.mxu0 0.0
      %1332 = vmatpush1.msra.mxu0 0.0
      %1333 = vmatprep.subr.mxu0 0.0
      %1334 = vmatpush1.msra.mxu0 0.0
      %1335 = vmatprep.subr.mxu0 0.0
      %1336 = vmatpush1.msra.mxu0 0.0
      %1337 = vmatprep.subr.mxu0 0.0
      %1338 = vmatpush1.msra.mxu0 0.0
      %1339 = vmatprep.subr.mxu0 0.0
      %1340 = vmatpush1.msra.mxu0 0.0
      %1341 = vmatprep.subr.mxu0 0.0
      %1342 = vmatpush1.msra.mxu0 0.0
      %1343 = vmatprep.subr.mxu0 0.0
      %1344 = vmatpush1.msra.mxu0 0.0
      %1345 = vmatprep.subr.mxu0 0.0
      %1346 = vmatpush1.msra.mxu0 0.0
      %1347 = vmatprep.subr.mxu0 0.0
      %1348 = vmatpush1.msra.mxu0 0.0
      %1349 = vmatprep.subr.mxu0 0.0
      %1350 = vmatpush1.msra.mxu0 0.0
      %1351 = vmatprep.subr.mxu0 0.0
      %1352 = vmatpush1.msra.mxu0 0.0
      %1353 = vmatprep.subr.mxu0 0.0
      %1354 = vmatpush1.msra.mxu0 0.0
      %1355 = vmatprep.subr.mxu0 0.0
      %1356 = vmatpush1.msra.mxu0 %v1314
      %1357 = vmatprep.subr.mxu0 0.0
      %1358 = vmatpush2.msra.mxu0 0.0
      %1359 = vmatprep.subr.mxu0 0.0
      %1360 = vmatpush2.msra.mxu0 0.0
      %1361 = vmatprep.subr.mxu0 0.0
      %1362 = vmatpush2.msra.mxu0 0.0
      %1363 = vmatprep.subr.mxu0 0.0
      %1364 = vmatpush2.msra.mxu0 0.0
      %1365 = vmatprep.subr.mxu0 0.0
      %1366 = vmatpush2.msra.mxu0 0.0
      %1367 = vmatprep.subr.mxu0 0.0
      %1368 = vmatpush2.msra.mxu0 0.0
      %1369 = vmatprep.subr.mxu0 0.0
      %1370 = vmatpush2.msra.mxu0 0.0
      %1371 = vmatprep.subr.mxu0 0.0
      %1372 = vmatpush2.msra.mxu0 0.0
      %1373 = vmatprep.subr.mxu0 0.0
      %1374 = vmatpush2.msra.mxu0 0.0
      %1375 = vmatprep.subr.mxu0 0.0
      %1376 = vmatpush2.msra.mxu0 0.0
      %1377 = vmatprep.subr.mxu0 0.0
      %1378 = vmatpush2.msra.mxu0 0.0
      %1379 = vmatprep.subr.mxu0 0.0
      %1380 = vmatpush2.msra.mxu0 0.0
      %1381 = vmatprep.subr.mxu0 0.0
      %1382 = vmatpush2.msra.mxu0 0.0
      %1383 = vmatprep.subr.mxu0 0.0
      %1384 = vmatpush2.msra.mxu0 0.0
      %1385 = vmatprep.subr.mxu0 0.0
      %1386 = vmatpush2.msra.mxu0 0.0
      %1387 = vmatprep.subr.mxu0 0.0
      %1388 = vmatpush2.msra.mxu0 0.0
      %1389 = vmatprep.mubr.f32.mxu0 0.0
      %1390 = vmatmul.mubr.f32.gmra.mxu0 %v1323
      %v1391 = vpop.f32.mrf.mxu0
      %v1392 = vadd.f32 %v1320, %v1391
      %v1393 = vpop.f32.mrf.mxu0
      %1394 = vdwg.mxu0
      %v1396 = vcombine.high %v1311, %v1311
      %v1398 = vunpack.c.l.s4 1966171168
      %v1399 = vunpack.c.0.s8 %v1398
      %v1400 = vlaneseq
      %v1401 = vshrl.u32 %v1400, 7
      %v1402 = vsub.s32 %v1399, %v1401
      %v1403 = vrot.slane %v1311, %v1402
      %v1405 = vunpack.c.l.s4 1966171168
      %v1406 = vunpack.c.0.s8 %v1405
      %v1407 = vlaneseq
      %v1408 = vshrl.u32 %v1407, 7
      %v1409 = vsub.s32 %v1406, %v1408
      %v1410 = vrot.slane %v1396, %v1409
      %v1411 = vcombine.high %v1403, %v1403
      %v1412 = vcombine.high %v1410, %v1410
      %v1414 = vunpack.c.l.s4 1966171168
      %v1415 = vunpack.c.0.s8 %v1414
      %v1416 = vlaneseq
      %v1417 = vshrl.u32 %v1416, 7
      %v1418 = vsub.s32 %v1415, %v1417
      %v1419 = vrot.slane %v1403, %v1418
      %v1421 = vunpack.c.l.s4 1966171168
      %v1422 = vunpack.c.0.s8 %v1421
      %v1423 = vlaneseq
      %v1424 = vshrl.u32 %v1423, 7
      %v1425 = vsub.s32 %v1422, %v1424
      %v1426 = vrot.slane %v1410, %v1425
      %v1428 = vunpack.c.l.s4 1966171168
      %v1429 = vunpack.c.0.s8 %v1428
      %v1430 = vlaneseq
      %v1431 = vshrl.u32 %v1430, 7
      %v1432 = vsub.s32 %v1429, %v1431
      %v1433 = vrot.slane %v1411, %v1432
      %v1435 = vunpack.c.l.s4 1966171168
      %v1436 = vunpack.c.0.s8 %v1435
      %v1437 = vlaneseq
      %v1438 = vshrl.u32 %v1437, 7
      %v1439 = vsub.s32 %v1436, %v1438
      %v1440 = vrot.slane %v1412, %v1439
      %v1441 = vcombine.high %v1419, %v1419
      %v1442 = vcombine.high %v1426, %v1426
      %v1443 = vcombine.high %v1433, %v1433
      %v1444 = vcombine.high %v1440, %v1440
      %v1445 = vlaneseq
      %v1446 = vshrl.u32 %v1445, 7
      %v1447 = vsub.s32 0, %v1446
      %v1448 = vrot.slane %v1419, %v1447
      %v1449 = vlaneseq
      %v1450 = vshrl.u32 %v1449, 7
      %v1451 = vsub.s32 0, %v1450
      %v1452 = vrot.slane %v1433, %v1451
      %v1453 = vlaneseq
      %v1454 = vshrl.u32 %v1453, 7
      %v1455 = vsub.s32 0, %v1454
      %v1456 = vrot.slane %v1441, %v1455
      %v1457 = vlaneseq
      %v1458 = vshrl.u32 %v1457, 7
      %v1459 = vsub.s32 0, %v1458
      %v1460 = vrot.slane %v1443, %v1459
      %v1461 = vlaneseq
      %v1462 = vshrl.u32 %v1461, 7
      %v1463 = vsub.s32 0, %v1462
      %v1464 = vrot.slane %v1426, %v1463
      %v1465 = vlaneseq
      %v1466 = vshrl.u32 %v1465, 7
      %v1467 = vsub.s32 0, %v1466
      %v1468 = vrot.slane %v1440, %v1467
      %v1469 = vlaneseq
      %v1470 = vshrl.u32 %v1469, 7
      %v1471 = vsub.s32 0, %v1470
      %v1472 = vrot.slane %v1442, %v1471
      %v1473 = vlaneseq
      %v1474 = vshrl.u32 %v1473, 7
      %v1475 = vsub.s32 0, %v1474
      %v1476 = vrot.slane %v1444, %v1475
      %v1485 = vmul.f32 %v1448, %v1392
      %v1486 = vmul.f32 %v1452, %v1392
      %v1487 = vmul.f32 %v1456, %v1392
      %v1488 = vmul.f32 %v1460, %v1392
      %v1489 = vmul.f32 %v1464, %v1392
      %v1490 = vmul.f32 %v1468, %v1392
      %v1491 = vmul.f32 %v1472, %v1392
      %v1492 = vmul.f32 %v1476, %v1392
      %v1493 = vsel %vm706, %v1485, -inf
      %v1494 = vrot.slane %v1493, 4
      %v1495 = vmax.f32 %v1493, %v1494
      %v1496 = vrot.slane %v1495, 2
      %v1497 = vmax.f32 %v1495, %v1496
      %v1498 = vrot.slane %v1497, 1
      %v1499 = vmax.f32 %v1497, %v1498
      %v1500 = vsel %vm706, %v1486, -inf
      %v1501 = vrot.slane %v1500, 4
      %v1502 = vmax.f32 %v1500, %v1501
      %v1503 = vrot.slane %v1502, 2
      %v1504 = vmax.f32 %v1502, %v1503
      %v1505 = vrot.slane %v1504, 1
      %v1506 = vmax.f32 %v1504, %v1505
      %v1507 = vsel %vm706, %v1487, -inf
      %v1508 = vrot.slane %v1507, 4
      %v1509 = vmax.f32 %v1507, %v1508
      %v1510 = vrot.slane %v1509, 2
      %v1511 = vmax.f32 %v1509, %v1510
      %v1512 = vrot.slane %v1511, 1
      %v1513 = vmax.f32 %v1511, %v1512
      %v1514 = vsel %vm706, %v1488, -inf
      %v1515 = vrot.slane %v1514, 4
      %v1516 = vmax.f32 %v1514, %v1515
      %v1517 = vrot.slane %v1516, 2
      %v1518 = vmax.f32 %v1516, %v1517
      %v1519 = vrot.slane %v1518, 1
      %v1520 = vmax.f32 %v1518, %v1519
      %v1521 = vsel %vm706, %v1489, -inf
      %v1522 = vrot.slane %v1521, 4
      %v1523 = vmax.f32 %v1521, %v1522
      %v1524 = vrot.slane %v1523, 2
      %v1525 = vmax.f32 %v1523, %v1524
      %v1526 = vrot.slane %v1525, 1
      %v1527 = vmax.f32 %v1525, %v1526
      %v1528 = vsel %vm706, %v1490, -inf
      %v1529 = vrot.slane %v1528, 4
      %v1530 = vmax.f32 %v1528, %v1529
      %v1531 = vrot.slane %v1530, 2
      %v1532 = vmax.f32 %v1530, %v1531
      %v1533 = vrot.slane %v1532, 1
      %v1534 = vmax.f32 %v1532, %v1533
      %v1535 = vsel %vm706, %v1491, -inf
      %v1536 = vrot.slane %v1535, 4
      %v1537 = vmax.f32 %v1535, %v1536
      %v1538 = vrot.slane %v1537, 2
      %v1539 = vmax.f32 %v1537, %v1538
      %v1540 = vrot.slane %v1539, 1
      %v1541 = vmax.f32 %v1539, %v1540
      %v1542 = vsel %vm706, %v1492, -inf
      %v1543 = vrot.slane %v1542, 4
      %v1544 = vmax.f32 %v1542, %v1543
      %v1545 = vrot.slane %v1544, 2
      %v1546 = vmax.f32 %v1544, %v1545
      %v1547 = vrot.slane %v1546, 1
      %v1548 = vmax.f32 %v1546, %v1547
      %v1549 = vsub.f32 %v1485, %v1499
      %v1550 = vsub.f32 %v1486, %v1506
      %v1551 = vsub.f32 %v1487, %v1513
      %v1552 = vsub.f32 %v1488, %v1520
      %v1553 = vsub.f32 %v1489, %v1527
      %v1554 = vsub.f32 %v1490, %v1534
      %v1555 = vsub.f32 %v1491, %v1541
      %v1556 = vsub.f32 %v1492, %v1548
      %v1557 = vmul.f32 %v1549, 1.442695
      %v1558 = vpow.pop %v1557
      %v1559 = vmul.f32 %v1550, 1.442695
      %v1560 = vpow.pop %v1559
      %v1561 = vmul.f32 %v1551, 1.442695
      %v1562 = vpow.pop %v1561
      %v1563 = vmul.f32 %v1552, 1.442695
      %v1564 = vpow.pop %v1563
      %v1565 = vmul.f32 %v1553, 1.442695
      %v1566 = vpow.pop %v1565
      %v1567 = vmul.f32 %v1554, 1.442695
      %v1568 = vpow.pop %v1567
      %v1569 = vmul.f32 %v1555, 1.442695
      %v1570 = vpow.pop %v1569
      %v1571 = vmul.f32 %v1556, 1.442695
      %v1572 = vpow.pop %v1571
      %v1573 = vsel %vm706, %v1558, 0.0
      %v1574 = vrot.slane %v1573, 4
      %v1575 = vadd.f32 %v1573, %v1574
      %v1576 = vrot.slane %v1575, 2
      %v1577 = vadd.f32 %v1575, %v1576
      %v1578 = vrot.slane %v1577, 1
      %v1579 = vadd.f32 %v1577, %v1578
      %v1580 = vsel %vm706, %v1560, 0.0
      %v1581 = vrot.slane %v1580, 4
      %v1582 = vadd.f32 %v1580, %v1581
      %v1583 = vrot.slane %v1582, 2
      %v1584 = vadd.f32 %v1582, %v1583
      %v1585 = vrot.slane %v1584, 1
      %v1586 = vadd.f32 %v1584, %v1585
      %v1587 = vsel %vm706, %v1562, 0.0
      %v1588 = vrot.slane %v1587, 4
      %v1589 = vadd.f32 %v1587, %v1588
      %v1590 = vrot.slane %v1589, 2
      %v1591 = vadd.f32 %v1589, %v1590
      %v1592 = vrot.slane %v1591, 1
      %v1593 = vadd.f32 %v1591, %v1592
      %v1594 = vsel %vm706, %v1564, 0.0
      %v1595 = vrot.slane %v1594, 4
      %v1596 = vadd.f32 %v1594, %v1595
      %v1597 = vrot.slane %v1596, 2
      %v1598 = vadd.f32 %v1596, %v1597
      %v1599 = vrot.slane %v1598, 1
      %v1600 = vadd.f32 %v1598, %v1599
      %v1601 = vsel %vm706, %v1566, 0.0
      %v1602 = vrot.slane %v1601, 4
      %v1603 = vadd.f32 %v1601, %v1602
      %v1604 = vrot.slane %v1603, 2
      %v1605 = vadd.f32 %v1603, %v1604
      %v1606 = vrot.slane %v1605, 1
      %v1607 = vadd.f32 %v1605, %v1606
      %v1608 = vsel %vm706, %v1568, 0.0
      %v1609 = vrot.slane %v1608, 4
      %v1610 = vadd.f32 %v1608, %v1609
      %v1611 = vrot.slane %v1610, 2
      %v1612 = vadd.f32 %v1610, %v1611
      %v1613 = vrot.slane %v1612, 1
      %v1614 = vadd.f32 %v1612, %v1613
      %v1615 = vsel %vm706, %v1570, 0.0
      %v1616 = vrot.slane %v1615, 4
      %v1617 = vadd.f32 %v1615, %v1616
      %v1618 = vrot.slane %v1617, 2
      %v1619 = vadd.f32 %v1617, %v1618
      %v1620 = vrot.slane %v1619, 1
      %v1621 = vadd.f32 %v1619, %v1620
      %v1622 = vsel %vm706, %v1572, 0.0
      %v1623 = vrot.slane %v1622, 4
      %v1624 = vadd.f32 %v1622, %v1623
      %v1625 = vrot.slane %v1624, 2
      %v1626 = vadd.f32 %v1624, %v1625
      %v1627 = vrot.slane %v1626, 1
      %v1628 = vadd.f32 %v1626, %v1627
      %v1629 = vrcp.pop %v1579
      %v1630 = vrcp.pop %v1586
      %v1631 = vrcp.pop %v1593
      %v1632 = vrcp.pop %v1600
      %v1633 = vrcp.pop %v1607
      %v1634 = vrcp.pop %v1614
      %v1635 = vrcp.pop %v1621
      %v1636 = vrcp.pop %v1628
      %v1637 = vmul.f32 %v1558, %v1629
      %v1638 = vmul.f32 %v1560, %v1630
      %v1639 = vmul.f32 %v1562, %v1631
      %v1640 = vmul.f32 %v1564, %v1632
      %v1641 = vmul.f32 %v1566, %v1633
      %v1642 = vmul.f32 %v1568, %v1634
      %v1643 = vmul.f32 %v1570, %v1635
      %v1644 = vmul.f32 %v1572, %v1636
      %1646 = vrot.lane.b32.xlu0 %v1392, 120
      %v1647 = vpop.permute.xlu0 %1646
      %v1649 = vmul.f32 %v1637, %v1647
      %v1650 = vmul.f32 %v1638, %v1647
      %v1651 = vmul.f32 %v1639, %v1647
      %v1652 = vmul.f32 %v1640, %v1647
      %v1653 = vmul.f32 %v1641, %v1647
      %v1654 = vmul.f32 %v1642, %v1647
      %v1655 = vmul.f32 %v1643, %v1647
      %v1656 = vmul.f32 %v1644, %v1647
      %v1657 = vsel %vm706, %v1649, 0.0
      %v1658 = vrot.slane %v1657, 4
      %v1659 = vadd.f32 %v1657, %v1658
      %v1660 = vrot.slane %v1659, 2
      %v1661 = vadd.f32 %v1659, %v1660
      %v1662 = vrot.slane %v1661, 1
      %v1663 = vadd.f32 %v1661, %v1662
      %v1664 = vsel %vm706, %v1650, 0.0
      %v1665 = vrot.slane %v1664, 4
      %v1666 = vadd.f32 %v1664, %v1665
      %v1667 = vrot.slane %v1666, 2
      %v1668 = vadd.f32 %v1666, %v1667
      %v1669 = vrot.slane %v1668, 1
      %v1670 = vadd.f32 %v1668, %v1669
      %v1671 = vsel %vm706, %v1651, 0.0
      %v1672 = vrot.slane %v1671, 4
      %v1673 = vadd.f32 %v1671, %v1672
      %v1674 = vrot.slane %v1673, 2
      %v1675 = vadd.f32 %v1673, %v1674
      %v1676 = vrot.slane %v1675, 1
      %v1677 = vadd.f32 %v1675, %v1676
      %v1678 = vsel %vm706, %v1652, 0.0
      %v1679 = vrot.slane %v1678, 4
      %v1680 = vadd.f32 %v1678, %v1679
      %v1681 = vrot.slane %v1680, 2
      %v1682 = vadd.f32 %v1680, %v1681
      %v1683 = vrot.slane %v1682, 1
      %v1684 = vadd.f32 %v1682, %v1683
      %v1685 = vsel %vm706, %v1653, 0.0
      %v1686 = vrot.slane %v1685, 4
      %v1687 = vadd.f32 %v1685, %v1686
      %v1688 = vrot.slane %v1687, 2
      %v1689 = vadd.f32 %v1687, %v1688
      %v1690 = vrot.slane %v1689, 1
      %v1691 = vadd.f32 %v1689, %v1690
      %v1692 = vsel %vm706, %v1654, 0.0
      %v1693 = vrot.slane %v1692, 4
      %v1694 = vadd.f32 %v1692, %v1693
      %v1695 = vrot.slane %v1694, 2
      %v1696 = vadd.f32 %v1694, %v1695
      %v1697 = vrot.slane %v1696, 1
      %v1698 = vadd.f32 %v1696, %v1697
      %v1699 = vsel %vm706, %v1655, 0.0
      %v1700 = vrot.slane %v1699, 4
      %v1701 = vadd.f32 %v1699, %v1700
      %v1702 = vrot.slane %v1701, 2
      %v1703 = vadd.f32 %v1701, %v1702
      %v1704 = vrot.slane %v1703, 1
      %v1705 = vadd.f32 %v1703, %v1704
      %v1706 = vsel %vm706, %v1656, 0.0
      %v1707 = vrot.slane %v1706, 4
      %v1708 = vadd.f32 %v1706, %v1707
      %v1709 = vrot.slane %v1708, 2
      %v1710 = vadd.f32 %v1708, %v1709
      %v1711 = vrot.slane %v1710, 1
      %v1712 = vadd.f32 %v1710, %v1711
      %v1713 = vld [vmem:[%s12] sm:$0xff]
      %v1714 = vld [vmem:[%s13] sm:$0x1]
      %v1716 = vlaneseq
      %v1717 = vshrl.u32 %v1716, 7
      %v1718 = vsub.s32 0, %v1717
      %v1719 = vrot.slane %v1714, %v1718
      %v1729 = vsel %vm1116, %v1670, %v1663
      %v1730 = vsel %vm1118, %v1677, %v1729
      %v1731 = vsel %vm1120, %v1684, %v1730
      %v1732 = vsel %vm1122, %v1691, %v1731
      %v1733 = vsel %vm1124, %v1698, %v1732
      %v1734 = vsel %vm1126, %v1705, %v1733
      %v1735 = vsel %vm1128, %v1712, %v1734
      %v1736 = vsel %vm706, %v1735, 0
      %1738 = vmatprep.subr.mxu0 0.0
      %1739 = vmatpush1.msra.mxu0 0.0
      %1740 = vmatprep.subr.mxu0 0.0
      %1741 = vmatpush1.msra.mxu0 0.0
      %1742 = vmatprep.subr.mxu0 0.0
      %1743 = vmatpush1.msra.mxu0 0.0
      %1744 = vmatprep.subr.mxu0 0.0
      %1745 = vmatpush1.msra.mxu0 0.0
      %1746 = vmatprep.subr.mxu0 0.0
      %1747 = vmatpush1.msra.mxu0 0.0
      %1748 = vmatprep.subr.mxu0 0.0
      %1749 = vmatpush1.msra.mxu0 0.0
      %1750 = vmatprep.subr.mxu0 0.0
      %1751 = vmatpush1.msra.mxu0 0.0
      %1752 = vmatprep.subr.mxu0 0.0
      %1753 = vmatpush1.msra.mxu0 0.0
      %1754 = vmatprep.subr.mxu0 0.0
      %1755 = vmatpush1.msra.mxu0 0.0
      %1756 = vmatprep.subr.mxu0 0.0
      %1757 = vmatpush1.msra.mxu0 0.0
      %1758 = vmatprep.subr.mxu0 0.0
      %1759 = vmatpush1.msra.mxu0 0.0
      %1760 = vmatprep.subr.mxu0 0.0
      %1761 = vmatpush1.msra.mxu0 0.0
      %1762 = vmatprep.subr.mxu0 0.0
      %1763 = vmatpush1.msra.mxu0 0.0
      %1764 = vmatprep.subr.mxu0 0.0
      %1765 = vmatpush1.msra.mxu0 0.0
      %1766 = vmatprep.subr.mxu0 0.0
      %1767 = vmatpush1.msra.mxu0 0.0
      %1768 = vmatprep.subr.mxu0 0.0
      %1769 = vmatpush1.msra.mxu0 %v1713
      %1770 = vmatprep.subr.mxu0 0.0
      %1771 = vmatpush2.msra.mxu0 0.0
      %1772 = vmatprep.subr.mxu0 0.0
      %1773 = vmatpush2.msra.mxu0 0.0
      %1774 = vmatprep.subr.mxu0 0.0
      %1775 = vmatpush2.msra.mxu0 0.0
      %1776 = vmatprep.subr.mxu0 0.0
      %1777 = vmatpush2.msra.mxu0 0.0
      %1778 = vmatprep.subr.mxu0 0.0
      %1779 = vmatpush2.msra.mxu0 0.0
      %1780 = vmatprep.subr.mxu0 0.0
      %1781 = vmatpush2.msra.mxu0 0.0
      %1782 = vmatprep.subr.mxu0 0.0
      %1783 = vmatpush2.msra.mxu0 0.0
      %1784 = vmatprep.subr.mxu0 0.0
      %1785 = vmatpush2.msra.mxu0 0.0
      %1786 = vmatprep.subr.mxu0 0.0
      %1787 = vmatpush2.msra.mxu0 0.0
      %1788 = vmatprep.subr.mxu0 0.0
      %1789 = vmatpush2.msra.mxu0 0.0
      %1790 = vmatprep.subr.mxu0 0.0
      %1791 = vmatpush2.msra.mxu0 0.0
      %1792 = vmatprep.subr.mxu0 0.0
      %1793 = vmatpush2.msra.mxu0 0.0
      %1794 = vmatprep.subr.mxu0 0.0
      %1795 = vmatpush2.msra.mxu0 0.0
      %1796 = vmatprep.subr.mxu0 0.0
      %1797 = vmatpush2.msra.mxu0 0.0
      %1798 = vmatprep.subr.mxu0 0.0
      %1799 = vmatpush2.msra.mxu0 0.0
      %1800 = vmatprep.subr.mxu0 0.0
      %1801 = vmatpush2.msra.mxu0 0.0
      %1802 = vmatprep.mubr.f32.mxu0 0.0
      %1803 = vmatmul.mubr.f32.gmra.mxu0 %v1736
      %v1804 = vpop.f32.mrf.mxu0
      %v1805 = vadd.f32 %v1719, %v1804
      %v1806 = vpop.f32.mrf.mxu0
      %1807 = vdwg.mxu0
      %v1808 = vadd.f32 %v1232, %v1805
      %v1809 = vld [vmem:[%s14] sm:$0x1]
      %v1810 = vld [vmem:[%s15] sm:$0x1]
      %v1811 = vsel %vm706, %v1808, 0.0
      %1812 = vadd.xlane.f32.xlu0 %v1811
      %v1813 = vpop.xlane.xlu0 %1812
      %v1814 = vmul.f32 %v1813, %v1208
      %v1815 = vsub.f32 %v1808, %v1814
      %v1816 = vmul.f32 %v1815, %v1815
      %v1817 = vsel %vm706, %v1816, 0.0
      %1818 = vadd.xlane.f32.xlu0 %v1817
      %v1819 = vpop.xlane.xlu0 %1818
      %v1820 = vmul.f32 %v1819, %v1208
      %v1821 = vadd.f32 %v1820, 1e-05
      %v1822 = vrsqrt.pop %v1821
      %v1823 = vmul.f32 %v1815, %v1822
      %v1825 = vlaneseq
      %v1826 = vshrl.u32 %v1825, 7
      %v1827 = vsub.s32 0, %v1826
      %v1828 = vrot.slane %v1809, %v1827
      %v1830 = vmul.f32 %v1823, %v1828
      %v1832 = vlaneseq
      %v1833 = vshrl.u32 %v1832, 7
      %v1834 = vsub.s32 0, %v1833
      %v1835 = vrot.slane %v1810, %v1834
      %v1837 = vadd.f32 %v1830, %v1835
      %v1838 = vld [vmem:[%s16] sm:$0xff]
      %v1839 = vld [vmem:[%s17] sm:$0x1]
      %v1841 = vlaneseq
      %v1842 = vshrl.u32 %v1841, 7
      %v1843 = vsub.s32 0, %v1842
      %v1844 = vrot.slane %v1839, %v1843
      %v1847 = vsel %vm706, %v1837, 0
      %1849 = vmatprep.subr.mxu0 0.0
      %1850 = vmatpush1.msra.mxu0 0.0
      %1851 = vmatprep.subr.mxu0 0.0
      %1852 = vmatpush1.msra.mxu0 0.0
      %1853 = vmatprep.subr.mxu0 0.0
      %1854 = vmatpush1.msra.mxu0 0.0
      %1855 = vmatprep.subr.mxu0 0.0
      %1856 = vmatpush1.msra.mxu0 0.0
      %1857 = vmatprep.subr.mxu0 0.0
      %1858 = vmatpush1.msra.mxu0 0.0
      %1859 = vmatprep.subr.mxu0 0.0
      %1860 = vmatpush1.msra.mxu0 0.0
      %1861 = vmatprep.subr.mxu0 0.0
      %1862 = vmatpush1.msra.mxu0 0.0
      %1863 = vmatprep.subr.mxu0 0.0
      %1864 = vmatpush1.msra.mxu0 0.0
      %1865 = vmatprep.subr.mxu0 0.0
      %1866 = vmatpush1.msra.mxu0 0.0
      %1867 = vmatprep.subr.mxu0 0.0
      %1868 = vmatpush1.msra.mxu0 0.0
      %1869 = vmatprep.subr.mxu0 0.0
      %1870 = vmatpush1.msra.mxu0 0.0
      %1871 = vmatprep.subr.mxu0 0.0
      %1872 = vmatpush1.msra.mxu0 0.0
      %1873 = vmatprep.subr.mxu0 0.0
      %1874 = vmatpush1.msra.mxu0 0.0
      %1875 = vmatprep.subr.mxu0 0.0
      %1876 = vmatpush1.msra.mxu0 0.0
      %1877 = vmatprep.subr.mxu0 0.0
      %1878 = vmatpush1.msra.mxu0 0.0
      %1879 = vmatprep.subr.mxu0 0.0
      %1880 = vmatpush1.msra.mxu0 %v1838
      %1881 = vmatprep.subr.mxu0 0.0
      %1882 = vmatpush2.msra.mxu0 0.0
      %1883 = vmatprep.subr.mxu0 0.0
      %1884 = vmatpush2.msra.mxu0 0.0
      %1885 = vmatprep.subr.mxu0 0.0
      %1886 = vmatpush2.msra.mxu0 0.0
      %1887 = vmatprep.subr.mxu0 0.0
      %1888 = vmatpush2.msra.mxu0 0.0
      %1889 = vmatprep.subr.mxu0 0.0
      %1890 = vmatpush2.msra.mxu0 0.0
      %1891 = vmatprep.subr.mxu0 0.0
      %1892 = vmatpush2.msra.mxu0 0.0
      %1893 = vmatprep.subr.mxu0 0.0
      %1894 = vmatpush2.msra.mxu0 0.0
      %1895 = vmatprep.subr.mxu0 0.0
      %1896 = vmatpush2.msra.mxu0 0.0
      %1897 = vmatprep.subr.mxu0 0.0
      %1898 = vmatpush2.msra.mxu0 0.0
      %1899 = vmatprep.subr.mxu0 0.0
      %1900 = vmatpush2.msra.mxu0 0.0
      %1901 = vmatprep.subr.mxu0 0.0
      %1902 = vmatpush2.msra.mxu0 0.0
      %1903 = vmatprep.subr.mxu0 0.0
      %1904 = vmatpush2.msra.mxu0 0.0
      %1905 = vmatprep.subr.mxu0 0.0
      %1906 = vmatpush2.msra.mxu0 0.0
      %1907 = vmatprep.subr.mxu0 0.0
      %1908 = vmatpush2.msra.mxu0 0.0
      %1909 = vmatprep.subr.mxu0 0.0
      %1910 = vmatpush2.msra.mxu0 0.0
      %1911 = vmatprep.subr.mxu0 0.0
      %1912 = vmatpush2.msra.mxu0 0.0
      %1913 = vmatprep.mubr.f32.mxu0 0.0
      %1914 = vmatmul.mubr.f32.gmra.mxu0 %v1847
      %v1915 = vpop.f32.mrf.mxu0
      %v1916 = vadd.f32 %v1844, %v1915
      %v1917 = vpop.f32.mrf.mxu0
      %1918 = vdwg.mxu0
      %v1919 = vmax.f32 %v1916, 0.0
      %v1920 = vld [vmem:[%s18] sm:$0xff]
      %v1921 = vld [vmem:[%s18 + $0x8] sm:$0xff]
      %v1922 = vld [vmem:[%s18 + $0x10] sm:$0xff]
      %v1923 = vld [vmem:[%s18 + $0x18] sm:$0xff]
      %v1924 = vld [vmem:[%s19] sm:$0x1]
      %v1926 = vlaneseq
      %v1927 = vshrl.u32 %v1926, 7
      %v1928 = vsub.s32 0, %v1927
      %v1929 = vrot.slane %v1924, %v1928
      %vm1931 = vcmask 261120
      %v1933 = vsel %vm1931, %v1919, 0
      %1935 = vmatprep.subr.mxu0 0.0
      %1936 = vmatpush1.msra.mxu0 0.0
      %1937 = vmatprep.subr.mxu0 0.0
      %1938 = vmatpush1.msra.mxu0 0.0
      %1939 = vmatprep.subr.mxu0 0.0
      %1940 = vmatpush1.msra.mxu0 0.0
      %1941 = vmatprep.subr.mxu0 0.0
      %1942 = vmatpush1.msra.mxu0 0.0
      %1943 = vmatprep.subr.mxu0 0.0
      %1944 = vmatpush1.msra.mxu0 0.0
      %1945 = vmatprep.subr.mxu0 0.0
      %1946 = vmatpush1.msra.mxu0 0.0
      %1947 = vmatprep.subr.mxu0 0.0
      %1948 = vmatpush1.msra.mxu0 0.0
      %1949 = vmatprep.subr.mxu0 0.0
      %1950 = vmatpush1.msra.mxu0 0.0
      %1951 = vmatprep.subr.mxu0 0.0
      %1952 = vmatpush1.msra.mxu0 0.0
      %1953 = vmatprep.subr.mxu0 0.0
      %1954 = vmatpush1.msra.mxu0 0.0
      %1955 = vmatprep.subr.mxu0 0.0
      %1956 = vmatpush1.msra.mxu0 0.0
      %1957 = vmatprep.subr.mxu0 0.0
      %1958 = vmatpush1.msra.mxu0 0.0
      %1959 = vmatprep.subr.mxu0 0.0
      %1960 = vmatpush1.msra.mxu0 %v1923
      %1961 = vmatprep.subr.mxu0 0.0
      %1962 = vmatpush1.msra.mxu0 %v1922
      %1963 = vmatprep.subr.mxu0 0.0
      %1964 = vmatpush1.msra.mxu0 %v1921
      %1965 = vmatprep.subr.mxu0 0.0
      %1966 = vmatpush1.msra.mxu0 %v1920
      %1967 = vmatprep.subr.mxu0 0.0
      %1968 = vmatpush2.msra.mxu0 0.0
      %1969 = vmatprep.subr.mxu0 0.0
      %1970 = vmatpush2.msra.mxu0 0.0
      %1971 = vmatprep.subr.mxu0 0.0
      %1972 = vmatpush2.msra.mxu0 0.0
      %1973 = vmatprep.subr.mxu0 0.0
      %1974 = vmatpush2.msra.mxu0 0.0
      %1975 = vmatprep.subr.mxu0 0.0
      %1976 = vmatpush2.msra.mxu0 0.0
      %1977 = vmatprep.subr.mxu0 0.0
      %1978 = vmatpush2.msra.mxu0 0.0
      %1979 = vmatprep.subr.mxu0 0.0
      %1980 = vmatpush2.msra.mxu0 0.0
      %1981 = vmatprep.subr.mxu0 0.0
      %1982 = vmatpush2.msra.mxu0 0.0
      %1983 = vmatprep.subr.mxu0 0.0
      %1984 = vmatpush2.msra.mxu0 0.0
      %1985 = vmatprep.subr.mxu0 0.0
      %1986 = vmatpush2.msra.mxu0 0.0
      %1987 = vmatprep.subr.mxu0 0.0
      %1988 = vmatpush2.msra.mxu0 0.0
      %1989 = vmatprep.subr.mxu0 0.0
      %1990 = vmatpush2.msra.mxu0 0.0
      %1991 = vmatprep.subr.mxu0 0.0
      %1992 = vmatpush2.msra.mxu0 0.0
      %1993 = vmatprep.subr.mxu0 0.0
      %1994 = vmatpush2.msra.mxu0 0.0
      %1995 = vmatprep.subr.mxu0 0.0
      %1996 = vmatpush2.msra.mxu0 0.0
      %1997 = vmatprep.subr.mxu0 0.0
      %1998 = vmatpush2.msra.mxu0 0.0
      %1999 = vmatprep.mubr.f32.mxu0 0.0
      %2000 = vmatmul.mubr.f32.gmra.mxu0 %v1933
      %v2001 = vpop.f32.mrf.mxu0
      %v2002 = vadd.f32 %v1929, %v2001
      %v2003 = vpop.f32.mrf.mxu0
      %2004 = vdwg.mxu0
      %v2005 = vadd.f32 %v1837, %v2002
      %v2006 = vld [vmem:[%s20] sm:$0x1]
      %v2007 = vld [vmem:[%s21] sm:$0x1]
      %v2008 = vsel %vm706, %v2005, 0.0
      %2009 = vadd.xlane.f32.xlu0 %v2008
      %v2010 = vpop.xlane.xlu0 %2009
      %v2011 = vmul.f32 %v2010, %v1208
      %v2012 = vsub.f32 %v2005, %v2011
      %v2013 = vmul.f32 %v2012, %v2012
      %v2014 = vsel %vm706, %v2013, 0.0
      %2015 = vadd.xlane.f32.xlu0 %v2014
      %v2016 = vpop.xlane.xlu0 %2015
      %v2017 = vmul.f32 %v2016, %v1208
      %v2018 = vadd.f32 %v2017, 1e-05
      %v2019 = vrsqrt.pop %v2018
      %v2020 = vmul.f32 %v2012, %v2019
      %v2022 = vlaneseq
      %v2023 = vshrl.u32 %v2022, 7
      %v2024 = vsub.s32 0, %v2023
      %v2025 = vrot.slane %v2006, %v2024
      %v2027 = vmul.f32 %v2020, %v2025
      %v2029 = vlaneseq
      %v2030 = vshrl.u32 %v2029, 7
      %v2031 = vsub.s32 0, %v2030
      %v2032 = vrot.slane %v2007, %v2031
      %v2034 = vadd.f32 %v2027, %v2032
      %2035 = vst.msk [vmem:[%s695] sm:$0xff] %vm706, %v2034
      %p2036 = scmp.lt.s32.totalorder %s33, 1
      %s2037 = scalar_select %p2036, %s33, 1
      %s2038 = smul.addr %s2037, 8
      %s2039 = scalar_lea.vmem %s22, %s2038
      // Predicated region
      $region109: #{optimated_transformer_forward.11} parent=107 // pred_check
        %p2040 = pneg %p523
      $region110: #{optimated_transformer_forward.11} parent=107 // pred_check_branch
        %2042 = sbr.rel (%p2040) target = $region112
      $region111: #{optimated_transformer_forward.11} parent=107 // pred_region
        _
      $region112: #{optimated_transformer_forward.11} parent=107 // pred_fallthru
        _
    $region108: #{optimated_transformer_forward.11} parent=5 // pred_fallthru
      _
    %p2043 = scmp.le.s32.totalorder 2, %s28
    // Predicated region
    $region113: #{optimated_transformer_forward.11} parent=5 // pred_check
      %p2044 = pneg %p2043
    $region114: #{optimated_transformer_forward.11} parent=5 // pred_check_branch
      %2046 = sbr.rel (%p2044) target = $region116
    $region115: #{optimated_transformer_forward.11} parent=5 // pred_region
      %s2047 = ssub.s32 %s28, 2
      // Predicated region
      $region117: #{optimated_transformer_forward.11} parent=115 // pred_check
        %p2048 = pneg %p529
      $region118: #{optimated_transformer_forward.11} parent=115 // pred_check_branch
        %2050 = sbr.rel (%p2048) target = $region120
      $region119: #{optimated_transformer_forward.11} parent=115 // pred_region
        %p2051 = scmp.lt.s32.totalorder %s34, 1
        %s2052 = scalar_select %p2051, %s34, 1
        %s2053 = smul.addr %s2052, 8
        %s2054 = scalar_lea.vmem %s22, %s2053
      $region120: #{optimated_transformer_forward.11} parent=115 // pred_fallthru
        _
    $region116: #{optimated_transformer_forward.11} parent=5 // pred_fallthru
      _
  $region6: #{optimated_transformer_forward.11} parent=0 // loop_footer
    %s32 = sadd.s32 1, %s28
  $region7: #{optimated_transformer_forward.11} parent=0 // loop_footer_branch
    %27 = sbr.rel target = $region3
  $region8: #{optimated_transformer_forward.11} parent=0 // loop_exit
    _

// kernel: optimated_transformer_forward.13
$region0: #{optimated_transformer_forward.13}
  #allocation0 [shape = 'u32[]', space=smem, size = 0x4, offset = 0x4, fixed_abs, tag = 'smem constant byte address 0x4 - core index']
  #allocation1 [shape = 'u32[144,128]{1,0:T(1,128)}', space=vmem, size = 0x12000, scoped, tag = 'internal scratch']
  #allocation2 [shape = 'f32[1,1]{1,0:T(1,128)S(1)}', space=vmem, size = 0x200, scoped, tag = 'scoped memory for optimated_transformer_forward.13']
  %s0 = inlined_call_operand.vmem [shape: f32[16,8], index: 0, kind: input, shape index: {}]
  %s1 = inlined_call_operand.vmem [shape: f32[8,64], index: 1, kind: input, shape index: {}]
  %s2 = inlined_call_operand.vmem [shape: f32[1,64], index: 2, kind: input, shape index: {}]
  %s3 = inlined_call_operand.<no memory space> [shape: f32[1,1], index: 3, kind: input, shape index: {}]
  %s4 = inlined_call_operand.hbm [shape: f32[16,64], index: 4, kind: output, shape index: {}]
  %s5 = sld [smem:[#allocation0]]
  $region26: #{optimated_transformer_forward.13} parent=0
    _
  %s7 = ssub.s32 1, %s5
  %s8 = scalar_select 0, %s7, %s5
  %v9 = vstv %s3
  %10 = vst [vmem:[#allocation2] sm:$0x1] %v9
  $region1: #{optimated_transformer_forward.13} parent=0
    #allocation3 [shape = 'u8[8192]{0}', space=vmem, size = 0x2000, scoped, tag = 'output window, operand 0, single buffered']
    #allocation4 [shape = 's32[1]{0}', space=sflag, size = 0x4, scoped, tag = 'scoped memory for optimated_transformer_forward.13']
    %11 = vsyncpa [#allocation4], 0
    // Predicated region
    $region2: #{optimated_transformer_forward.13} parent=1 // pred_check
      _
    $region3: #{optimated_transformer_forward.13} parent=1 // pred_check_branch
      %13 = sbr.rel (0) target = $region5
    $region4: #{optimated_transformer_forward.13} parent=1 // pred_region
      _
    $region5: #{optimated_transformer_forward.13} parent=1 // pred_fallthru
      _
    // Predicated region
    $region6: #{optimated_transformer_forward.13} parent=1 // pred_check
      _
    $region7: #{optimated_transformer_forward.13} parent=1 // pred_check_branch
      %15 = sbr.rel (0) target = $region9
    $region8: #{optimated_transformer_forward.13} parent=1 // pred_region
      _
    $region9: #{optimated_transformer_forward.13} parent=1 // pred_fallthru
      _
    // Predicated region
    $region10: #{optimated_transformer_forward.13} parent=1 // pred_check
      _
    $region11: #{optimated_transformer_forward.13} parent=1 // pred_check_branch
      %17 = sbr.rel (0) target = $region13
    $region12: #{optimated_transformer_forward.13} parent=1 // pred_region
      _
    $region13: #{optimated_transformer_forward.13} parent=1 // pred_fallthru
      _
    // Predicated region
    $region14: #{optimated_transformer_forward.13} parent=1 // pred_check
      _
    $region15: #{optimated_transformer_forward.13} parent=1 // pred_check_branch
      %19 = sbr.rel (0) target = $region17
    $region16: #{optimated_transformer_forward.13} parent=1 // pred_region
      _
    $region17: #{optimated_transformer_forward.13} parent=1 // pred_fallthru
      _
    %v20 = vld [vmem:[%s0] sm:$0xff]
    %v21 = vld [vmem:[%s0 + $0x8] sm:$0xff]
    %v22 = vld [vmem:[%s1] sm:$0xff]
    %v23 = vld [vmem:[%s2] sm:$0x1]
    %v25 = vlaneseq
    %v26 = vshrl.u32 %v25, 7
    %v27 = vsub.s32 0, %v26
    %v28 = vrot.slane %v23, %v27
    %vm30 = vcmask 64512
    %v32 = vsel %vm30, %v20, 0
    %v35 = vsel %vm30, %v21, 0
    %37 = vmatprep.subr.mxu0 0.0
    %38 = vmatpush1.msra.mxu0 0.0
    %39 = vmatprep.subr.mxu0 0.0
    %40 = vmatpush1.msra.mxu0 0.0
    %41 = vmatprep.subr.mxu0 0.0
    %42 = vmatpush1.msra.mxu0 0.0
    %43 = vmatprep.subr.mxu0 0.0
    %44 = vmatpush1.msra.mxu0 0.0
    %45 = vmatprep.subr.mxu0 0.0
    %46 = vmatpush1.msra.mxu0 0.0
    %47 = vmatprep.subr.mxu0 0.0
    %48 = vmatpush1.msra.mxu0 0.0
    %49 = vmatprep.subr.mxu0 0.0
    %50 = vmatpush1.msra.mxu0 0.0
    %51 = vmatprep.subr.mxu0 0.0
    %52 = vmatpush1.msra.mxu0 0.0
    %53 = vmatprep.subr.mxu0 0.0
    %54 = vmatpush1.msra.mxu0 0.0
    %55 = vmatprep.subr.mxu0 0.0
    %56 = vmatpush1.msra.mxu0 0.0
    %57 = vmatprep.subr.mxu0 0.0
    %58 = vmatpush1.msra.mxu0 0.0
    %59 = vmatprep.subr.mxu0 0.0
    %60 = vmatpush1.msra.mxu0 0.0
    %61 = vmatprep.subr.mxu0 0.0
    %62 = vmatpush1.msra.mxu0 0.0
    %63 = vmatprep.subr.mxu0 0.0
    %64 = vmatpush1.msra.mxu0 0.0
    %65 = vmatprep.subr.mxu0 0.0
    %66 = vmatpush1.msra.mxu0 0.0
    %67 = vmatprep.subr.mxu0 0.0
    %68 = vmatpush1.msra.mxu0 %v22
    %69 = vmatprep.subr.mxu0 0.0
    %70 = vmatpush2.msra.mxu0 0.0
    %71 = vmatprep.subr.mxu0 0.0
    %72 = vmatpush2.msra.mxu0 0.0
    %73 = vmatprep.subr.mxu0 0.0
    %74 = vmatpush2.msra.mxu0 0.0
    %75 = vmatprep.subr.mxu0 0.0
    %76 = vmatpush2.msra.mxu0 0.0
    %77 = vmatprep.subr.mxu0 0.0
    %78 = vmatpush2.msra.mxu0 0.0
    %79 = vmatprep.subr.mxu0 0.0
    %80 = vmatpush2.msra.mxu0 0.0
    %81 = vmatprep.subr.mxu0 0.0
    %82 = vmatpush2.msra.mxu0 0.0
    %83 = vmatprep.subr.mxu0 0.0
    %84 = vmatpush2.msra.mxu0 0.0
    %85 = vmatprep.subr.mxu0 0.0
    %86 = vmatpush2.msra.mxu0 0.0
    %87 = vmatprep.subr.mxu0 0.0
    %88 = vmatpush2.msra.mxu0 0.0
    %89 = vmatprep.subr.mxu0 0.0
    %90 = vmatpush2.msra.mxu0 0.0
    %91 = vmatprep.subr.mxu0 0.0
    %92 = vmatpush2.msra.mxu0 0.0
    %93 = vmatprep.subr.mxu0 0.0
    %94 = vmatpush2.msra.mxu0 0.0
    %95 = vmatprep.subr.mxu0 0.0
    %96 = vmatpush2.msra.mxu0 0.0
    %97 = vmatprep.subr.mxu0 0.0
    %98 = vmatpush2.msra.mxu0 0.0
    %99 = vmatprep.subr.mxu0 0.0
    %100 = vmatpush2.msra.mxu0 0.0
    %101 = vmatprep.mubr.f32.mxu0 0.0
    %102 = vmatmul.mubr.f32.gmra.mxu0 %v32
    %v103 = vpop.f32.mrf.mxu0
    %v104 = vadd.f32 %v28, %v103
    %v105 = vpop.f32.mrf.mxu0
    %106 = vmatprep.mubr.f32.mxu0 0.0
    %107 = vmatmul.mubr.f32.gmra.mxu0 %v35
    %v108 = vpop.f32.mrf.mxu0
    %v109 = vadd.f32 %v28, %v108
    %v110 = vpop.f32.mrf.mxu0
    %111 = vdwg.mxu0
    %v112 = vld [vmem:[#allocation2] sm:$0x1]
    %v114 = vlaneseq
    %v115 = vshrl.u32 %v114, 7
    %v116 = vsub.s32 0, %v115
    %v117 = vrot.slane %v112, %v116
    %118 = vset.pattern.permute.xlu0 0
    %119 = vperm.xlu0 %118, %v117
    %v120 = vpop.permute.xlu0 %119
    %v122 = vmul.f32 %v104, %v120
    %v123 = vmul.f32 %v109, %v120
    %vm124 = vcmask 523264
    %125 = vst.msk [vmem:[#allocation3] sm:$0xff] %vm124, %v122
    %126 = vst.msk [vmem:[#allocation3 + $0x8] sm:$0xff] %vm124, %v123
    // Predicated region
    $region18: #{optimated_transformer_forward.13} parent=1 // pred_check
      _
    $region19: #{optimated_transformer_forward.13} parent=1 // pred_check_branch
      %128 = sbr.rel (0) target = $region21
    $region20: #{optimated_transformer_forward.13} parent=1 // pred_region
      %s130 = ssub.s32 256, 256
      %131 = vsyncadd [#allocation4], %s130
      %s132 = sshll.u32 [#allocation3], 4
      %s133 = int_to_ptr.vmem [resolvable:$true] %s132
      %138 = dma.vmem_to_hbm [thread:$0]  %s133, 256, %s4, [#allocation4], 128, 128, 8
    $region21: #{optimated_transformer_forward.13} parent=1 // pred_fallthru
      _
    // Predicated region
    $region22: #{optimated_transformer_forward.13} parent=1 // pred_check
      _
    $region23: #{optimated_transformer_forward.13} parent=1 // pred_check_branch
      %140 = sbr.rel (0) target = $region25
    $region24: #{optimated_transformer_forward.13} parent=1 // pred_region
      %141 = dma.done [#allocation4], 256
    $region25: #{optimated_transformer_forward.13} parent=1 // pred_fallthru
      _
    %142 = vsyncpa [#allocation4], 1

// kernel: optimated_transformer_forward.12
$region0: #{optimated_transformer_forward.12}
  #allocation0 [shape = 'u32[]', space=smem, size = 0x4, offset = 0x4, fixed_abs, tag = 'smem constant byte address 0x4 - core index']
  #allocation1 [shape = 'u32[144,128]{1,0:T(1,128)}', space=vmem, size = 0x12000, scoped, tag = 'internal scratch']
  %s0 = inlined_call_operand.vmem [shape: f32[2,8,8], index: 0, kind: input, shape index: {}]
  %s1 = inlined_call_operand.vmem [shape: f32[2,8,8], index: 1, kind: input, shape index: {}]
  %s2 = inlined_call_operand.vmem [shape: f32[8,24], index: 2, kind: input, shape index: {}]
  %s3 = inlined_call_operand.vmem [shape: f32[1,24], index: 3, kind: input, shape index: {}]
  %s4 = inlined_call_operand.vmem [shape: f32[8,8], index: 4, kind: input, shape index: {}]
  %s5 = inlined_call_operand.vmem [shape: f32[1,8], index: 5, kind: input, shape index: {}]
  %s6 = inlined_call_operand.vmem [shape: f32[1,8], index: 6, kind: input, shape index: {}]
  %s7 = inlined_call_operand.vmem [shape: f32[1,8], index: 7, kind: input, shape index: {}]
  %s8 = inlined_call_operand.vmem [shape: f32[8,8], index: 8, kind: input, shape index: {}]
  %s9 = inlined_call_operand.vmem [shape: f32[1,8], index: 9, kind: input, shape index: {}]
  %s10 = inlined_call_operand.vmem [shape: f32[8,16], index: 10, kind: input, shape index: {}]
  %s11 = inlined_call_operand.vmem [shape: f32[1,16], index: 11, kind: input, shape index: {}]
  %s12 = inlined_call_operand.vmem [shape: f32[8,8], index: 12, kind: input, shape index: {}]
  %s13 = inlined_call_operand.vmem [shape: f32[1,8], index: 13, kind: input, shape index: {}]
  %s14 = inlined_call_operand.vmem [shape: f32[1,8], index: 14, kind: input, shape index: {}]
  %s15 = inlined_call_operand.vmem [shape: f32[1,8], index: 15, kind: input, shape index: {}]
  %s16 = inlined_call_operand.vmem [shape: f32[8,32], index: 16, kind: input, shape index: {}]
  %s17 = inlined_call_operand.vmem [shape: f32[1,32], index: 17, kind: input, shape index: {}]
  %s18 = inlined_call_operand.vmem [shape: f32[32,8], index: 18, kind: input, shape index: {}]
  %s19 = inlined_call_operand.vmem [shape: f32[1,8], index: 19, kind: input, shape index: {}]
  %s20 = inlined_call_operand.vmem [shape: f32[1,8], index: 20, kind: input, shape index: {}]
  %s21 = inlined_call_operand.hbm [shape: f32[1,8], index: 21, kind: input, shape index: {}]
  %s22 = inlined_call_operand.vmem [shape: f32[2,8,8], index: 22, kind: output, shape index: {}]
  %s23 = sld [smem:[#allocation0]]
  $region125: #{optimated_transformer_forward.12} parent=0
    _
  %s25 = ssub.s32 1, %s23
  %s26 = scalar_select 0, %s25, %s23
  $region1: #{optimated_transformer_forward.12} parent=0
    #allocation2 [shape = 'u8[512]{0}', space=vmem, size = 0x400, scoped, tag = 'input window, operand 21, single buffered']
    #allocation3 [shape = 's32[2]{0}', space=sflag, size = 0x8, scoped, tag = 'scoped memory for optimated_transformer_forward.12']
    %27 = vsyncpa [#allocation3], 0
    loop: start=0, step=1, limit=4
    $region2: #{optimated_transformer_forward.12} parent=1 // loop_pre_header
      _
    $region3: #{optimated_transformer_forward.12} parent=1 // loop_header
      %s29 = sphi 0, %s33
      %p30 = scmp.ge.s32.totalorder %s29, 4
      %s39 = sphi 0, %s41
      %s42 = sphi 0, %s39
      %s43 = sphi 0, %s42
      %s59 = sphi 0, %s43
      %s65 = sphi 0, %s67
      %s68 = sphi 0, %s65
      %s69 = sphi 0, %s68
      %s85 = sphi 0, %s69
      %s89 = sphi 0, %s89
      %s91 = sphi 0, %s89
      %s92 = sphi 0, %s91
      %s106 = sphi 0, %s92
      %s110 = sphi 0, %s110
      %s112 = sphi 0, %s110
      %s113 = sphi 0, %s112
      %s127 = sphi 0, %s113
      %s131 = sphi 0, %s131
      %s133 = sphi 0, %s131
      %s134 = sphi 0, %s133
      %s148 = sphi 0, %s134
      %s152 = sphi 0, %s152
      %s154 = sphi 0, %s152
      %s155 = sphi 0, %s154
      %s169 = sphi 0, %s155
      %s173 = sphi 0, %s173
      %s175 = sphi 0, %s173
      %s176 = sphi 0, %s175
      %s190 = sphi 0, %s176
      %s194 = sphi 0, %s194
      %s196 = sphi 0, %s194
      %s197 = sphi 0, %s196
      %s211 = sphi 0, %s197
      %s215 = sphi 0, %s215
      %s217 = sphi 0, %s215
      %s218 = sphi 0, %s217
      %s232 = sphi 0, %s218
      %s236 = sphi 0, %s236
      %s238 = sphi 0, %s236
      %s239 = sphi 0, %s238
      %s253 = sphi 0, %s239
      %s257 = sphi 0, %s257
      %s259 = sphi 0, %s257
      %s260 = sphi 0, %s259
      %s274 = sphi 0, %s260
      %s278 = sphi 0, %s278
      %s280 = sphi 0, %s278
      %s281 = sphi 0, %s280
      %s295 = sphi 0, %s281
      %s299 = sphi 0, %s299
      %s301 = sphi 0, %s299
      %s302 = sphi 0, %s301
      %s316 = sphi 0, %s302
      %s320 = sphi 0, %s320
      %s322 = sphi 0, %s320
      %s323 = sphi 0, %s322
      %s337 = sphi 0, %s323
      %s341 = sphi 0, %s341
      %s343 = sphi 0, %s341
      %s344 = sphi 0, %s343
      %s358 = sphi 0, %s344
      %s362 = sphi 0, %s362
      %s364 = sphi 0, %s362
      %s365 = sphi 0, %s364
      %s379 = sphi 0, %s365
      %s383 = sphi 0, %s383
      %s385 = sphi 0, %s383
      %s386 = sphi 0, %s385
      %s400 = sphi 0, %s386
      %s404 = sphi 0, %s404
      %s406 = sphi 0, %s404
      %s407 = sphi 0, %s406
      %s421 = sphi 0, %s407
      %s425 = sphi 0, %s425
      %s427 = sphi 0, %s425
      %s428 = sphi 0, %s427
      %s442 = sphi 0, %s428
      %s446 = sphi 0, %s446
      %s448 = sphi 0, %s446
      %s449 = sphi 0, %s448
      %s463 = sphi 0, %s449
      %s467 = sphi 0, %s467
      %s469 = sphi 0, %s467
      %s470 = sphi 0, %s469
      %s484 = sphi 0, %s470
      %s488 = sphi 0, %s488
      %s490 = sphi 0, %s488
      %s491 = sphi 0, %s490
      %s505 = sphi 0, %s491
      %s511 = sphi 0, %s513
      %s514 = sphi 0, %s511
      %s515 = sphi 0, %s514
      %s531 = sphi 0, %s515
    $region4: #{optimated_transformer_forward.12} parent=1 // loop_header_branch
      %32 = sbr.rel (%p30) target = $region8
    $region5: #{optimated_transformer_forward.12} parent=1 // loop_body
      %s34 = ssub.s32 %s29, 1
      %s35 = ssub.s32 %s29, 2
      %s36 = sadd.s32 %s29, 1
      %s37 = ssub.s32 %s29, %s36
      %p38 = scmp.eq.s32.totalorder %s37, 0
      %s40 = sadd.s32 %s39, 1
      %s41 = scalar_select %p38, %s39, %s40
      %p44 = pneg %p38
      %p45 = scmp.eq.s32.totalorder %s29, 1
      %p46 = por %p44, %p45
      %p47 = scmp.ne.s32.totalorder %s39, %s42
      %p48 = scmp.eq.s32.totalorder %s29, 0
      %p49 = por %p47, %p48
      %p50 = scmp.ne.s32.totalorder %s39, %s42
      %p51 = scmp.eq.s32.totalorder %s34, 1
      %p52 = por %p50, %p51
      %p53 = scmp.ne.s32.totalorder %s42, %s43
      %p54 = scmp.eq.s32.totalorder %s34, 0
      %p55 = por %p53, %p54
      %p56 = scmp.ne.s32.totalorder %s42, %s43
      %p57 = scmp.eq.s32.totalorder %s35, 1
      %p58 = por %p56, %p57
      %p60 = scmp.ne.s32.totalorder %s43, %s59
      %p61 = scmp.eq.s32.totalorder %s35, 0
      %p62 = por %p60, %p61
      %s63 = ssub.s32 %s29, %s36
      %p64 = scmp.eq.s32.totalorder %s63, 0
      %s66 = sadd.s32 %s65, 1
      %s67 = scalar_select %p64, %s65, %s66
      %p70 = pneg %p64
      %p71 = scmp.eq.s32.totalorder %s29, 1
      %p72 = por %p70, %p71
      %p73 = scmp.ne.s32.totalorder %s65, %s68
      %p74 = scmp.eq.s32.totalorder %s29, 0
      %p75 = por %p73, %p74
      %p76 = scmp.ne.s32.totalorder %s65, %s68
      %p77 = scmp.eq.s32.totalorder %s34, 1
      %p78 = por %p76, %p77
      %p79 = scmp.ne.s32.totalorder %s68, %s69
      %p80 = scmp.eq.s32.totalorder %s34, 0
      %p81 = por %p79, %p80
      %p82 = scmp.ne.s32.totalorder %s68, %s69
      %p83 = scmp.eq.s32.totalorder %s35, 1
      %p84 = por %p82, %p83
      %p86 = scmp.ne.s32.totalorder %s69, %s85
      %p87 = scmp.eq.s32.totalorder %s35, 0
      %p88 = por %p86, %p87
      %s90 = sadd.s32 %s89, 1
      %p93 = scmp.eq.s32.totalorder %s29, 1
      %p94 = scmp.ne.s32.totalorder %s89, %s91
      %p95 = scmp.eq.s32.totalorder %s29, 0
      %p96 = por %p94, %p95
      %p97 = scmp.ne.s32.totalorder %s89, %s91
      %p98 = scmp.eq.s32.totalorder %s34, 1
      %p99 = por %p97, %p98
      %p100 = scmp.ne.s32.totalorder %s91, %s92
      %p101 = scmp.eq.s32.totalorder %s34, 0
      %p102 = por %p100, %p101
      %p103 = scmp.ne.s32.totalorder %s91, %s92
      %p104 = scmp.eq.s32.totalorder %s35, 1
      %p105 = por %p103, %p104
      %p107 = scmp.ne.s32.totalorder %s92, %s106
      %p108 = scmp.eq.s32.totalorder %s35, 0
      %p109 = por %p107, %p108
      %s111 = sadd.s32 %s110, 1
      %p114 = scmp.eq.s32.totalorder %s29, 1
      %p115 = scmp.ne.s32.totalorder %s110, %s112
      %p116 = scmp.eq.s32.totalorder %s29, 0
      %p117 = por %p115, %p116
      %p118 = scmp.ne.s32.totalorder %s110, %s112
      %p119 = scmp.eq.s32.totalorder %s34, 1
      %p120 = por %p118, %p119
      %p121 = scmp.ne.s32.totalorder %s112, %s113
      %p122 = scmp.eq.s32.totalorder %s34, 0
      %p123 = por %p121, %p122
      %p124 = scmp.ne.s32.totalorder %s112, %s113
      %p125 = scmp.eq.s32.totalorder %s35, 1
      %p126 = por %p124, %p125
      %p128 = scmp.ne.s32.totalorder %s113, %s127
      %p129 = scmp.eq.s32.totalorder %s35, 0
      %p130 = por %p128, %p129
      %s132 = sadd.s32 %s131, 1
      %p135 = scmp.eq.s32.totalorder %s29, 1
      %p136 = scmp.ne.s32.totalorder %s131, %s133
      %p137 = scmp.eq.s32.totalorder %s29, 0
      %p138 = por %p136, %p137
      %p139 = scmp.ne.s32.totalorder %s131, %s133
      %p140 = scmp.eq.s32.totalorder %s34, 1
      %p141 = por %p139, %p140
      %p142 = scmp.ne.s32.totalorder %s133, %s134
      %p143 = scmp.eq.s32.totalorder %s34, 0
      %p144 = por %p142, %p143
      %p145 = scmp.ne.s32.totalorder %s133, %s134
      %p146 = scmp.eq.s32.totalorder %s35, 1
      %p147 = por %p145, %p146
      %p149 = scmp.ne.s32.totalorder %s134, %s148
      %p150 = scmp.eq.s32.totalorder %s35, 0
      %p151 = por %p149, %p150
      %s153 = sadd.s32 %s152, 1
      %p156 = scmp.eq.s32.totalorder %s29, 1
      %p157 = scmp.ne.s32.totalorder %s152, %s154
      %p158 = scmp.eq.s32.totalorder %s29, 0
      %p159 = por %p157, %p158
      %p160 = scmp.ne.s32.totalorder %s152, %s154
      %p161 = scmp.eq.s32.totalorder %s34, 1
      %p162 = por %p160, %p161
      %p163 = scmp.ne.s32.totalorder %s154, %s155
      %p164 = scmp.eq.s32.totalorder %s34, 0
      %p165 = por %p163, %p164
      %p166 = scmp.ne.s32.totalorder %s154, %s155
      %p167 = scmp.eq.s32.totalorder %s35, 1
      %p168 = por %p166, %p167
      %p170 = scmp.ne.s32.totalorder %s155, %s169
      %p171 = scmp.eq.s32.totalorder %s35, 0
      %p172 = por %p170, %p171
      %s174 = sadd.s32 %s173, 1
      %p177 = scmp.eq.s32.totalorder %s29, 1
      %p178 = scmp.ne.s32.totalorder %s173, %s175
      %p179 = scmp.eq.s32.totalorder %s29, 0
      %p180 = por %p178, %p179
      %p181 = scmp.ne.s32.totalorder %s173, %s175
      %p182 = scmp.eq.s32.totalorder %s34, 1
      %p183 = por %p181, %p182
      %p184 = scmp.ne.s32.totalorder %s175, %s176
      %p185 = scmp.eq.s32.totalorder %s34, 0
      %p186 = por %p184, %p185
      %p187 = scmp.ne.s32.totalorder %s175, %s176
      %p188 = scmp.eq.s32.totalorder %s35, 1
      %p189 = por %p187, %p188
      %p191 = scmp.ne.s32.totalorder %s176, %s190
      %p192 = scmp.eq.s32.totalorder %s35, 0
      %p193 = por %p191, %p192
      %s195 = sadd.s32 %s194, 1
      %p198 = scmp.eq.s32.totalorder %s29, 1
      %p199 = scmp.ne.s32.totalorder %s194, %s196
      %p200 = scmp.eq.s32.totalorder %s29, 0
      %p201 = por %p199, %p200
      %p202 = scmp.ne.s32.totalorder %s194, %s196
      %p203 = scmp.eq.s32.totalorder %s34, 1
      %p204 = por %p202, %p203
      %p205 = scmp.ne.s32.totalorder %s196, %s197
      %p206 = scmp.eq.s32.totalorder %s34, 0
      %p207 = por %p205, %p206
      %p208 = scmp.ne.s32.totalorder %s196, %s197
      %p209 = scmp.eq.s32.totalorder %s35, 1
      %p210 = por %p208, %p209
      %p212 = scmp.ne.s32.totalorder %s197, %s211
      %p213 = scmp.eq.s32.totalorder %s35, 0
      %p214 = por %p212, %p213
      %s216 = sadd.s32 %s215, 1
      %p219 = scmp.eq.s32.totalorder %s29, 1
      %p220 = scmp.ne.s32.totalorder %s215, %s217
      %p221 = scmp.eq.s32.totalorder %s29, 0
      %p222 = por %p220, %p221
      %p223 = scmp.ne.s32.totalorder %s215, %s217
      %p224 = scmp.eq.s32.totalorder %s34, 1
      %p225 = por %p223, %p224
      %p226 = scmp.ne.s32.totalorder %s217, %s218
      %p227 = scmp.eq.s32.totalorder %s34, 0
      %p228 = por %p226, %p227
      %p229 = scmp.ne.s32.totalorder %s217, %s218
      %p230 = scmp.eq.s32.totalorder %s35, 1
      %p231 = por %p229, %p230
      %p233 = scmp.ne.s32.totalorder %s218, %s232
      %p234 = scmp.eq.s32.totalorder %s35, 0
      %p235 = por %p233, %p234
      %s237 = sadd.s32 %s236, 1
      %p240 = scmp.eq.s32.totalorder %s29, 1
      %p241 = scmp.ne.s32.totalorder %s236, %s238
      %p242 = scmp.eq.s32.totalorder %s29, 0
      %p243 = por %p241, %p242
      %p244 = scmp.ne.s32.totalorder %s236, %s238
      %p245 = scmp.eq.s32.totalorder %s34, 1
      %p246 = por %p244, %p245
      %p247 = scmp.ne.s32.totalorder %s238, %s239
      %p248 = scmp.eq.s32.totalorder %s34, 0
      %p249 = por %p247, %p248
      %p250 = scmp.ne.s32.totalorder %s238, %s239
      %p251 = scmp.eq.s32.totalorder %s35, 1
      %p252 = por %p250, %p251
      %p254 = scmp.ne.s32.totalorder %s239, %s253
      %p255 = scmp.eq.s32.totalorder %s35, 0
      %p256 = por %p254, %p255
      %s258 = sadd.s32 %s257, 1
      %p261 = scmp.eq.s32.totalorder %s29, 1
      %p262 = scmp.ne.s32.totalorder %s257, %s259
      %p263 = scmp.eq.s32.totalorder %s29, 0
      %p264 = por %p262, %p263
      %p265 = scmp.ne.s32.totalorder %s257, %s259
      %p266 = scmp.eq.s32.totalorder %s34, 1
      %p267 = por %p265, %p266
      %p268 = scmp.ne.s32.totalorder %s259, %s260
      %p269 = scmp.eq.s32.totalorder %s34, 0
      %p270 = por %p268, %p269
      %p271 = scmp.ne.s32.totalorder %s259, %s260
      %p272 = scmp.eq.s32.totalorder %s35, 1
      %p273 = por %p271, %p272
      %p275 = scmp.ne.s32.totalorder %s260, %s274
      %p276 = scmp.eq.s32.totalorder %s35, 0
      %p277 = por %p275, %p276
      %s279 = sadd.s32 %s278, 1
      %p282 = scmp.eq.s32.totalorder %s29, 1
      %p283 = scmp.ne.s32.totalorder %s278, %s280
      %p284 = scmp.eq.s32.totalorder %s29, 0
      %p285 = por %p283, %p284
      %p286 = scmp.ne.s32.totalorder %s278, %s280
      %p287 = scmp.eq.s32.totalorder %s34, 1
      %p288 = por %p286, %p287
      %p289 = scmp.ne.s32.totalorder %s280, %s281
      %p290 = scmp.eq.s32.totalorder %s34, 0
      %p291 = por %p289, %p290
      %p292 = scmp.ne.s32.totalorder %s280, %s281
      %p293 = scmp.eq.s32.totalorder %s35, 1
      %p294 = por %p292, %p293
      %p296 = scmp.ne.s32.totalorder %s281, %s295
      %p297 = scmp.eq.s32.totalorder %s35, 0
      %p298 = por %p296, %p297
      %s300 = sadd.s32 %s299, 1
      %p303 = scmp.eq.s32.totalorder %s29, 1
      %p304 = scmp.ne.s32.totalorder %s299, %s301
      %p305 = scmp.eq.s32.totalorder %s29, 0
      %p306 = por %p304, %p305
      %p307 = scmp.ne.s32.totalorder %s299, %s301
      %p308 = scmp.eq.s32.totalorder %s34, 1
      %p309 = por %p307, %p308
      %p310 = scmp.ne.s32.totalorder %s301, %s302
      %p311 = scmp.eq.s32.totalorder %s34, 0
      %p312 = por %p310, %p311
      %p313 = scmp.ne.s32.totalorder %s301, %s302
      %p314 = scmp.eq.s32.totalorder %s35, 1
      %p315 = por %p313, %p314
      %p317 = scmp.ne.s32.totalorder %s302, %s316
      %p318 = scmp.eq.s32.totalorder %s35, 0
      %p319 = por %p317, %p318
      %s321 = sadd.s32 %s320, 1
      %p324 = scmp.eq.s32.totalorder %s29, 1
      %p325 = scmp.ne.s32.totalorder %s320, %s322
      %p326 = scmp.eq.s32.totalorder %s29, 0
      %p327 = por %p325, %p326
      %p328 = scmp.ne.s32.totalorder %s320, %s322
      %p329 = scmp.eq.s32.totalorder %s34, 1
      %p330 = por %p328, %p329
      %p331 = scmp.ne.s32.totalorder %s322, %s323
      %p332 = scmp.eq.s32.totalorder %s34, 0
      %p333 = por %p331, %p332
      %p334 = scmp.ne.s32.totalorder %s322, %s323
      %p335 = scmp.eq.s32.totalorder %s35, 1
      %p336 = por %p334, %p335
      %p338 = scmp.ne.s32.totalorder %s323, %s337
      %p339 = scmp.eq.s32.totalorder %s35, 0
      %p340 = por %p338, %p339
      %s342 = sadd.s32 %s341, 1
      %p345 = scmp.eq.s32.totalorder %s29, 1
      %p346 = scmp.ne.s32.totalorder %s341, %s343
      %p347 = scmp.eq.s32.totalorder %s29, 0
      %p348 = por %p346, %p347
      %p349 = scmp.ne.s32.totalorder %s341, %s343
      %p350 = scmp.eq.s32.totalorder %s34, 1
      %p351 = por %p349, %p350
      %p352 = scmp.ne.s32.totalorder %s343, %s344
      %p353 = scmp.eq.s32.totalorder %s34, 0
      %p354 = por %p352, %p353
      %p355 = scmp.ne.s32.totalorder %s343, %s344
      %p356 = scmp.eq.s32.totalorder %s35, 1
      %p357 = por %p355, %p356
      %p359 = scmp.ne.s32.totalorder %s344, %s358
      %p360 = scmp.eq.s32.totalorder %s35, 0
      %p361 = por %p359, %p360
      %s363 = sadd.s32 %s362, 1
      %p366 = scmp.eq.s32.totalorder %s29, 1
      %p367 = scmp.ne.s32.totalorder %s362, %s364
      %p368 = scmp.eq.s32.totalorder %s29, 0
      %p369 = por %p367, %p368
      %p370 = scmp.ne.s32.totalorder %s362, %s364
      %p371 = scmp.eq.s32.totalorder %s34, 1
      %p372 = por %p370, %p371
      %p373 = scmp.ne.s32.totalorder %s364, %s365
      %p374 = scmp.eq.s32.totalorder %s34, 0
      %p375 = por %p373, %p374
      %p376 = scmp.ne.s32.totalorder %s364, %s365
      %p377 = scmp.eq.s32.totalorder %s35, 1
      %p378 = por %p376, %p377
      %p380 = scmp.ne.s32.totalorder %s365, %s379
      %p381 = scmp.eq.s32.totalorder %s35, 0
      %p382 = por %p380, %p381
      %s384 = sadd.s32 %s383, 1
      %p387 = scmp.eq.s32.totalorder %s29, 1
      %p388 = scmp.ne.s32.totalorder %s383, %s385
      %p389 = scmp.eq.s32.totalorder %s29, 0
      %p390 = por %p388, %p389
      %p391 = scmp.ne.s32.totalorder %s383, %s385
      %p392 = scmp.eq.s32.totalorder %s34, 1
      %p393 = por %p391, %p392
      %p394 = scmp.ne.s32.totalorder %s385, %s386
      %p395 = scmp.eq.s32.totalorder %s34, 0
      %p396 = por %p394, %p395
      %p397 = scmp.ne.s32.totalorder %s385, %s386
      %p398 = scmp.eq.s32.totalorder %s35, 1
      %p399 = por %p397, %p398
      %p401 = scmp.ne.s32.totalorder %s386, %s400
      %p402 = scmp.eq.s32.totalorder %s35, 0
      %p403 = por %p401, %p402
      %s405 = sadd.s32 %s404, 1
      %p408 = scmp.eq.s32.totalorder %s29, 1
      %p409 = scmp.ne.s32.totalorder %s404, %s406
      %p410 = scmp.eq.s32.totalorder %s29, 0
      %p411 = por %p409, %p410
      %p412 = scmp.ne.s32.totalorder %s404, %s406
      %p413 = scmp.eq.s32.totalorder %s34, 1
      %p414 = por %p412, %p413
      %p415 = scmp.ne.s32.totalorder %s406, %s407
      %p416 = scmp.eq.s32.totalorder %s34, 0
      %p417 = por %p415, %p416
      %p418 = scmp.ne.s32.totalorder %s406, %s407
      %p419 = scmp.eq.s32.totalorder %s35, 1
      %p420 = por %p418, %p419
      %p422 = scmp.ne.s32.totalorder %s407, %s421
      %p423 = scmp.eq.s32.totalorder %s35, 0
      %p424 = por %p422, %p423
      %s426 = sadd.s32 %s425, 1
      %p429 = scmp.eq.s32.totalorder %s29, 1
      %p430 = scmp.ne.s32.totalorder %s425, %s427
      %p431 = scmp.eq.s32.totalorder %s29, 0
      %p432 = por %p430, %p431
      %p433 = scmp.ne.s32.totalorder %s425, %s427
      %p434 = scmp.eq.s32.totalorder %s34, 1
      %p435 = por %p433, %p434
      %p436 = scmp.ne.s32.totalorder %s427, %s428
      %p437 = scmp.eq.s32.totalorder %s34, 0
      %p438 = por %p436, %p437
      %p439 = scmp.ne.s32.totalorder %s427, %s428
      %p440 = scmp.eq.s32.totalorder %s35, 1
      %p441 = por %p439, %p440
      %p443 = scmp.ne.s32.totalorder %s428, %s442
      %p444 = scmp.eq.s32.totalorder %s35, 0
      %p445 = por %p443, %p444
      %s447 = sadd.s32 %s446, 1
      %p450 = scmp.eq.s32.totalorder %s29, 1
      %p451 = scmp.ne.s32.totalorder %s446, %s448
      %p452 = scmp.eq.s32.totalorder %s29, 0
      %p453 = por %p451, %p452
      %p454 = scmp.ne.s32.totalorder %s446, %s448
      %p455 = scmp.eq.s32.totalorder %s34, 1
      %p456 = por %p454, %p455
      %p457 = scmp.ne.s32.totalorder %s448, %s449
      %p458 = scmp.eq.s32.totalorder %s34, 0
      %p459 = por %p457, %p458
      %p460 = scmp.ne.s32.totalorder %s448, %s449
      %p461 = scmp.eq.s32.totalorder %s35, 1
      %p462 = por %p460, %p461
      %p464 = scmp.ne.s32.totalorder %s449, %s463
      %p465 = scmp.eq.s32.totalorder %s35, 0
      %p466 = por %p464, %p465
      %s468 = sadd.s32 %s467, 1
      %p471 = scmp.eq.s32.totalorder %s29, 1
      %p472 = scmp.ne.s32.totalorder %s467, %s469
      %p473 = scmp.eq.s32.totalorder %s29, 0
      %p474 = por %p472, %p473
      %p475 = scmp.ne.s32.totalorder %s467, %s469
      %p476 = scmp.eq.s32.totalorder %s34, 1
      %p477 = por %p475, %p476
      %p478 = scmp.ne.s32.totalorder %s469, %s470
      %p479 = scmp.eq.s32.totalorder %s34, 0
      %p480 = por %p478, %p479
      %p481 = scmp.ne.s32.totalorder %s469, %s470
      %p482 = scmp.eq.s32.totalorder %s35, 1
      %p483 = por %p481, %p482
      %p485 = scmp.ne.s32.totalorder %s470, %s484
      %p486 = scmp.eq.s32.totalorder %s35, 0
      %p487 = por %p485, %p486
      %s489 = sadd.s32 %s488, 1
      %p492 = scmp.eq.s32.totalorder %s29, 1
      %p493 = scmp.ne.s32.totalorder %s488, %s490
      %p494 = scmp.eq.s32.totalorder %s29, 0
      %p495 = por %p493, %p494
      %p496 = scmp.ne.s32.totalorder %s488, %s490
      %p497 = scmp.eq.s32.totalorder %s34, 1
      %p498 = por %p496, %p497
      %p499 = scmp.ne.s32.totalorder %s490, %s491
      %p500 = scmp.eq.s32.totalorder %s34, 0
      %p501 = por %p499, %p500
      %p502 = scmp.ne.s32.totalorder %s490, %s491
      %p503 = scmp.eq.s32.totalorder %s35, 1
      %p504 = por %p502, %p503
      %p506 = scmp.ne.s32.totalorder %s491, %s505
      %p507 = scmp.eq.s32.totalorder %s35, 0
      %p508 = por %p506, %p507
      %s509 = ssub.s32 %s29, %s36
      %p510 = scmp.eq.s32.totalorder %s509, 0
      %s512 = sadd.s32 %s511, 1
      %s513 = scalar_select %p510, %s511, %s512
      %p516 = pneg %p510
      %p517 = scmp.eq.s32.totalorder %s29, 1
      %p518 = por %p516, %p517
      %p519 = scmp.ne.s32.totalorder %s511, %s514
      %p520 = scmp.eq.s32.totalorder %s29, 0
      %p521 = por %p519, %p520
      %p522 = scmp.ne.s32.totalorder %s511, %s514
      %p523 = scmp.eq.s32.totalorder %s34, 1
      %p524 = por %p522, %p523
      %p525 = scmp.ne.s32.totalorder %s514, %s515
      %p526 = scmp.eq.s32.totalorder %s34, 0
      %p527 = por %p525, %p526
      %p528 = scmp.ne.s32.totalorder %s514, %s515
      %p529 = scmp.eq.s32.totalorder %s35, 1
      %p530 = por %p528, %p529
      %p532 = scmp.ne.s32.totalorder %s515, %s531
      %p533 = scmp.eq.s32.totalorder %s35, 0
      %p534 = por %p532, %p533
      %p535 = scmp.le.s32.totalorder 1, %s29
      %p536 = scmp.lt.s32.totalorder %s29, 3
      %p537 = pnand %p535, %p536
      %p538 = pneg %p537
      // Predicated region
      $region9: #{optimated_transformer_forward.12} parent=5 // pred_check
        _
      $region10: #{optimated_transformer_forward.12} parent=5 // pred_check_branch
        %540 = sbr.rel (%p537) target = $region12
      $region11: #{optimated_transformer_forward.12} parent=5 // pred_region
        %s541 = ssub.s32 %s29, 1
        // Predicated region
        $region13: #{optimated_transformer_forward.12} parent=11 // pred_check
          %p542 = pneg %p102
        $region14: #{optimated_transformer_forward.12} parent=11 // pred_check_branch
          %544 = sbr.rel (%p542) target = $region16
        $region15: #{optimated_transformer_forward.12} parent=11 // pred_region
          _
        $region16: #{optimated_transformer_forward.12} parent=11 // pred_fallthru
          _
        // Predicated region
        $region17: #{optimated_transformer_forward.12} parent=11 // pred_check
          %p545 = pneg %p123
        $region18: #{optimated_transformer_forward.12} parent=11 // pred_check_branch
          %547 = sbr.rel (%p545) target = $region20
        $region19: #{optimated_transformer_forward.12} parent=11 // pred_region
          _
        $region20: #{optimated_transformer_forward.12} parent=11 // pred_fallthru
          _
        // Predicated region
        $region21: #{optimated_transformer_forward.12} parent=11 // pred_check
          %p548 = pneg %p144
        $region22: #{optimated_transformer_forward.12} parent=11 // pred_check_branch
          %550 = sbr.rel (%p548) target = $region24
        $region23: #{optimated_transformer_forward.12} parent=11 // pred_region
          _
        $region24: #{optimated_transformer_forward.12} parent=11 // pred_fallthru
          _
        // Predicated region
        $region25: #{optimated_transformer_forward.12} parent=11 // pred_check
          %p551 = pneg %p165
        $region26: #{optimated_transformer_forward.12} parent=11 // pred_check_branch
          %553 = sbr.rel (%p551) target = $region28
        $region27: #{optimated_transformer_forward.12} parent=11 // pred_region
          _
        $region28: #{optimated_transformer_forward.12} parent=11 // pred_fallthru
          _
        // Predicated region
        $region29: #{optimated_transformer_forward.12} parent=11 // pred_check
          %p554 = pneg %p186
        $region30: #{optimated_transformer_forward.12} parent=11 // pred_check_branch
          %556 = sbr.rel (%p554) target = $region32
        $region31: #{optimated_transformer_forward.12} parent=11 // pred_region
          _
        $region32: #{optimated_transformer_forward.12} parent=11 // pred_fallthru
          _
        // Predicated region
        $region33: #{optimated_transformer_forward.12} parent=11 // pred_check
          %p557 = pneg %p207
        $region34: #{optimated_transformer_forward.12} parent=11 // pred_check_branch
          %559 = sbr.rel (%p557) target = $region36
        $region35: #{optimated_transformer_forward.12} parent=11 // pred_region
          _
        $region36: #{optimated_transformer_forward.12} parent=11 // pred_fallthru
          _
        // Predicated region
        $region37: #{optimated_transformer_forward.12} parent=11 // pred_check
          %p560 = pneg %p228
        $region38: #{optimated_transformer_forward.12} parent=11 // pred_check_branch
          %562 = sbr.rel (%p560) target = $region40
        $region39: #{optimated_transformer_forward.12} parent=11 // pred_region
          _
        $region40: #{optimated_transformer_forward.12} parent=11 // pred_fallthru
          _
        // Predicated region
        $region41: #{optimated_transformer_forward.12} parent=11 // pred_check
          %p563 = pneg %p249
        $region42: #{optimated_transformer_forward.12} parent=11 // pred_check_branch
          %565 = sbr.rel (%p563) target = $region44
        $region43: #{optimated_transformer_forward.12} parent=11 // pred_region
          _
        $region44: #{optimated_transformer_forward.12} parent=11 // pred_fallthru
          _
        // Predicated region
        $region45: #{optimated_transformer_forward.12} parent=11 // pred_check
          %p566 = pneg %p270
        $region46: #{optimated_transformer_forward.12} parent=11 // pred_check_branch
          %568 = sbr.rel (%p566) target = $region48
        $region47: #{optimated_transformer_forward.12} parent=11 // pred_region
          _
        $region48: #{optimated_transformer_forward.12} parent=11 // pred_fallthru
          _
        // Predicated region
        $region49: #{optimated_transformer_forward.12} parent=11 // pred_check
          %p569 = pneg %p291
        $region50: #{optimated_transformer_forward.12} parent=11 // pred_check_branch
          %571 = sbr.rel (%p569) target = $region52
        $region51: #{optimated_transformer_forward.12} parent=11 // pred_region
          _
        $region52: #{optimated_transformer_forward.12} parent=11 // pred_fallthru
          _
        // Predicated region
        $region53: #{optimated_transformer_forward.12} parent=11 // pred_check
          %p572 = pneg %p312
        $region54: #{optimated_transformer_forward.12} parent=11 // pred_check_branch
          %574 = sbr.rel (%p572) target = $region56
        $region55: #{optimated_transformer_forward.12} parent=11 // pred_region
          _
        $region56: #{optimated_transformer_forward.12} parent=11 // pred_fallthru
          _
        // Predicated region
        $region57: #{optimated_transformer_forward.12} parent=11 // pred_check
          %p575 = pneg %p333
        $region58: #{optimated_transformer_forward.12} parent=11 // pred_check_branch
          %577 = sbr.rel (%p575) target = $region60
        $region59: #{optimated_transformer_forward.12} parent=11 // pred_region
          _
        $region60: #{optimated_transformer_forward.12} parent=11 // pred_fallthru
          _
        // Predicated region
        $region61: #{optimated_transformer_forward.12} parent=11 // pred_check
          %p578 = pneg %p354
        $region62: #{optimated_transformer_forward.12} parent=11 // pred_check_branch
          %580 = sbr.rel (%p578) target = $region64
        $region63: #{optimated_transformer_forward.12} parent=11 // pred_region
          _
        $region64: #{optimated_transformer_forward.12} parent=11 // pred_fallthru
          _
        // Predicated region
        $region65: #{optimated_transformer_forward.12} parent=11 // pred_check
          %p581 = pneg %p375
        $region66: #{optimated_transformer_forward.12} parent=11 // pred_check_branch
          %583 = sbr.rel (%p581) target = $region68
        $region67: #{optimated_transformer_forward.12} parent=11 // pred_region
          _
        $region68: #{optimated_transformer_forward.12} parent=11 // pred_fallthru
          _
        // Predicated region
        $region69: #{optimated_transformer_forward.12} parent=11 // pred_check
          %p584 = pneg %p396
        $region70: #{optimated_transformer_forward.12} parent=11 // pred_check_branch
          %586 = sbr.rel (%p584) target = $region72
        $region71: #{optimated_transformer_forward.12} parent=11 // pred_region
          _
        $region72: #{optimated_transformer_forward.12} parent=11 // pred_fallthru
          _
        // Predicated region
        $region73: #{optimated_transformer_forward.12} parent=11 // pred_check
          %p587 = pneg %p417
        $region74: #{optimated_transformer_forward.12} parent=11 // pred_check_branch
          %589 = sbr.rel (%p587) target = $region76
        $region75: #{optimated_transformer_forward.12} parent=11 // pred_region
          _
        $region76: #{optimated_transformer_forward.12} parent=11 // pred_fallthru
          _
        // Predicated region
        $region77: #{optimated_transformer_forward.12} parent=11 // pred_check
          %p590 = pneg %p438
        $region78: #{optimated_transformer_forward.12} parent=11 // pred_check_branch
          %592 = sbr.rel (%p590) target = $region80
        $region79: #{optimated_transformer_forward.12} parent=11 // pred_region
          _
        $region80: #{optimated_transformer_forward.12} parent=11 // pred_fallthru
          _
        // Predicated region
        $region81: #{optimated_transformer_forward.12} parent=11 // pred_check
          %p593 = pneg %p459
        $region82: #{optimated_transformer_forward.12} parent=11 // pred_check_branch
          %595 = sbr.rel (%p593) target = $region84
        $region83: #{optimated_transformer_forward.12} parent=11 // pred_region
          _
        $region84: #{optimated_transformer_forward.12} parent=11 // pred_fallthru
          _
        // Predicated region
        $region85: #{optimated_transformer_forward.12} parent=11 // pred_check
          %p596 = pneg %p480
        $region86: #{optimated_transformer_forward.12} parent=11 // pred_check_branch
          %598 = sbr.rel (%p596) target = $region88
        $region87: #{optimated_transformer_forward.12} parent=11 // pred_region
          _
        $region88: #{optimated_transformer_forward.12} parent=11 // pred_fallthru
          _
        // Predicated region
        $region89: #{optimated_transformer_forward.12} parent=11 // pred_check
          %p599 = pneg %p501
        $region90: #{optimated_transformer_forward.12} parent=11 // pred_check_branch
          %601 = sbr.rel (%p599) target = $region92
        $region91: #{optimated_transformer_forward.12} parent=11 // pred_region
          %s603 = ssub.s32 16, 16
          %604 = vsyncadd [#allocation3], %s603
          %s606 = sshll.u32 [#allocation2], 4
          %s607 = int_to_ptr.vmem [resolvable:$true] %s606
          %609 = dma.hbm_to_vmem [thread:$0]  %s21, 16, %s607, [#allocation3]
        $region92: #{optimated_transformer_forward.12} parent=11 // pred_fallthru
          _
      $region12: #{optimated_transformer_forward.12} parent=5 // pred_fallthru
        _
      %p610 = scmp.lt.s32.totalorder %s29, 2
      // Predicated region
      $region93: #{optimated_transformer_forward.12} parent=5 // pred_check
        %p611 = pneg %p610
      $region94: #{optimated_transformer_forward.12} parent=5 // pred_check_branch
        %613 = sbr.rel (%p611) target = $region96
      $region95: #{optimated_transformer_forward.12} parent=5 // pred_region
        // Predicated region
        $region97: #{optimated_transformer_forward.12} parent=95 // pred_check
          %p614 = pneg %p49
        $region98: #{optimated_transformer_forward.12} parent=95 // pred_check_branch
          %616 = sbr.rel (%p614) target = $region100
        $region99: #{optimated_transformer_forward.12} parent=95 // pred_region
          %p617 = scmp.lt.s32.totalorder %s29, 1
          %s618 = scalar_select %p617, %s29, 1
          %s619 = smul.addr %s618, 8
          %s620 = scalar_lea.vmem %s0, %s619
        $region100: #{optimated_transformer_forward.12} parent=95 // pred_fallthru
          _
        // Predicated region
        $region101: #{optimated_transformer_forward.12} parent=95 // pred_check
          %p621 = pneg %p75
        $region102: #{optimated_transformer_forward.12} parent=95 // pred_check_branch
          %623 = sbr.rel (%p621) target = $region104
        $region103: #{optimated_transformer_forward.12} parent=95 // pred_region
          %p624 = scmp.lt.s32.totalorder %s29, 1
          %s625 = scalar_select %p624, %s29, 1
          %s626 = smul.addr %s625, 8
          %s627 = scalar_lea.vmem %s1, %s626
        $region104: #{optimated_transformer_forward.12} parent=95 // pred_fallthru
          _
      $region96: #{optimated_transformer_forward.12} parent=5 // pred_fallthru
        _
      %p628 = scmp.le.s32.totalorder 1, %s29
      %p629 = scmp.lt.s32.totalorder %s29, 3
      %p630 = pnand %p628, %p629
      %p631 = pneg %p630
      // Predicated region
      $region105: #{optimated_transformer_forward.12} parent=5 // pred_check
        _
      $region106: #{optimated_transformer_forward.12} parent=5 // pred_check_branch
        %633 = sbr.rel (%p630) target = $region108
      $region107: #{optimated_transformer_forward.12} parent=5 // pred_region
        %s634 = ssub.s32 %s29, 1
        // Predicated region
        $region109: #{optimated_transformer_forward.12} parent=107 // pred_check
          %p635 = pneg %p501
        $region110: #{optimated_transformer_forward.12} parent=107 // pred_check_branch
          %637 = sbr.rel (%p635) target = $region112
        $region111: #{optimated_transformer_forward.12} parent=107 // pred_region
          %638 = dma.done [#allocation3], 16
        $region112: #{optimated_transformer_forward.12} parent=107 // pred_fallthru
          _
        %p639 = scmp.lt.s32.totalorder %s34, 1
        %s640 = scalar_select %p639, %s34, 1
        %s641 = smul.addr %s640, 8
        %s642 = scalar_lea.vmem %s0, %s641
        %p643 = pneg %p55
        %p644 = pneg %p52
        %p645 = scmp.lt.s32.totalorder %s34, 1
        %s646 = scalar_select %p645, %s34, 1
        %s647 = smul.addr %s646, 8
        %s648 = scalar_lea.vmem %s1, %s647
        %p649 = pneg %p81
        %p650 = pneg %p78
        %p651 = pneg %p102
        %p652 = pneg %p99
        %p653 = pneg %p123
        %p654 = pneg %p120
        %p655 = pneg %p144
        %p656 = pneg %p141
        %p657 = pneg %p165
        %p658 = pneg %p162
        %p659 = pneg %p186
        %p660 = pneg %p183
        %p661 = pneg %p207
        %p662 = pneg %p204
        %p663 = pneg %p228
        %p664 = pneg %p225
        %p665 = pneg %p249
        %p666 = pneg %p246
        %p667 = pneg %p270
        %p668 = pneg %p267
        %p669 = pneg %p291
        %p670 = pneg %p288
        %p671 = pneg %p312
        %p672 = pneg %p309
        %p673 = pneg %p333
        %p674 = pneg %p330
        %p675 = pneg %p354
        %p676 = pneg %p351
        %p677 = pneg %p375
        %p678 = pneg %p372
        %p679 = pneg %p396
        %p680 = pneg %p393
        %p681 = pneg %p417
        %p682 = pneg %p414
        %p683 = pneg %p438
        %p684 = pneg %p435
        %p685 = pneg %p459
        %p686 = pneg %p456
        %p687 = pneg %p480
        %p688 = pneg %p477
        %p689 = pneg %p501
        %p690 = pneg %p498
        %p691 = pneg %p527
        %p692 = pneg %p524
        %p693 = scmp.lt.s32.totalorder %s34, 1
        %s694 = scalar_select %p693, %s34, 1
        %s695 = smul.addr %s694, 8
        %s696 = scalar_lea.vmem %s22, %s695
        %p697 = scmp.lt.s32.totalorder %s34, 1
        %s698 = scalar_select %p697, %s34, 1
        %s699 = smul.addr %s698, 8
        %s700 = scalar_lea.vmem %s0, %s699
        %p701 = scmp.lt.s32.totalorder %s34, 1
        %s702 = scalar_select %p701, %s34, 1
        %s703 = smul.addr %s702, 8
        %s704 = scalar_lea.vmem %s1, %s703
        %p705 = scmp.lt.s32.totalorder %s34, 1
        %s706 = scalar_select %p705, %s34, 1
        %s707 = smul.addr %s706, 8
        %s708 = scalar_lea.vmem %s22, %s707
        %v709 = vld [vmem:[%s700] sm:$0xff]
        %v710 = vld [vmem:[%s704] sm:$0xff]
        %v711 = vld [vmem:[%s2] sm:$0xff]
        %v712 = vld [vmem:[%s3] sm:$0x1]
        %v714 = vlaneseq
        %v715 = vshrl.u32 %v714, 7
        %v716 = vsub.s32 0, %v715
        %v717 = vrot.slane %v712, %v716
        %vm719 = vcmask 64512
        %v721 = vsel %vm719, %v709, 0
        %723 = vmatprep.subr.mxu0 0.0
        %724 = vmatpush1.msra.mxu0 0.0
        %725 = vmatprep.subr.mxu0 0.0
        %726 = vmatpush1.msra.mxu0 0.0
        %727 = vmatprep.subr.mxu0 0.0
        %728 = vmatpush1.msra.mxu0 0.0
        %729 = vmatprep.subr.mxu0 0.0
        %730 = vmatpush1.msra.mxu0 0.0
        %731 = vmatprep.subr.mxu0 0.0
        %732 = vmatpush1.msra.mxu0 0.0
        %733 = vmatprep.subr.mxu0 0.0
        %734 = vmatpush1.msra.mxu0 0.0
        %735 = vmatprep.subr.mxu0 0.0
        %736 = vmatpush1.msra.mxu0 0.0
        %737 = vmatprep.subr.mxu0 0.0
        %738 = vmatpush1.msra.mxu0 0.0
        %739 = vmatprep.subr.mxu0 0.0
        %740 = vmatpush1.msra.mxu0 0.0
        %741 = vmatprep.subr.mxu0 0.0
        %742 = vmatpush1.msra.mxu0 0.0
        %743 = vmatprep.subr.mxu0 0.0
        %744 = vmatpush1.msra.mxu0 0.0
        %745 = vmatprep.subr.mxu0 0.0
        %746 = vmatpush1.msra.mxu0 0.0
        %747 = vmatprep.subr.mxu0 0.0
        %748 = vmatpush1.msra.mxu0 0.0
        %749 = vmatprep.subr.mxu0 0.0
        %750 = vmatpush1.msra.mxu0 0.0
        %751 = vmatprep.subr.mxu0 0.0
        %752 = vmatpush1.msra.mxu0 0.0
        %753 = vmatprep.subr.mxu0 0.0
        %754 = vmatpush1.msra.mxu0 %v711
        %755 = vmatprep.subr.mxu0 0.0
        %756 = vmatpush2.msra.mxu0 0.0
        %757 = vmatprep.subr.mxu0 0.0
        %758 = vmatpush2.msra.mxu0 0.0
        %759 = vmatprep.subr.mxu0 0.0
        %760 = vmatpush2.msra.mxu0 0.0
        %761 = vmatprep.subr.mxu0 0.0
        %762 = vmatpush2.msra.mxu0 0.0
        %763 = vmatprep.subr.mxu0 0.0
        %764 = vmatpush2.msra.mxu0 0.0
        %765 = vmatprep.subr.mxu0 0.0
        %766 = vmatpush2.msra.mxu0 0.0
        %767 = vmatprep.subr.mxu0 0.0
        %768 = vmatpush2.msra.mxu0 0.0
        %769 = vmatprep.subr.mxu0 0.0
        %770 = vmatpush2.msra.mxu0 0.0
        %771 = vmatprep.subr.mxu0 0.0
        %772 = vmatpush2.msra.mxu0 0.0
        %773 = vmatprep.subr.mxu0 0.0
        %774 = vmatpush2.msra.mxu0 0.0
        %775 = vmatprep.subr.mxu0 0.0
        %776 = vmatpush2.msra.mxu0 0.0
        %777 = vmatprep.subr.mxu0 0.0
        %778 = vmatpush2.msra.mxu0 0.0
        %779 = vmatprep.subr.mxu0 0.0
        %780 = vmatpush2.msra.mxu0 0.0
        %781 = vmatprep.subr.mxu0 0.0
        %782 = vmatpush2.msra.mxu0 0.0
        %783 = vmatprep.subr.mxu0 0.0
        %784 = vmatpush2.msra.mxu0 0.0
        %785 = vmatprep.subr.mxu0 0.0
        %786 = vmatpush2.msra.mxu0 0.0
        %787 = vmatprep.mubr.f32.mxu0 0.0
        %788 = vmatmul.mubr.f32.gmra.mxu0 %v721
        %v789 = vpop.f32.mrf.mxu0
        %v790 = vadd.f32 %v717, %v789
        %v791 = vpop.f32.mrf.mxu0
        %792 = vdwg.mxu0
        %v794 = vcombine.high %v790, %v790
        %v796 = vunpack.c.l.s4 1966171168
        %v797 = vunpack.c.0.s8 %v796
        %v798 = vlaneseq
        %v799 = vshrl.u32 %v798, 7
        %v800 = vsub.s32 %v797, %v799
        %v801 = vrot.slane %v790, %v800
        %v803 = vunpack.c.l.s4 1966171168
        %v804 = vunpack.c.0.s8 %v803
        %v805 = vlaneseq
        %v806 = vshrl.u32 %v805, 7
        %v807 = vsub.s32 %v804, %v806
        %v808 = vrot.slane %v794, %v807
        %v809 = vcombine.high %v801, %v801
        %v810 = vcombine.high %v808, %v808
        %v812 = vunpack.c.l.s4 1966171168
        %v813 = vunpack.c.0.s8 %v812
        %v814 = vlaneseq
        %v815 = vshrl.u32 %v814, 7
        %v816 = vsub.s32 %v813, %v815
        %v817 = vrot.slane %v801, %v816
        %v819 = vunpack.c.l.s4 1966171168
        %v820 = vunpack.c.0.s8 %v819
        %v821 = vlaneseq
        %v822 = vshrl.u32 %v821, 7
        %v823 = vsub.s32 %v820, %v822
        %v824 = vrot.slane %v808, %v823
        %v826 = vunpack.c.l.s4 1966171168
        %v827 = vunpack.c.0.s8 %v826
        %v828 = vlaneseq
        %v829 = vshrl.u32 %v828, 7
        %v830 = vsub.s32 %v827, %v829
        %v831 = vrot.slane %v809, %v830
        %v833 = vunpack.c.l.s4 1966171168
        %v834 = vunpack.c.0.s8 %v833
        %v835 = vlaneseq
        %v836 = vshrl.u32 %v835, 7
        %v837 = vsub.s32 %v834, %v836
        %v838 = vrot.slane %v810, %v837
        %v839 = vcombine.high %v817, %v817
        %v840 = vcombine.high %v824, %v824
        %v841 = vcombine.high %v831, %v831
        %v842 = vcombine.high %v838, %v838
        %v843 = vlaneseq
        %v844 = vshrl.u32 %v843, 7
        %v845 = vsub.s32 0, %v844
        %v846 = vrot.slane %v817, %v845
        %v847 = vlaneseq
        %v848 = vshrl.u32 %v847, 7
        %v849 = vsub.s32 0, %v848
        %v850 = vrot.slane %v831, %v849
        %v851 = vlaneseq
        %v852 = vshrl.u32 %v851, 7
        %v853 = vsub.s32 0, %v852
        %v854 = vrot.slane %v839, %v853
        %v855 = vlaneseq
        %v856 = vshrl.u32 %v855, 7
        %v857 = vsub.s32 0, %v856
        %v858 = vrot.slane %v841, %v857
        %v859 = vlaneseq
        %v860 = vshrl.u32 %v859, 7
        %v861 = vsub.s32 0, %v860
        %v862 = vrot.slane %v824, %v861
        %v863 = vlaneseq
        %v864 = vshrl.u32 %v863, 7
        %v865 = vsub.s32 0, %v864
        %v866 = vrot.slane %v838, %v865
        %v867 = vlaneseq
        %v868 = vshrl.u32 %v867, 7
        %v869 = vsub.s32 0, %v868
        %v870 = vrot.slane %v840, %v869
        %v871 = vlaneseq
        %v872 = vshrl.u32 %v871, 7
        %v873 = vsub.s32 0, %v872
        %v874 = vrot.slane %v842, %v873
        %883 = vrot.lane.b32.xlu0 %v790, 120
        %v884 = vpop.permute.xlu0 %883
        %v886 = vmul.f32 %v846, %v884
        %v887 = vmul.f32 %v850, %v884
        %v888 = vmul.f32 %v854, %v884
        %v889 = vmul.f32 %v858, %v884
        %v890 = vmul.f32 %v862, %v884
        %v891 = vmul.f32 %v866, %v884
        %v892 = vmul.f32 %v870, %v884
        %v893 = vmul.f32 %v874, %v884
        %v894 = vsel %vm719, %v886, -inf
        %v895 = vrot.slane %v894, 4
        %v896 = vmax.f32 %v894, %v895
        %v897 = vrot.slane %v896, 2
        %v898 = vmax.f32 %v896, %v897
        %v899 = vrot.slane %v898, 1
        %v900 = vmax.f32 %v898, %v899
        %v901 = vsel %vm719, %v887, -inf
        %v902 = vrot.slane %v901, 4
        %v903 = vmax.f32 %v901, %v902
        %v904 = vrot.slane %v903, 2
        %v905 = vmax.f32 %v903, %v904
        %v906 = vrot.slane %v905, 1
        %v907 = vmax.f32 %v905, %v906
        %v908 = vsel %vm719, %v888, -inf
        %v909 = vrot.slane %v908, 4
        %v910 = vmax.f32 %v908, %v909
        %v911 = vrot.slane %v910, 2
        %v912 = vmax.f32 %v910, %v911
        %v913 = vrot.slane %v912, 1
        %v914 = vmax.f32 %v912, %v913
        %v915 = vsel %vm719, %v889, -inf
        %v916 = vrot.slane %v915, 4
        %v917 = vmax.f32 %v915, %v916
        %v918 = vrot.slane %v917, 2
        %v919 = vmax.f32 %v917, %v918
        %v920 = vrot.slane %v919, 1
        %v921 = vmax.f32 %v919, %v920
        %v922 = vsel %vm719, %v890, -inf
        %v923 = vrot.slane %v922, 4
        %v924 = vmax.f32 %v922, %v923
        %v925 = vrot.slane %v924, 2
        %v926 = vmax.f32 %v924, %v925
        %v927 = vrot.slane %v926, 1
        %v928 = vmax.f32 %v926, %v927
        %v929 = vsel %vm719, %v891, -inf
        %v930 = vrot.slane %v929, 4
        %v931 = vmax.f32 %v929, %v930
        %v932 = vrot.slane %v931, 2
        %v933 = vmax.f32 %v931, %v932
        %v934 = vrot.slane %v933, 1
        %v935 = vmax.f32 %v933, %v934
        %v936 = vsel %vm719, %v892, -inf
        %v937 = vrot.slane %v936, 4
        %v938 = vmax.f32 %v936, %v937
        %v939 = vrot.slane %v938, 2
        %v940 = vmax.f32 %v938, %v939
        %v941 = vrot.slane %v940, 1
        %v942 = vmax.f32 %v940, %v941
        %v943 = vsel %vm719, %v893, -inf
        %v944 = vrot.slane %v943, 4
        %v945 = vmax.f32 %v943, %v944
        %v946 = vrot.slane %v945, 2
        %v947 = vmax.f32 %v945, %v946
        %v948 = vrot.slane %v947, 1
        %v949 = vmax.f32 %v947, %v948
        %v950 = vsub.f32 %v886, %v900
        %v951 = vsub.f32 %v887, %v907
        %v952 = vsub.f32 %v888, %v914
        %v953 = vsub.f32 %v889, %v921
        %v954 = vsub.f32 %v890, %v928
        %v955 = vsub.f32 %v891, %v935
        %v956 = vsub.f32 %v892, %v942
        %v957 = vsub.f32 %v893, %v949
        %v958 = vmul.f32 %v950, 1.442695
        %v959 = vpow.pop %v958
        %v960 = vmul.f32 %v951, 1.442695
        %v961 = vpow.pop %v960
        %v962 = vmul.f32 %v952, 1.442695
        %v963 = vpow.pop %v962
        %v964 = vmul.f32 %v953, 1.442695
        %v965 = vpow.pop %v964
        %v966 = vmul.f32 %v954, 1.442695
        %v967 = vpow.pop %v966
        %v968 = vmul.f32 %v955, 1.442695
        %v969 = vpow.pop %v968
        %v970 = vmul.f32 %v956, 1.442695
        %v971 = vpow.pop %v970
        %v972 = vmul.f32 %v957, 1.442695
        %v973 = vpow.pop %v972
        %v974 = vsel %vm719, %v959, 0.0
        %v975 = vrot.slane %v974, 4
        %v976 = vadd.f32 %v974, %v975
        %v977 = vrot.slane %v976, 2
        %v978 = vadd.f32 %v976, %v977
        %v979 = vrot.slane %v978, 1
        %v980 = vadd.f32 %v978, %v979
        %v981 = vsel %vm719, %v961, 0.0
        %v982 = vrot.slane %v981, 4
        %v983 = vadd.f32 %v981, %v982
        %v984 = vrot.slane %v983, 2
        %v985 = vadd.f32 %v983, %v984
        %v986 = vrot.slane %v985, 1
        %v987 = vadd.f32 %v985, %v986
        %v988 = vsel %vm719, %v963, 0.0
        %v989 = vrot.slane %v988, 4
        %v990 = vadd.f32 %v988, %v989
        %v991 = vrot.slane %v990, 2
        %v992 = vadd.f32 %v990, %v991
        %v993 = vrot.slane %v992, 1
        %v994 = vadd.f32 %v992, %v993
        %v995 = vsel %vm719, %v965, 0.0
        %v996 = vrot.slane %v995, 4
        %v997 = vadd.f32 %v995, %v996
        %v998 = vrot.slane %v997, 2
        %v999 = vadd.f32 %v997, %v998
        %v1000 = vrot.slane %v999, 1
        %v1001 = vadd.f32 %v999, %v1000
        %v1002 = vsel %vm719, %v967, 0.0
        %v1003 = vrot.slane %v1002, 4
        %v1004 = vadd.f32 %v1002, %v1003
        %v1005 = vrot.slane %v1004, 2
        %v1006 = vadd.f32 %v1004, %v1005
        %v1007 = vrot.slane %v1006, 1
        %v1008 = vadd.f32 %v1006, %v1007
        %v1009 = vsel %vm719, %v969, 0.0
        %v1010 = vrot.slane %v1009, 4
        %v1011 = vadd.f32 %v1009, %v1010
        %v1012 = vrot.slane %v1011, 2
        %v1013 = vadd.f32 %v1011, %v1012
        %v1014 = vrot.slane %v1013, 1
        %v1015 = vadd.f32 %v1013, %v1014
        %v1016 = vsel %vm719, %v971, 0.0
        %v1017 = vrot.slane %v1016, 4
        %v1018 = vadd.f32 %v1016, %v1017
        %v1019 = vrot.slane %v1018, 2
        %v1020 = vadd.f32 %v1018, %v1019
        %v1021 = vrot.slane %v1020, 1
        %v1022 = vadd.f32 %v1020, %v1021
        %v1023 = vsel %vm719, %v973, 0.0
        %v1024 = vrot.slane %v1023, 4
        %v1025 = vadd.f32 %v1023, %v1024
        %v1026 = vrot.slane %v1025, 2
        %v1027 = vadd.f32 %v1025, %v1026
        %v1028 = vrot.slane %v1027, 1
        %v1029 = vadd.f32 %v1027, %v1028
        %v1030 = vrcp.pop %v980
        %v1031 = vrcp.pop %v987
        %v1032 = vrcp.pop %v994
        %v1033 = vrcp.pop %v1001
        %v1034 = vrcp.pop %v1008
        %v1035 = vrcp.pop %v1015
        %v1036 = vrcp.pop %v1022
        %v1037 = vrcp.pop %v1029
        %v1038 = vmul.f32 %v959, %v1030
        %v1039 = vmul.f32 %v961, %v1031
        %v1040 = vmul.f32 %v963, %v1032
        %v1041 = vmul.f32 %v965, %v1033
        %v1042 = vmul.f32 %v967, %v1034
        %v1043 = vmul.f32 %v969, %v1035
        %v1044 = vmul.f32 %v971, %v1036
        %v1045 = vmul.f32 %v973, %v1037
        %1046 = vrot.lane.b32.xlu0 %v790, 112
        %v1047 = vpop.permute.xlu0 %1046
        %v1049 = vmul.f32 %v1038, %v1047
        %v1050 = vmul.f32 %v1039, %v1047
        %v1051 = vmul.f32 %v1040, %v1047
        %v1052 = vmul.f32 %v1041, %v1047
        %v1053 = vmul.f32 %v1042, %v1047
        %v1054 = vmul.f32 %v1043, %v1047
        %v1055 = vmul.f32 %v1044, %v1047
        %v1056 = vmul.f32 %v1045, %v1047
        %v1057 = vsel %vm719, %v1049, 0.0
        %v1058 = vrot.slane %v1057, 4
        %v1059 = vadd.f32 %v1057, %v1058
        %v1060 = vrot.slane %v1059, 2
        %v1061 = vadd.f32 %v1059, %v1060
        %v1062 = vrot.slane %v1061, 1
        %v1063 = vadd.f32 %v1061, %v1062
        %v1064 = vsel %vm719, %v1050, 0.0
        %v1065 = vrot.slane %v1064, 4
        %v1066 = vadd.f32 %v1064, %v1065
        %v1067 = vrot.slane %v1066, 2
        %v1068 = vadd.f32 %v1066, %v1067
        %v1069 = vrot.slane %v1068, 1
        %v1070 = vadd.f32 %v1068, %v1069
        %v1071 = vsel %vm719, %v1051, 0.0
        %v1072 = vrot.slane %v1071, 4
        %v1073 = vadd.f32 %v1071, %v1072
        %v1074 = vrot.slane %v1073, 2
        %v1075 = vadd.f32 %v1073, %v1074
        %v1076 = vrot.slane %v1075, 1
        %v1077 = vadd.f32 %v1075, %v1076
        %v1078 = vsel %vm719, %v1052, 0.0
        %v1079 = vrot.slane %v1078, 4
        %v1080 = vadd.f32 %v1078, %v1079
        %v1081 = vrot.slane %v1080, 2
        %v1082 = vadd.f32 %v1080, %v1081
        %v1083 = vrot.slane %v1082, 1
        %v1084 = vadd.f32 %v1082, %v1083
        %v1085 = vsel %vm719, %v1053, 0.0
        %v1086 = vrot.slane %v1085, 4
        %v1087 = vadd.f32 %v1085, %v1086
        %v1088 = vrot.slane %v1087, 2
        %v1089 = vadd.f32 %v1087, %v1088
        %v1090 = vrot.slane %v1089, 1
        %v1091 = vadd.f32 %v1089, %v1090
        %v1092 = vsel %vm719, %v1054, 0.0
        %v1093 = vrot.slane %v1092, 4
        %v1094 = vadd.f32 %v1092, %v1093
        %v1095 = vrot.slane %v1094, 2
        %v1096 = vadd.f32 %v1094, %v1095
        %v1097 = vrot.slane %v1096, 1
        %v1098 = vadd.f32 %v1096, %v1097
        %v1099 = vsel %vm719, %v1055, 0.0
        %v1100 = vrot.slane %v1099, 4
        %v1101 = vadd.f32 %v1099, %v1100
        %v1102 = vrot.slane %v1101, 2
        %v1103 = vadd.f32 %v1101, %v1102
        %v1104 = vrot.slane %v1103, 1
        %v1105 = vadd.f32 %v1103, %v1104
        %v1106 = vsel %vm719, %v1056, 0.0
        %v1107 = vrot.slane %v1106, 4
        %v1108 = vadd.f32 %v1106, %v1107
        %v1109 = vrot.slane %v1108, 2
        %v1110 = vadd.f32 %v1108, %v1109
        %v1111 = vrot.slane %v1110, 1
        %v1112 = vadd.f32 %v1110, %v1111
        %v1113 = vld [vmem:[%s4] sm:$0xff]
        %v1114 = vld [vmem:[%s5] sm:$0x1]
        %v1116 = vlaneseq
        %v1117 = vshrl.u32 %v1116, 7
        %v1118 = vsub.s32 0, %v1117
        %v1119 = vrot.slane %v1114, %v1118
        %vm1129 = vcmask 1041409
        %v1130 = vsel %vm1129, %v1070, %v1063
        %vm1131 = vcmask 1042434
        %v1132 = vsel %vm1131, %v1077, %v1130
        %vm1133 = vcmask 1043459
        %v1134 = vsel %vm1133, %v1084, %v1132
        %vm1135 = vcmask 1044484
        %v1136 = vsel %vm1135, %v1091, %v1134
        %vm1137 = vcmask 1045509
        %v1138 = vsel %vm1137, %v1098, %v1136
        %vm1139 = vcmask 1046534
        %v1140 = vsel %vm1139, %v1105, %v1138
        %vm1141 = vcmask 1047559
        %v1142 = vsel %vm1141, %v1112, %v1140
        %v1143 = vsel %vm719, %v1142, 0
        %1145 = vmatprep.subr.mxu0 0.0
        %1146 = vmatpush1.msra.mxu0 0.0
        %1147 = vmatprep.subr.mxu0 0.0
        %1148 = vmatpush1.msra.mxu0 0.0
        %1149 = vmatprep.subr.mxu0 0.0
        %1150 = vmatpush1.msra.mxu0 0.0
        %1151 = vmatprep.subr.mxu0 0.0
        %1152 = vmatpush1.msra.mxu0 0.0
        %1153 = vmatprep.subr.mxu0 0.0
        %1154 = vmatpush1.msra.mxu0 0.0
        %1155 = vmatprep.subr.mxu0 0.0
        %1156 = vmatpush1.msra.mxu0 0.0
        %1157 = vmatprep.subr.mxu0 0.0
        %1158 = vmatpush1.msra.mxu0 0.0
        %1159 = vmatprep.subr.mxu0 0.0
        %1160 = vmatpush1.msra.mxu0 0.0
        %1161 = vmatprep.subr.mxu0 0.0
        %1162 = vmatpush1.msra.mxu0 0.0
        %1163 = vmatprep.subr.mxu0 0.0
        %1164 = vmatpush1.msra.mxu0 0.0
        %1165 = vmatprep.subr.mxu0 0.0
        %1166 = vmatpush1.msra.mxu0 0.0
        %1167 = vmatprep.subr.mxu0 0.0
        %1168 = vmatpush1.msra.mxu0 0.0
        %1169 = vmatprep.subr.mxu0 0.0
        %1170 = vmatpush1.msra.mxu0 0.0
        %1171 = vmatprep.subr.mxu0 0.0
        %1172 = vmatpush1.msra.mxu0 0.0
        %1173 = vmatprep.subr.mxu0 0.0
        %1174 = vmatpush1.msra.mxu0 0.0
        %1175 = vmatprep.subr.mxu0 0.0
        %1176 = vmatpush1.msra.mxu0 %v1113
        %1177 = vmatprep.subr.mxu0 0.0
        %1178 = vmatpush2.msra.mxu0 0.0
        %1179 = vmatprep.subr.mxu0 0.0
        %1180 = vmatpush2.msra.mxu0 0.0
        %1181 = vmatprep.subr.mxu0 0.0
        %1182 = vmatpush2.msra.mxu0 0.0
        %1183 = vmatprep.subr.mxu0 0.0
        %1184 = vmatpush2.msra.mxu0 0.0
        %1185 = vmatprep.subr.mxu0 0.0
        %1186 = vmatpush2.msra.mxu0 0.0
        %1187 = vmatprep.subr.mxu0 0.0
        %1188 = vmatpush2.msra.mxu0 0.0
        %1189 = vmatprep.subr.mxu0 0.0
        %1190 = vmatpush2.msra.mxu0 0.0
        %1191 = vmatprep.subr.mxu0 0.0
        %1192 = vmatpush2.msra.mxu0 0.0
        %1193 = vmatprep.subr.mxu0 0.0
        %1194 = vmatpush2.msra.mxu0 0.0
        %1195 = vmatprep.subr.mxu0 0.0
        %1196 = vmatpush2.msra.mxu0 0.0
        %1197 = vmatprep.subr.mxu0 0.0
        %1198 = vmatpush2.msra.mxu0 0.0
        %1199 = vmatprep.subr.mxu0 0.0
        %1200 = vmatpush2.msra.mxu0 0.0
        %1201 = vmatprep.subr.mxu0 0.0
        %1202 = vmatpush2.msra.mxu0 0.0
        %1203 = vmatprep.subr.mxu0 0.0
        %1204 = vmatpush2.msra.mxu0 0.0
        %1205 = vmatprep.subr.mxu0 0.0
        %1206 = vmatpush2.msra.mxu0 0.0
        %1207 = vmatprep.subr.mxu0 0.0
        %1208 = vmatpush2.msra.mxu0 0.0
        %1209 = vmatprep.mubr.f32.mxu0 0.0
        %1210 = vmatmul.mubr.f32.gmra.mxu0 %v1143
        %v1211 = vpop.f32.mrf.mxu0
        %v1212 = vadd.f32 %v1119, %v1211
        %v1213 = vpop.f32.mrf.mxu0
        %1214 = vdwg.mxu0
        %v1215 = vadd.f32 %v709, %v1212
        %v1216 = vld [vmem:[%s6] sm:$0x1]
        %v1217 = vld [vmem:[%s7] sm:$0x1]
        %v1218 = vsel %vm719, %v1215, 0.0
        %1219 = vadd.xlane.f32.xlu0 %v1218
        %v1220 = vpop.xlane.xlu0 %1219
        %v1221 = vrcp.pop 8.0
        %v1222 = vmul.f32 %v1220, %v1221
        %v1223 = vsub.f32 %v1215, %v1222
        %v1224 = vmul.f32 %v1223, %v1223
        %v1225 = vsel %vm719, %v1224, 0.0
        %1226 = vadd.xlane.f32.xlu0 %v1225
        %v1227 = vpop.xlane.xlu0 %1226
        %v1228 = vmul.f32 %v1227, %v1221
        %v1229 = vadd.f32 %v1228, 1e-05
        %v1230 = vrsqrt.pop %v1229
        %v1231 = vmul.f32 %v1223, %v1230
        %v1233 = vlaneseq
        %v1234 = vshrl.u32 %v1233, 7
        %v1235 = vsub.s32 0, %v1234
        %v1236 = vrot.slane %v1216, %v1235
        %v1238 = vmul.f32 %v1231, %v1236
        %v1240 = vlaneseq
        %v1241 = vshrl.u32 %v1240, 7
        %v1242 = vsub.s32 0, %v1241
        %v1243 = vrot.slane %v1217, %v1242
        %v1245 = vadd.f32 %v1238, %v1243
        %v1246 = vld [vmem:[%s8] sm:$0xff]
        %v1247 = vld [vmem:[%s9] sm:$0x1]
        %v1249 = vlaneseq
        %v1250 = vshrl.u32 %v1249, 7
        %v1251 = vsub.s32 0, %v1250
        %v1252 = vrot.slane %v1247, %v1251
        %v1255 = vsel %vm719, %v1245, 0
        %1257 = vmatprep.subr.mxu0 0.0
        %1258 = vmatpush1.msra.mxu0 0.0
        %1259 = vmatprep.subr.mxu0 0.0
        %1260 = vmatpush1.msra.mxu0 0.0
        %1261 = vmatprep.subr.mxu0 0.0
        %1262 = vmatpush1.msra.mxu0 0.0
        %1263 = vmatprep.subr.mxu0 0.0
        %1264 = vmatpush1.msra.mxu0 0.0
        %1265 = vmatprep.subr.mxu0 0.0
        %1266 = vmatpush1.msra.mxu0 0.0
        %1267 = vmatprep.subr.mxu0 0.0
        %1268 = vmatpush1.msra.mxu0 0.0
        %1269 = vmatprep.subr.mxu0 0.0
        %1270 = vmatpush1.msra.mxu0 0.0
        %1271 = vmatprep.subr.mxu0 0.0
        %1272 = vmatpush1.msra.mxu0 0.0
        %1273 = vmatprep.subr.mxu0 0.0
        %1274 = vmatpush1.msra.mxu0 0.0
        %1275 = vmatprep.subr.mxu0 0.0
        %1276 = vmatpush1.msra.mxu0 0.0
        %1277 = vmatprep.subr.mxu0 0.0
        %1278 = vmatpush1.msra.mxu0 0.0
        %1279 = vmatprep.subr.mxu0 0.0
        %1280 = vmatpush1.msra.mxu0 0.0
        %1281 = vmatprep.subr.mxu0 0.0
        %1282 = vmatpush1.msra.mxu0 0.0
        %1283 = vmatprep.subr.mxu0 0.0
        %1284 = vmatpush1.msra.mxu0 0.0
        %1285 = vmatprep.subr.mxu0 0.0
        %1286 = vmatpush1.msra.mxu0 0.0
        %1287 = vmatprep.subr.mxu0 0.0
        %1288 = vmatpush1.msra.mxu0 %v1246
        %1289 = vmatprep.subr.mxu0 0.0
        %1290 = vmatpush2.msra.mxu0 0.0
        %1291 = vmatprep.subr.mxu0 0.0
        %1292 = vmatpush2.msra.mxu0 0.0
        %1293 = vmatprep.subr.mxu0 0.0
        %1294 = vmatpush2.msra.mxu0 0.0
        %1295 = vmatprep.subr.mxu0 0.0
        %1296 = vmatpush2.msra.mxu0 0.0
        %1297 = vmatprep.subr.mxu0 0.0
        %1298 = vmatpush2.msra.mxu0 0.0
        %1299 = vmatprep.subr.mxu0 0.0
        %1300 = vmatpush2.msra.mxu0 0.0
        %1301 = vmatprep.subr.mxu0 0.0
        %1302 = vmatpush2.msra.mxu0 0.0
        %1303 = vmatprep.subr.mxu0 0.0
        %1304 = vmatpush2.msra.mxu0 0.0
        %1305 = vmatprep.subr.mxu0 0.0
        %1306 = vmatpush2.msra.mxu0 0.0
        %1307 = vmatprep.subr.mxu0 0.0
        %1308 = vmatpush2.msra.mxu0 0.0
        %1309 = vmatprep.subr.mxu0 0.0
        %1310 = vmatpush2.msra.mxu0 0.0
        %1311 = vmatprep.subr.mxu0 0.0
        %1312 = vmatpush2.msra.mxu0 0.0
        %1313 = vmatprep.subr.mxu0 0.0
        %1314 = vmatpush2.msra.mxu0 0.0
        %1315 = vmatprep.subr.mxu0 0.0
        %1316 = vmatpush2.msra.mxu0 0.0
        %1317 = vmatprep.subr.mxu0 0.0
        %1318 = vmatpush2.msra.mxu0 0.0
        %1319 = vmatprep.subr.mxu0 0.0
        %1320 = vmatpush2.msra.mxu0 0.0
        %1321 = vmatprep.mubr.f32.mxu0 0.0
        %1322 = vmatmul.mubr.f32.gmra.mxu0 %v1255
        %v1323 = vpop.f32.mrf.mxu0
        %v1324 = vadd.f32 %v1252, %v1323
        %v1325 = vpop.f32.mrf.mxu0
        %1326 = vdwg.mxu0
        %v1327 = vld [vmem:[%s10] sm:$0xff]
        %v1328 = vld [vmem:[%s11] sm:$0x1]
        %v1330 = vlaneseq
        %v1331 = vshrl.u32 %v1330, 7
        %v1332 = vsub.s32 0, %v1331
        %v1333 = vrot.slane %v1328, %v1332
        %v1336 = vsel %vm719, %v710, 0
        %1338 = vmatprep.subr.mxu0 0.0
        %1339 = vmatpush1.msra.mxu0 0.0
        %1340 = vmatprep.subr.mxu0 0.0
        %1341 = vmatpush1.msra.mxu0 0.0
        %1342 = vmatprep.subr.mxu0 0.0
        %1343 = vmatpush1.msra.mxu0 0.0
        %1344 = vmatprep.subr.mxu0 0.0
        %1345 = vmatpush1.msra.mxu0 0.0
        %1346 = vmatprep.subr.mxu0 0.0
        %1347 = vmatpush1.msra.mxu0 0.0
        %1348 = vmatprep.subr.mxu0 0.0
        %1349 = vmatpush1.msra.mxu0 0.0
        %1350 = vmatprep.subr.mxu0 0.0
        %1351 = vmatpush1.msra.mxu0 0.0
        %1352 = vmatprep.subr.mxu0 0.0
        %1353 = vmatpush1.msra.mxu0 0.0
        %1354 = vmatprep.subr.mxu0 0.0
        %1355 = vmatpush1.msra.mxu0 0.0
        %1356 = vmatprep.subr.mxu0 0.0
        %1357 = vmatpush1.msra.mxu0 0.0
        %1358 = vmatprep.subr.mxu0 0.0
        %1359 = vmatpush1.msra.mxu0 0.0
        %1360 = vmatprep.subr.mxu0 0.0
        %1361 = vmatpush1.msra.mxu0 0.0
        %1362 = vmatprep.subr.mxu0 0.0
        %1363 = vmatpush1.msra.mxu0 0.0
        %1364 = vmatprep.subr.mxu0 0.0
        %1365 = vmatpush1.msra.mxu0 0.0
        %1366 = vmatprep.subr.mxu0 0.0
        %1367 = vmatpush1.msra.mxu0 0.0
        %1368 = vmatprep.subr.mxu0 0.0
        %1369 = vmatpush1.msra.mxu0 %v1327
        %1370 = vmatprep.subr.mxu0 0.0
        %1371 = vmatpush2.msra.mxu0 0.0
        %1372 = vmatprep.subr.mxu0 0.0
        %1373 = vmatpush2.msra.mxu0 0.0
        %1374 = vmatprep.subr.mxu0 0.0
        %1375 = vmatpush2.msra.mxu0 0.0
        %1376 = vmatprep.subr.mxu0 0.0
        %1377 = vmatpush2.msra.mxu0 0.0
        %1378 = vmatprep.subr.mxu0 0.0
        %1379 = vmatpush2.msra.mxu0 0.0
        %1380 = vmatprep.subr.mxu0 0.0
        %1381 = vmatpush2.msra.mxu0 0.0
        %1382 = vmatprep.subr.mxu0 0.0
        %1383 = vmatpush2.msra.mxu0 0.0
        %1384 = vmatprep.subr.mxu0 0.0
        %1385 = vmatpush2.msra.mxu0 0.0
        %1386 = vmatprep.subr.mxu0 0.0
        %1387 = vmatpush2.msra.mxu0 0.0
        %1388 = vmatprep.subr.mxu0 0.0
        %1389 = vmatpush2.msra.mxu0 0.0
        %1390 = vmatprep.subr.mxu0 0.0
        %1391 = vmatpush2.msra.mxu0 0.0
        %1392 = vmatprep.subr.mxu0 0.0
        %1393 = vmatpush2.msra.mxu0 0.0
        %1394 = vmatprep.subr.mxu0 0.0
        %1395 = vmatpush2.msra.mxu0 0.0
        %1396 = vmatprep.subr.mxu0 0.0
        %1397 = vmatpush2.msra.mxu0 0.0
        %1398 = vmatprep.subr.mxu0 0.0
        %1399 = vmatpush2.msra.mxu0 0.0
        %1400 = vmatprep.subr.mxu0 0.0
        %1401 = vmatpush2.msra.mxu0 0.0
        %1402 = vmatprep.mubr.f32.mxu0 0.0
        %1403 = vmatmul.mubr.f32.gmra.mxu0 %v1336
        %v1404 = vpop.f32.mrf.mxu0
        %v1405 = vadd.f32 %v1333, %v1404
        %v1406 = vpop.f32.mrf.mxu0
        %1407 = vdwg.mxu0
        %v1409 = vcombine.high %v1324, %v1324
        %v1411 = vunpack.c.l.s4 1966171168
        %v1412 = vunpack.c.0.s8 %v1411
        %v1413 = vlaneseq
        %v1414 = vshrl.u32 %v1413, 7
        %v1415 = vsub.s32 %v1412, %v1414
        %v1416 = vrot.slane %v1324, %v1415
        %v1418 = vunpack.c.l.s4 1966171168
        %v1419 = vunpack.c.0.s8 %v1418
        %v1420 = vlaneseq
        %v1421 = vshrl.u32 %v1420, 7
        %v1422 = vsub.s32 %v1419, %v1421
        %v1423 = vrot.slane %v1409, %v1422
        %v1424 = vcombine.high %v1416, %v1416
        %v1425 = vcombine.high %v1423, %v1423
        %v1427 = vunpack.c.l.s4 1966171168
        %v1428 = vunpack.c.0.s8 %v1427
        %v1429 = vlaneseq
        %v1430 = vshrl.u32 %v1429, 7
        %v1431 = vsub.s32 %v1428, %v1430
        %v1432 = vrot.slane %v1416, %v1431
        %v1434 = vunpack.c.l.s4 1966171168
        %v1435 = vunpack.c.0.s8 %v1434
        %v1436 = vlaneseq
        %v1437 = vshrl.u32 %v1436, 7
        %v1438 = vsub.s32 %v1435, %v1437
        %v1439 = vrot.slane %v1423, %v1438
        %v1441 = vunpack.c.l.s4 1966171168
        %v1442 = vunpack.c.0.s8 %v1441
        %v1443 = vlaneseq
        %v1444 = vshrl.u32 %v1443, 7
        %v1445 = vsub.s32 %v1442, %v1444
        %v1446 = vrot.slane %v1424, %v1445
        %v1448 = vunpack.c.l.s4 1966171168
        %v1449 = vunpack.c.0.s8 %v1448
        %v1450 = vlaneseq
        %v1451 = vshrl.u32 %v1450, 7
        %v1452 = vsub.s32 %v1449, %v1451
        %v1453 = vrot.slane %v1425, %v1452
        %v1454 = vcombine.high %v1432, %v1432
        %v1455 = vcombine.high %v1439, %v1439
        %v1456 = vcombine.high %v1446, %v1446
        %v1457 = vcombine.high %v1453, %v1453
        %v1458 = vlaneseq
        %v1459 = vshrl.u32 %v1458, 7
        %v1460 = vsub.s32 0, %v1459
        %v1461 = vrot.slane %v1432, %v1460
        %v1462 = vlaneseq
        %v1463 = vshrl.u32 %v1462, 7
        %v1464 = vsub.s32 0, %v1463
        %v1465 = vrot.slane %v1446, %v1464
        %v1466 = vlaneseq
        %v1467 = vshrl.u32 %v1466, 7
        %v1468 = vsub.s32 0, %v1467
        %v1469 = vrot.slane %v1454, %v1468
        %v1470 = vlaneseq
        %v1471 = vshrl.u32 %v1470, 7
        %v1472 = vsub.s32 0, %v1471
        %v1473 = vrot.slane %v1456, %v1472
        %v1474 = vlaneseq
        %v1475 = vshrl.u32 %v1474, 7
        %v1476 = vsub.s32 0, %v1475
        %v1477 = vrot.slane %v1439, %v1476
        %v1478 = vlaneseq
        %v1479 = vshrl.u32 %v1478, 7
        %v1480 = vsub.s32 0, %v1479
        %v1481 = vrot.slane %v1453, %v1480
        %v1482 = vlaneseq
        %v1483 = vshrl.u32 %v1482, 7
        %v1484 = vsub.s32 0, %v1483
        %v1485 = vrot.slane %v1455, %v1484
        %v1486 = vlaneseq
        %v1487 = vshrl.u32 %v1486, 7
        %v1488 = vsub.s32 0, %v1487
        %v1489 = vrot.slane %v1457, %v1488
        %v1498 = vmul.f32 %v1461, %v1405
        %v1499 = vmul.f32 %v1465, %v1405
        %v1500 = vmul.f32 %v1469, %v1405
        %v1501 = vmul.f32 %v1473, %v1405
        %v1502 = vmul.f32 %v1477, %v1405
        %v1503 = vmul.f32 %v1481, %v1405
        %v1504 = vmul.f32 %v1485, %v1405
        %v1505 = vmul.f32 %v1489, %v1405
        %v1506 = vsel %vm719, %v1498, -inf
        %v1507 = vrot.slane %v1506, 4
        %v1508 = vmax.f32 %v1506, %v1507
        %v1509 = vrot.slane %v1508, 2
        %v1510 = vmax.f32 %v1508, %v1509
        %v1511 = vrot.slane %v1510, 1
        %v1512 = vmax.f32 %v1510, %v1511
        %v1513 = vsel %vm719, %v1499, -inf
        %v1514 = vrot.slane %v1513, 4
        %v1515 = vmax.f32 %v1513, %v1514
        %v1516 = vrot.slane %v1515, 2
        %v1517 = vmax.f32 %v1515, %v1516
        %v1518 = vrot.slane %v1517, 1
        %v1519 = vmax.f32 %v1517, %v1518
        %v1520 = vsel %vm719, %v1500, -inf
        %v1521 = vrot.slane %v1520, 4
        %v1522 = vmax.f32 %v1520, %v1521
        %v1523 = vrot.slane %v1522, 2
        %v1524 = vmax.f32 %v1522, %v1523
        %v1525 = vrot.slane %v1524, 1
        %v1526 = vmax.f32 %v1524, %v1525
        %v1527 = vsel %vm719, %v1501, -inf
        %v1528 = vrot.slane %v1527, 4
        %v1529 = vmax.f32 %v1527, %v1528
        %v1530 = vrot.slane %v1529, 2
        %v1531 = vmax.f32 %v1529, %v1530
        %v1532 = vrot.slane %v1531, 1
        %v1533 = vmax.f32 %v1531, %v1532
        %v1534 = vsel %vm719, %v1502, -inf
        %v1535 = vrot.slane %v1534, 4
        %v1536 = vmax.f32 %v1534, %v1535
        %v1537 = vrot.slane %v1536, 2
        %v1538 = vmax.f32 %v1536, %v1537
        %v1539 = vrot.slane %v1538, 1
        %v1540 = vmax.f32 %v1538, %v1539
        %v1541 = vsel %vm719, %v1503, -inf
        %v1542 = vrot.slane %v1541, 4
        %v1543 = vmax.f32 %v1541, %v1542
        %v1544 = vrot.slane %v1543, 2
        %v1545 = vmax.f32 %v1543, %v1544
        %v1546 = vrot.slane %v1545, 1
        %v1547 = vmax.f32 %v1545, %v1546
        %v1548 = vsel %vm719, %v1504, -inf
        %v1549 = vrot.slane %v1548, 4
        %v1550 = vmax.f32 %v1548, %v1549
        %v1551 = vrot.slane %v1550, 2
        %v1552 = vmax.f32 %v1550, %v1551
        %v1553 = vrot.slane %v1552, 1
        %v1554 = vmax.f32 %v1552, %v1553
        %v1555 = vsel %vm719, %v1505, -inf
        %v1556 = vrot.slane %v1555, 4
        %v1557 = vmax.f32 %v1555, %v1556
        %v1558 = vrot.slane %v1557, 2
        %v1559 = vmax.f32 %v1557, %v1558
        %v1560 = vrot.slane %v1559, 1
        %v1561 = vmax.f32 %v1559, %v1560
        %v1562 = vsub.f32 %v1498, %v1512
        %v1563 = vsub.f32 %v1499, %v1519
        %v1564 = vsub.f32 %v1500, %v1526
        %v1565 = vsub.f32 %v1501, %v1533
        %v1566 = vsub.f32 %v1502, %v1540
        %v1567 = vsub.f32 %v1503, %v1547
        %v1568 = vsub.f32 %v1504, %v1554
        %v1569 = vsub.f32 %v1505, %v1561
        %v1570 = vmul.f32 %v1562, 1.442695
        %v1571 = vpow.pop %v1570
        %v1572 = vmul.f32 %v1563, 1.442695
        %v1573 = vpow.pop %v1572
        %v1574 = vmul.f32 %v1564, 1.442695
        %v1575 = vpow.pop %v1574
        %v1576 = vmul.f32 %v1565, 1.442695
        %v1577 = vpow.pop %v1576
        %v1578 = vmul.f32 %v1566, 1.442695
        %v1579 = vpow.pop %v1578
        %v1580 = vmul.f32 %v1567, 1.442695
        %v1581 = vpow.pop %v1580
        %v1582 = vmul.f32 %v1568, 1.442695
        %v1583 = vpow.pop %v1582
        %v1584 = vmul.f32 %v1569, 1.442695
        %v1585 = vpow.pop %v1584
        %v1586 = vsel %vm719, %v1571, 0.0
        %v1587 = vrot.slane %v1586, 4
        %v1588 = vadd.f32 %v1586, %v1587
        %v1589 = vrot.slane %v1588, 2
        %v1590 = vadd.f32 %v1588, %v1589
        %v1591 = vrot.slane %v1590, 1
        %v1592 = vadd.f32 %v1590, %v1591
        %v1593 = vsel %vm719, %v1573, 0.0
        %v1594 = vrot.slane %v1593, 4
        %v1595 = vadd.f32 %v1593, %v1594
        %v1596 = vrot.slane %v1595, 2
        %v1597 = vadd.f32 %v1595, %v1596
        %v1598 = vrot.slane %v1597, 1
        %v1599 = vadd.f32 %v1597, %v1598
        %v1600 = vsel %vm719, %v1575, 0.0
        %v1601 = vrot.slane %v1600, 4
        %v1602 = vadd.f32 %v1600, %v1601
        %v1603 = vrot.slane %v1602, 2
        %v1604 = vadd.f32 %v1602, %v1603
        %v1605 = vrot.slane %v1604, 1
        %v1606 = vadd.f32 %v1604, %v1605
        %v1607 = vsel %vm719, %v1577, 0.0
        %v1608 = vrot.slane %v1607, 4
        %v1609 = vadd.f32 %v1607, %v1608
        %v1610 = vrot.slane %v1609, 2
        %v1611 = vadd.f32 %v1609, %v1610
        %v1612 = vrot.slane %v1611, 1
        %v1613 = vadd.f32 %v1611, %v1612
        %v1614 = vsel %vm719, %v1579, 0.0
        %v1615 = vrot.slane %v1614, 4
        %v1616 = vadd.f32 %v1614, %v1615
        %v1617 = vrot.slane %v1616, 2
        %v1618 = vadd.f32 %v1616, %v1617
        %v1619 = vrot.slane %v1618, 1
        %v1620 = vadd.f32 %v1618, %v1619
        %v1621 = vsel %vm719, %v1581, 0.0
        %v1622 = vrot.slane %v1621, 4
        %v1623 = vadd.f32 %v1621, %v1622
        %v1624 = vrot.slane %v1623, 2
        %v1625 = vadd.f32 %v1623, %v1624
        %v1626 = vrot.slane %v1625, 1
        %v1627 = vadd.f32 %v1625, %v1626
        %v1628 = vsel %vm719, %v1583, 0.0
        %v1629 = vrot.slane %v1628, 4
        %v1630 = vadd.f32 %v1628, %v1629
        %v1631 = vrot.slane %v1630, 2
        %v1632 = vadd.f32 %v1630, %v1631
        %v1633 = vrot.slane %v1632, 1
        %v1634 = vadd.f32 %v1632, %v1633
        %v1635 = vsel %vm719, %v1585, 0.0
        %v1636 = vrot.slane %v1635, 4
        %v1637 = vadd.f32 %v1635, %v1636
        %v1638 = vrot.slane %v1637, 2
        %v1639 = vadd.f32 %v1637, %v1638
        %v1640 = vrot.slane %v1639, 1
        %v1641 = vadd.f32 %v1639, %v1640
        %v1642 = vrcp.pop %v1592
        %v1643 = vrcp.pop %v1599
        %v1644 = vrcp.pop %v1606
        %v1645 = vrcp.pop %v1613
        %v1646 = vrcp.pop %v1620
        %v1647 = vrcp.pop %v1627
        %v1648 = vrcp.pop %v1634
        %v1649 = vrcp.pop %v1641
        %v1650 = vmul.f32 %v1571, %v1642
        %v1651 = vmul.f32 %v1573, %v1643
        %v1652 = vmul.f32 %v1575, %v1644
        %v1653 = vmul.f32 %v1577, %v1645
        %v1654 = vmul.f32 %v1579, %v1646
        %v1655 = vmul.f32 %v1581, %v1647
        %v1656 = vmul.f32 %v1583, %v1648
        %v1657 = vmul.f32 %v1585, %v1649
        %1659 = vrot.lane.b32.xlu0 %v1405, 120
        %v1660 = vpop.permute.xlu0 %1659
        %v1662 = vmul.f32 %v1650, %v1660
        %v1663 = vmul.f32 %v1651, %v1660
        %v1664 = vmul.f32 %v1652, %v1660
        %v1665 = vmul.f32 %v1653, %v1660
        %v1666 = vmul.f32 %v1654, %v1660
        %v1667 = vmul.f32 %v1655, %v1660
        %v1668 = vmul.f32 %v1656, %v1660
        %v1669 = vmul.f32 %v1657, %v1660
        %v1670 = vsel %vm719, %v1662, 0.0
        %v1671 = vrot.slane %v1670, 4
        %v1672 = vadd.f32 %v1670, %v1671
        %v1673 = vrot.slane %v1672, 2
        %v1674 = vadd.f32 %v1672, %v1673
        %v1675 = vrot.slane %v1674, 1
        %v1676 = vadd.f32 %v1674, %v1675
        %v1677 = vsel %vm719, %v1663, 0.0
        %v1678 = vrot.slane %v1677, 4
        %v1679 = vadd.f32 %v1677, %v1678
        %v1680 = vrot.slane %v1679, 2
        %v1681 = vadd.f32 %v1679, %v1680
        %v1682 = vrot.slane %v1681, 1
        %v1683 = vadd.f32 %v1681, %v1682
        %v1684 = vsel %vm719, %v1664, 0.0
        %v1685 = vrot.slane %v1684, 4
        %v1686 = vadd.f32 %v1684, %v1685
        %v1687 = vrot.slane %v1686, 2
        %v1688 = vadd.f32 %v1686, %v1687
        %v1689 = vrot.slane %v1688, 1
        %v1690 = vadd.f32 %v1688, %v1689
        %v1691 = vsel %vm719, %v1665, 0.0
        %v1692 = vrot.slane %v1691, 4
        %v1693 = vadd.f32 %v1691, %v1692
        %v1694 = vrot.slane %v1693, 2
        %v1695 = vadd.f32 %v1693, %v1694
        %v1696 = vrot.slane %v1695, 1
        %v1697 = vadd.f32 %v1695, %v1696
        %v1698 = vsel %vm719, %v1666, 0.0
        %v1699 = vrot.slane %v1698, 4
        %v1700 = vadd.f32 %v1698, %v1699
        %v1701 = vrot.slane %v1700, 2
        %v1702 = vadd.f32 %v1700, %v1701
        %v1703 = vrot.slane %v1702, 1
        %v1704 = vadd.f32 %v1702, %v1703
        %v1705 = vsel %vm719, %v1667, 0.0
        %v1706 = vrot.slane %v1705, 4
        %v1707 = vadd.f32 %v1705, %v1706
        %v1708 = vrot.slane %v1707, 2
        %v1709 = vadd.f32 %v1707, %v1708
        %v1710 = vrot.slane %v1709, 1
        %v1711 = vadd.f32 %v1709, %v1710
        %v1712 = vsel %vm719, %v1668, 0.0
        %v1713 = vrot.slane %v1712, 4
        %v1714 = vadd.f32 %v1712, %v1713
        %v1715 = vrot.slane %v1714, 2
        %v1716 = vadd.f32 %v1714, %v1715
        %v1717 = vrot.slane %v1716, 1
        %v1718 = vadd.f32 %v1716, %v1717
        %v1719 = vsel %vm719, %v1669, 0.0
        %v1720 = vrot.slane %v1719, 4
        %v1721 = vadd.f32 %v1719, %v1720
        %v1722 = vrot.slane %v1721, 2
        %v1723 = vadd.f32 %v1721, %v1722
        %v1724 = vrot.slane %v1723, 1
        %v1725 = vadd.f32 %v1723, %v1724
        %v1726 = vld [vmem:[%s12] sm:$0xff]
        %v1727 = vld [vmem:[%s13] sm:$0x1]
        %v1729 = vlaneseq
        %v1730 = vshrl.u32 %v1729, 7
        %v1731 = vsub.s32 0, %v1730
        %v1732 = vrot.slane %v1727, %v1731
        %v1742 = vsel %vm1129, %v1683, %v1676
        %v1743 = vsel %vm1131, %v1690, %v1742
        %v1744 = vsel %vm1133, %v1697, %v1743
        %v1745 = vsel %vm1135, %v1704, %v1744
        %v1746 = vsel %vm1137, %v1711, %v1745
        %v1747 = vsel %vm1139, %v1718, %v1746
        %v1748 = vsel %vm1141, %v1725, %v1747
        %v1749 = vsel %vm719, %v1748, 0
        %1751 = vmatprep.subr.mxu0 0.0
        %1752 = vmatpush1.msra.mxu0 0.0
        %1753 = vmatprep.subr.mxu0 0.0
        %1754 = vmatpush1.msra.mxu0 0.0
        %1755 = vmatprep.subr.mxu0 0.0
        %1756 = vmatpush1.msra.mxu0 0.0
        %1757 = vmatprep.subr.mxu0 0.0
        %1758 = vmatpush1.msra.mxu0 0.0
        %1759 = vmatprep.subr.mxu0 0.0
        %1760 = vmatpush1.msra.mxu0 0.0
        %1761 = vmatprep.subr.mxu0 0.0
        %1762 = vmatpush1.msra.mxu0 0.0
        %1763 = vmatprep.subr.mxu0 0.0
        %1764 = vmatpush1.msra.mxu0 0.0
        %1765 = vmatprep.subr.mxu0 0.0
        %1766 = vmatpush1.msra.mxu0 0.0
        %1767 = vmatprep.subr.mxu0 0.0
        %1768 = vmatpush1.msra.mxu0 0.0
        %1769 = vmatprep.subr.mxu0 0.0
        %1770 = vmatpush1.msra.mxu0 0.0
        %1771 = vmatprep.subr.mxu0 0.0
        %1772 = vmatpush1.msra.mxu0 0.0
        %1773 = vmatprep.subr.mxu0 0.0
        %1774 = vmatpush1.msra.mxu0 0.0
        %1775 = vmatprep.subr.mxu0 0.0
        %1776 = vmatpush1.msra.mxu0 0.0
        %1777 = vmatprep.subr.mxu0 0.0
        %1778 = vmatpush1.msra.mxu0 0.0
        %1779 = vmatprep.subr.mxu0 0.0
        %1780 = vmatpush1.msra.mxu0 0.0
        %1781 = vmatprep.subr.mxu0 0.0
        %1782 = vmatpush1.msra.mxu0 %v1726
        %1783 = vmatprep.subr.mxu0 0.0
        %1784 = vmatpush2.msra.mxu0 0.0
        %1785 = vmatprep.subr.mxu0 0.0
        %1786 = vmatpush2.msra.mxu0 0.0
        %1787 = vmatprep.subr.mxu0 0.0
        %1788 = vmatpush2.msra.mxu0 0.0
        %1789 = vmatprep.subr.mxu0 0.0
        %1790 = vmatpush2.msra.mxu0 0.0
        %1791 = vmatprep.subr.mxu0 0.0
        %1792 = vmatpush2.msra.mxu0 0.0
        %1793 = vmatprep.subr.mxu0 0.0
        %1794 = vmatpush2.msra.mxu0 0.0
        %1795 = vmatprep.subr.mxu0 0.0
        %1796 = vmatpush2.msra.mxu0 0.0
        %1797 = vmatprep.subr.mxu0 0.0
        %1798 = vmatpush2.msra.mxu0 0.0
        %1799 = vmatprep.subr.mxu0 0.0
        %1800 = vmatpush2.msra.mxu0 0.0
        %1801 = vmatprep.subr.mxu0 0.0
        %1802 = vmatpush2.msra.mxu0 0.0
        %1803 = vmatprep.subr.mxu0 0.0
        %1804 = vmatpush2.msra.mxu0 0.0
        %1805 = vmatprep.subr.mxu0 0.0
        %1806 = vmatpush2.msra.mxu0 0.0
        %1807 = vmatprep.subr.mxu0 0.0
        %1808 = vmatpush2.msra.mxu0 0.0
        %1809 = vmatprep.subr.mxu0 0.0
        %1810 = vmatpush2.msra.mxu0 0.0
        %1811 = vmatprep.subr.mxu0 0.0
        %1812 = vmatpush2.msra.mxu0 0.0
        %1813 = vmatprep.subr.mxu0 0.0
        %1814 = vmatpush2.msra.mxu0 0.0
        %1815 = vmatprep.mubr.f32.mxu0 0.0
        %1816 = vmatmul.mubr.f32.gmra.mxu0 %v1749
        %v1817 = vpop.f32.mrf.mxu0
        %v1818 = vadd.f32 %v1732, %v1817
        %v1819 = vpop.f32.mrf.mxu0
        %1820 = vdwg.mxu0
        %v1821 = vadd.f32 %v1245, %v1818
        %v1822 = vld [vmem:[%s14] sm:$0x1]
        %v1823 = vld [vmem:[%s15] sm:$0x1]
        %v1824 = vsel %vm719, %v1821, 0.0
        %1825 = vadd.xlane.f32.xlu0 %v1824
        %v1826 = vpop.xlane.xlu0 %1825
        %v1827 = vmul.f32 %v1826, %v1221
        %v1828 = vsub.f32 %v1821, %v1827
        %v1829 = vmul.f32 %v1828, %v1828
        %v1830 = vsel %vm719, %v1829, 0.0
        %1831 = vadd.xlane.f32.xlu0 %v1830
        %v1832 = vpop.xlane.xlu0 %1831
        %v1833 = vmul.f32 %v1832, %v1221
        %v1834 = vadd.f32 %v1833, 1e-05
        %v1835 = vrsqrt.pop %v1834
        %v1836 = vmul.f32 %v1828, %v1835
        %v1838 = vlaneseq
        %v1839 = vshrl.u32 %v1838, 7
        %v1840 = vsub.s32 0, %v1839
        %v1841 = vrot.slane %v1822, %v1840
        %v1843 = vmul.f32 %v1836, %v1841
        %v1845 = vlaneseq
        %v1846 = vshrl.u32 %v1845, 7
        %v1847 = vsub.s32 0, %v1846
        %v1848 = vrot.slane %v1823, %v1847
        %v1850 = vadd.f32 %v1843, %v1848
        %v1851 = vld [vmem:[%s16] sm:$0xff]
        %v1852 = vld [vmem:[%s17] sm:$0x1]
        %v1854 = vlaneseq
        %v1855 = vshrl.u32 %v1854, 7
        %v1856 = vsub.s32 0, %v1855
        %v1857 = vrot.slane %v1852, %v1856
        %v1860 = vsel %vm719, %v1850, 0
        %1862 = vmatprep.subr.mxu0 0.0
        %1863 = vmatpush1.msra.mxu0 0.0
        %1864 = vmatprep.subr.mxu0 0.0
        %1865 = vmatpush1.msra.mxu0 0.0
        %1866 = vmatprep.subr.mxu0 0.0
        %1867 = vmatpush1.msra.mxu0 0.0
        %1868 = vmatprep.subr.mxu0 0.0
        %1869 = vmatpush1.msra.mxu0 0.0
        %1870 = vmatprep.subr.mxu0 0.0
        %1871 = vmatpush1.msra.mxu0 0.0
        %1872 = vmatprep.subr.mxu0 0.0
        %1873 = vmatpush1.msra.mxu0 0.0
        %1874 = vmatprep.subr.mxu0 0.0
        %1875 = vmatpush1.msra.mxu0 0.0
        %1876 = vmatprep.subr.mxu0 0.0
        %1877 = vmatpush1.msra.mxu0 0.0
        %1878 = vmatprep.subr.mxu0 0.0
        %1879 = vmatpush1.msra.mxu0 0.0
        %1880 = vmatprep.subr.mxu0 0.0
        %1881 = vmatpush1.msra.mxu0 0.0
        %1882 = vmatprep.subr.mxu0 0.0
        %1883 = vmatpush1.msra.mxu0 0.0
        %1884 = vmatprep.subr.mxu0 0.0
        %1885 = vmatpush1.msra.mxu0 0.0
        %1886 = vmatprep.subr.mxu0 0.0
        %1887 = vmatpush1.msra.mxu0 0.0
        %1888 = vmatprep.subr.mxu0 0.0
        %1889 = vmatpush1.msra.mxu0 0.0
        %1890 = vmatprep.subr.mxu0 0.0
        %1891 = vmatpush1.msra.mxu0 0.0
        %1892 = vmatprep.subr.mxu0 0.0
        %1893 = vmatpush1.msra.mxu0 %v1851
        %1894 = vmatprep.subr.mxu0 0.0
        %1895 = vmatpush2.msra.mxu0 0.0
        %1896 = vmatprep.subr.mxu0 0.0
        %1897 = vmatpush2.msra.mxu0 0.0
        %1898 = vmatprep.subr.mxu0 0.0
        %1899 = vmatpush2.msra.mxu0 0.0
        %1900 = vmatprep.subr.mxu0 0.0
        %1901 = vmatpush2.msra.mxu0 0.0
        %1902 = vmatprep.subr.mxu0 0.0
        %1903 = vmatpush2.msra.mxu0 0.0
        %1904 = vmatprep.subr.mxu0 0.0
        %1905 = vmatpush2.msra.mxu0 0.0
        %1906 = vmatprep.subr.mxu0 0.0
        %1907 = vmatpush2.msra.mxu0 0.0
        %1908 = vmatprep.subr.mxu0 0.0
        %1909 = vmatpush2.msra.mxu0 0.0
        %1910 = vmatprep.subr.mxu0 0.0
        %1911 = vmatpush2.msra.mxu0 0.0
        %1912 = vmatprep.subr.mxu0 0.0
        %1913 = vmatpush2.msra.mxu0 0.0
        %1914 = vmatprep.subr.mxu0 0.0
        %1915 = vmatpush2.msra.mxu0 0.0
        %1916 = vmatprep.subr.mxu0 0.0
        %1917 = vmatpush2.msra.mxu0 0.0
        %1918 = vmatprep.subr.mxu0 0.0
        %1919 = vmatpush2.msra.mxu0 0.0
        %1920 = vmatprep.subr.mxu0 0.0
        %1921 = vmatpush2.msra.mxu0 0.0
        %1922 = vmatprep.subr.mxu0 0.0
        %1923 = vmatpush2.msra.mxu0 0.0
        %1924 = vmatprep.subr.mxu0 0.0
        %1925 = vmatpush2.msra.mxu0 0.0
        %1926 = vmatprep.mubr.f32.mxu0 0.0
        %1927 = vmatmul.mubr.f32.gmra.mxu0 %v1860
        %v1928 = vpop.f32.mrf.mxu0
        %v1929 = vadd.f32 %v1857, %v1928
        %v1930 = vpop.f32.mrf.mxu0
        %1931 = vdwg.mxu0
        %v1932 = vmax.f32 %v1929, 0.0
        %v1933 = vld [vmem:[%s18] sm:$0xff]
        %v1934 = vld [vmem:[%s18 + $0x8] sm:$0xff]
        %v1935 = vld [vmem:[%s18 + $0x10] sm:$0xff]
        %v1936 = vld [vmem:[%s18 + $0x18] sm:$0xff]
        %v1937 = vld [vmem:[%s19] sm:$0x1]
        %v1939 = vlaneseq
        %v1940 = vshrl.u32 %v1939, 7
        %v1941 = vsub.s32 0, %v1940
        %v1942 = vrot.slane %v1937, %v1941
        %vm1944 = vcmask 261120
        %v1946 = vsel %vm1944, %v1932, 0
        %1948 = vmatprep.subr.mxu0 0.0
        %1949 = vmatpush1.msra.mxu0 0.0
        %1950 = vmatprep.subr.mxu0 0.0
        %1951 = vmatpush1.msra.mxu0 0.0
        %1952 = vmatprep.subr.mxu0 0.0
        %1953 = vmatpush1.msra.mxu0 0.0
        %1954 = vmatprep.subr.mxu0 0.0
        %1955 = vmatpush1.msra.mxu0 0.0
        %1956 = vmatprep.subr.mxu0 0.0
        %1957 = vmatpush1.msra.mxu0 0.0
        %1958 = vmatprep.subr.mxu0 0.0
        %1959 = vmatpush1.msra.mxu0 0.0
        %1960 = vmatprep.subr.mxu0 0.0
        %1961 = vmatpush1.msra.mxu0 0.0
        %1962 = vmatprep.subr.mxu0 0.0
        %1963 = vmatpush1.msra.mxu0 0.0
        %1964 = vmatprep.subr.mxu0 0.0
        %1965 = vmatpush1.msra.mxu0 0.0
        %1966 = vmatprep.subr.mxu0 0.0
        %1967 = vmatpush1.msra.mxu0 0.0
        %1968 = vmatprep.subr.mxu0 0.0
        %1969 = vmatpush1.msra.mxu0 0.0
        %1970 = vmatprep.subr.mxu0 0.0
        %1971 = vmatpush1.msra.mxu0 0.0
        %1972 = vmatprep.subr.mxu0 0.0
        %1973 = vmatpush1.msra.mxu0 %v1936
        %1974 = vmatprep.subr.mxu0 0.0
        %1975 = vmatpush1.msra.mxu0 %v1935
        %1976 = vmatprep.subr.mxu0 0.0
        %1977 = vmatpush1.msra.mxu0 %v1934
        %1978 = vmatprep.subr.mxu0 0.0
        %1979 = vmatpush1.msra.mxu0 %v1933
        %1980 = vmatprep.subr.mxu0 0.0
        %1981 = vmatpush2.msra.mxu0 0.0
        %1982 = vmatprep.subr.mxu0 0.0
        %1983 = vmatpush2.msra.mxu0 0.0
        %1984 = vmatprep.subr.mxu0 0.0
        %1985 = vmatpush2.msra.mxu0 0.0
        %1986 = vmatprep.subr.mxu0 0.0
        %1987 = vmatpush2.msra.mxu0 0.0
        %1988 = vmatprep.subr.mxu0 0.0
        %1989 = vmatpush2.msra.mxu0 0.0
        %1990 = vmatprep.subr.mxu0 0.0
        %1991 = vmatpush2.msra.mxu0 0.0
        %1992 = vmatprep.subr.mxu0 0.0
        %1993 = vmatpush2.msra.mxu0 0.0
        %1994 = vmatprep.subr.mxu0 0.0
        %1995 = vmatpush2.msra.mxu0 0.0
        %1996 = vmatprep.subr.mxu0 0.0
        %1997 = vmatpush2.msra.mxu0 0.0
        %1998 = vmatprep.subr.mxu0 0.0
        %1999 = vmatpush2.msra.mxu0 0.0
        %2000 = vmatprep.subr.mxu0 0.0
        %2001 = vmatpush2.msra.mxu0 0.0
        %2002 = vmatprep.subr.mxu0 0.0
        %2003 = vmatpush2.msra.mxu0 0.0
        %2004 = vmatprep.subr.mxu0 0.0
        %2005 = vmatpush2.msra.mxu0 0.0
        %2006 = vmatprep.subr.mxu0 0.0
        %2007 = vmatpush2.msra.mxu0 0.0
        %2008 = vmatprep.subr.mxu0 0.0
        %2009 = vmatpush2.msra.mxu0 0.0
        %2010 = vmatprep.subr.mxu0 0.0
        %2011 = vmatpush2.msra.mxu0 0.0
        %2012 = vmatprep.mubr.f32.mxu0 0.0
        %2013 = vmatmul.mubr.f32.gmra.mxu0 %v1946
        %v2014 = vpop.f32.mrf.mxu0
        %v2015 = vadd.f32 %v1942, %v2014
        %v2016 = vpop.f32.mrf.mxu0
        %2017 = vdwg.mxu0
        %v2018 = vadd.f32 %v1850, %v2015
        %v2019 = vld [vmem:[%s20] sm:$0x1]
        %v2020 = vld [vmem:[#allocation2] sm:$0x1]
        %v2021 = vsel %vm719, %v2018, 0.0
        %2022 = vadd.xlane.f32.xlu0 %v2021
        %v2023 = vpop.xlane.xlu0 %2022
        %v2024 = vmul.f32 %v2023, %v1221
        %v2025 = vsub.f32 %v2018, %v2024
        %v2026 = vmul.f32 %v2025, %v2025
        %v2027 = vsel %vm719, %v2026, 0.0
        %2028 = vadd.xlane.f32.xlu0 %v2027
        %v2029 = vpop.xlane.xlu0 %2028
        %v2030 = vmul.f32 %v2029, %v1221
        %v2031 = vadd.f32 %v2030, 1e-05
        %v2032 = vrsqrt.pop %v2031
        %v2033 = vmul.f32 %v2025, %v2032
        %v2035 = vlaneseq
        %v2036 = vshrl.u32 %v2035, 7
        %v2037 = vsub.s32 0, %v2036
        %v2038 = vrot.slane %v2019, %v2037
        %v2040 = vmul.f32 %v2033, %v2038
        %v2042 = vlaneseq
        %v2043 = vshrl.u32 %v2042, 7
        %v2044 = vsub.s32 0, %v2043
        %v2045 = vrot.slane %v2020, %v2044
        %v2047 = vadd.f32 %v2040, %v2045
        %2048 = vst.msk [vmem:[%s708] sm:$0xff] %vm719, %v2047
        %p2049 = scmp.lt.s32.totalorder %s34, 1
        %s2050 = scalar_select %p2049, %s34, 1
        %s2051 = smul.addr %s2050, 8
        %s2052 = scalar_lea.vmem %s22, %s2051
        // Predicated region
        $region113: #{optimated_transformer_forward.12} parent=107 // pred_check
          %p2053 = pneg %p524
        $region114: #{optimated_transformer_forward.12} parent=107 // pred_check_branch
          %2055 = sbr.rel (%p2053) target = $region116
        $region115: #{optimated_transformer_forward.12} parent=107 // pred_region
          _
        $region116: #{optimated_transformer_forward.12} parent=107 // pred_fallthru
          _
      $region108: #{optimated_transformer_forward.12} parent=5 // pred_fallthru
        _
      %p2056 = scmp.le.s32.totalorder 2, %s29
      // Predicated region
      $region117: #{optimated_transformer_forward.12} parent=5 // pred_check
        %p2057 = pneg %p2056
      $region118: #{optimated_transformer_forward.12} parent=5 // pred_check_branch
        %2059 = sbr.rel (%p2057) target = $region120
      $region119: #{optimated_transformer_forward.12} parent=5 // pred_region
        %s2060 = ssub.s32 %s29, 2
        // Predicated region
        $region121: #{optimated_transformer_forward.12} parent=119 // pred_check
          %p2061 = pneg %p530
        $region122: #{optimated_transformer_forward.12} parent=119 // pred_check_branch
          %2063 = sbr.rel (%p2061) target = $region124
        $region123: #{optimated_transformer_forward.12} parent=119 // pred_region
          %p2064 = scmp.lt.s32.totalorder %s35, 1
          %s2065 = scalar_select %p2064, %s35, 1
          %s2066 = smul.addr %s2065, 8
          %s2067 = scalar_lea.vmem %s22, %s2066
        $region124: #{optimated_transformer_forward.12} parent=119 // pred_fallthru
          _
      $region120: #{optimated_transformer_forward.12} parent=5 // pred_fallthru
        _
    $region6: #{optimated_transformer_forward.12} parent=1 // loop_footer
      %s33 = sadd.s32 1, %s29
    $region7: #{optimated_transformer_forward.12} parent=1 // loop_footer_branch
      %28 = sbr.rel target = $region3
    $region8: #{optimated_transformer_forward.12} parent=1 // loop_exit
      _
    %2068 = vsyncpa [#allocation3], 1
    %s2069 = scalar_lea.sflag [#allocation3], 1
    %2070 = vsyncpa %s2069, 1

</llo_original>
